<compile_context>
chip_gen: v6e
topology: v6e:2x2x1
jax: 0.10.0
libtpu: 0.0.40
codegen_flags: <defaults>
</compile_context>

<pallas_src>
import functools

import jax
import jax.numpy as jnp
from jax.experimental import pallas as pl
from jax.experimental.pallas import tpu as pltpu

EPS = 1e-5
EXPANSION = 4
LANE = 128      # channel dims padded to multiples of this (lane-dense stores)
SUBLANE = 8


def _round_up(x, m):
    return (x + m - 1) // m * m


@functools.lru_cache(maxsize=None)
def _vmem_capacity_bytes():
    # Generation-aware budget (v5e/v6e: 128 MiB, v7x: 64 MiB).  Falls back to a
    # conservative 64 MiB if the query is unavailable on this jax version.
    try:
        return int(pltpu.get_tpu_info().vmem_capacity_bytes)
    except Exception:
        return 64 * 1024 * 1024


def _vmem_limit_bytes():
    # Leave >=25% headroom for Mosaic-internal scratch; never request more than 96 MiB.
    return min(_vmem_capacity_bytes() * 3 // 4, 96 * 1024 * 1024)


def _default_tile_m():
    # 1024-row tiles on 128-MiB-VMEM parts (v5e/v6e), 512 on 64-MiB parts (v7x).
    return 1024 if _vmem_capacity_bytes() >= 100 * 1024 * 1024 else 512


def _compiler_params():
    return pltpu.CompilerParams(
        dimension_semantics=("parallel",),      # row/batch grid axis is independent
        vmem_limit_bytes=_vmem_limit_bytes(),
    )


def _cost_estimate(flops, bytes_accessed):
    try:
        return pl.CostEstimate(flops=int(flops), transcendentals=0,
                               bytes_accessed=int(bytes_accessed))
    except Exception:   # older jax without pl.CostEstimate -> just skip the hint
        return None


# --------------------------------- kernels -----------------------------------

def _matmul_stats_kernel(x_ref, w_ref, y_ref, psum_ref, psq_ref):
    """y = x @ w (bf16 operands, f32 accumulation), stored as bf16 to halve the HBM
    round trip; per-tile column sum / sum-of-squares come from the f32 accumulator.
    Zero-padded input rows produce zero outputs, so they do not perturb the stats."""
    y = jnp.dot(x_ref[...], w_ref[...], preferred_element_type=jnp.float32)
    y_ref[...] = y.astype(y_ref.dtype)
    psum_ref[...] = jnp.sum(y, axis=0).reshape(1, 1, -1)
    psq_ref[...] = jnp.sum(y * y, axis=0).reshape(1, 1, -1)


def _conv2_halo_kernel(y1_ref, s1_ref, b1_ref, w2_ref, y2_ref, psum_ref, psq_ref,
                       xpad_ref, *, h, w):
    """Fused bn1 + relu + 3x3 / stride-1 / pad-1 conv for one batch element.

    The raw conv1 output (1, h, w, C) is normalized in f32 on the VPU, the zero-padded
    halo slab is assembled in a VMEM scratch (so the conv sees zero padding *after*
    bn+relu, matching the reference), and the convolution is nine shifted MXU matmuls
    accumulated in f32.  bn2 partial stats are emitted from the f32 accumulator.
    No im2col tensor ever touches HBM."""
    c = y1_ref.shape[-1]
    cout = w2_ref.shape[-1]
    x = y1_ref[0].astype(jnp.float32)                         # (h, w, c)
    x = jnp.maximum(x * s1_ref[0] + b1_ref[0], 0.0)           # bn1 + relu (f32 VPU)
    xpad_ref[...] = jnp.zeros_like(xpad_ref)
    xpad_ref[1:h + 1, 1:w + 1, :] = x.astype(xpad_ref.dtype)
    acc = jnp.zeros((h * w, cout), jnp.float32)
    for dy in range(3):
        for dx in range(3):
            win = xpad_ref[dy:dy + h, dx:dx + w, :]           # (h, w, c) bf16 view load
            acc = acc + jnp.dot(win.reshape(h * w, c), w2_ref[dy * 3 + dx],
                                preferred_element_type=jnp.float32)
    y2_ref[...] = acc.reshape(1, h, w, cout).astype(y2_ref.dtype)
    psum_ref[...] = jnp.sum(acc, axis=0).reshape(1, 1, -1)
    psq_ref[...] = jnp.sum(acc * acc, axis=0).reshape(1, 1, -1)


def _bn_relu_kernel(y_ref, scale_ref, shift_ref, h_ref):
    """h = relu(y * scale + shift)  (bf16 in, f32 VPU math, bf16 out).
    Only used by the stride>1 im2col fallback path."""
    hval = jnp.maximum(y_ref[...].astype(jnp.float32) * scale_ref[...] + shift_ref[...],
                       0.0)
    h_ref[...] = hval.astype(h_ref.dtype)


def _bn_relu_matmul_stats_kernel(y_ref, scale_ref, shift_ref, w_ref,
                                 o_ref, psum_ref, psq_ref, *,
                                 valid_rows, tile_rows, need_mask):
    """Fused bn2 + relu (f32 VPU) -> bf16 -> conv3 (1x1) MXU matmul + bn3 partials.
    Tile-padding rows are zeroed before the matmul so relu(0*scale+shift) cannot
    contaminate the bn3 statistics."""
    hval = jnp.maximum(y_ref[...].astype(jnp.float32) * scale_ref[...] + shift_ref[...],
                       0.0)
    if need_mask:
        row = (pl.program_id(0) * tile_rows
               + jax.lax.broadcasted_iota(jnp.int32, (tile_rows, 1), 0))
        hval = jnp.where(row < valid_rows, hval, 0.0)
    o = jnp.dot(hval.astype(w_ref.dtype), w_ref[...], preferred_element_type=jnp.float32)
    o_ref[...] = o.astype(o_ref.dtype)
    psum_ref[...] = jnp.sum(o, axis=0).reshape(1, 1, -1)
    psq_ref[...] = jnp.sum(o * o, axis=0).reshape(1, 1, -1)


def _finalize_kernel(y3_ref, s3_ref, b3_ref, ysc_ref, ss_ref, bs_ref, out_ref, *pre_refs):
    """bn3 + (bn_shortcut | identity) + residual add + relu.  The identity shortcut is
    expressed with scale=1 / shift=0 so one kernel serves both variants.  `pre` (f32)
    is written only when the block is the last one; `out` is bf16."""
    pre = (y3_ref[...].astype(jnp.float32) * s3_ref[...] + b3_ref[...]
           + ysc_ref[...].astype(jnp.float32) * ss_ref[...] + bs_ref[...])
    for pre_ref in pre_refs:
        pre_ref[...] = pre
    out_ref[...] = jnp.maximum(pre, 0.0).astype(out_ref.dtype)


# ----------------------------- pallas_call wrappers ---------------------------

def matmul_with_stats(x, w, tile_m):
    """x: (Mp, K) bf16 (rows padded to a tile multiple), w: (K, C) bf16.
    Returns y (Mp, C) bf16 and f32 column sum / sum-of-squares over all rows."""
    m, k = x.shape
    c = w.shape[1]
    grid = m // tile_m
    y, psum, psq = pl.pallas_call(
        _matmul_stats_kernel,
        grid=(grid,),
        in_specs=[pl.BlockSpec((tile_m, k), lambda i: (i, 0)),
                  pl.BlockSpec((k, c), lambda i: (0, 0))],
        out_specs=(pl.BlockSpec((tile_m, c), lambda i: (i, 0)),
                   pl.BlockSpec((1, 1, c), lambda i: (i, 0, 0)),
                   pl.BlockSpec((1, 1, c), lambda i: (i, 0, 0))),
        out_shape=(jax.ShapeDtypeStruct((m, c), jnp.bfloat16),
                   jax.ShapeDtypeStruct((grid, 1, c), jnp.float32),
                   jax.ShapeDtypeStruct((grid, 1, c), jnp.float32)),
        compiler_params=_compiler_params(),
        cost_estimate=_cost_estimate(2 * m * k * c + 3 * m * c,
                                     (m * k + k * c + m * c) * 2 + 2 * grid * c * 4),
    )(x, w)
    return y, jnp.sum(psum, axis=(0, 1)), jnp.sum(psq, axis=(0, 1))


def conv2_bn1_relu_halo(y1_img, scale1, shift1, w2_taps):
    """Fused bn1+relu + 3x3 stride-1 pad-1 conv.  Grid over batch; the (h, w, C) image
    of one batch element is VMEM-resident and the conv is 9 shifted MXU dots."""
    n, h, w, c = y1_img.shape
    cout = w2_taps.shape[-1]
    kern = functools.partial(_conv2_halo_kernel, h=h, w=w)
    flops = 2 * n * h * w * 9 * c * cout + 3 * n * h * w * c
    bytes_acc = (n * h * w * c + 9 * c * cout + n * h * w * cout) * 2 + 2 * n * cout * 4
    y2, psum, psq = pl.pallas_call(
        kern,
        grid=(n,),
        in_specs=[pl.BlockSpec((1, h, w, c), lambda b: (b, 0, 0, 0)),
                  pl.BlockSpec((1, c), lambda b: (0, 0)),
                  pl.BlockSpec((1, c), lambda b: (0, 0)),
                  pl.BlockSpec((9, c, cout), lambda b: (0, 0, 0))],
        out_specs=(pl.BlockSpec((1, h, w, cout), lambda b: (b, 0, 0, 0)),
                   pl.BlockSpec((1, 1, cout), lambda b: (b, 0, 0)),
                   pl.BlockSpec((1, 1, cout), lambda b: (b, 0, 0))),
        out_shape=(jax.ShapeDtypeStruct((n, h, w, cout), jnp.bfloat16),
                   jax.ShapeDtypeStruct((n, 1, cout), jnp.float32),
                   jax.ShapeDtypeStruct((n, 1, cout), jnp.float32)),
        scratch_shapes=[pltpu.VMEM((h + 2, w + 2, c), jnp.bfloat16)],
        compiler_params=_compiler_params(),
        cost_estimate=_cost_estimate(flops, bytes_acc),
    )(y1_img, scale1, shift1, w2_taps)
    return y2, jnp.sum(psum, axis=(0, 1)), jnp.sum(psq, axis=(0, 1))


def bn_relu(y, scale, shift, tile_m):
    m, c = y.shape
    grid = m // tile_m
    return pl.pallas_call(
        _bn_relu_kernel,
        grid=(grid,),
        in_specs=[pl.BlockSpec((tile_m, c), lambda i: (i, 0)),
                  pl.BlockSpec((1, c), lambda i: (0, 0)),
                  pl.BlockSpec((1, c), lambda i: (0, 0))],
        out_specs=pl.BlockSpec((tile_m, c), lambda i: (i, 0)),
        out_shape=jax.ShapeDtypeStruct((m, c), jnp.bfloat16),
        compiler_params=_compiler_params(),
    )(y, scale, shift)


def bn_relu_matmul_with_stats(y, scale, shift, w, tile_m, valid_rows):
    m, k = y.shape
    c = w.shape[1]
    grid = m // tile_m
    kern = functools.partial(_bn_relu_matmul_stats_kernel, valid_rows=valid_rows,
                             tile_rows=tile_m, need_mask=(m != valid_rows))
    o, psum, psq = pl.pallas_call(
        kern,
        grid=(grid,),
        in_specs=[pl.BlockSpec((tile_m, k), lambda i: (i, 0)),
                  pl.BlockSpec((1, k), lambda i: (0, 0)),
                  pl.BlockSpec((1, k), lambda i: (0, 0)),
                  pl.BlockSpec((k, c), lambda i: (0, 0))],
        out_specs=(pl.BlockSpec((tile_m, c), lambda i: (i, 0)),
                   pl.BlockSpec((1, 1, c), lambda i: (i, 0, 0)),
                   pl.BlockSpec((1, 1, c), lambda i: (i, 0, 0))),
        out_shape=(jax.ShapeDtypeStruct((m, c), jnp.bfloat16),
                   jax.ShapeDtypeStruct((grid, 1, c), jnp.float32),
                   jax.ShapeDtypeStruct((grid, 1, c), jnp.float32)),
        compiler_params=_compiler_params(),
        cost_estimate=_cost_estimate(2 * m * k * c + 6 * m * k,
                                     (m * k + k * c + m * c) * 2 + 2 * grid * c * 4),
    )(y, scale, shift, w)
    return o, jnp.sum(psum, axis=(0, 1)), jnp.sum(psq, axis=(0, 1))


def finalize(y3, s3, b3, ysc, ss, bs, tile_m, want_pre):
    m, c = y3.shape
    grid = m // tile_m
    row = pl.BlockSpec((tile_m, c), lambda i: (i, 0))
    vec = pl.BlockSpec((1, c), lambda i: (0, 0))
    out_specs = [pl.BlockSpec((tile_m, c), lambda i: (i, 0))]
    out_shape = [jax.ShapeDtypeStruct((m, c), jnp.bfloat16)]
    if want_pre:
        out_specs.append(pl.BlockSpec((tile_m, c), lambda i: (i, 0)))
        out_shape.append(jax.ShapeDtypeStruct((m, c), jnp.float32))
    res = pl.pallas_call(
        _finalize_kernel,
        grid=(grid,),
        in_specs=[row, vec, vec, row, vec, vec],
        out_specs=tuple(out_specs),
        out_shape=tuple(out_shape),
        compiler_params=_compiler_params(),
    )(y3, s3, b3, ysc, ss, bs)
    if want_pre:
        return res[0], res[1]
    out = res[0] if isinstance(res, (tuple, list)) else res
    return out, None


# ---------------------------------- glue --------------------------------------

def _pad2d(a, rows, cols, dtype=None):
    out = jnp.pad(a, ((0, rows - a.shape[0]), (0, cols - a.shape[1])))
    return out if dtype is None else out.astype(dtype)


def _pad_vec(v, c):
    return jnp.pad(v, (0, c - v.shape[0]))


def _bn_scale_shift(col_sum, col_sq, count, gamma_p, beta_p):
    """One-pass training-mode BN statistics -> per-channel affine (f32).
    # TODO(synk): switch to a two-level (count, mean, M2) combine for very large M."""
    mean = col_sum / count
    var = jnp.maximum(col_sq / count - mean * mean, 0.0)    # biased variance
    scale = gamma_p * jax.lax.rsqrt(var + EPS)
    shift = beta_p - mean * scale
    return scale.reshape(1, -1), shift.reshape(1, -1)


# ------------------------------- full forward ---------------------------------

def bottleneck_forward_nhwc(x_nhwc, p, stride=1, is_last=False, tile_m=None):
    """NHWC-in / NHWC-out Bottleneck forward.  `out` is bf16 (next block casts to bf16
    anyway); `pre` (f32) is returned only when is_last."""
    n, h, w, cin = x_nhwc.shape
    planes = p['conv1_w'].shape[0]
    cout = EXPANSION * planes
    has_proj = 'sc_w' in p
    if not has_proj:
        assert stride == 1 and cin == cout, "identity shortcut requires stride=1, cin==cout"

    if tile_m is None:
        tile_m = _default_tile_m()
    tile_m = _round_up(tile_m, SUBLANE)

    cin_p = _round_up(cin, LANE)
    pln_p = _round_up(planes, LANE)
    cout_p = _round_up(cout, LANE)

    m1 = n * h * w
    ho = (h + 2 - 3) // stride + 1
    wo = (w + 2 - 3) // stride + 1
    m2 = n * ho * wo

    tm1 = min(tile_m, _round_up(m1, SUBLANE))
    tm2 = min(tile_m, _round_up(m2, SUBLANE))
    m1p = _round_up(m1, tm1)
    m2p = _round_up(m2, tm2)

    # -- weights / BN params, padded to lane multiples, MXU operands in bf16 --
    w1 = _pad2d(jnp.transpose(p['conv1_w'][:, :, 0, 0]), cin_p, pln_p, jnp.bfloat16)
    w3 = _pad2d(jnp.transpose(p['conv3_w'][:, :, 0, 0]), pln_p, cout_p, jnp.bfloat16)
    w2 = jnp.transpose(p['conv2_w'], (2, 3, 1, 0))          # (kh, kw, in, out)
    w2 = jnp.pad(w2, ((0, 0), (0, 0), (0, pln_p - planes),
                      (0, pln_p - planes))).astype(jnp.bfloat16)

    g1, b1 = _pad_vec(p['g1'], pln_p), _pad_vec(p['b1'], pln_p)
    g2, b2 = _pad_vec(p['g2'], pln_p), _pad_vec(p['b2'], pln_p)
    g3, b3 = _pad_vec(p['g3'], cout_p), _pad_vec(p['b3'], cout_p)

    # -- stage 1: conv1 (1x1) matmul + bn1 stats (bn1+relu fused into the next kernel) --
    x2d = _pad2d(x_nhwc.reshape(m1, cin), m1p, cin_p, jnp.bfloat16)
    y1, s1, q1 = matmul_with_stats(x2d, w1, tm1)            # (m1p, pln_p) bf16
    sc1, sh1 = _bn_scale_shift(s1, q1, m1, g1, b1)

    # -- stage 2: bn1+relu + 3x3 conv --
    if stride == 1:
        y1_img = y1[:m1].reshape(n, h, w, pln_p)
        w2_taps = w2.reshape(9, pln_p, pln_p)
        y2_img, s2, q2 = conv2_bn1_relu_halo(y1_img, sc1, sh1, w2_taps)
        y2 = y2_img.reshape(m2, pln_p)
        if m2p != m2:
            y2 = jnp.pad(y2, ((0, m2p - m2), (0, 0)))
    else:
        # TODO(synk): stride>1 blocks still use an XLA-glue im2col (the strided halo
        # tap loads need strided VMEM reads); output is 1/stride^2 smaller so the
        # duplication penalty is bounded, but this should move in-kernel too.
        h1 = bn_relu(y1, sc1, sh1, tm1)
        h1_img = h1[:m1].reshape(n, h, w, pln_p)
        h1_pad = jnp.pad(h1_img, ((0, 0), (1, 1), (1, 1), (0, 0)))
        taps = []
        for dy in range(3):
            for dx in range(3):
                win = h1_pad[:, dy:dy + (ho - 1) * stride + 1:stride,
                                dx:dx + (wo - 1) * stride + 1:stride, :]
                taps.append(win.reshape(m2, pln_p))
        x_col = jnp.concatenate(taps, axis=1)               # (m2, 9*pln_p) bf16
        x_col = jnp.pad(x_col, ((0, m2p - m2), (0, 0)))
        y2, s2, q2 = matmul_with_stats(x_col, w2.reshape(9 * pln_p, pln_p), tm2)
    sc2, sh2 = _bn_scale_shift(s2, q2, m2, g2, b2)

    # -- stage 3: bn2 + relu fused into conv3 (1x1) matmul + bn3 stats (mask padded rows) --
    y3, s3, q3 = bn_relu_matmul_with_stats(y2, sc2, sh2, w3, tm2, valid_rows=m2)
    sc3, sh3 = _bn_scale_shift(s3, q3, m2, g3, b3)

    # -- shortcut + finalize (bn3 + shortcut + residual add + relu [+ preact]) --
    xs_img = x_nhwc[:, ::stride, ::stride, :].reshape(m2, cin)
    if has_proj:
        ws = _pad2d(jnp.transpose(p['sc_w'][:, :, 0, 0]), cin_p, cout_p, jnp.bfloat16)
        gs, bsc = _pad_vec(p['gs'], cout_p), _pad_vec(p['bs'], cout_p)
        xs = _pad2d(xs_img, m2p, cin_p, jnp.bfloat16)
        ysc, ssum, qsum = matmul_with_stats(xs, ws, tm2)
        scs, shs = _bn_scale_shift(ssum, qsum, m2, gs, bsc)
    else:
        ysc = _pad2d(xs_img, m2p, cout_p, jnp.bfloat16)     # identity: scale=1, shift=0
        scs = jnp.ones((1, cout_p), jnp.float32)
        shs = jnp.zeros((1, cout_p), jnp.float32)

    out2d, pre2d = finalize(y3, sc3, sh3, ysc, scs, shs, tm2, want_pre=is_last)
    out = out2d[:m2, :cout].reshape(n, ho, wo, cout)
    if is_last:
        pre = pre2d[:m2, :cout].reshape(n, ho, wo, cout)
        return out, pre
    return out


def bottleneck_forward(x_nchw, p, stride=1, is_last=False, tile_m=None):
    """NCHW boundary wrapper matching the PyTorch module.  When stacking blocks, keep
    activations in NHWC/bf16 and call bottleneck_forward_nhwc directly (the layout
    conversion then happens only at network entry/exit)."""
    x_nhwc = jnp.transpose(x_nchw, (0, 2, 3, 1))
    res = bottleneck_forward_nhwc(x_nhwc, p, stride=stride, is_last=is_last, tile_m=tile_m)
    if is_last:
        out, pre = res
        return (jnp.transpose(out, (0, 3, 1, 2)).astype(jnp.float32),
                jnp.transpose(pre, (0, 3, 1, 2)))
    return jnp.transpose(res, (0, 3, 1, 2)).astype(jnp.float32)


# ----------------------------- deterministic params ---------------------------

def init_params(key, in_planes, planes, stride):
    keys = jax.random.split(key, 12)

    def conv_init(k, shape):
        fan_in = shape[1] * shape[2] * shape[3]
        bound = 1.0 / (fan_in ** 0.5)
        return jax.random.uniform(k, shape, jnp.float32, -bound, bound)

    def bn_init(kg, kb, c):
        g = 1.0 + 0.1 * jax.random.normal(kg, (c,), jnp.float32)
        b = 0.1 * jax.random.normal(kb, (c,), jnp.float32)
        return g, b

    p = {}
    p['conv1_w'] = conv_init(keys[0], (planes, in_planes, 1, 1))
    p['g1'], p['b1'] = bn_init(keys[1], keys[2], planes)
    p['conv2_w'] = conv_init(keys[3], (planes, planes, 3, 3))
    p['g2'], p['b2'] = bn_init(keys[4], keys[5], planes)
    p['conv3_w'] = conv_init(keys[6], (EXPANSION * planes, planes, 1, 1))
    p['g3'], p['b3'] = bn_init(keys[7], keys[8], EXPANSION * planes)
    if stride != 1 or in_planes != EXPANSION * planes:
        p['sc_w'] = conv_init(keys[9], (EXPANSION * planes, in_planes, 1, 1))
        p['gs'], p['bs'] = bn_init(keys[10], keys[11], EXPANSION * planes)
    return p


# ------------------------------ pure-JAX reference -----------------------------

def _bn_ref(y, g, b):
    mean = jnp.mean(y, axis=(0, 2, 3), keepdims=True)
    var = jnp.mean((y - mean) ** 2, axis=(0, 2, 3), keepdims=True)
    return (y - mean) / jnp.sqrt(var + EPS) * g.reshape(1, -1, 1, 1) + b.reshape(1, -1, 1, 1)


def _conv_ref(x, w, stride=1, pad=0):
    return jax.lax.conv_general_dilated(
        x, w, (stride, stride), [(pad, pad), (pad, pad)],
        dimension_numbers=('NCHW', 'OIHW', 'NCHW'),
        precision=jax.lax.Precision.HIGHEST)


def bottleneck_ref(x, p, stride, is_last):
    out = jax.nn.relu(_bn_ref(_conv_ref(x, p['conv1_w']), p['g1'], p['b1']))
    out = jax.nn.relu(_bn_ref(_conv_ref(out, p['conv2_w'], stride, 1), p['g2'], p['b2']))
    out = _bn_ref(_conv_ref(out, p['conv3_w']), p['g3'], p['b3'])
    sc = _bn_ref(_conv_ref(x, p['sc_w'], stride), p['gs'], p['bs']) if 'sc_w' in p else x
    pre = out + sc
    out = jax.nn.relu(pre)
    return (out, pre) if is_last else out


# ------------------------------------ main -------------------------------------

if __name__ == "__main__":
    key = jax.random.PRNGKey(0)
    # (in_planes, planes, stride, is_last, tile_m): projection / identity / strided
    # paths, plus one config whose row count is NOT a tile multiple (tile_m=96) to
    # exercise the padded-row masking of the bn3 statistics.
    configs = [
        (4, 4, 1, True, 128),
        (16, 4, 1, True, 128),
        (4, 4, 2, False, 128),
        (4, 4, 1, False, 96),
    ]

    # bf16 MXU operands + bf16 intermediates (f32 stats/elementwise) vs. an f32
    # HIGHEST-precision reference -> tolerance reflects bf16 rounding.
    ATOL = RTOL = 5e-2

    for idx, (in_planes, planes, stride, is_last, tile_m) in enumerate(configs):
        kx, kp = jax.random.split(jax.random.fold_in(key, idx))
        x = jax.random.normal(kx, (2, in_planes, 16, 16), jnp.float32)
        params = init_params(kp, in_planes, planes, stride)

        # Small tile_m keeps the toy problem multi-tile so the pipelined grid path
        # runs; production shapes should use the generation-aware default (tile_m=None).
        fwd = jax.jit(functools.partial(bottleneck_forward, stride=stride,
                                        is_last=is_last, tile_m=tile_m))
        res = fwd(x, params)
        jax.block_until_ready(res)
        ref = bottleneck_ref(x, params, stride, is_last)

        if is_last:
            out, pre = res
            ref_out, ref_pre = ref
            assert out.shape == ref_out.shape, (out.shape, ref_out.shape)
            assert jnp.allclose(out, ref_out, atol=ATOL, rtol=RTOL)
            assert jnp.allclose(pre, ref_pre, atol=ATOL, rtol=RTOL)
        else:
            out, ref_out = res, ref
            assert out.shape == ref_out.shape, (out.shape, ref_out.shape)
            assert jnp.allclose(out, ref_out, atol=ATOL, rtol=RTOL)

    print("KERNEL_OK")
</pallas_src>

<mosaic_0001>
module attributes {stable_mosaic.version = 11 : i64} {
  func.func @_matmul_stats_kernel(%arg0: i32, %arg1: memref<128x128xbf16, #tpu.memory_space<vmem>>, %arg2: memref<128x128xbf16, #tpu.memory_space<vmem>>, %arg3: memref<128x128xbf16, #tpu.memory_space<vmem>>, %arg4: memref<1x1x128xf32, #tpu.memory_space<vmem>>, %arg5: memref<1x1x128xf32, #tpu.memory_space<vmem>>) attributes {dimension_semantics = [#tpu.dimension_semantics<parallel>], iteration_bounds = array<i64: 4>, scalar_prefetch = 0 : i64, scratch_operands = 0 : i64, tpu.core_type = #tpu.core_type<tc>, window_params = [{transform_indices = @transform_0, window_bounds = array<i64: 128, 128>}, {pipeline_mode = #tpu.pipeline_mode<synchronous>, transform_indices = @transform_1, window_bounds = array<i64: 128, 128>}, {transform_indices = @transform_2, window_bounds = array<i64: 128, 128>}, {transform_indices = @transform_3, window_bounds = array<i64: 1, 1, 128>}, {transform_indices = @transform_4, window_bounds = array<i64: 1, 1, 128>}]} {
    %c0 = arith.constant 0 : index
    %c0_0 = arith.constant 0 : index
    %0 = vector.load %arg1[%c0, %c0_0] : memref<128x128xbf16, #tpu.memory_space<vmem>>, vector<128x128xbf16>
    %c0_1 = arith.constant 0 : index
    %c0_2 = arith.constant 0 : index
    %1 = vector.load %arg2[%c0_1, %c0_2] : memref<128x128xbf16, #tpu.memory_space<vmem>>, vector<128x128xbf16>
    %cst = arith.constant dense<0.000000e+00> : vector<128x128xf32>
    %2 = tpu.matmul %0, %1, %cst {dimension_numbers = #tpu.dot_dimension_numbers<[1], [0], [0], [1], [0, 0, 1, 1], [], []>} : vector<128x128xbf16>, vector<128x128xbf16>, vector<128x128xf32> -> vector<128x128xf32>
    %3 = arith.truncf %2 : vector<128x128xf32> to vector<128x128xbf16>
    %c0_3 = arith.constant 0 : index
    %c0_4 = arith.constant 0 : index
    %4 = vector.load %arg3[%c0_3, %c0_4] : memref<128x128xbf16, #tpu.memory_space<vmem>>, vector<128x128xbf16>
    tpu.vector_store %arg3[%c0_3, %c0_4], %3 {strides = array<i32>} : memref<128x128xbf16, #tpu.memory_space<vmem>>, vector<128x128xbf16>,
    %cst_5 = arith.constant dense<0.000000e+00> : vector<128xf32>
    %5 = vector.multi_reduction <add>, %2, %cst_5 [0] : vector<128x128xf32> to vector<128xf32>
    %6 = vector.shape_cast %5 : vector<128xf32> to vector<1x1x128xf32>
    %c0_6 = arith.constant 0 : index
    %c0_7 = arith.constant 0 : index
    %c0_8 = arith.constant 0 : index
    %7 = vector.load %arg4[%c0_6, %c0_7, %c0_8] : memref<1x1x128xf32, #tpu.memory_space<vmem>>, vector<1x1x128xf32>
    tpu.vector_store %arg4[%c0_6, %c0_7, %c0_8], %6 {strides = array<i32>} : memref<1x1x128xf32, #tpu.memory_space<vmem>>, vector<1x1x128xf32>,
    %8 = arith.mulf %2, %2 : vector<128x128xf32>
    %cst_9 = arith.constant dense<0.000000e+00> : vector<128xf32>
    %9 = vector.multi_reduction <add>, %8, %cst_9 [0] : vector<128x128xf32> to vector<128xf32>
    %10 = vector.shape_cast %9 : vector<128xf32> to vector<1x1x128xf32>
    %c0_10 = arith.constant 0 : index
    %c0_11 = arith.constant 0 : index
    %c0_12 = arith.constant 0 : index
    %11 = vector.load %arg5[%c0_10, %c0_11, %c0_12] : memref<1x1x128xf32, #tpu.memory_space<vmem>>, vector<1x1x128xf32>
    tpu.vector_store %arg5[%c0_10, %c0_11, %c0_12], %10 {strides = array<i32>} : memref<1x1x128xf32, #tpu.memory_space<vmem>>, vector<1x1x128xf32>,
    return
  }
  func.func @transform_0(%arg0: i32) -> (i32, i32) {
    %c0_i32 = arith.constant 0 : i32
    %c0_i32_0 = arith.constant 0 : i32
    return %arg0, %c0_i32 : i32, i32
  }
  func.func @transform_1(%arg0: i32) -> (i32, i32) {
    %c0_i32 = arith.constant 0 : i32
    %c0_i32_0 = arith.constant 0 : i32
    %c0_i32_1 = arith.constant 0 : i32
    return %c0_i32, %c0_i32_0 : i32, i32
  }
  func.func @transform_2(%arg0: i32) -> (i32, i32) {
    %c0_i32 = arith.constant 0 : i32
    %c0_i32_0 = arith.constant 0 : i32
    return %arg0, %c0_i32 : i32, i32
  }
  func.func @transform_3(%arg0: i32) -> (i32, i32, i32) {
    %c0_i32 = arith.constant 0 : i32
    %c0_i32_0 = arith.constant 0 : i32
    %c0_i32_1 = arith.constant 0 : i32
    return %arg0, %c0_i32, %c0_i32_0 : i32, i32, i32
  }
  func.func @transform_4(%arg0: i32) -> (i32, i32, i32) {
    %c0_i32 = arith.constant 0 : i32
    %c0_i32_0 = arith.constant 0 : i32
    %c0_i32_1 = arith.constant 0 : i32
    return %arg0, %c0_i32, %c0_i32_0 : i32, i32, i32
  }
}

module attributes {stable_mosaic.version = 11 : i64} {
  func.func @_conv2_halo_kernel(%arg0: i32, %arg1: memref<1x16x16x128xbf16, #tpu.memory_space<vmem>>, %arg2: memref<1x128xf32, #tpu.memory_space<vmem>>, %arg3: memref<1x128xf32, #tpu.memory_space<vmem>>, %arg4: memref<9x128x128xbf16, #tpu.memory_space<vmem>>, %arg5: memref<1x16x16x128xbf16, #tpu.memory_space<vmem>>, %arg6: memref<1x1x128xf32, #tpu.memory_space<vmem>>, %arg7: memref<1x1x128xf32, #tpu.memory_space<vmem>>, %arg8: memref<18x18x128xbf16, #tpu.memory_space<vmem>>) attributes {dimension_semantics = [#tpu.dimension_semantics<parallel>], iteration_bounds = array<i64: 2>, scalar_prefetch = 0 : i64, scratch_operands = 1 : i64, tpu.core_type = #tpu.core_type<tc>, window_params = [{transform_indices = @transform_0, window_bounds = array<i64: 1, 16, 16, 128>}, {pipeline_mode = #tpu.pipeline_mode<synchronous>, transform_indices = @transform_1, window_bounds = array<i64: 1, 128>}, {pipeline_mode = #tpu.pipeline_mode<synchronous>, transform_indices = @transform_2, window_bounds = array<i64: 1, 128>}, {pipeline_mode = #tpu.pipeline_mode<synchronous>, transform_indices = @transform_3, window_bounds = array<i64: 9, 128, 128>}, {transform_indices = @transform_4, window_bounds = array<i64: 1, 16, 16, 128>}, {transform_indices = @transform_5, window_bounds = array<i64: 1, 1, 128>}, {transform_indices = @transform_6, window_bounds = array<i64: 1, 1, 128>}]} {
    %c0 = arith.constant 0 : index
    %c0_0 = arith.constant 0 : index
    %c0_1 = arith.constant 0 : index
    %c0_2 = arith.constant 0 : index
    %0 = vector.load %arg1[%c0, %c0_0, %c0_1, %c0_2] : memref<1x16x16x128xbf16, #tpu.memory_space<vmem>>, vector<1x16x16x128xbf16>
    %1 = vector.shape_cast %0 : vector<1x16x16x128xbf16> to vector<16x16x128xbf16>
    %2 = arith.extf %1 : vector<16x16x128xbf16> to vector<16x16x128xf32>
    %c0_3 = arith.constant 0 : index
    %c0_4 = arith.constant 0 : index
    %3 = vector.load %arg2[%c0_3, %c0_4] : memref<1x128xf32, #tpu.memory_space<vmem>>, vector<1x128xf32>
    %4 = vector.shape_cast %3 : vector<1x128xf32> to vector<128xf32>
    %5 = vector.shape_cast %4 : vector<128xf32> to vector<1x1x128xf32>
    %6 = vector.broadcast %5 : vector<1x1x128xf32> to vector<16x16x128xf32>
    %7 = arith.mulf %2, %6 : vector<16x16x128xf32>
    %c0_5 = arith.constant 0 : index
    %c0_6 = arith.constant 0 : index
    %8 = vector.load %arg3[%c0_5, %c0_6] : memref<1x128xf32, #tpu.memory_space<vmem>>, vector<1x128xf32>
    %9 = vector.shape_cast %8 : vector<1x128xf32> to vector<128xf32>
    %10 = vector.shape_cast %9 : vector<128xf32> to vector<1x1x128xf32>
    %11 = vector.broadcast %10 : vector<1x1x128xf32> to vector<16x16x128xf32>
    %12 = arith.addf %7, %11 : vector<16x16x128xf32>
    %cst = arith.constant 0.000000e+00 : f32
    %13 = vector.broadcast %cst : f32 to vector<16x16x128xf32>
    %14 = arith.maximumf %12, %13 : vector<16x16x128xf32>
    %cst_7 = arith.constant 0.000000e+00 : bf16
    %15 = vector.broadcast %cst_7 : bf16 to vector<18x18x128xbf16>
    %c0_8 = arith.constant 0 : index
    %c0_9 = arith.constant 0 : index
    %c0_10 = arith.constant 0 : index
    %16 = vector.load %arg8[%c0_8, %c0_9, %c0_10] : memref<18x18x128xbf16, #tpu.memory_space<vmem>>, vector<18x18x128xbf16>
    tpu.vector_store %arg8[%c0_8, %c0_9, %c0_10], %15 {strides = array<i32>} : memref<18x18x128xbf16, #tpu.memory_space<vmem>>, vector<18x18x128xbf16>,
    %17 = arith.truncf %14 : vector<16x16x128xf32> to vector<16x16x128xbf16>
    %c1 = arith.constant 1 : index
    %c1_11 = arith.constant 1 : index
    %c0_12 = arith.constant 0 : index
    %18 = vector.load %arg8[%c1, %c1_11, %c0_12] : memref<18x18x128xbf16, #tpu.memory_space<vmem>>, vector<16x16x128xbf16>
    tpu.vector_store %arg8[%c1, %c1_11, %c0_12], %17 {strides = array<i32>} : memref<18x18x128xbf16, #tpu.memory_space<vmem>>, vector<16x16x128xbf16>,
    %cst_13 = arith.constant 0.000000e+00 : f32
    %19 = vector.broadcast %cst_13 : f32 to vector<256x128xf32>
    %c0_14 = arith.constant 0 : index
    %c0_15 = arith.constant 0 : index
    %c0_16 = arith.constant 0 : index
    %20 = vector.load %arg8[%c0_14, %c0_15, %c0_16] : memref<18x18x128xbf16, #tpu.memory_space<vmem>>, vector<16x16x128xbf16>
    %21 = vector.shape_cast %20 : vector<16x16x128xbf16> to vector<256x128xbf16>
    %c0_17 = arith.constant 0 : index
    %c0_18 = arith.constant 0 : index
    %c0_19 = arith.constant 0 : index
    %22 = vector.load %arg4[%c0_17, %c0_18, %c0_19] : memref<9x128x128xbf16, #tpu.memory_space<vmem>>, vector<1x128x128xbf16>
    %23 = vector.shape_cast %22 : vector<1x128x128xbf16> to vector<128x128xbf16>
    %cst_20 = arith.constant dense<0.000000e+00> : vector<256x128xf32>
    %24 = tpu.matmul %21, %23, %cst_20 {dimension_numbers = #tpu.dot_dimension_numbers<[1], [0], [0], [1], [0, 0, 1, 1], [], []>} : vector<256x128xbf16>, vector<128x128xbf16>, vector<256x128xf32> -> vector<256x128xf32>
    %25 = arith.addf %19, %24 : vector<256x128xf32>
    %c0_21 = arith.constant 0 : index
    %c1_22 = arith.constant 1 : index
    %c0_23 = arith.constant 0 : index
    %26 = vector.load %arg8[%c0_21, %c1_22, %c0_23] : memref<18x18x128xbf16, #tpu.memory_space<vmem>>, vector<16x16x128xbf16>
    %27 = vector.shape_cast %26 : vector<16x16x128xbf16> to vector<256x128xbf16>
    %c1_24 = arith.constant 1 : index
    %c0_25 = arith.constant 0 : index
    %c0_26 = arith.constant 0 : index
    %28 = vector.load %arg4[%c1_24, %c0_25, %c0_26] : memref<9x128x128xbf16, #tpu.memory_space<vmem>>, vector<1x128x128xbf16>
    %29 = vector.shape_cast %28 : vector<1x128x128xbf16> to vector<128x128xbf16>
    %cst_27 = arith.constant dense<0.000000e+00> : vector<256x128xf32>
    %30 = tpu.matmul %27, %29, %cst_27 {dimension_numbers = #tpu.dot_dimension_numbers<[1], [0], [0], [1], [0, 0, 1, 1], [], []>} : vector<256x128xbf16>, vector<128x128xbf16>, vector<256x128xf32> -> vector<256x128xf32>
    %31 = arith.addf %25, %30 : vector<256x128xf32>
    %c0_28 = arith.constant 0 : index
    %c2 = arith.constant 2 : index
    %c0_29 = arith.constant 0 : index
    %32 = vector.load %arg8[%c0_28, %c2, %c0_29] : memref<18x18x128xbf16, #tpu.memory_space<vmem>>, vector<16x16x128xbf16>
    %33 = vector.shape_cast %32 : vector<16x16x128xbf16> to vector<256x128xbf16>
    %c2_30 = arith.constant 2 : index
    %c0_31 = arith.constant 0 : index
    %c0_32 = arith.constant 0 : index
    %34 = vector.load %arg4[%c2_30, %c0_31, %c0_32] : memref<9x128x128xbf16, #tpu.memory_space<vmem>>, vector<1x128x128xbf16>
    %35 = vector.shape_cast %34 : vector<1x128x128xbf16> to vector<128x128xbf16>
    %cst_33 = arith.constant dense<0.000000e+00> : vector<256x128xf32>
    %36 = tpu.matmul %33, %35, %cst_33 {dimension_numbers = #tpu.dot_dimension_numbers<[1], [0], [0], [1], [0, 0, 1, 1], [], []>} : vector<256x128xbf16>, vector<128x128xbf16>, vector<256x128xf32> -> vector<256x128xf32>
    %37 = arith.addf %31, %36 : vector<256x128xf32>
    %c1_34 = arith.constant 1 : index
    %c0_35 = arith.constant 0 : index
    %c0_36 = arith.constant 0 : index
    %38 = vector.load %arg8[%c1_34, %c0_35, %c0_36] : memref<18x18x128xbf16, #tpu.memory_space<vmem>>, vector<16x16x128xbf16>
    %39 = vector.shape_cast %38 : vector<16x16x128xbf16> to vector<256x128xbf16>
    %c3 = arith.constant 3 : index
    %c0_37 = arith.constant 0 : index
    %c0_38 = arith.constant 0 : index
    %40 = vector.load %arg4[%c3, %c0_37, %c0_38] : memref<9x128x128xbf16, #tpu.memory_space<vmem>>, vector<1x128x128xbf16>
    %41 = vector.shape_cast %40 : vector<1x128x128xbf16> to vector<128x128xbf16>
    %cst_39 = arith.constant dense<0.000000e+00> : vector<256x128xf32>
    %42 = tpu.matmul %39, %41, %cst_39 {dimension_numbers = #tpu.dot_dimension_numbers<[1], [0], [0], [1], [0, 0, 1, 1], [], []>} : vector<256x128xbf16>, vector<128x128xbf16>, vector<256x128xf32> -> vector<256x128xf32>
    %43 = arith.addf %37, %42 : vector<256x128xf32>
    %c1_40 = arith.constant 1 : index
    %c1_41 = arith.constant 1 : index
    %c0_42 = arith.constant 0 : index
    %44 = vector.load %arg8[%c1_40, %c1_41, %c0_42] : memref<18x18x128xbf16, #tpu.memory_space<vmem>>, vector<16x16x128xbf16>
    %45 = vector.shape_cast %44 : vector<16x16x128xbf16> to vector<256x128xbf16>
    %c4 = arith.constant 4 : index
    %c0_43 = arith.constant 0 : index
    %c0_44 = arith.constant 0 : index
    %46 = vector.load %arg4[%c4, %c0_43, %c0_44] : memref<9x128x128xbf16, #tpu.memory_space<vmem>>, vector<1x128x128xbf16>
    %47 = vector.shape_cast %46 : vector<1x128x128xbf16> to vector<128x128xbf16>
    %cst_45 = arith.constant dense<0.000000e+00> : vector<256x128xf32>
    %48 = tpu.matmul %45, %47, %cst_45 {dimension_numbers = #tpu.dot_dimension_numbers<[1], [0], [0], [1], [0, 0, 1, 1], [], []>} : vector<256x128xbf16>, vector<128x128xbf16>, vector<256x128xf32> -> vector<256x128xf32>
    %49 = arith.addf %43, %48 : vector<256x128xf32>
    %c1_46 = arith.constant 1 : index
    %c2_47 = arith.constant 2 : index
    %c0_48 = arith.constant 0 : index
    %50 = vector.load %arg8[%c1_46, %c2_47, %c0_48] : memref<18x18x128xbf16, #tpu.memory_space<vmem>>, vector<16x16x128xbf16>
    %51 = vector.shape_cast %50 : vector<16x16x128xbf16> to vector<256x128xbf16>
    %c5 = arith.constant 5 : index
    %c0_49 = arith.constant 0 : index
    %c0_50 = arith.constant 0 : index
    %52 = vector.load %arg4[%c5, %c0_49, %c0_50] : memref<9x128x128xbf16, #tpu.memory_space<vmem>>, vector<1x128x128xbf16>
    %53 = vector.shape_cast %52 : vector<1x128x128xbf16> to vector<128x128xbf16>
    %cst_51 = arith.constant dense<0.000000e+00> : vector<256x128xf32>
    %54 = tpu.matmul %51, %53, %cst_51 {dimension_numbers = #tpu.dot_dimension_numbers<[1], [0], [0], [1], [0, 0, 1, 1], [], []>} : vector<256x128xbf16>, vector<128x128xbf16>, vector<256x128xf32> -> vector<256x128xf32>
    %55 = arith.addf %49, %54 : vector<256x128xf32>
    %c2_52 = arith.constant 2 : index
    %c0_53 = arith.constant 0 : index
    %c0_54 = arith.constant 0 : index
    %56 = vector.load %arg8[%c2_52, %c0_53, %c0_54] : memref<18x18x128xbf16, #tpu.memory_space<vmem>>, vector<16x16x128xbf16>
    %57 = vector.shape_cast %56 : vector<16x16x128xbf16> to vector<256x128xbf16>
    %c6 = arith.constant 6 : index
    %c0_55 = arith.constant 0 : index
    %c0_56 = arith.constant 0 : index
    %58 = vector.load %arg4[%c6, %c0_55, %c0_56] : memref<9x128x128xbf16, #tpu.memory_space<vmem>>, vector<1x128x128xbf16>
    %59 = vector.shape_cast %58 : vector<1x128x128xbf16> to vector<128x128xbf16>
    %cst_57 = arith.constant dense<0.000000e+00> : vector<256x128xf32>
    %60 = tpu.matmul %57, %59, %cst_57 {dimension_numbers = #tpu.dot_dimension_numbers<[1], [0], [0], [1], [0, 0, 1, 1], [], []>} : vector<256x128xbf16>, vector<128x128xbf16>, vector<256x128xf32> -> vector<256x128xf32>
    %61 = arith.addf %55, %60 : vector<256x128xf32>
    %c2_58 = arith.constant 2 : index
    %c1_59 = arith.constant 1 : index
    %c0_60 = arith.constant 0 : index
    %62 = vector.load %arg8[%c2_58, %c1_59, %c0_60] : memref<18x18x128xbf16, #tpu.memory_space<vmem>>, vector<16x16x128xbf16>
    %63 = vector.shape_cast %62 : vector<16x16x128xbf16> to vector<256x128xbf16>
    %c7 = arith.constant 7 : index
    %c0_61 = arith.constant 0 : index
    %c0_62 = arith.constant 0 : index
    %64 = vector.load %arg4[%c7, %c0_61, %c0_62] : memref<9x128x128xbf16, #tpu.memory_space<vmem>>, vector<1x128x128xbf16>
    %65 = vector.shape_cast %64 : vector<1x128x128xbf16> to vector<128x128xbf16>
    %cst_63 = arith.constant dense<0.000000e+00> : vector<256x128xf32>
    %66 = tpu.matmul %63, %65, %cst_63 {dimension_numbers = #tpu.dot_dimension_numbers<[1], [0], [0], [1], [0, 0, 1, 1], [], []>} : vector<256x128xbf16>, vector<128x128xbf16>, vector<256x128xf32> -> vector<256x128xf32>
    %67 = arith.addf %61, %66 : vector<256x128xf32>
    %c2_64 = arith.constant 2 : index
    %c2_65 = arith.constant 2 : index
    %c0_66 = arith.constant 0 : index
    %68 = vector.load %arg8[%c2_64, %c2_65, %c0_66] : memref<18x18x128xbf16, #tpu.memory_space<vmem>>, vector<16x16x128xbf16>
    %69 = vector.shape_cast %68 : vector<16x16x128xbf16> to vector<256x128xbf16>
    %c8 = arith.constant 8 : index
    %c0_67 = arith.constant 0 : index
    %c0_68 = arith.constant 0 : index
    %70 = vector.load %arg4[%c8, %c0_67, %c0_68] : memref<9x128x128xbf16, #tpu.memory_space<vmem>>, vector<1x128x128xbf16>
    %71 = vector.shape_cast %70 : vector<1x128x128xbf16> to vector<128x128xbf16>
    %cst_69 = arith.constant dense<0.000000e+00> : vector<256x128xf32>
    %72 = tpu.matmul %69, %71, %cst_69 {dimension_numbers = #tpu.dot_dimension_numbers<[1], [0], [0], [1], [0, 0, 1, 1], [], []>} : vector<256x128xbf16>, vector<128x128xbf16>, vector<256x128xf32> -> vector<256x128xf32>
    %73 = arith.addf %67, %72 : vector<256x128xf32>
    %74 = vector.shape_cast %73 : vector<256x128xf32> to vector<1x16x16x128xf32>
    %75 = arith.truncf %74 : vector<1x16x16x128xf32> to vector<1x16x16x128xbf16>
    %c0_70 = arith.constant 0 : index
    %c0_71 = arith.constant 0 : index
    %c0_72 = arith.constant 0 : index
    %c0_73 = arith.constant 0 : index
    %76 = vector.load %arg5[%c0_70, %c0_71, %c0_72, %c0_73] : memref<1x16x16x128xbf16, #tpu.memory_space<vmem>>, vector<1x16x16x128xbf16>
    tpu.vector_store %arg5[%c0_70, %c0_71, %c0_72, %c0_73], %75 {strides = array<i32>} : memref<1x16x16x128xbf16, #tpu.memory_space<vmem>>, vector<1x16x16x128xbf16>,
    %cst_74 = arith.constant dense<0.000000e+00> : vector<128xf32>
    %77 = vector.multi_reduction <add>, %73, %cst_74 [0] : vector<256x128xf32> to vector<128xf32>
    %78 = vector.shape_cast %77 : vector<128xf32> to vector<1x1x128xf32>
    %c0_75 = arith.constant 0 : index
    %c0_76 = arith.constant 0 : index
    %c0_77 = arith.constant 0 : index
    %79 = vector.load %arg6[%c0_75, %c0_76, %c0_77] : memref<1x1x128xf32, #tpu.memory_space<vmem>>, vector<1x1x128xf32>
    tpu.vector_store %arg6[%c0_75, %c0_76, %c0_77], %78 {strides = array<i32>} : memref<1x1x128xf32, #tpu.memory_space<vmem>>, vector<1x1x128xf32>,
    %80 = arith.mulf %73, %73 : vector<256x128xf32>
    %cst_78 = arith.constant dense<0.000000e+00> : vector<128xf32>
    %81 = vector.multi_reduction <add>, %80, %cst_78 [0] : vector<256x128xf32> to vector<128xf32>
    %82 = vector.shape_cast %81 : vector<128xf32> to vector<1x1x128xf32>
    %c0_79 = arith.constant 0 : index
    %c0_80 = arith.constant 0 : index
    %c0_81 = arith.constant 0 : index
    %83 = vector.load %arg7[%c0_79, %c0_80, %c0_81] : memref<1x1x128xf32, #tpu.memory_space<vmem>>, vector<1x1x128xf32>
    tpu.vector_store %arg7[%c0_79, %c0_80, %c0_81], %82 {strides = array<i32>} : memref<1x1x128xf32, #tpu.memory_space<vmem>>, vector<1x1x128xf32>,
    return
  }
  func.func @transform_0(%arg0: i32) -> (i32, i32, i32, i32) {
    %c0_i32 = arith.constant 0 : i32
    %c0_i32_0 = arith.constant 0 : i32
    %c0_i32_1 = arith.constant 0 : i32
    %c0_i32_2 = arith.constant 0 : i32
    return %arg0, %c0_i32, %c0_i32_0, %c0_i32_1 : i32, i32, i32, i32
  }
  func.func @transform_1(%arg0: i32) -> (i32, i32) {
    %c0_i32 = arith.constant 0 : i32
    %c0_i32_0 = arith.constant 0 : i32
    %c0_i32_1 = arith.constant 0 : i32
    return %c0_i32, %c0_i32_0 : i32, i32
  }
  func.func @transform_2(%arg0: i32) -> (i32, i32) {
    %c0_i32 = arith.constant 0 : i32
    %c0_i32_0 = arith.constant 0 : i32
    %c0_i32_1 = arith.constant 0 : i32
    return %c0_i32, %c0_i32_0 : i32, i32
  }
  func.func @transform_3(%arg0: i32) -> (i32, i32, i32) {
    %c0_i32 = arith.constant 0 : i32
    %c0_i32_0 = arith.constant 0 : i32
    %c0_i32_1 = arith.constant 0 : i32
    %c0_i32_2 = arith.constant 0 : i32
    return %c0_i32, %c0_i32_0, %c0_i32_1 : i32, i32, i32
  }
  func.func @transform_4(%arg0: i32) -> (i32, i32, i32, i32) {
    %c0_i32 = arith.constant 0 : i32
    %c0_i32_0 = arith.constant 0 : i32
    %c0_i32_1 = arith.constant 0 : i32
    %c0_i32_2 = arith.constant 0 : i32
    return %arg0, %c0_i32, %c0_i32_0, %c0_i32_1 : i32, i32, i32, i32
  }
  func.func @transform_5(%arg0: i32) -> (i32, i32, i32) {
    %c0_i32 = arith.constant 0 : i32
    %c0_i32_0 = arith.constant 0 : i32
    %c0_i32_1 = arith.constant 0 : i32
    return %arg0, %c0_i32, %c0_i32_0 : i32, i32, i32
  }
  func.func @transform_6(%arg0: i32) -> (i32, i32, i32) {
    %c0_i32 = arith.constant 0 : i32
    %c0_i32_0 = arith.constant 0 : i32
    %c0_i32_1 = arith.constant 0 : i32
    return %arg0, %c0_i32, %c0_i32_0 : i32, i32, i32
  }
}

module attributes {stable_mosaic.version = 11 : i64} {
  func.func @_bn_relu_matmul_stats_kernel(%arg0: i32, %arg1: memref<128x128xbf16, #tpu.memory_space<vmem>>, %arg2: memref<1x128xf32, #tpu.memory_space<vmem>>, %arg3: memref<1x128xf32, #tpu.memory_space<vmem>>, %arg4: memref<128x128xbf16, #tpu.memory_space<vmem>>, %arg5: memref<128x128xbf16, #tpu.memory_space<vmem>>, %arg6: memref<1x1x128xf32, #tpu.memory_space<vmem>>, %arg7: memref<1x1x128xf32, #tpu.memory_space<vmem>>) attributes {dimension_semantics = [#tpu.dimension_semantics<parallel>], iteration_bounds = array<i64: 4>, scalar_prefetch = 0 : i64, scratch_operands = 0 : i64, tpu.core_type = #tpu.core_type<tc>, window_params = [{transform_indices = @transform_0, window_bounds = array<i64: 128, 128>}, {pipeline_mode = #tpu.pipeline_mode<synchronous>, transform_indices = @transform_1, window_bounds = array<i64: 1, 128>}, {pipeline_mode = #tpu.pipeline_mode<synchronous>, transform_indices = @transform_2, window_bounds = array<i64: 1, 128>}, {pipeline_mode = #tpu.pipeline_mode<synchronous>, transform_indices = @transform_3, window_bounds = array<i64: 128, 128>}, {transform_indices = @transform_4, window_bounds = array<i64: 128, 128>}, {transform_indices = @transform_5, window_bounds = array<i64: 1, 1, 128>}, {transform_indices = @transform_6, window_bounds = array<i64: 1, 1, 128>}]} {
    %c0 = arith.constant 0 : index
    %c0_0 = arith.constant 0 : index
    %0 = vector.load %arg1[%c0, %c0_0] : memref<128x128xbf16, #tpu.memory_space<vmem>>, vector<128x128xbf16>
    %1 = arith.extf %0 : vector<128x128xbf16> to vector<128x128xf32>
    %c0_1 = arith.constant 0 : index
    %c0_2 = arith.constant 0 : index
    %2 = vector.load %arg2[%c0_1, %c0_2] : memref<1x128xf32, #tpu.memory_space<vmem>>, vector<1x128xf32>
    %3 = vector.broadcast %2 : vector<1x128xf32> to vector<128x128xf32>
    %4 = arith.mulf %1, %3 : vector<128x128xf32>
    %c0_3 = arith.constant 0 : index
    %c0_4 = arith.constant 0 : index
    %5 = vector.load %arg3[%c0_3, %c0_4] : memref<1x128xf32, #tpu.memory_space<vmem>>, vector<1x128xf32>
    %6 = vector.broadcast %5 : vector<1x128xf32> to vector<128x128xf32>
    %7 = arith.addf %4, %6 : vector<128x128xf32>
    %cst = arith.constant 0.000000e+00 : f32
    %8 = vector.broadcast %cst : f32 to vector<128x128xf32>
    %9 = arith.maximumf %7, %8 : vector<128x128xf32>
    %10 = arith.truncf %9 : vector<128x128xf32> to vector<128x128xbf16>
    %c0_5 = arith.constant 0 : index
    %c0_6 = arith.constant 0 : index
    %11 = vector.load %arg4[%c0_5, %c0_6] : memref<128x128xbf16, #tpu.memory_space<vmem>>, vector<128x128xbf16>
    %cst_7 = arith.constant dense<0.000000e+00> : vector<128x128xf32>
    %12 = tpu.matmul %10, %11, %cst_7 {dimension_numbers = #tpu.dot_dimension_numbers<[1], [0], [0], [1], [0, 0, 1, 1], [], []>} : vector<128x128xbf16>, vector<128x128xbf16>, vector<128x128xf32> -> vector<128x128xf32>
    %13 = arith.truncf %12 : vector<128x128xf32> to vector<128x128xbf16>
    %c0_8 = arith.constant 0 : index
    %c0_9 = arith.constant 0 : index
    %14 = vector.load %arg5[%c0_8, %c0_9] : memref<128x128xbf16, #tpu.memory_space<vmem>>, vector<128x128xbf16>
    tpu.vector_store %arg5[%c0_8, %c0_9], %13 {strides = array<i32>} : memref<128x128xbf16, #tpu.memory_space<vmem>>, vector<128x128xbf16>,
    %cst_10 = arith.constant dense<0.000000e+00> : vector<128xf32>
    %15 = vector.multi_reduction <add>, %12, %cst_10 [0] : vector<128x128xf32> to vector<128xf32>
    %16 = vector.shape_cast %15 : vector<128xf32> to vector<1x1x128xf32>
    %c0_11 = arith.constant 0 : index
    %c0_12 = arith.constant 0 : index
    %c0_13 = arith.constant 0 : index
    %17 = vector.load %arg6[%c0_11, %c0_12, %c0_13] : memref<1x1x128xf32, #tpu.memory_space<vmem>>, vector<1x1x128xf32>
    tpu.vector_store %arg6[%c0_11, %c0_12, %c0_13], %16 {strides = array<i32>} : memref<1x1x128xf32, #tpu.memory_space<vmem>>, vector<1x1x128xf32>,
    %18 = arith.mulf %12, %12 : vector<128x128xf32>
    %cst_14 = arith.constant dense<0.000000e+00> : vector<128xf32>
    %19 = vector.multi_reduction <add>, %18, %cst_14 [0] : vector<128x128xf32> to vector<128xf32>
    %20 = vector.shape_cast %19 : vector<128xf32> to vector<1x1x128xf32>
    %c0_15 = arith.constant 0 : index
    %c0_16 = arith.constant 0 : index
    %c0_17 = arith.constant 0 : index
    %21 = vector.load %arg7[%c0_15, %c0_16, %c0_17] : memref<1x1x128xf32, #tpu.memory_space<vmem>>, vector<1x1x128xf32>
    tpu.vector_store %arg7[%c0_15, %c0_16, %c0_17], %20 {strides = array<i32>} : memref<1x1x128xf32, #tpu.memory_space<vmem>>, vector<1x1x128xf32>,
    return
  }
  func.func @transform_0(%arg0: i32) -> (i32, i32) {
    %c0_i32 = arith.constant 0 : i32
    %c0_i32_0 = arith.constant 0 : i32
    return %arg0, %c0_i32 : i32, i32
  }
  func.func @transform_1(%arg0: i32) -> (i32, i32) {
    %c0_i32 = arith.constant 0 : i32
    %c0_i32_0 = arith.constant 0 : i32
    %c0_i32_1 = arith.constant 0 : i32
    return %c0_i32, %c0_i32_0 : i32, i32
  }
  func.func @transform_2(%arg0: i32) -> (i32, i32) {
    %c0_i32 = arith.constant 0 : i32
    %c0_i32_0 = arith.constant 0 : i32
    %c0_i32_1 = arith.constant 0 : i32
    return %c0_i32, %c0_i32_0 : i32, i32
  }
  func.func @transform_3(%arg0: i32) -> (i32, i32) {
    %c0_i32 = arith.constant 0 : i32
    %c0_i32_0 = arith.constant 0 : i32
    %c0_i32_1 = arith.constant 0 : i32
    return %c0_i32, %c0_i32_0 : i32, i32
  }
  func.func @transform_4(%arg0: i32) -> (i32, i32) {
    %c0_i32 = arith.constant 0 : i32
    %c0_i32_0 = arith.constant 0 : i32
    return %arg0, %c0_i32 : i32, i32
  }
  func.func @transform_5(%arg0: i32) -> (i32, i32, i32) {
    %c0_i32 = arith.constant 0 : i32
    %c0_i32_0 = arith.constant 0 : i32
    %c0_i32_1 = arith.constant 0 : i32
    return %arg0, %c0_i32, %c0_i32_0 : i32, i32, i32
  }
  func.func @transform_6(%arg0: i32) -> (i32, i32, i32) {
    %c0_i32 = arith.constant 0 : i32
    %c0_i32_0 = arith.constant 0 : i32
    %c0_i32_1 = arith.constant 0 : i32
    return %arg0, %c0_i32, %c0_i32_0 : i32, i32, i32
  }
}

module attributes {stable_mosaic.version = 11 : i64} {
  func.func @_finalize_kernel(%arg0: i32, %arg1: memref<128x128xbf16, #tpu.memory_space<vmem>>, %arg2: memref<1x128xf32, #tpu.memory_space<vmem>>, %arg3: memref<1x128xf32, #tpu.memory_space<vmem>>, %arg4: memref<128x128xbf16, #tpu.memory_space<vmem>>, %arg5: memref<1x128xf32, #tpu.memory_space<vmem>>, %arg6: memref<1x128xf32, #tpu.memory_space<vmem>>, %arg7: memref<128x128xbf16, #tpu.memory_space<vmem>>, %arg8: memref<128x128xf32, #tpu.memory_space<vmem>>) attributes {dimension_semantics = [#tpu.dimension_semantics<parallel>], iteration_bounds = array<i64: 4>, scalar_prefetch = 0 : i64, scratch_operands = 0 : i64, tpu.core_type = #tpu.core_type<tc>, window_params = [{transform_indices = @transform_0, window_bounds = array<i64: 128, 128>}, {pipeline_mode = #tpu.pipeline_mode<synchronous>, transform_indices = @transform_1, window_bounds = array<i64: 1, 128>}, {pipeline_mode = #tpu.pipeline_mode<synchronous>, transform_indices = @transform_2, window_bounds = array<i64: 1, 128>}, {transform_indices = @transform_3, window_bounds = array<i64: 128, 128>}, {pipeline_mode = #tpu.pipeline_mode<synchronous>, transform_indices = @transform_4, window_bounds = array<i64: 1, 128>}, {pipeline_mode = #tpu.pipeline_mode<synchronous>, transform_indices = @transform_5, window_bounds = array<i64: 1, 128>}, {transform_indices = @transform_6, window_bounds = array<i64: 128, 128>}, {transform_indices = @transform_7, window_bounds = array<i64: 128, 128>}]} {
    %c0 = arith.constant 0 : index
    %c0_0 = arith.constant 0 : index
    %0 = vector.load %arg1[%c0, %c0_0] : memref<128x128xbf16, #tpu.memory_space<vmem>>, vector<128x128xbf16>
    %1 = arith.extf %0 : vector<128x128xbf16> to vector<128x128xf32>
    %c0_1 = arith.constant 0 : index
    %c0_2 = arith.constant 0 : index
    %2 = vector.load %arg2[%c0_1, %c0_2] : memref<1x128xf32, #tpu.memory_space<vmem>>, vector<1x128xf32>
    %3 = vector.broadcast %2 : vector<1x128xf32> to vector<128x128xf32>
    %4 = arith.mulf %1, %3 : vector<128x128xf32>
    %c0_3 = arith.constant 0 : index
    %c0_4 = arith.constant 0 : index
    %5 = vector.load %arg3[%c0_3, %c0_4] : memref<1x128xf32, #tpu.memory_space<vmem>>, vector<1x128xf32>
    %6 = vector.broadcast %5 : vector<1x128xf32> to vector<128x128xf32>
    %7 = arith.addf %4, %6 : vector<128x128xf32>
    %c0_5 = arith.constant 0 : index
    %c0_6 = arith.constant 0 : index
    %8 = vector.load %arg4[%c0_5, %c0_6] : memref<128x128xbf16, #tpu.memory_space<vmem>>, vector<128x128xbf16>
    %9 = arith.extf %8 : vector<128x128xbf16> to vector<128x128xf32>
    %c0_7 = arith.constant 0 : index
    %c0_8 = arith.constant 0 : index
    %10 = vector.load %arg5[%c0_7, %c0_8] : memref<1x128xf32, #tpu.memory_space<vmem>>, vector<1x128xf32>
    %11 = vector.broadcast %10 : vector<1x128xf32> to vector<128x128xf32>
    %12 = arith.mulf %9, %11 : vector<128x128xf32>
    %13 = arith.addf %7, %12 : vector<128x128xf32>
    %c0_9 = arith.constant 0 : index
    %c0_10 = arith.constant 0 : index
    %14 = vector.load %arg6[%c0_9, %c0_10] : memref<1x128xf32, #tpu.memory_space<vmem>>, vector<1x128xf32>
    %15 = vector.broadcast %14 : vector<1x128xf32> to vector<128x128xf32>
    %16 = arith.addf %13, %15 : vector<128x128xf32>
    %c0_11 = arith.constant 0 : index
    %c0_12 = arith.constant 0 : index
    %17 = vector.load %arg8[%c0_11, %c0_12] : memref<128x128xf32, #tpu.memory_space<vmem>>, vector<128x128xf32>
    tpu.vector_store %arg8[%c0_11, %c0_12], %16 {strides = array<i32>} : memref<128x128xf32, #tpu.memory_space<vmem>>, vector<128x128xf32>,
    %cst = arith.constant 0.000000e+00 : f32
    %18 = vector.broadcast %cst : f32 to vector<128x128xf32>
    %19 = arith.maximumf %16, %18 : vector<128x128xf32>
    %20 = arith.truncf %19 : vector<128x128xf32> to vector<128x128xbf16>
    %c0_13 = arith.constant 0 : index
    %c0_14 = arith.constant 0 : index
    %21 = vector.load %arg7[%c0_13, %c0_14] : memref<128x128xbf16, #tpu.memory_space<vmem>>, vector<128x128xbf16>
    tpu.vector_store %arg7[%c0_13, %c0_14], %20 {strides = array<i32>} : memref<128x128xbf16, #tpu.memory_space<vmem>>, vector<128x128xbf16>,
    return
  }
  func.func @transform_0(%arg0: i32) -> (i32, i32) {
    %c0_i32 = arith.constant 0 : i32
    %c0_i32_0 = arith.constant 0 : i32
    return %arg0, %c0_i32 : i32, i32
  }
  func.func @transform_1(%arg0: i32) -> (i32, i32) {
    %c0_i32 = arith.constant 0 : i32
    %c0_i32_0 = arith.constant 0 : i32
    %c0_i32_1 = arith.constant 0 : i32
    return %c0_i32, %c0_i32_0 : i32, i32
  }
  func.func @transform_2(%arg0: i32) -> (i32, i32) {
    %c0_i32 = arith.constant 0 : i32
    %c0_i32_0 = arith.constant 0 : i32
    %c0_i32_1 = arith.constant 0 : i32
    return %c0_i32, %c0_i32_0 : i32, i32
  }
  func.func @transform_3(%arg0: i32) -> (i32, i32) {
    %c0_i32 = arith.constant 0 : i32
    %c0_i32_0 = arith.constant 0 : i32
    return %arg0, %c0_i32 : i32, i32
  }
  func.func @transform_4(%arg0: i32) -> (i32, i32) {
    %c0_i32 = arith.constant 0 : i32
    %c0_i32_0 = arith.constant 0 : i32
    %c0_i32_1 = arith.constant 0 : i32
    return %c0_i32, %c0_i32_0 : i32, i32
  }
  func.func @transform_5(%arg0: i32) -> (i32, i32) {
    %c0_i32 = arith.constant 0 : i32
    %c0_i32_0 = arith.constant 0 : i32
    %c0_i32_1 = arith.constant 0 : i32
    return %c0_i32, %c0_i32_0 : i32, i32
  }
  func.func @transform_6(%arg0: i32) -> (i32, i32) {
    %c0_i32 = arith.constant 0 : i32
    %c0_i32_0 = arith.constant 0 : i32
    return %arg0, %c0_i32 : i32, i32
  }
  func.func @transform_7(%arg0: i32) -> (i32, i32) {
    %c0_i32 = arith.constant 0 : i32
    %c0_i32_0 = arith.constant 0 : i32
    return %arg0, %c0_i32 : i32, i32
  }
}

</mosaic_0001>

<llo_original>
// kernel: bottleneck_forward.8
$region0: #{bottleneck_forward.8}
  #allocation0 [shape = 'u32[]', space=smem, size = 0x4, offset = 0x4, fixed_abs, tag = 'smem constant byte address 0x4 - core index']
  #allocation1 [shape = 'u32[144,128]{1,0:T(1,128)}', space=vmem, size = 0x12000, scoped, tag = 'internal scratch']
  %s0 = inlined_call_operand.vmem [shape: bf16[512,128], index: 0, kind: input, shape index: {}]
  %s1 = inlined_call_operand.vmem [shape: bf16[128,128], index: 1, kind: input, shape index: {}]
  %s2 = inlined_call_operand.vmem [shape: bf16[512,128], index: 2, kind: output, shape index: {0}]
  %s3 = inlined_call_operand.vmem [shape: f32[4,1,128], index: 3, kind: output, shape index: {1}]
  %s4 = inlined_call_operand.vmem [shape: f32[4,1,128], index: 4, kind: output, shape index: {2}]
  %5 = xla_tuple %s2, %s3, %s4
  %s6 = sld [smem:[#allocation0]]
  $region57: #{bottleneck_forward.8} parent=0
    _
  %s8 = ssub.s32 1, %s6
  %s9 = scalar_select 0, %s8, %s6
  loop: start=0, step=1, limit=6
  $region2: #{bottleneck_forward.8} parent=0 // loop_pre_header
    _
  $region3: #{bottleneck_forward.8} parent=0 // loop_header
    %s11 = sphi 0, %s15
    %p12 = scmp.ge.s32.totalorder %s11, 6
    %s21 = sphi 0, %s23
    %s24 = sphi 0, %s21
    %s25 = sphi 0, %s24
    %s41 = sphi 0, %s25
    %s45 = sphi 0, %s45
    %s47 = sphi 0, %s45
    %s48 = sphi 0, %s47
    %s62 = sphi 0, %s48
    %s68 = sphi 0, %s70
    %s71 = sphi 0, %s68
    %s72 = sphi 0, %s71
    %s88 = sphi 0, %s72
    %s94 = sphi 0, %s96
    %s97 = sphi 0, %s94
    %s98 = sphi 0, %s97
    %s114 = sphi 0, %s98
    %s120 = sphi 0, %s122
    %s123 = sphi 0, %s120
    %s124 = sphi 0, %s123
    %s140 = sphi 0, %s124
  $region4: #{bottleneck_forward.8} parent=0 // loop_header_branch
    %14 = sbr.rel (%p12) target = $region8
  $region5: #{bottleneck_forward.8} parent=0 // loop_body
    %s16 = ssub.s32 %s11, 1
    %s17 = ssub.s32 %s11, 2
    %s18 = sadd.s32 %s11, 1
    %s19 = ssub.s32 %s11, %s18
    %p20 = scmp.eq.s32.totalorder %s19, 0
    %s22 = sadd.s32 %s21, 1
    %s23 = scalar_select %p20, %s21, %s22
    %p26 = pneg %p20
    %p27 = scmp.eq.s32.totalorder %s11, 3
    %p28 = por %p26, %p27
    %p29 = scmp.ne.s32.totalorder %s21, %s24
    %p30 = scmp.eq.s32.totalorder %s11, 0
    %p31 = por %p29, %p30
    %p32 = scmp.ne.s32.totalorder %s21, %s24
    %p33 = scmp.eq.s32.totalorder %s16, 3
    %p34 = por %p32, %p33
    %p35 = scmp.ne.s32.totalorder %s24, %s25
    %p36 = scmp.eq.s32.totalorder %s16, 0
    %p37 = por %p35, %p36
    %p38 = scmp.ne.s32.totalorder %s24, %s25
    %p39 = scmp.eq.s32.totalorder %s17, 3
    %p40 = por %p38, %p39
    %p42 = scmp.ne.s32.totalorder %s25, %s41
    %p43 = scmp.eq.s32.totalorder %s17, 0
    %p44 = por %p42, %p43
    %s46 = sadd.s32 %s45, 1
    %p49 = scmp.eq.s32.totalorder %s11, 3
    %p50 = scmp.ne.s32.totalorder %s45, %s47
    %p51 = scmp.eq.s32.totalorder %s11, 0
    %p52 = por %p50, %p51
    %p53 = scmp.ne.s32.totalorder %s45, %s47
    %p54 = scmp.eq.s32.totalorder %s16, 3
    %p55 = por %p53, %p54
    %p56 = scmp.ne.s32.totalorder %s47, %s48
    %p57 = scmp.eq.s32.totalorder %s16, 0
    %p58 = por %p56, %p57
    %p59 = scmp.ne.s32.totalorder %s47, %s48
    %p60 = scmp.eq.s32.totalorder %s17, 3
    %p61 = por %p59, %p60
    %p63 = scmp.ne.s32.totalorder %s48, %s62
    %p64 = scmp.eq.s32.totalorder %s17, 0
    %p65 = por %p63, %p64
    %s66 = ssub.s32 %s11, %s18
    %p67 = scmp.eq.s32.totalorder %s66, 0
    %s69 = sadd.s32 %s68, 1
    %s70 = scalar_select %p67, %s68, %s69
    %p73 = pneg %p67
    %p74 = scmp.eq.s32.totalorder %s11, 3
    %p75 = por %p73, %p74
    %p76 = scmp.ne.s32.totalorder %s68, %s71
    %p77 = scmp.eq.s32.totalorder %s11, 0
    %p78 = por %p76, %p77
    %p79 = scmp.ne.s32.totalorder %s68, %s71
    %p80 = scmp.eq.s32.totalorder %s16, 3
    %p81 = por %p79, %p80
    %p82 = scmp.ne.s32.totalorder %s71, %s72
    %p83 = scmp.eq.s32.totalorder %s16, 0
    %p84 = por %p82, %p83
    %p85 = scmp.ne.s32.totalorder %s71, %s72
    %p86 = scmp.eq.s32.totalorder %s17, 3
    %p87 = por %p85, %p86
    %p89 = scmp.ne.s32.totalorder %s72, %s88
    %p90 = scmp.eq.s32.totalorder %s17, 0
    %p91 = por %p89, %p90
    %s92 = ssub.s32 %s11, %s18
    %p93 = scmp.eq.s32.totalorder %s92, 0
    %s95 = sadd.s32 %s94, 1
    %s96 = scalar_select %p93, %s94, %s95
    %p99 = pneg %p93
    %p100 = scmp.eq.s32.totalorder %s11, 3
    %p101 = por %p99, %p100
    %p102 = scmp.ne.s32.totalorder %s94, %s97
    %p103 = scmp.eq.s32.totalorder %s11, 0
    %p104 = por %p102, %p103
    %p105 = scmp.ne.s32.totalorder %s94, %s97
    %p106 = scmp.eq.s32.totalorder %s16, 3
    %p107 = por %p105, %p106
    %p108 = scmp.ne.s32.totalorder %s97, %s98
    %p109 = scmp.eq.s32.totalorder %s16, 0
    %p110 = por %p108, %p109
    %p111 = scmp.ne.s32.totalorder %s97, %s98
    %p112 = scmp.eq.s32.totalorder %s17, 3
    %p113 = por %p111, %p112
    %p115 = scmp.ne.s32.totalorder %s98, %s114
    %p116 = scmp.eq.s32.totalorder %s17, 0
    %p117 = por %p115, %p116
    %s118 = ssub.s32 %s11, %s18
    %p119 = scmp.eq.s32.totalorder %s118, 0
    %s121 = sadd.s32 %s120, 1
    %s122 = scalar_select %p119, %s120, %s121
    %p125 = pneg %p119
    %p126 = scmp.eq.s32.totalorder %s11, 3
    %p127 = por %p125, %p126
    %p128 = scmp.ne.s32.totalorder %s120, %s123
    %p129 = scmp.eq.s32.totalorder %s11, 0
    %p130 = por %p128, %p129
    %p131 = scmp.ne.s32.totalorder %s120, %s123
    %p132 = scmp.eq.s32.totalorder %s16, 3
    %p133 = por %p131, %p132
    %p134 = scmp.ne.s32.totalorder %s123, %s124
    %p135 = scmp.eq.s32.totalorder %s16, 0
    %p136 = por %p134, %p135
    %p137 = scmp.ne.s32.totalorder %s123, %s124
    %p138 = scmp.eq.s32.totalorder %s17, 3
    %p139 = por %p137, %p138
    %p141 = scmp.ne.s32.totalorder %s124, %s140
    %p142 = scmp.eq.s32.totalorder %s17, 0
    %p143 = por %p141, %p142
    %p144 = scmp.le.s32.totalorder 1, %s11
    %p145 = scmp.lt.s32.totalorder %s11, 5
    %p146 = pnand %p144, %p145
    %p147 = pneg %p146
    // Predicated region
    $region9: #{bottleneck_forward.8} parent=5 // pred_check
      _
    $region10: #{bottleneck_forward.8} parent=5 // pred_check_branch
      %149 = sbr.rel (%p146) target = $region12
    $region11: #{bottleneck_forward.8} parent=5 // pred_region
      %s150 = ssub.s32 %s11, 1
      // Predicated region
      $region13: #{bottleneck_forward.8} parent=11 // pred_check
        %p151 = pneg %p58
      $region14: #{bottleneck_forward.8} parent=11 // pred_check_branch
        %153 = sbr.rel (%p151) target = $region16
      $region15: #{bottleneck_forward.8} parent=11 // pred_region
        _
      $region16: #{bottleneck_forward.8} parent=11 // pred_fallthru
        _
    $region12: #{bottleneck_forward.8} parent=5 // pred_fallthru
      _
    %p154 = scmp.lt.s32.totalorder %s11, 4
    // Predicated region
    $region17: #{bottleneck_forward.8} parent=5 // pred_check
      %p155 = pneg %p154
    $region18: #{bottleneck_forward.8} parent=5 // pred_check_branch
      %157 = sbr.rel (%p155) target = $region20
    $region19: #{bottleneck_forward.8} parent=5 // pred_region
      // Predicated region
      $region21: #{bottleneck_forward.8} parent=19 // pred_check
        %p158 = pneg %p31
      $region22: #{bottleneck_forward.8} parent=19 // pred_check_branch
        %160 = sbr.rel (%p158) target = $region24
      $region23: #{bottleneck_forward.8} parent=19 // pred_region
        %s161 = smul.u32 16, %s11
        %p162 = scmp.lt.s32.totalorder %s161, 63
        %s163 = scalar_select %p162, %s161, 63
        %s164 = smul.addr %s163, 4
        %s165 = scalar_lea.vmem %s0, %s164
        %s166 = smul.u32 16, %s11
      $region24: #{bottleneck_forward.8} parent=19 // pred_fallthru
        _
    $region20: #{bottleneck_forward.8} parent=5 // pred_fallthru
      _
    %p167 = scmp.le.s32.totalorder 1, %s11
    %p168 = scmp.lt.s32.totalorder %s11, 5
    %p169 = pnand %p167, %p168
    %p170 = pneg %p169
    // Predicated region
    $region25: #{bottleneck_forward.8} parent=5 // pred_check
      _
    $region26: #{bottleneck_forward.8} parent=5 // pred_check_branch
      %172 = sbr.rel (%p169) target = $region28
    $region27: #{bottleneck_forward.8} parent=5 // pred_region
      %s173 = ssub.s32 %s11, 1
      %s174 = smul.u32 16, %s16
      %p175 = scmp.lt.s32.totalorder %s174, 63
      %s176 = scalar_select %p175, %s174, 63
      %s177 = smul.addr %s176, 4
      %s178 = scalar_lea.vmem %s0, %s177
      %p179 = pneg %p37
      %p180 = pneg %p34
      %p181 = pneg %p58
      %p182 = pneg %p55
      %p183 = pneg %p84
      %p184 = pneg %p81
      %s185 = smul.u32 16, %s16
      %p186 = scmp.lt.s32.totalorder %s185, 63
      %s187 = scalar_select %p186, %s185, 63
      %s188 = smul.addr %s187, 4
      %s189 = scalar_lea.vmem %s2, %s188
      %p190 = pneg %p110
      %p191 = pneg %p107
      %p192 = scmp.lt.s32.totalorder %s16, 3
      %s193 = scalar_select %p192, %s16, 3
      %s194 = scalar_lea.vmem %s3, %s193
      %p195 = pneg %p136
      %p196 = pneg %p133
      %p197 = scmp.lt.s32.totalorder %s16, 3
      %s198 = scalar_select %p197, %s16, 3
      %s199 = scalar_lea.vmem %s4, %s198
      %s200 = smul.u32 16, %s16
      %p201 = scmp.lt.s32.totalorder %s200, 63
      %s202 = scalar_select %p201, %s200, 63
      %s203 = smul.addr %s202, 4
      %s204 = scalar_lea.vmem %s0, %s203
      %s205 = smul.u32 16, %s16
      %s206 = smul.u32 16, %s16
      %p207 = scmp.lt.s32.totalorder %s206, 63
      %s208 = scalar_select %p207, %s206, 63
      %s209 = smul.addr %s208, 4
      %s210 = scalar_lea.vmem %s2, %s209
      %s211 = smul.u32 16, %s16
      %p212 = scmp.lt.s32.totalorder %s16, 3
      %s213 = scalar_select %p212, %s16, 3
      %s214 = scalar_lea.vmem %s3, %s213
      %p215 = scmp.lt.s32.totalorder %s16, 3
      %s216 = scalar_select %p215, %s16, 3
      %s217 = scalar_lea.vmem %s4, %s216
      %v219 = vld [vmem:[%s204] sm:$0xf]
      %v220 = vld [vmem:[%s204 + $0x4] sm:$0xf]
      %v221 = vld [vmem:[%s204 + $0x8] sm:$0xf]
      %v222 = vld [vmem:[%s204 + $0xc] sm:$0xf]
      %v223 = vld [vmem:[%s204 + $0x10] sm:$0xf]
      %v224 = vld [vmem:[%s204 + $0x14] sm:$0xf]
      %v225 = vld [vmem:[%s204 + $0x18] sm:$0xf]
      %v226 = vld [vmem:[%s204 + $0x1c] sm:$0xf]
      %v227 = vld [vmem:[%s204 + $0x20] sm:$0xf]
      %v228 = vld [vmem:[%s204 + $0x24] sm:$0xf]
      %v229 = vld [vmem:[%s204 + $0x28] sm:$0xf]
      %v230 = vld [vmem:[%s204 + $0x2c] sm:$0xf]
      %v231 = vld [vmem:[%s204 + $0x30] sm:$0xf]
      %v232 = vld [vmem:[%s204 + $0x34] sm:$0xf]
      %v233 = vld [vmem:[%s204 + $0x38] sm:$0xf]
      %v234 = vld [vmem:[%s204 + $0x3c] sm:$0xf]
      %v235 = vld [vmem:[%s1] sm:$0xf]
      %v236 = vld [vmem:[%s1 + $0x4] sm:$0xf]
      %v237 = vld [vmem:[%s1 + $0x8] sm:$0xf]
      %v238 = vld [vmem:[%s1 + $0xc] sm:$0xf]
      %v239 = vld [vmem:[%s1 + $0x10] sm:$0xf]
      %v240 = vld [vmem:[%s1 + $0x14] sm:$0xf]
      %v241 = vld [vmem:[%s1 + $0x18] sm:$0xf]
      %v242 = vld [vmem:[%s1 + $0x1c] sm:$0xf]
      %v243 = vld [vmem:[%s1 + $0x20] sm:$0xf]
      %v244 = vld [vmem:[%s1 + $0x24] sm:$0xf]
      %v245 = vld [vmem:[%s1 + $0x28] sm:$0xf]
      %v246 = vld [vmem:[%s1 + $0x2c] sm:$0xf]
      %v247 = vld [vmem:[%s1 + $0x30] sm:$0xf]
      %v248 = vld [vmem:[%s1 + $0x34] sm:$0xf]
      %v249 = vld [vmem:[%s1 + $0x38] sm:$0xf]
      %v250 = vld [vmem:[%s1 + $0x3c] sm:$0xf]
      %v267 = vunpack.c.l.b16 %v219
      %v268 = vunpack.c.l.b16 %v220
      %v269 = vunpack.c.l.b16 %v221
      %v270 = vunpack.c.l.b16 %v222
      %v271 = vunpack.c.l.b16 %v223
      %v272 = vunpack.c.l.b16 %v224
      %v273 = vunpack.c.l.b16 %v225
      %v274 = vunpack.c.l.b16 %v226
      %v275 = vunpack.c.l.b16 %v227
      %v276 = vunpack.c.l.b16 %v228
      %v277 = vunpack.c.l.b16 %v229
      %v278 = vunpack.c.l.b16 %v230
      %v279 = vunpack.c.l.b16 %v231
      %v280 = vunpack.c.l.b16 %v232
      %v281 = vunpack.c.l.b16 %v233
      %v282 = vunpack.c.l.b16 %v234
      %v283 = vpack.c.b16 %v268, %v267
      %v284 = vpack.c.b16 %v270, %v269
      %v285 = vpack.c.b16 %v272, %v271
      %v286 = vpack.c.b16 %v274, %v273
      %v287 = vpack.c.b16 %v276, %v275
      %v288 = vpack.c.b16 %v278, %v277
      %v289 = vpack.c.b16 %v280, %v279
      %v290 = vpack.c.b16 %v282, %v281
      %v315 = vunpack.c.l.b16 %v235
      %v316 = vunpack.c.l.b16 %v236
      %v317 = vunpack.c.l.b16 %v237
      %v318 = vunpack.c.l.b16 %v238
      %v319 = vunpack.c.l.b16 %v239
      %v320 = vunpack.c.l.b16 %v240
      %v321 = vunpack.c.l.b16 %v241
      %v322 = vunpack.c.l.b16 %v242
      %v323 = vunpack.c.l.b16 %v243
      %v324 = vunpack.c.l.b16 %v244
      %v325 = vunpack.c.l.b16 %v245
      %v326 = vunpack.c.l.b16 %v246
      %v327 = vunpack.c.l.b16 %v247
      %v328 = vunpack.c.l.b16 %v248
      %v329 = vunpack.c.l.b16 %v249
      %v330 = vunpack.c.l.b16 %v250
      %v331 = vpack.c.b16 %v316, %v315
      %v332 = vpack.c.b16 %v318, %v317
      %v333 = vpack.c.b16 %v320, %v319
      %v334 = vpack.c.b16 %v322, %v321
      %v335 = vpack.c.b16 %v324, %v323
      %v336 = vpack.c.b16 %v326, %v325
      %v337 = vpack.c.b16 %v328, %v327
      %v338 = vpack.c.b16 %v330, %v329
      %347 = vmatprep.subr.bf16.mxu0 0
      %348 = vmatpush1.bf16.msra.mxu0 %v338
      %349 = vmatprep.subr.bf16.mxu0 0
      %350 = vmatpush1.bf16.msra.mxu0 %v337
      %351 = vmatprep.subr.bf16.mxu0 0
      %352 = vmatpush1.bf16.msra.mxu0 %v336
      %353 = vmatprep.subr.bf16.mxu0 0
      %354 = vmatpush1.bf16.msra.mxu0 %v335
      %355 = vmatprep.subr.bf16.mxu0 0
      %356 = vmatpush1.bf16.msra.mxu0 %v334
      %357 = vmatprep.subr.bf16.mxu0 0
      %358 = vmatpush1.bf16.msra.mxu0 %v333
      %359 = vmatprep.subr.bf16.mxu0 0
      %360 = vmatpush1.bf16.msra.mxu0 %v332
      %361 = vmatprep.subr.bf16.mxu0 0
      %362 = vmatpush1.bf16.msra.mxu0 %v331
      %363 = vmatprep.subr.bf16.mxu0 0
      %364 = vmatpush2.bf16.msra.mxu0 0
      %365 = vmatprep.subr.bf16.mxu0 0
      %366 = vmatpush2.bf16.msra.mxu0 0
      %367 = vmatprep.subr.bf16.mxu0 0
      %368 = vmatpush2.bf16.msra.mxu0 0
      %369 = vmatprep.subr.bf16.mxu0 0
      %370 = vmatpush2.bf16.msra.mxu0 0
      %371 = vmatprep.subr.bf16.mxu0 0
      %372 = vmatpush2.bf16.msra.mxu0 0
      %373 = vmatprep.subr.bf16.mxu0 0
      %374 = vmatpush2.bf16.msra.mxu0 0
      %375 = vmatprep.subr.bf16.mxu0 0
      %376 = vmatpush2.bf16.msra.mxu0 0
      %377 = vmatprep.subr.bf16.mxu0 0
      %378 = vmatpush2.bf16.msra.mxu0 0
      %379 = vmatprep.mubr.bf16.mxu0 0
      %380 = vmatmul.mubr.bf16.gmra.mxu0 %v283
      %v381 = vpop.f32.mrf.mxu0
      %v382 = vadd.f32 0.0, %v381
      %v383 = vpop.f32.mrf.mxu0
      %v384 = vpop.f32.mrf.mxu0
      %v385 = vadd.f32 0.0, %v384
      %v386 = vpop.f32.mrf.mxu0
      %387 = vmatprep.mubr.bf16.mxu0 0
      %388 = vmatmul.mubr.bf16.gmra.mxu0 %v284
      %v389 = vpop.f32.mrf.mxu0
      %v390 = vadd.f32 0.0, %v389
      %v391 = vpop.f32.mrf.mxu0
      %v392 = vpop.f32.mrf.mxu0
      %v393 = vadd.f32 0.0, %v392
      %v394 = vpop.f32.mrf.mxu0
      %395 = vmatprep.mubr.bf16.mxu0 0
      %396 = vmatmul.mubr.bf16.gmra.mxu0 %v285
      %v397 = vpop.f32.mrf.mxu0
      %v398 = vadd.f32 0.0, %v397
      %v399 = vpop.f32.mrf.mxu0
      %v400 = vpop.f32.mrf.mxu0
      %v401 = vadd.f32 0.0, %v400
      %v402 = vpop.f32.mrf.mxu0
      %403 = vmatprep.mubr.bf16.mxu0 0
      %404 = vmatmul.mubr.bf16.gmra.mxu0 %v286
      %v405 = vpop.f32.mrf.mxu0
      %v406 = vadd.f32 0.0, %v405
      %v407 = vpop.f32.mrf.mxu0
      %v408 = vpop.f32.mrf.mxu0
      %v409 = vadd.f32 0.0, %v408
      %v410 = vpop.f32.mrf.mxu0
      %411 = vmatprep.mubr.bf16.mxu0 0
      %412 = vmatmul.mubr.bf16.gmra.mxu0 %v287
      %v413 = vpop.f32.mrf.mxu0
      %v414 = vadd.f32 0.0, %v413
      %v415 = vpop.f32.mrf.mxu0
      %v416 = vpop.f32.mrf.mxu0
      %v417 = vadd.f32 0.0, %v416
      %v418 = vpop.f32.mrf.mxu0
      %419 = vmatprep.mubr.bf16.mxu0 0
      %420 = vmatmul.mubr.bf16.gmra.mxu0 %v288
      %v421 = vpop.f32.mrf.mxu0
      %v422 = vadd.f32 0.0, %v421
      %v423 = vpop.f32.mrf.mxu0
      %v424 = vpop.f32.mrf.mxu0
      %v425 = vadd.f32 0.0, %v424
      %v426 = vpop.f32.mrf.mxu0
      %427 = vmatprep.mubr.bf16.mxu0 0
      %428 = vmatmul.mubr.bf16.gmra.mxu0 %v289
      %v429 = vpop.f32.mrf.mxu0
      %v430 = vadd.f32 0.0, %v429
      %v431 = vpop.f32.mrf.mxu0
      %v432 = vpop.f32.mrf.mxu0
      %v433 = vadd.f32 0.0, %v432
      %v434 = vpop.f32.mrf.mxu0
      %435 = vmatprep.mubr.bf16.mxu0 0
      %436 = vmatmul.mubr.bf16.gmra.mxu0 %v290
      %v437 = vpop.f32.mrf.mxu0
      %v438 = vadd.f32 0.0, %v437
      %v439 = vpop.f32.mrf.mxu0
      %v440 = vpop.f32.mrf.mxu0
      %v441 = vadd.f32 0.0, %v440
      %v442 = vpop.f32.mrf.mxu0
      %443 = vdwg.mxu0
      %v444 = vpack.c.bf16 %v385, %v382
      %v445 = vpack.c.bf16 %v393, %v390
      %v446 = vpack.c.bf16 %v401, %v398
      %v447 = vpack.c.bf16 %v409, %v406
      %v448 = vpack.c.bf16 %v417, %v414
      %v449 = vpack.c.bf16 %v425, %v422
      %v450 = vpack.c.bf16 %v433, %v430
      %v451 = vpack.c.bf16 %v441, %v438
      %v460 = vunpack.c.l.b16 %v444
      %v461 = vunpack.c.h.b16 %v444
      %v462 = vunpack.c.l.b16 %v445
      %v463 = vunpack.c.h.b16 %v445
      %v464 = vunpack.c.l.b16 %v446
      %v465 = vunpack.c.h.b16 %v446
      %v466 = vunpack.c.l.b16 %v447
      %v467 = vunpack.c.h.b16 %v447
      %v468 = vunpack.c.l.b16 %v448
      %v469 = vunpack.c.h.b16 %v448
      %v470 = vunpack.c.l.b16 %v449
      %v471 = vunpack.c.h.b16 %v449
      %v472 = vunpack.c.l.b16 %v450
      %v473 = vunpack.c.h.b16 %v450
      %v474 = vunpack.c.l.b16 %v451
      %v475 = vunpack.c.h.b16 %v451
      %v476 = vpack.c.b16 %v460, %v460
      %v477 = vpack.c.b16 %v461, %v461
      %v478 = vpack.c.b16 %v462, %v462
      %v479 = vpack.c.b16 %v463, %v463
      %v480 = vpack.c.b16 %v464, %v464
      %v481 = vpack.c.b16 %v465, %v465
      %v482 = vpack.c.b16 %v466, %v466
      %v483 = vpack.c.b16 %v467, %v467
      %v484 = vpack.c.b16 %v468, %v468
      %v485 = vpack.c.b16 %v469, %v469
      %v486 = vpack.c.b16 %v470, %v470
      %v487 = vpack.c.b16 %v471, %v471
      %v488 = vpack.c.b16 %v472, %v472
      %v489 = vpack.c.b16 %v473, %v473
      %v490 = vpack.c.b16 %v474, %v474
      %v491 = vpack.c.b16 %v475, %v475
      %508 = vst [vmem:[%s210] sm:$0xf] %v476
      %509 = vst [vmem:[%s210 + $0x4] sm:$0xf] %v477
      %510 = vst [vmem:[%s210 + $0x8] sm:$0xf] %v478
      %511 = vst [vmem:[%s210 + $0xc] sm:$0xf] %v479
      %512 = vst [vmem:[%s210 + $0x10] sm:$0xf] %v480
      %513 = vst [vmem:[%s210 + $0x14] sm:$0xf] %v481
      %514 = vst [vmem:[%s210 + $0x18] sm:$0xf] %v482
      %515 = vst [vmem:[%s210 + $0x1c] sm:$0xf] %v483
      %516 = vst [vmem:[%s210 + $0x20] sm:$0xf] %v484
      %517 = vst [vmem:[%s210 + $0x24] sm:$0xf] %v485
      %518 = vst [vmem:[%s210 + $0x28] sm:$0xf] %v486
      %519 = vst [vmem:[%s210 + $0x2c] sm:$0xf] %v487
      %520 = vst [vmem:[%s210 + $0x30] sm:$0xf] %v488
      %521 = vst [vmem:[%s210 + $0x34] sm:$0xf] %v489
      %522 = vst [vmem:[%s210 + $0x38] sm:$0xf] %v490
      %523 = vst [vmem:[%s210 + $0x3c] sm:$0xf] %v491
      %v524 = vadd.f32 %v382, %v385
      %v525 = vadd.f32 %v524, %v390
      %v526 = vadd.f32 %v525, %v393
      %v527 = vadd.f32 %v526, %v398
      %v528 = vadd.f32 %v527, %v401
      %v529 = vadd.f32 %v528, %v406
      %v530 = vadd.f32 %v529, %v409
      %v531 = vadd.f32 %v530, %v414
      %v532 = vadd.f32 %v531, %v417
      %v533 = vadd.f32 %v532, %v422
      %v534 = vadd.f32 %v533, %v425
      %v535 = vadd.f32 %v534, %v430
      %v536 = vadd.f32 %v535, %v433
      %v537 = vadd.f32 %v536, %v438
      %v538 = vadd.f32 %v537, %v441
      %v539 = vrot.slane %v538, 4
      %v540 = vadd.f32 %v538, %v539
      %v541 = vrot.slane %v540, 2
      %v542 = vadd.f32 %v540, %v541
      %v543 = vrot.slane %v542, 1
      %v544 = vadd.f32 %v542, %v543
      %545 = vst [vmem:[%s214] sm:$0x1] %v544
      %v546 = vmul.f32 %v382, %v382
      %v547 = vmul.f32 %v385, %v385
      %v548 = vmul.f32 %v390, %v390
      %v549 = vmul.f32 %v393, %v393
      %v550 = vmul.f32 %v398, %v398
      %v551 = vmul.f32 %v401, %v401
      %v552 = vmul.f32 %v406, %v406
      %v553 = vmul.f32 %v409, %v409
      %v554 = vmul.f32 %v414, %v414
      %v555 = vmul.f32 %v417, %v417
      %v556 = vmul.f32 %v422, %v422
      %v557 = vmul.f32 %v425, %v425
      %v558 = vmul.f32 %v430, %v430
      %v559 = vmul.f32 %v433, %v433
      %v560 = vmul.f32 %v438, %v438
      %v561 = vmul.f32 %v441, %v441
      %v562 = vadd.f32 %v546, %v547
      %v563 = vadd.f32 %v562, %v548
      %v564 = vadd.f32 %v563, %v549
      %v565 = vadd.f32 %v564, %v550
      %v566 = vadd.f32 %v565, %v551
      %v567 = vadd.f32 %v566, %v552
      %v568 = vadd.f32 %v567, %v553
      %v569 = vadd.f32 %v568, %v554
      %v570 = vadd.f32 %v569, %v555
      %v571 = vadd.f32 %v570, %v556
      %v572 = vadd.f32 %v571, %v557
      %v573 = vadd.f32 %v572, %v558
      %v574 = vadd.f32 %v573, %v559
      %v575 = vadd.f32 %v574, %v560
      %v576 = vadd.f32 %v575, %v561
      %v577 = vrot.slane %v576, 4
      %v578 = vadd.f32 %v576, %v577
      %v579 = vrot.slane %v578, 2
      %v580 = vadd.f32 %v578, %v579
      %v581 = vrot.slane %v580, 1
      %v582 = vadd.f32 %v580, %v581
      %583 = vst [vmem:[%s217] sm:$0x1] %v582
      %s584 = smul.u32 16, %s16
      %p585 = scmp.lt.s32.totalorder %s584, 63
      %s586 = scalar_select %p585, %s584, 63
      %s587 = smul.addr %s586, 4
      %s588 = scalar_lea.vmem %s2, %s587
      %p589 = scmp.lt.s32.totalorder %s16, 3
      %s590 = scalar_select %p589, %s16, 3
      %s591 = scalar_lea.vmem %s3, %s590
      %p592 = scmp.lt.s32.totalorder %s16, 3
      %s593 = scalar_select %p592, %s16, 3
      %s594 = scalar_lea.vmem %s4, %s593
      // Predicated region
      $region29: #{bottleneck_forward.8} parent=27 // pred_check
        %p595 = pneg %p81
      $region30: #{bottleneck_forward.8} parent=27 // pred_check_branch
        %597 = sbr.rel (%p595) target = $region32
      $region31: #{bottleneck_forward.8} parent=27 // pred_region
        %s598 = smul.u32 16, %s16
      $region32: #{bottleneck_forward.8} parent=27 // pred_fallthru
        _
      // Predicated region
      $region33: #{bottleneck_forward.8} parent=27 // pred_check
        %p599 = pneg %p107
      $region34: #{bottleneck_forward.8} parent=27 // pred_check_branch
        %601 = sbr.rel (%p599) target = $region36
      $region35: #{bottleneck_forward.8} parent=27 // pred_region
        _
      $region36: #{bottleneck_forward.8} parent=27 // pred_fallthru
        _
      // Predicated region
      $region37: #{bottleneck_forward.8} parent=27 // pred_check
        %p602 = pneg %p133
      $region38: #{bottleneck_forward.8} parent=27 // pred_check_branch
        %604 = sbr.rel (%p602) target = $region40
      $region39: #{bottleneck_forward.8} parent=27 // pred_region
        _
      $region40: #{bottleneck_forward.8} parent=27 // pred_fallthru
        _
    $region28: #{bottleneck_forward.8} parent=5 // pred_fallthru
      _
    %p605 = scmp.le.s32.totalorder 2, %s11
    // Predicated region
    $region41: #{bottleneck_forward.8} parent=5 // pred_check
      %p606 = pneg %p605
    $region42: #{bottleneck_forward.8} parent=5 // pred_check_branch
      %608 = sbr.rel (%p606) target = $region44
    $region43: #{bottleneck_forward.8} parent=5 // pred_region
      %s609 = ssub.s32 %s11, 2
      // Predicated region
      $region45: #{bottleneck_forward.8} parent=43 // pred_check
        %p610 = pneg %p87
      $region46: #{bottleneck_forward.8} parent=43 // pred_check_branch
        %612 = sbr.rel (%p610) target = $region48
      $region47: #{bottleneck_forward.8} parent=43 // pred_region
        %s613 = smul.u32 16, %s17
        %p614 = scmp.lt.s32.totalorder %s613, 63
        %s615 = scalar_select %p614, %s613, 63
        %s616 = smul.addr %s615, 4
        %s617 = scalar_lea.vmem %s2, %s616
      $region48: #{bottleneck_forward.8} parent=43 // pred_fallthru
        _
      // Predicated region
      $region49: #{bottleneck_forward.8} parent=43 // pred_check
        %p618 = pneg %p113
      $region50: #{bottleneck_forward.8} parent=43 // pred_check_branch
        %620 = sbr.rel (%p618) target = $region52
      $region51: #{bottleneck_forward.8} parent=43 // pred_region
        %p621 = scmp.lt.s32.totalorder %s17, 3
        %s622 = scalar_select %p621, %s17, 3
        %s623 = scalar_lea.vmem %s3, %s622
      $region52: #{bottleneck_forward.8} parent=43 // pred_fallthru
        _
      // Predicated region
      $region53: #{bottleneck_forward.8} parent=43 // pred_check
        %p624 = pneg %p139
      $region54: #{bottleneck_forward.8} parent=43 // pred_check_branch
        %626 = sbr.rel (%p624) target = $region56
      $region55: #{bottleneck_forward.8} parent=43 // pred_region
        %p627 = scmp.lt.s32.totalorder %s17, 3
        %s628 = scalar_select %p627, %s17, 3
        %s629 = scalar_lea.vmem %s4, %s628
      $region56: #{bottleneck_forward.8} parent=43 // pred_fallthru
        _
    $region44: #{bottleneck_forward.8} parent=5 // pred_fallthru
      _
  $region6: #{bottleneck_forward.8} parent=0 // loop_footer
    %s15 = sadd.s32 1, %s11
  $region7: #{bottleneck_forward.8} parent=0 // loop_footer_branch
    %10 = sbr.rel target = $region3
  $region8: #{bottleneck_forward.8} parent=0 // loop_exit
    _

// kernel: bottleneck_forward.7
$region0: #{bottleneck_forward.7}
  #allocation0 [shape = 'u32[]', space=smem, size = 0x4, offset = 0x4, fixed_abs, tag = 'smem constant byte address 0x4 - core index']
  #allocation1 [shape = 'u32[144,128]{1,0:T(1,128)}', space=vmem, size = 0x12000, scoped, tag = 'internal scratch']
  %s0 = inlined_call_operand.vmem [shape: bf16[512,128], index: 0, kind: input, shape index: {}]
  %s1 = inlined_call_operand.vmem [shape: f32[1,128], index: 1, kind: input, shape index: {}]
  %s2 = inlined_call_operand.vmem [shape: f32[1,128], index: 2, kind: input, shape index: {}]
  %s3 = inlined_call_operand.vmem [shape: bf16[128,128], index: 3, kind: input, shape index: {}]
  %s4 = inlined_call_operand.vmem [shape: bf16[512,128], index: 4, kind: output, shape index: {0}]
  %s5 = inlined_call_operand.vmem [shape: f32[4,1,128], index: 5, kind: output, shape index: {1}]
  %s6 = inlined_call_operand.vmem [shape: f32[4,1,128], index: 6, kind: output, shape index: {2}]
  %7 = xla_tuple %s4, %s5, %s6
  %s8 = sld [smem:[#allocation0]]
  $region65: #{bottleneck_forward.7} parent=0
    _
  %s10 = ssub.s32 1, %s8
  %s11 = scalar_select 0, %s10, %s8
  loop: start=0, step=1, limit=6
  $region2: #{bottleneck_forward.7} parent=0 // loop_pre_header
    _
  $region3: #{bottleneck_forward.7} parent=0 // loop_header
    %s13 = sphi 0, %s17
    %p14 = scmp.ge.s32.totalorder %s13, 6
    %s23 = sphi 0, %s25
    %s26 = sphi 0, %s23
    %s27 = sphi 0, %s26
    %s43 = sphi 0, %s27
    %s47 = sphi 0, %s47
    %s49 = sphi 0, %s47
    %s50 = sphi 0, %s49
    %s64 = sphi 0, %s50
    %s68 = sphi 0, %s68
    %s70 = sphi 0, %s68
    %s71 = sphi 0, %s70
    %s85 = sphi 0, %s71
    %s89 = sphi 0, %s89
    %s91 = sphi 0, %s89
    %s92 = sphi 0, %s91
    %s106 = sphi 0, %s92
    %s112 = sphi 0, %s114
    %s115 = sphi 0, %s112
    %s116 = sphi 0, %s115
    %s132 = sphi 0, %s116
    %s138 = sphi 0, %s140
    %s141 = sphi 0, %s138
    %s142 = sphi 0, %s141
    %s158 = sphi 0, %s142
    %s164 = sphi 0, %s166
    %s167 = sphi 0, %s164
    %s168 = sphi 0, %s167
    %s184 = sphi 0, %s168
  $region4: #{bottleneck_forward.7} parent=0 // loop_header_branch
    %16 = sbr.rel (%p14) target = $region8
  $region5: #{bottleneck_forward.7} parent=0 // loop_body
    %s18 = ssub.s32 %s13, 1
    %s19 = ssub.s32 %s13, 2
    %s20 = sadd.s32 %s13, 1
    %s21 = ssub.s32 %s13, %s20
    %p22 = scmp.eq.s32.totalorder %s21, 0
    %s24 = sadd.s32 %s23, 1
    %s25 = scalar_select %p22, %s23, %s24
    %p28 = pneg %p22
    %p29 = scmp.eq.s32.totalorder %s13, 3
    %p30 = por %p28, %p29
    %p31 = scmp.ne.s32.totalorder %s23, %s26
    %p32 = scmp.eq.s32.totalorder %s13, 0
    %p33 = por %p31, %p32
    %p34 = scmp.ne.s32.totalorder %s23, %s26
    %p35 = scmp.eq.s32.totalorder %s18, 3
    %p36 = por %p34, %p35
    %p37 = scmp.ne.s32.totalorder %s26, %s27
    %p38 = scmp.eq.s32.totalorder %s18, 0
    %p39 = por %p37, %p38
    %p40 = scmp.ne.s32.totalorder %s26, %s27
    %p41 = scmp.eq.s32.totalorder %s19, 3
    %p42 = por %p40, %p41
    %p44 = scmp.ne.s32.totalorder %s27, %s43
    %p45 = scmp.eq.s32.totalorder %s19, 0
    %p46 = por %p44, %p45
    %s48 = sadd.s32 %s47, 1
    %p51 = scmp.eq.s32.totalorder %s13, 3
    %p52 = scmp.ne.s32.totalorder %s47, %s49
    %p53 = scmp.eq.s32.totalorder %s13, 0
    %p54 = por %p52, %p53
    %p55 = scmp.ne.s32.totalorder %s47, %s49
    %p56 = scmp.eq.s32.totalorder %s18, 3
    %p57 = por %p55, %p56
    %p58 = scmp.ne.s32.totalorder %s49, %s50
    %p59 = scmp.eq.s32.totalorder %s18, 0
    %p60 = por %p58, %p59
    %p61 = scmp.ne.s32.totalorder %s49, %s50
    %p62 = scmp.eq.s32.totalorder %s19, 3
    %p63 = por %p61, %p62
    %p65 = scmp.ne.s32.totalorder %s50, %s64
    %p66 = scmp.eq.s32.totalorder %s19, 0
    %p67 = por %p65, %p66
    %s69 = sadd.s32 %s68, 1
    %p72 = scmp.eq.s32.totalorder %s13, 3
    %p73 = scmp.ne.s32.totalorder %s68, %s70
    %p74 = scmp.eq.s32.totalorder %s13, 0
    %p75 = por %p73, %p74
    %p76 = scmp.ne.s32.totalorder %s68, %s70
    %p77 = scmp.eq.s32.totalorder %s18, 3
    %p78 = por %p76, %p77
    %p79 = scmp.ne.s32.totalorder %s70, %s71
    %p80 = scmp.eq.s32.totalorder %s18, 0
    %p81 = por %p79, %p80
    %p82 = scmp.ne.s32.totalorder %s70, %s71
    %p83 = scmp.eq.s32.totalorder %s19, 3
    %p84 = por %p82, %p83
    %p86 = scmp.ne.s32.totalorder %s71, %s85
    %p87 = scmp.eq.s32.totalorder %s19, 0
    %p88 = por %p86, %p87
    %s90 = sadd.s32 %s89, 1
    %p93 = scmp.eq.s32.totalorder %s13, 3
    %p94 = scmp.ne.s32.totalorder %s89, %s91
    %p95 = scmp.eq.s32.totalorder %s13, 0
    %p96 = por %p94, %p95
    %p97 = scmp.ne.s32.totalorder %s89, %s91
    %p98 = scmp.eq.s32.totalorder %s18, 3
    %p99 = por %p97, %p98
    %p100 = scmp.ne.s32.totalorder %s91, %s92
    %p101 = scmp.eq.s32.totalorder %s18, 0
    %p102 = por %p100, %p101
    %p103 = scmp.ne.s32.totalorder %s91, %s92
    %p104 = scmp.eq.s32.totalorder %s19, 3
    %p105 = por %p103, %p104
    %p107 = scmp.ne.s32.totalorder %s92, %s106
    %p108 = scmp.eq.s32.totalorder %s19, 0
    %p109 = por %p107, %p108
    %s110 = ssub.s32 %s13, %s20
    %p111 = scmp.eq.s32.totalorder %s110, 0
    %s113 = sadd.s32 %s112, 1
    %s114 = scalar_select %p111, %s112, %s113
    %p117 = pneg %p111
    %p118 = scmp.eq.s32.totalorder %s13, 3
    %p119 = por %p117, %p118
    %p120 = scmp.ne.s32.totalorder %s112, %s115
    %p121 = scmp.eq.s32.totalorder %s13, 0
    %p122 = por %p120, %p121
    %p123 = scmp.ne.s32.totalorder %s112, %s115
    %p124 = scmp.eq.s32.totalorder %s18, 3
    %p125 = por %p123, %p124
    %p126 = scmp.ne.s32.totalorder %s115, %s116
    %p127 = scmp.eq.s32.totalorder %s18, 0
    %p128 = por %p126, %p127
    %p129 = scmp.ne.s32.totalorder %s115, %s116
    %p130 = scmp.eq.s32.totalorder %s19, 3
    %p131 = por %p129, %p130
    %p133 = scmp.ne.s32.totalorder %s116, %s132
    %p134 = scmp.eq.s32.totalorder %s19, 0
    %p135 = por %p133, %p134
    %s136 = ssub.s32 %s13, %s20
    %p137 = scmp.eq.s32.totalorder %s136, 0
    %s139 = sadd.s32 %s138, 1
    %s140 = scalar_select %p137, %s138, %s139
    %p143 = pneg %p137
    %p144 = scmp.eq.s32.totalorder %s13, 3
    %p145 = por %p143, %p144
    %p146 = scmp.ne.s32.totalorder %s138, %s141
    %p147 = scmp.eq.s32.totalorder %s13, 0
    %p148 = por %p146, %p147
    %p149 = scmp.ne.s32.totalorder %s138, %s141
    %p150 = scmp.eq.s32.totalorder %s18, 3
    %p151 = por %p149, %p150
    %p152 = scmp.ne.s32.totalorder %s141, %s142
    %p153 = scmp.eq.s32.totalorder %s18, 0
    %p154 = por %p152, %p153
    %p155 = scmp.ne.s32.totalorder %s141, %s142
    %p156 = scmp.eq.s32.totalorder %s19, 3
    %p157 = por %p155, %p156
    %p159 = scmp.ne.s32.totalorder %s142, %s158
    %p160 = scmp.eq.s32.totalorder %s19, 0
    %p161 = por %p159, %p160
    %s162 = ssub.s32 %s13, %s20
    %p163 = scmp.eq.s32.totalorder %s162, 0
    %s165 = sadd.s32 %s164, 1
    %s166 = scalar_select %p163, %s164, %s165
    %p169 = pneg %p163
    %p170 = scmp.eq.s32.totalorder %s13, 3
    %p171 = por %p169, %p170
    %p172 = scmp.ne.s32.totalorder %s164, %s167
    %p173 = scmp.eq.s32.totalorder %s13, 0
    %p174 = por %p172, %p173
    %p175 = scmp.ne.s32.totalorder %s164, %s167
    %p176 = scmp.eq.s32.totalorder %s18, 3
    %p177 = por %p175, %p176
    %p178 = scmp.ne.s32.totalorder %s167, %s168
    %p179 = scmp.eq.s32.totalorder %s18, 0
    %p180 = por %p178, %p179
    %p181 = scmp.ne.s32.totalorder %s167, %s168
    %p182 = scmp.eq.s32.totalorder %s19, 3
    %p183 = por %p181, %p182
    %p185 = scmp.ne.s32.totalorder %s168, %s184
    %p186 = scmp.eq.s32.totalorder %s19, 0
    %p187 = por %p185, %p186
    %p188 = scmp.le.s32.totalorder 1, %s13
    %p189 = scmp.lt.s32.totalorder %s13, 5
    %p190 = pnand %p188, %p189
    %p191 = pneg %p190
    // Predicated region
    $region9: #{bottleneck_forward.7} parent=5 // pred_check
      _
    $region10: #{bottleneck_forward.7} parent=5 // pred_check_branch
      %193 = sbr.rel (%p190) target = $region12
    $region11: #{bottleneck_forward.7} parent=5 // pred_region
      %s194 = ssub.s32 %s13, 1
      // Predicated region
      $region13: #{bottleneck_forward.7} parent=11 // pred_check
        %p195 = pneg %p60
      $region14: #{bottleneck_forward.7} parent=11 // pred_check_branch
        %197 = sbr.rel (%p195) target = $region16
      $region15: #{bottleneck_forward.7} parent=11 // pred_region
        _
      $region16: #{bottleneck_forward.7} parent=11 // pred_fallthru
        _
      // Predicated region
      $region17: #{bottleneck_forward.7} parent=11 // pred_check
        %p198 = pneg %p81
      $region18: #{bottleneck_forward.7} parent=11 // pred_check_branch
        %200 = sbr.rel (%p198) target = $region20
      $region19: #{bottleneck_forward.7} parent=11 // pred_region
        _
      $region20: #{bottleneck_forward.7} parent=11 // pred_fallthru
        _
      // Predicated region
      $region21: #{bottleneck_forward.7} parent=11 // pred_check
        %p201 = pneg %p102
      $region22: #{bottleneck_forward.7} parent=11 // pred_check_branch
        %203 = sbr.rel (%p201) target = $region24
      $region23: #{bottleneck_forward.7} parent=11 // pred_region
        _
      $region24: #{bottleneck_forward.7} parent=11 // pred_fallthru
        _
    $region12: #{bottleneck_forward.7} parent=5 // pred_fallthru
      _
    %p204 = scmp.lt.s32.totalorder %s13, 4
    // Predicated region
    $region25: #{bottleneck_forward.7} parent=5 // pred_check
      %p205 = pneg %p204
    $region26: #{bottleneck_forward.7} parent=5 // pred_check_branch
      %207 = sbr.rel (%p205) target = $region28
    $region27: #{bottleneck_forward.7} parent=5 // pred_region
      // Predicated region
      $region29: #{bottleneck_forward.7} parent=27 // pred_check
        %p208 = pneg %p33
      $region30: #{bottleneck_forward.7} parent=27 // pred_check_branch
        %210 = sbr.rel (%p208) target = $region32
      $region31: #{bottleneck_forward.7} parent=27 // pred_region
        %s211 = smul.u32 16, %s13
        %p212 = scmp.lt.s32.totalorder %s211, 63
        %s213 = scalar_select %p212, %s211, 63
        %s214 = smul.addr %s213, 4
        %s215 = scalar_lea.vmem %s0, %s214
        %s216 = smul.u32 16, %s13
      $region32: #{bottleneck_forward.7} parent=27 // pred_fallthru
        _
    $region28: #{bottleneck_forward.7} parent=5 // pred_fallthru
      _
    %p217 = scmp.le.s32.totalorder 1, %s13
    %p218 = scmp.lt.s32.totalorder %s13, 5
    %p219 = pnand %p217, %p218
    %p220 = pneg %p219
    // Predicated region
    $region33: #{bottleneck_forward.7} parent=5 // pred_check
      _
    $region34: #{bottleneck_forward.7} parent=5 // pred_check_branch
      %222 = sbr.rel (%p219) target = $region36
    $region35: #{bottleneck_forward.7} parent=5 // pred_region
      %s223 = ssub.s32 %s13, 1
      %s224 = smul.u32 16, %s18
      %p225 = scmp.lt.s32.totalorder %s224, 63
      %s226 = scalar_select %p225, %s224, 63
      %s227 = smul.addr %s226, 4
      %s228 = scalar_lea.vmem %s0, %s227
      %p229 = pneg %p39
      %p230 = pneg %p36
      %p231 = pneg %p60
      %p232 = pneg %p57
      %p233 = pneg %p81
      %p234 = pneg %p78
      %p235 = pneg %p102
      %p236 = pneg %p99
      %p237 = pneg %p128
      %p238 = pneg %p125
      %s239 = smul.u32 16, %s18
      %p240 = scmp.lt.s32.totalorder %s239, 63
      %s241 = scalar_select %p240, %s239, 63
      %s242 = smul.addr %s241, 4
      %s243 = scalar_lea.vmem %s4, %s242
      %p244 = pneg %p154
      %p245 = pneg %p151
      %p246 = scmp.lt.s32.totalorder %s18, 3
      %s247 = scalar_select %p246, %s18, 3
      %s248 = scalar_lea.vmem %s5, %s247
      %p249 = pneg %p180
      %p250 = pneg %p177
      %p251 = scmp.lt.s32.totalorder %s18, 3
      %s252 = scalar_select %p251, %s18, 3
      %s253 = scalar_lea.vmem %s6, %s252
      %s254 = smul.u32 16, %s18
      %p255 = scmp.lt.s32.totalorder %s254, 63
      %s256 = scalar_select %p255, %s254, 63
      %s257 = smul.addr %s256, 4
      %s258 = scalar_lea.vmem %s0, %s257
      %s259 = smul.u32 16, %s18
      %s260 = smul.u32 16, %s18
      %p261 = scmp.lt.s32.totalorder %s260, 63
      %s262 = scalar_select %p261, %s260, 63
      %s263 = smul.addr %s262, 4
      %s264 = scalar_lea.vmem %s4, %s263
      %s265 = smul.u32 16, %s18
      %p266 = scmp.lt.s32.totalorder %s18, 3
      %s267 = scalar_select %p266, %s18, 3
      %s268 = scalar_lea.vmem %s5, %s267
      %p269 = scmp.lt.s32.totalorder %s18, 3
      %s270 = scalar_select %p269, %s18, 3
      %s271 = scalar_lea.vmem %s6, %s270
      %v273 = vld [vmem:[%s258] sm:$0xf]
      %v274 = vld [vmem:[%s258 + $0x4] sm:$0xf]
      %v275 = vld [vmem:[%s258 + $0x8] sm:$0xf]
      %v276 = vld [vmem:[%s258 + $0xc] sm:$0xf]
      %v277 = vld [vmem:[%s258 + $0x10] sm:$0xf]
      %v278 = vld [vmem:[%s258 + $0x14] sm:$0xf]
      %v279 = vld [vmem:[%s258 + $0x18] sm:$0xf]
      %v280 = vld [vmem:[%s258 + $0x1c] sm:$0xf]
      %v281 = vld [vmem:[%s258 + $0x20] sm:$0xf]
      %v282 = vld [vmem:[%s258 + $0x24] sm:$0xf]
      %v283 = vld [vmem:[%s258 + $0x28] sm:$0xf]
      %v284 = vld [vmem:[%s258 + $0x2c] sm:$0xf]
      %v285 = vld [vmem:[%s258 + $0x30] sm:$0xf]
      %v286 = vld [vmem:[%s258 + $0x34] sm:$0xf]
      %v287 = vld [vmem:[%s258 + $0x38] sm:$0xf]
      %v288 = vld [vmem:[%s258 + $0x3c] sm:$0xf]
      %v289 = vunpack.c.l.bf16 %v273
      %v290 = vunpack.c.l.bf16 %v274
      %v291 = vunpack.c.l.bf16 %v275
      %v292 = vunpack.c.l.bf16 %v276
      %v293 = vunpack.c.l.bf16 %v277
      %v294 = vunpack.c.l.bf16 %v278
      %v295 = vunpack.c.l.bf16 %v279
      %v296 = vunpack.c.l.bf16 %v280
      %v297 = vunpack.c.l.bf16 %v281
      %v298 = vunpack.c.l.bf16 %v282
      %v299 = vunpack.c.l.bf16 %v283
      %v300 = vunpack.c.l.bf16 %v284
      %v301 = vunpack.c.l.bf16 %v285
      %v302 = vunpack.c.l.bf16 %v286
      %v303 = vunpack.c.l.bf16 %v287
      %v304 = vunpack.c.l.bf16 %v288
      %v305 = vld [vmem:[%s1] sm:$0x1]
      %v307 = vlaneseq
      %v308 = vshrl.u32 %v307, 7
      %v309 = vsub.s32 0, %v308
      %v310 = vrot.slane %v305, %v309
      %v312 = vmul.f32 %v289, %v310
      %v313 = vmul.f32 %v290, %v310
      %v314 = vmul.f32 %v291, %v310
      %v315 = vmul.f32 %v292, %v310
      %v316 = vmul.f32 %v293, %v310
      %v317 = vmul.f32 %v294, %v310
      %v318 = vmul.f32 %v295, %v310
      %v319 = vmul.f32 %v296, %v310
      %v320 = vmul.f32 %v297, %v310
      %v321 = vmul.f32 %v298, %v310
      %v322 = vmul.f32 %v299, %v310
      %v323 = vmul.f32 %v300, %v310
      %v324 = vmul.f32 %v301, %v310
      %v325 = vmul.f32 %v302, %v310
      %v326 = vmul.f32 %v303, %v310
      %v327 = vmul.f32 %v304, %v310
      %v328 = vld [vmem:[%s2] sm:$0x1]
      %v330 = vlaneseq
      %v331 = vshrl.u32 %v330, 7
      %v332 = vsub.s32 0, %v331
      %v333 = vrot.slane %v328, %v332
      %v335 = vadd.f32 %v312, %v333
      %v336 = vadd.f32 %v313, %v333
      %v337 = vadd.f32 %v314, %v333
      %v338 = vadd.f32 %v315, %v333
      %v339 = vadd.f32 %v316, %v333
      %v340 = vadd.f32 %v317, %v333
      %v341 = vadd.f32 %v318, %v333
      %v342 = vadd.f32 %v319, %v333
      %v343 = vadd.f32 %v320, %v333
      %v344 = vadd.f32 %v321, %v333
      %v345 = vadd.f32 %v322, %v333
      %v346 = vadd.f32 %v323, %v333
      %v347 = vadd.f32 %v324, %v333
      %v348 = vadd.f32 %v325, %v333
      %v349 = vadd.f32 %v326, %v333
      %v350 = vadd.f32 %v327, %v333
      %v351 = vmax.f32 %v335, 0.0
      %v352 = vmax.f32 %v336, 0.0
      %v353 = vmax.f32 %v337, 0.0
      %v354 = vmax.f32 %v338, 0.0
      %v355 = vmax.f32 %v339, 0.0
      %v356 = vmax.f32 %v340, 0.0
      %v357 = vmax.f32 %v341, 0.0
      %v358 = vmax.f32 %v342, 0.0
      %v359 = vmax.f32 %v343, 0.0
      %v360 = vmax.f32 %v344, 0.0
      %v361 = vmax.f32 %v345, 0.0
      %v362 = vmax.f32 %v346, 0.0
      %v363 = vmax.f32 %v347, 0.0
      %v364 = vmax.f32 %v348, 0.0
      %v365 = vmax.f32 %v349, 0.0
      %v366 = vmax.f32 %v350, 0.0
      %v367 = vpack.c.bf16 %v352, %v351
      %v368 = vpack.c.bf16 %v354, %v353
      %v369 = vpack.c.bf16 %v356, %v355
      %v370 = vpack.c.bf16 %v358, %v357
      %v371 = vpack.c.bf16 %v360, %v359
      %v372 = vpack.c.bf16 %v362, %v361
      %v373 = vpack.c.bf16 %v364, %v363
      %v374 = vpack.c.bf16 %v366, %v365
      %v375 = vld [vmem:[%s3] sm:$0xf]
      %v376 = vld [vmem:[%s3 + $0x4] sm:$0xf]
      %v377 = vld [vmem:[%s3 + $0x8] sm:$0xf]
      %v378 = vld [vmem:[%s3 + $0xc] sm:$0xf]
      %v379 = vld [vmem:[%s3 + $0x10] sm:$0xf]
      %v380 = vld [vmem:[%s3 + $0x14] sm:$0xf]
      %v381 = vld [vmem:[%s3 + $0x18] sm:$0xf]
      %v382 = vld [vmem:[%s3 + $0x1c] sm:$0xf]
      %v383 = vld [vmem:[%s3 + $0x20] sm:$0xf]
      %v384 = vld [vmem:[%s3 + $0x24] sm:$0xf]
      %v385 = vld [vmem:[%s3 + $0x28] sm:$0xf]
      %v386 = vld [vmem:[%s3 + $0x2c] sm:$0xf]
      %v387 = vld [vmem:[%s3 + $0x30] sm:$0xf]
      %v388 = vld [vmem:[%s3 + $0x34] sm:$0xf]
      %v389 = vld [vmem:[%s3 + $0x38] sm:$0xf]
      %v390 = vld [vmem:[%s3 + $0x3c] sm:$0xf]
      %v407 = vunpack.c.l.b16 %v375
      %v408 = vunpack.c.l.b16 %v376
      %v409 = vunpack.c.l.b16 %v377
      %v410 = vunpack.c.l.b16 %v378
      %v411 = vunpack.c.l.b16 %v379
      %v412 = vunpack.c.l.b16 %v380
      %v413 = vunpack.c.l.b16 %v381
      %v414 = vunpack.c.l.b16 %v382
      %v415 = vunpack.c.l.b16 %v383
      %v416 = vunpack.c.l.b16 %v384
      %v417 = vunpack.c.l.b16 %v385
      %v418 = vunpack.c.l.b16 %v386
      %v419 = vunpack.c.l.b16 %v387
      %v420 = vunpack.c.l.b16 %v388
      %v421 = vunpack.c.l.b16 %v389
      %v422 = vunpack.c.l.b16 %v390
      %v423 = vpack.c.b16 %v408, %v407
      %v424 = vpack.c.b16 %v410, %v409
      %v425 = vpack.c.b16 %v412, %v411
      %v426 = vpack.c.b16 %v414, %v413
      %v427 = vpack.c.b16 %v416, %v415
      %v428 = vpack.c.b16 %v418, %v417
      %v429 = vpack.c.b16 %v420, %v419
      %v430 = vpack.c.b16 %v422, %v421
      %439 = vmatprep.subr.bf16.mxu0 0
      %440 = vmatpush1.bf16.msra.mxu0 %v430
      %441 = vmatprep.subr.bf16.mxu0 0
      %442 = vmatpush1.bf16.msra.mxu0 %v429
      %443 = vmatprep.subr.bf16.mxu0 0
      %444 = vmatpush1.bf16.msra.mxu0 %v428
      %445 = vmatprep.subr.bf16.mxu0 0
      %446 = vmatpush1.bf16.msra.mxu0 %v427
      %447 = vmatprep.subr.bf16.mxu0 0
      %448 = vmatpush1.bf16.msra.mxu0 %v426
      %449 = vmatprep.subr.bf16.mxu0 0
      %450 = vmatpush1.bf16.msra.mxu0 %v425
      %451 = vmatprep.subr.bf16.mxu0 0
      %452 = vmatpush1.bf16.msra.mxu0 %v424
      %453 = vmatprep.subr.bf16.mxu0 0
      %454 = vmatpush1.bf16.msra.mxu0 %v423
      %455 = vmatprep.subr.bf16.mxu0 0
      %456 = vmatpush2.bf16.msra.mxu0 0
      %457 = vmatprep.subr.bf16.mxu0 0
      %458 = vmatpush2.bf16.msra.mxu0 0
      %459 = vmatprep.subr.bf16.mxu0 0
      %460 = vmatpush2.bf16.msra.mxu0 0
      %461 = vmatprep.subr.bf16.mxu0 0
      %462 = vmatpush2.bf16.msra.mxu0 0
      %463 = vmatprep.subr.bf16.mxu0 0
      %464 = vmatpush2.bf16.msra.mxu0 0
      %465 = vmatprep.subr.bf16.mxu0 0
      %466 = vmatpush2.bf16.msra.mxu0 0
      %467 = vmatprep.subr.bf16.mxu0 0
      %468 = vmatpush2.bf16.msra.mxu0 0
      %469 = vmatprep.subr.bf16.mxu0 0
      %470 = vmatpush2.bf16.msra.mxu0 0
      %471 = vmatprep.mubr.bf16.mxu0 0
      %472 = vmatmul.mubr.bf16.gmra.mxu0 %v367
      %v473 = vpop.f32.mrf.mxu0
      %v474 = vadd.f32 0.0, %v473
      %v475 = vpop.f32.mrf.mxu0
      %v476 = vpop.f32.mrf.mxu0
      %v477 = vadd.f32 0.0, %v476
      %v478 = vpop.f32.mrf.mxu0
      %479 = vmatprep.mubr.bf16.mxu0 0
      %480 = vmatmul.mubr.bf16.gmra.mxu0 %v368
      %v481 = vpop.f32.mrf.mxu0
      %v482 = vadd.f32 0.0, %v481
      %v483 = vpop.f32.mrf.mxu0
      %v484 = vpop.f32.mrf.mxu0
      %v485 = vadd.f32 0.0, %v484
      %v486 = vpop.f32.mrf.mxu0
      %487 = vmatprep.mubr.bf16.mxu0 0
      %488 = vmatmul.mubr.bf16.gmra.mxu0 %v369
      %v489 = vpop.f32.mrf.mxu0
      %v490 = vadd.f32 0.0, %v489
      %v491 = vpop.f32.mrf.mxu0
      %v492 = vpop.f32.mrf.mxu0
      %v493 = vadd.f32 0.0, %v492
      %v494 = vpop.f32.mrf.mxu0
      %495 = vmatprep.mubr.bf16.mxu0 0
      %496 = vmatmul.mubr.bf16.gmra.mxu0 %v370
      %v497 = vpop.f32.mrf.mxu0
      %v498 = vadd.f32 0.0, %v497
      %v499 = vpop.f32.mrf.mxu0
      %v500 = vpop.f32.mrf.mxu0
      %v501 = vadd.f32 0.0, %v500
      %v502 = vpop.f32.mrf.mxu0
      %503 = vmatprep.mubr.bf16.mxu0 0
      %504 = vmatmul.mubr.bf16.gmra.mxu0 %v371
      %v505 = vpop.f32.mrf.mxu0
      %v506 = vadd.f32 0.0, %v505
      %v507 = vpop.f32.mrf.mxu0
      %v508 = vpop.f32.mrf.mxu0
      %v509 = vadd.f32 0.0, %v508
      %v510 = vpop.f32.mrf.mxu0
      %511 = vmatprep.mubr.bf16.mxu0 0
      %512 = vmatmul.mubr.bf16.gmra.mxu0 %v372
      %v513 = vpop.f32.mrf.mxu0
      %v514 = vadd.f32 0.0, %v513
      %v515 = vpop.f32.mrf.mxu0
      %v516 = vpop.f32.mrf.mxu0
      %v517 = vadd.f32 0.0, %v516
      %v518 = vpop.f32.mrf.mxu0
      %519 = vmatprep.mubr.bf16.mxu0 0
      %520 = vmatmul.mubr.bf16.gmra.mxu0 %v373
      %v521 = vpop.f32.mrf.mxu0
      %v522 = vadd.f32 0.0, %v521
      %v523 = vpop.f32.mrf.mxu0
      %v524 = vpop.f32.mrf.mxu0
      %v525 = vadd.f32 0.0, %v524
      %v526 = vpop.f32.mrf.mxu0
      %527 = vmatprep.mubr.bf16.mxu0 0
      %528 = vmatmul.mubr.bf16.gmra.mxu0 %v374
      %v529 = vpop.f32.mrf.mxu0
      %v530 = vadd.f32 0.0, %v529
      %v531 = vpop.f32.mrf.mxu0
      %v532 = vpop.f32.mrf.mxu0
      %v533 = vadd.f32 0.0, %v532
      %v534 = vpop.f32.mrf.mxu0
      %535 = vdwg.mxu0
      %v536 = vpack.c.bf16 %v477, %v474
      %v537 = vpack.c.bf16 %v485, %v482
      %v538 = vpack.c.bf16 %v493, %v490
      %v539 = vpack.c.bf16 %v501, %v498
      %v540 = vpack.c.bf16 %v509, %v506
      %v541 = vpack.c.bf16 %v517, %v514
      %v542 = vpack.c.bf16 %v525, %v522
      %v543 = vpack.c.bf16 %v533, %v530
      %v552 = vunpack.c.l.b16 %v536
      %v553 = vunpack.c.h.b16 %v536
      %v554 = vunpack.c.l.b16 %v537
      %v555 = vunpack.c.h.b16 %v537
      %v556 = vunpack.c.l.b16 %v538
      %v557 = vunpack.c.h.b16 %v538
      %v558 = vunpack.c.l.b16 %v539
      %v559 = vunpack.c.h.b16 %v539
      %v560 = vunpack.c.l.b16 %v540
      %v561 = vunpack.c.h.b16 %v540
      %v562 = vunpack.c.l.b16 %v541
      %v563 = vunpack.c.h.b16 %v541
      %v564 = vunpack.c.l.b16 %v542
      %v565 = vunpack.c.h.b16 %v542
      %v566 = vunpack.c.l.b16 %v543
      %v567 = vunpack.c.h.b16 %v543
      %v568 = vpack.c.b16 %v552, %v552
      %v569 = vpack.c.b16 %v553, %v553
      %v570 = vpack.c.b16 %v554, %v554
      %v571 = vpack.c.b16 %v555, %v555
      %v572 = vpack.c.b16 %v556, %v556
      %v573 = vpack.c.b16 %v557, %v557
      %v574 = vpack.c.b16 %v558, %v558
      %v575 = vpack.c.b16 %v559, %v559
      %v576 = vpack.c.b16 %v560, %v560
      %v577 = vpack.c.b16 %v561, %v561
      %v578 = vpack.c.b16 %v562, %v562
      %v579 = vpack.c.b16 %v563, %v563
      %v580 = vpack.c.b16 %v564, %v564
      %v581 = vpack.c.b16 %v565, %v565
      %v582 = vpack.c.b16 %v566, %v566
      %v583 = vpack.c.b16 %v567, %v567
      %600 = vst [vmem:[%s264] sm:$0xf] %v568
      %601 = vst [vmem:[%s264 + $0x4] sm:$0xf] %v569
      %602 = vst [vmem:[%s264 + $0x8] sm:$0xf] %v570
      %603 = vst [vmem:[%s264 + $0xc] sm:$0xf] %v571
      %604 = vst [vmem:[%s264 + $0x10] sm:$0xf] %v572
      %605 = vst [vmem:[%s264 + $0x14] sm:$0xf] %v573
      %606 = vst [vmem:[%s264 + $0x18] sm:$0xf] %v574
      %607 = vst [vmem:[%s264 + $0x1c] sm:$0xf] %v575
      %608 = vst [vmem:[%s264 + $0x20] sm:$0xf] %v576
      %609 = vst [vmem:[%s264 + $0x24] sm:$0xf] %v577
      %610 = vst [vmem:[%s264 + $0x28] sm:$0xf] %v578
      %611 = vst [vmem:[%s264 + $0x2c] sm:$0xf] %v579
      %612 = vst [vmem:[%s264 + $0x30] sm:$0xf] %v580
      %613 = vst [vmem:[%s264 + $0x34] sm:$0xf] %v581
      %614 = vst [vmem:[%s264 + $0x38] sm:$0xf] %v582
      %615 = vst [vmem:[%s264 + $0x3c] sm:$0xf] %v583
      %v616 = vadd.f32 %v474, %v477
      %v617 = vadd.f32 %v616, %v482
      %v618 = vadd.f32 %v617, %v485
      %v619 = vadd.f32 %v618, %v490
      %v620 = vadd.f32 %v619, %v493
      %v621 = vadd.f32 %v620, %v498
      %v622 = vadd.f32 %v621, %v501
      %v623 = vadd.f32 %v622, %v506
      %v624 = vadd.f32 %v623, %v509
      %v625 = vadd.f32 %v624, %v514
      %v626 = vadd.f32 %v625, %v517
      %v627 = vadd.f32 %v626, %v522
      %v628 = vadd.f32 %v627, %v525
      %v629 = vadd.f32 %v628, %v530
      %v630 = vadd.f32 %v629, %v533
      %v631 = vrot.slane %v630, 4
      %v632 = vadd.f32 %v630, %v631
      %v633 = vrot.slane %v632, 2
      %v634 = vadd.f32 %v632, %v633
      %v635 = vrot.slane %v634, 1
      %v636 = vadd.f32 %v634, %v635
      %637 = vst [vmem:[%s268] sm:$0x1] %v636
      %v638 = vmul.f32 %v474, %v474
      %v639 = vmul.f32 %v477, %v477
      %v640 = vmul.f32 %v482, %v482
      %v641 = vmul.f32 %v485, %v485
      %v642 = vmul.f32 %v490, %v490
      %v643 = vmul.f32 %v493, %v493
      %v644 = vmul.f32 %v498, %v498
      %v645 = vmul.f32 %v501, %v501
      %v646 = vmul.f32 %v506, %v506
      %v647 = vmul.f32 %v509, %v509
      %v648 = vmul.f32 %v514, %v514
      %v649 = vmul.f32 %v517, %v517
      %v650 = vmul.f32 %v522, %v522
      %v651 = vmul.f32 %v525, %v525
      %v652 = vmul.f32 %v530, %v530
      %v653 = vmul.f32 %v533, %v533
      %v654 = vadd.f32 %v638, %v639
      %v655 = vadd.f32 %v654, %v640
      %v656 = vadd.f32 %v655, %v641
      %v657 = vadd.f32 %v656, %v642
      %v658 = vadd.f32 %v657, %v643
      %v659 = vadd.f32 %v658, %v644
      %v660 = vadd.f32 %v659, %v645
      %v661 = vadd.f32 %v660, %v646
      %v662 = vadd.f32 %v661, %v647
      %v663 = vadd.f32 %v662, %v648
      %v664 = vadd.f32 %v663, %v649
      %v665 = vadd.f32 %v664, %v650
      %v666 = vadd.f32 %v665, %v651
      %v667 = vadd.f32 %v666, %v652
      %v668 = vadd.f32 %v667, %v653
      %v669 = vrot.slane %v668, 4
      %v670 = vadd.f32 %v668, %v669
      %v671 = vrot.slane %v670, 2
      %v672 = vadd.f32 %v670, %v671
      %v673 = vrot.slane %v672, 1
      %v674 = vadd.f32 %v672, %v673
      %675 = vst [vmem:[%s271] sm:$0x1] %v674
      %s676 = smul.u32 16, %s18
      %p677 = scmp.lt.s32.totalorder %s676, 63
      %s678 = scalar_select %p677, %s676, 63
      %s679 = smul.addr %s678, 4
      %s680 = scalar_lea.vmem %s4, %s679
      %p681 = scmp.lt.s32.totalorder %s18, 3
      %s682 = scalar_select %p681, %s18, 3
      %s683 = scalar_lea.vmem %s5, %s682
      %p684 = scmp.lt.s32.totalorder %s18, 3
      %s685 = scalar_select %p684, %s18, 3
      %s686 = scalar_lea.vmem %s6, %s685
      // Predicated region
      $region37: #{bottleneck_forward.7} parent=35 // pred_check
        %p687 = pneg %p125
      $region38: #{bottleneck_forward.7} parent=35 // pred_check_branch
        %689 = sbr.rel (%p687) target = $region40
      $region39: #{bottleneck_forward.7} parent=35 // pred_region
        %s690 = smul.u32 16, %s18
      $region40: #{bottleneck_forward.7} parent=35 // pred_fallthru
        _
      // Predicated region
      $region41: #{bottleneck_forward.7} parent=35 // pred_check
        %p691 = pneg %p151
      $region42: #{bottleneck_forward.7} parent=35 // pred_check_branch
        %693 = sbr.rel (%p691) target = $region44
      $region43: #{bottleneck_forward.7} parent=35 // pred_region
        _
      $region44: #{bottleneck_forward.7} parent=35 // pred_fallthru
        _
      // Predicated region
      $region45: #{bottleneck_forward.7} parent=35 // pred_check
        %p694 = pneg %p177
      $region46: #{bottleneck_forward.7} parent=35 // pred_check_branch
        %696 = sbr.rel (%p694) target = $region48
      $region47: #{bottleneck_forward.7} parent=35 // pred_region
        _
      $region48: #{bottleneck_forward.7} parent=35 // pred_fallthru
        _
    $region36: #{bottleneck_forward.7} parent=5 // pred_fallthru
      _
    %p697 = scmp.le.s32.totalorder 2, %s13
    // Predicated region
    $region49: #{bottleneck_forward.7} parent=5 // pred_check
      %p698 = pneg %p697
    $region50: #{bottleneck_forward.7} parent=5 // pred_check_branch
      %700 = sbr.rel (%p698) target = $region52
    $region51: #{bottleneck_forward.7} parent=5 // pred_region
      %s701 = ssub.s32 %s13, 2
      // Predicated region
      $region53: #{bottleneck_forward.7} parent=51 // pred_check
        %p702 = pneg %p131
      $region54: #{bottleneck_forward.7} parent=51 // pred_check_branch
        %704 = sbr.rel (%p702) target = $region56
      $region55: #{bottleneck_forward.7} parent=51 // pred_region
        %s705 = smul.u32 16, %s19
        %p706 = scmp.lt.s32.totalorder %s705, 63
        %s707 = scalar_select %p706, %s705, 63
        %s708 = smul.addr %s707, 4
        %s709 = scalar_lea.vmem %s4, %s708
      $region56: #{bottleneck_forward.7} parent=51 // pred_fallthru
        _
      // Predicated region
      $region57: #{bottleneck_forward.7} parent=51 // pred_check
        %p710 = pneg %p157
      $region58: #{bottleneck_forward.7} parent=51 // pred_check_branch
        %712 = sbr.rel (%p710) target = $region60
      $region59: #{bottleneck_forward.7} parent=51 // pred_region
        %p713 = scmp.lt.s32.totalorder %s19, 3
        %s714 = scalar_select %p713, %s19, 3
        %s715 = scalar_lea.vmem %s5, %s714
      $region60: #{bottleneck_forward.7} parent=51 // pred_fallthru
        _
      // Predicated region
      $region61: #{bottleneck_forward.7} parent=51 // pred_check
        %p716 = pneg %p183
      $region62: #{bottleneck_forward.7} parent=51 // pred_check_branch
        %718 = sbr.rel (%p716) target = $region64
      $region63: #{bottleneck_forward.7} parent=51 // pred_region
        %p719 = scmp.lt.s32.totalorder %s19, 3
        %s720 = scalar_select %p719, %s19, 3
        %s721 = scalar_lea.vmem %s6, %s720
      $region64: #{bottleneck_forward.7} parent=51 // pred_fallthru
        _
    $region52: #{bottleneck_forward.7} parent=5 // pred_fallthru
      _
  $region6: #{bottleneck_forward.7} parent=0 // loop_footer
    %s17 = sadd.s32 1, %s13
  $region7: #{bottleneck_forward.7} parent=0 // loop_footer_branch
    %12 = sbr.rel target = $region3
  $region8: #{bottleneck_forward.7} parent=0 // loop_exit
    _

// kernel: bottleneck_forward.9
$region0: #{bottleneck_forward.9}
  #allocation0 [shape = 'u32[]', space=smem, size = 0x4, offset = 0x4, fixed_abs, tag = 'smem constant byte address 0x4 - core index']
  #allocation1 [shape = 'u32[144,128]{1,0:T(1,128)}', space=vmem, size = 0x12000, scoped, tag = 'internal scratch']
  %s0 = inlined_call_operand.vmem [shape: bf16[512,128], index: 0, kind: input, shape index: {}]
  %s1 = inlined_call_operand.vmem [shape: f32[1,128], index: 1, kind: input, shape index: {}]
  %s2 = inlined_call_operand.vmem [shape: f32[1,128], index: 2, kind: input, shape index: {}]
  %s3 = inlined_call_operand.vmem [shape: bf16[512,128], index: 3, kind: input, shape index: {}]
  %s4 = inlined_call_operand.vmem [shape: f32[1,128], index: 4, kind: input, shape index: {}]
  %s5 = inlined_call_operand.vmem [shape: f32[1,128], index: 5, kind: input, shape index: {}]
  %s6 = inlined_call_operand.vmem [shape: bf16[512,128], index: 6, kind: output, shape index: {0}]
  %s7 = inlined_call_operand.vmem [shape: f32[512,128], index: 7, kind: output, shape index: {1}]
  %8 = xla_tuple %s6, %s7
  %s9 = sld [smem:[#allocation0]]
  $region65: #{bottleneck_forward.9} parent=0
    _
  %s11 = ssub.s32 1, %s9
  %s12 = scalar_select 0, %s11, %s9
  loop: start=0, step=1, limit=6
  $region2: #{bottleneck_forward.9} parent=0 // loop_pre_header
    _
  $region3: #{bottleneck_forward.9} parent=0 // loop_header
    %s14 = sphi 0, %s18
    %p15 = scmp.ge.s32.totalorder %s14, 6
    %s24 = sphi 0, %s26
    %s27 = sphi 0, %s24
    %s28 = sphi 0, %s27
    %s44 = sphi 0, %s28
    %s48 = sphi 0, %s48
    %s50 = sphi 0, %s48
    %s51 = sphi 0, %s50
    %s65 = sphi 0, %s51
    %s69 = sphi 0, %s69
    %s71 = sphi 0, %s69
    %s72 = sphi 0, %s71
    %s86 = sphi 0, %s72
    %s92 = sphi 0, %s94
    %s95 = sphi 0, %s92
    %s96 = sphi 0, %s95
    %s112 = sphi 0, %s96
    %s116 = sphi 0, %s116
    %s118 = sphi 0, %s116
    %s119 = sphi 0, %s118
    %s133 = sphi 0, %s119
    %s137 = sphi 0, %s137
    %s139 = sphi 0, %s137
    %s140 = sphi 0, %s139
    %s154 = sphi 0, %s140
    %s160 = sphi 0, %s162
    %s163 = sphi 0, %s160
    %s164 = sphi 0, %s163
    %s180 = sphi 0, %s164
    %s186 = sphi 0, %s188
    %s189 = sphi 0, %s186
    %s190 = sphi 0, %s189
    %s206 = sphi 0, %s190
  $region4: #{bottleneck_forward.9} parent=0 // loop_header_branch
    %17 = sbr.rel (%p15) target = $region8
  $region5: #{bottleneck_forward.9} parent=0 // loop_body
    %s19 = ssub.s32 %s14, 1
    %s20 = ssub.s32 %s14, 2
    %s21 = sadd.s32 %s14, 1
    %s22 = ssub.s32 %s14, %s21
    %p23 = scmp.eq.s32.totalorder %s22, 0
    %s25 = sadd.s32 %s24, 1
    %s26 = scalar_select %p23, %s24, %s25
    %p29 = pneg %p23
    %p30 = scmp.eq.s32.totalorder %s14, 3
    %p31 = por %p29, %p30
    %p32 = scmp.ne.s32.totalorder %s24, %s27
    %p33 = scmp.eq.s32.totalorder %s14, 0
    %p34 = por %p32, %p33
    %p35 = scmp.ne.s32.totalorder %s24, %s27
    %p36 = scmp.eq.s32.totalorder %s19, 3
    %p37 = por %p35, %p36
    %p38 = scmp.ne.s32.totalorder %s27, %s28
    %p39 = scmp.eq.s32.totalorder %s19, 0
    %p40 = por %p38, %p39
    %p41 = scmp.ne.s32.totalorder %s27, %s28
    %p42 = scmp.eq.s32.totalorder %s20, 3
    %p43 = por %p41, %p42
    %p45 = scmp.ne.s32.totalorder %s28, %s44
    %p46 = scmp.eq.s32.totalorder %s20, 0
    %p47 = por %p45, %p46
    %s49 = sadd.s32 %s48, 1
    %p52 = scmp.eq.s32.totalorder %s14, 3
    %p53 = scmp.ne.s32.totalorder %s48, %s50
    %p54 = scmp.eq.s32.totalorder %s14, 0
    %p55 = por %p53, %p54
    %p56 = scmp.ne.s32.totalorder %s48, %s50
    %p57 = scmp.eq.s32.totalorder %s19, 3
    %p58 = por %p56, %p57
    %p59 = scmp.ne.s32.totalorder %s50, %s51
    %p60 = scmp.eq.s32.totalorder %s19, 0
    %p61 = por %p59, %p60
    %p62 = scmp.ne.s32.totalorder %s50, %s51
    %p63 = scmp.eq.s32.totalorder %s20, 3
    %p64 = por %p62, %p63
    %p66 = scmp.ne.s32.totalorder %s51, %s65
    %p67 = scmp.eq.s32.totalorder %s20, 0
    %p68 = por %p66, %p67
    %s70 = sadd.s32 %s69, 1
    %p73 = scmp.eq.s32.totalorder %s14, 3
    %p74 = scmp.ne.s32.totalorder %s69, %s71
    %p75 = scmp.eq.s32.totalorder %s14, 0
    %p76 = por %p74, %p75
    %p77 = scmp.ne.s32.totalorder %s69, %s71
    %p78 = scmp.eq.s32.totalorder %s19, 3
    %p79 = por %p77, %p78
    %p80 = scmp.ne.s32.totalorder %s71, %s72
    %p81 = scmp.eq.s32.totalorder %s19, 0
    %p82 = por %p80, %p81
    %p83 = scmp.ne.s32.totalorder %s71, %s72
    %p84 = scmp.eq.s32.totalorder %s20, 3
    %p85 = por %p83, %p84
    %p87 = scmp.ne.s32.totalorder %s72, %s86
    %p88 = scmp.eq.s32.totalorder %s20, 0
    %p89 = por %p87, %p88
    %s90 = ssub.s32 %s14, %s21
    %p91 = scmp.eq.s32.totalorder %s90, 0
    %s93 = sadd.s32 %s92, 1
    %s94 = scalar_select %p91, %s92, %s93
    %p97 = pneg %p91
    %p98 = scmp.eq.s32.totalorder %s14, 3
    %p99 = por %p97, %p98
    %p100 = scmp.ne.s32.totalorder %s92, %s95
    %p101 = scmp.eq.s32.totalorder %s14, 0
    %p102 = por %p100, %p101
    %p103 = scmp.ne.s32.totalorder %s92, %s95
    %p104 = scmp.eq.s32.totalorder %s19, 3
    %p105 = por %p103, %p104
    %p106 = scmp.ne.s32.totalorder %s95, %s96
    %p107 = scmp.eq.s32.totalorder %s19, 0
    %p108 = por %p106, %p107
    %p109 = scmp.ne.s32.totalorder %s95, %s96
    %p110 = scmp.eq.s32.totalorder %s20, 3
    %p111 = por %p109, %p110
    %p113 = scmp.ne.s32.totalorder %s96, %s112
    %p114 = scmp.eq.s32.totalorder %s20, 0
    %p115 = por %p113, %p114
    %s117 = sadd.s32 %s116, 1
    %p120 = scmp.eq.s32.totalorder %s14, 3
    %p121 = scmp.ne.s32.totalorder %s116, %s118
    %p122 = scmp.eq.s32.totalorder %s14, 0
    %p123 = por %p121, %p122
    %p124 = scmp.ne.s32.totalorder %s116, %s118
    %p125 = scmp.eq.s32.totalorder %s19, 3
    %p126 = por %p124, %p125
    %p127 = scmp.ne.s32.totalorder %s118, %s119
    %p128 = scmp.eq.s32.totalorder %s19, 0
    %p129 = por %p127, %p128
    %p130 = scmp.ne.s32.totalorder %s118, %s119
    %p131 = scmp.eq.s32.totalorder %s20, 3
    %p132 = por %p130, %p131
    %p134 = scmp.ne.s32.totalorder %s119, %s133
    %p135 = scmp.eq.s32.totalorder %s20, 0
    %p136 = por %p134, %p135
    %s138 = sadd.s32 %s137, 1
    %p141 = scmp.eq.s32.totalorder %s14, 3
    %p142 = scmp.ne.s32.totalorder %s137, %s139
    %p143 = scmp.eq.s32.totalorder %s14, 0
    %p144 = por %p142, %p143
    %p145 = scmp.ne.s32.totalorder %s137, %s139
    %p146 = scmp.eq.s32.totalorder %s19, 3
    %p147 = por %p145, %p146
    %p148 = scmp.ne.s32.totalorder %s139, %s140
    %p149 = scmp.eq.s32.totalorder %s19, 0
    %p150 = por %p148, %p149
    %p151 = scmp.ne.s32.totalorder %s139, %s140
    %p152 = scmp.eq.s32.totalorder %s20, 3
    %p153 = por %p151, %p152
    %p155 = scmp.ne.s32.totalorder %s140, %s154
    %p156 = scmp.eq.s32.totalorder %s20, 0
    %p157 = por %p155, %p156
    %s158 = ssub.s32 %s14, %s21
    %p159 = scmp.eq.s32.totalorder %s158, 0
    %s161 = sadd.s32 %s160, 1
    %s162 = scalar_select %p159, %s160, %s161
    %p165 = pneg %p159
    %p166 = scmp.eq.s32.totalorder %s14, 3
    %p167 = por %p165, %p166
    %p168 = scmp.ne.s32.totalorder %s160, %s163
    %p169 = scmp.eq.s32.totalorder %s14, 0
    %p170 = por %p168, %p169
    %p171 = scmp.ne.s32.totalorder %s160, %s163
    %p172 = scmp.eq.s32.totalorder %s19, 3
    %p173 = por %p171, %p172
    %p174 = scmp.ne.s32.totalorder %s163, %s164
    %p175 = scmp.eq.s32.totalorder %s19, 0
    %p176 = por %p174, %p175
    %p177 = scmp.ne.s32.totalorder %s163, %s164
    %p178 = scmp.eq.s32.totalorder %s20, 3
    %p179 = por %p177, %p178
    %p181 = scmp.ne.s32.totalorder %s164, %s180
    %p182 = scmp.eq.s32.totalorder %s20, 0
    %p183 = por %p181, %p182
    %s184 = ssub.s32 %s14, %s21
    %p185 = scmp.eq.s32.totalorder %s184, 0
    %s187 = sadd.s32 %s186, 1
    %s188 = scalar_select %p185, %s186, %s187
    %p191 = pneg %p185
    %p192 = scmp.eq.s32.totalorder %s14, 3
    %p193 = por %p191, %p192
    %p194 = scmp.ne.s32.totalorder %s186, %s189
    %p195 = scmp.eq.s32.totalorder %s14, 0
    %p196 = por %p194, %p195
    %p197 = scmp.ne.s32.totalorder %s186, %s189
    %p198 = scmp.eq.s32.totalorder %s19, 3
    %p199 = por %p197, %p198
    %p200 = scmp.ne.s32.totalorder %s189, %s190
    %p201 = scmp.eq.s32.totalorder %s19, 0
    %p202 = por %p200, %p201
    %p203 = scmp.ne.s32.totalorder %s189, %s190
    %p204 = scmp.eq.s32.totalorder %s20, 3
    %p205 = por %p203, %p204
    %p207 = scmp.ne.s32.totalorder %s190, %s206
    %p208 = scmp.eq.s32.totalorder %s20, 0
    %p209 = por %p207, %p208
    %p210 = scmp.le.s32.totalorder 1, %s14
    %p211 = scmp.lt.s32.totalorder %s14, 5
    %p212 = pnand %p210, %p211
    %p213 = pneg %p212
    // Predicated region
    $region9: #{bottleneck_forward.9} parent=5 // pred_check
      _
    $region10: #{bottleneck_forward.9} parent=5 // pred_check_branch
      %215 = sbr.rel (%p212) target = $region12
    $region11: #{bottleneck_forward.9} parent=5 // pred_region
      %s216 = ssub.s32 %s14, 1
      // Predicated region
      $region13: #{bottleneck_forward.9} parent=11 // pred_check
        %p217 = pneg %p61
      $region14: #{bottleneck_forward.9} parent=11 // pred_check_branch
        %219 = sbr.rel (%p217) target = $region16
      $region15: #{bottleneck_forward.9} parent=11 // pred_region
        _
      $region16: #{bottleneck_forward.9} parent=11 // pred_fallthru
        _
      // Predicated region
      $region17: #{bottleneck_forward.9} parent=11 // pred_check
        %p220 = pneg %p82
      $region18: #{bottleneck_forward.9} parent=11 // pred_check_branch
        %222 = sbr.rel (%p220) target = $region20
      $region19: #{bottleneck_forward.9} parent=11 // pred_region
        _
      $region20: #{bottleneck_forward.9} parent=11 // pred_fallthru
        _
      // Predicated region
      $region21: #{bottleneck_forward.9} parent=11 // pred_check
        %p223 = pneg %p129
      $region22: #{bottleneck_forward.9} parent=11 // pred_check_branch
        %225 = sbr.rel (%p223) target = $region24
      $region23: #{bottleneck_forward.9} parent=11 // pred_region
        _
      $region24: #{bottleneck_forward.9} parent=11 // pred_fallthru
        _
      // Predicated region
      $region25: #{bottleneck_forward.9} parent=11 // pred_check
        %p226 = pneg %p150
      $region26: #{bottleneck_forward.9} parent=11 // pred_check_branch
        %228 = sbr.rel (%p226) target = $region28
      $region27: #{bottleneck_forward.9} parent=11 // pred_region
        _
      $region28: #{bottleneck_forward.9} parent=11 // pred_fallthru
        _
    $region12: #{bottleneck_forward.9} parent=5 // pred_fallthru
      _
    %p229 = scmp.lt.s32.totalorder %s14, 4
    // Predicated region
    $region29: #{bottleneck_forward.9} parent=5 // pred_check
      %p230 = pneg %p229
    $region30: #{bottleneck_forward.9} parent=5 // pred_check_branch
      %232 = sbr.rel (%p230) target = $region32
    $region31: #{bottleneck_forward.9} parent=5 // pred_region
      // Predicated region
      $region33: #{bottleneck_forward.9} parent=31 // pred_check
        %p233 = pneg %p34
      $region34: #{bottleneck_forward.9} parent=31 // pred_check_branch
        %235 = sbr.rel (%p233) target = $region36
      $region35: #{bottleneck_forward.9} parent=31 // pred_region
        %s236 = smul.u32 16, %s14
        %p237 = scmp.lt.s32.totalorder %s236, 63
        %s238 = scalar_select %p237, %s236, 63
        %s239 = smul.addr %s238, 4
        %s240 = scalar_lea.vmem %s0, %s239
        %s241 = smul.u32 16, %s14
      $region36: #{bottleneck_forward.9} parent=31 // pred_fallthru
        _
      // Predicated region
      $region37: #{bottleneck_forward.9} parent=31 // pred_check
        %p242 = pneg %p102
      $region38: #{bottleneck_forward.9} parent=31 // pred_check_branch
        %244 = sbr.rel (%p242) target = $region40
      $region39: #{bottleneck_forward.9} parent=31 // pred_region
        %s245 = smul.u32 16, %s14
        %p246 = scmp.lt.s32.totalorder %s245, 63
        %s247 = scalar_select %p246, %s245, 63
        %s248 = smul.addr %s247, 4
        %s249 = scalar_lea.vmem %s3, %s248
        %s250 = smul.u32 16, %s14
      $region40: #{bottleneck_forward.9} parent=31 // pred_fallthru
        _
    $region32: #{bottleneck_forward.9} parent=5 // pred_fallthru
      _
    %p251 = scmp.le.s32.totalorder 1, %s14
    %p252 = scmp.lt.s32.totalorder %s14, 5
    %p253 = pnand %p251, %p252
    %p254 = pneg %p253
    // Predicated region
    $region41: #{bottleneck_forward.9} parent=5 // pred_check
      _
    $region42: #{bottleneck_forward.9} parent=5 // pred_check_branch
      %256 = sbr.rel (%p253) target = $region44
    $region43: #{bottleneck_forward.9} parent=5 // pred_region
      %s257 = ssub.s32 %s14, 1
      %s258 = smul.u32 16, %s19
      %p259 = scmp.lt.s32.totalorder %s258, 63
      %s260 = scalar_select %p259, %s258, 63
      %s261 = smul.addr %s260, 4
      %s262 = scalar_lea.vmem %s0, %s261
      %p263 = pneg %p40
      %p264 = pneg %p37
      %p265 = pneg %p61
      %p266 = pneg %p58
      %p267 = pneg %p82
      %p268 = pneg %p79
      %s269 = smul.u32 16, %s19
      %p270 = scmp.lt.s32.totalorder %s269, 63
      %s271 = scalar_select %p270, %s269, 63
      %s272 = smul.addr %s271, 4
      %s273 = scalar_lea.vmem %s3, %s272
      %p274 = pneg %p108
      %p275 = pneg %p105
      %p276 = pneg %p129
      %p277 = pneg %p126
      %p278 = pneg %p150
      %p279 = pneg %p147
      %p280 = pneg %p176
      %p281 = pneg %p173
      %s282 = smul.u32 16, %s19
      %p283 = scmp.lt.s32.totalorder %s282, 63
      %s284 = scalar_select %p283, %s282, 63
      %s285 = smul.addr %s284, 4
      %s286 = scalar_lea.vmem %s6, %s285
      %p287 = pneg %p202
      %p288 = pneg %p199
      %s289 = smul.u32 16, %s19
      %p290 = scmp.lt.s32.totalorder %s289, 63
      %s291 = scalar_select %p290, %s289, 63
      %s292 = smul.addr %s291, 8
      %s293 = scalar_lea.vmem %s7, %s292
      %s294 = smul.u32 16, %s19
      %p295 = scmp.lt.s32.totalorder %s294, 63
      %s296 = scalar_select %p295, %s294, 63
      %s297 = smul.addr %s296, 4
      %s298 = scalar_lea.vmem %s0, %s297
      %s299 = smul.u32 16, %s19
      %s300 = smul.u32 16, %s19
      %p301 = scmp.lt.s32.totalorder %s300, 63
      %s302 = scalar_select %p301, %s300, 63
      %s303 = smul.addr %s302, 4
      %s304 = scalar_lea.vmem %s3, %s303
      %s305 = smul.u32 16, %s19
      %s306 = smul.u32 16, %s19
      %p307 = scmp.lt.s32.totalorder %s306, 63
      %s308 = scalar_select %p307, %s306, 63
      %s309 = smul.addr %s308, 4
      %s310 = scalar_lea.vmem %s6, %s309
      %s311 = smul.u32 16, %s19
      %s312 = smul.u32 16, %s19
      %p313 = scmp.lt.s32.totalorder %s312, 63
      %s314 = scalar_select %p313, %s312, 63
      %s315 = smul.addr %s314, 8
      %s316 = scalar_lea.vmem %s7, %s315
      %s317 = smul.u32 16, %s19
      %v318 = vld [vmem:[%s298] sm:$0xf]
      %v319 = vld [vmem:[%s298 + $0x4] sm:$0xf]
      %v320 = vld [vmem:[%s298 + $0x8] sm:$0xf]
      %v321 = vld [vmem:[%s298 + $0xc] sm:$0xf]
      %v322 = vld [vmem:[%s298 + $0x10] sm:$0xf]
      %v323 = vld [vmem:[%s298 + $0x14] sm:$0xf]
      %v324 = vld [vmem:[%s298 + $0x18] sm:$0xf]
      %v325 = vld [vmem:[%s298 + $0x1c] sm:$0xf]
      %v326 = vld [vmem:[%s298 + $0x20] sm:$0xf]
      %v327 = vld [vmem:[%s298 + $0x24] sm:$0xf]
      %v328 = vld [vmem:[%s298 + $0x28] sm:$0xf]
      %v329 = vld [vmem:[%s298 + $0x2c] sm:$0xf]
      %v330 = vld [vmem:[%s298 + $0x30] sm:$0xf]
      %v331 = vld [vmem:[%s298 + $0x34] sm:$0xf]
      %v332 = vld [vmem:[%s298 + $0x38] sm:$0xf]
      %v333 = vld [vmem:[%s298 + $0x3c] sm:$0xf]
      %v334 = vunpack.c.l.bf16 %v318
      %v335 = vunpack.c.l.bf16 %v319
      %v336 = vunpack.c.l.bf16 %v320
      %v337 = vunpack.c.l.bf16 %v321
      %v338 = vunpack.c.l.bf16 %v322
      %v339 = vunpack.c.l.bf16 %v323
      %v340 = vunpack.c.l.bf16 %v324
      %v341 = vunpack.c.l.bf16 %v325
      %v342 = vunpack.c.l.bf16 %v326
      %v343 = vunpack.c.l.bf16 %v327
      %v344 = vunpack.c.l.bf16 %v328
      %v345 = vunpack.c.l.bf16 %v329
      %v346 = vunpack.c.l.bf16 %v330
      %v347 = vunpack.c.l.bf16 %v331
      %v348 = vunpack.c.l.bf16 %v332
      %v349 = vunpack.c.l.bf16 %v333
      %v350 = vld [vmem:[%s1] sm:$0x1]
      %v352 = vlaneseq
      %v353 = vshrl.u32 %v352, 7
      %v354 = vsub.s32 0, %v353
      %v355 = vrot.slane %v350, %v354
      %v357 = vmul.f32 %v334, %v355
      %v358 = vmul.f32 %v335, %v355
      %v359 = vmul.f32 %v336, %v355
      %v360 = vmul.f32 %v337, %v355
      %v361 = vmul.f32 %v338, %v355
      %v362 = vmul.f32 %v339, %v355
      %v363 = vmul.f32 %v340, %v355
      %v364 = vmul.f32 %v341, %v355
      %v365 = vmul.f32 %v342, %v355
      %v366 = vmul.f32 %v343, %v355
      %v367 = vmul.f32 %v344, %v355
      %v368 = vmul.f32 %v345, %v355
      %v369 = vmul.f32 %v346, %v355
      %v370 = vmul.f32 %v347, %v355
      %v371 = vmul.f32 %v348, %v355
      %v372 = vmul.f32 %v349, %v355
      %v373 = vld [vmem:[%s2] sm:$0x1]
      %v375 = vlaneseq
      %v376 = vshrl.u32 %v375, 7
      %v377 = vsub.s32 0, %v376
      %v378 = vrot.slane %v373, %v377
      %v380 = vadd.f32 %v357, %v378
      %v381 = vadd.f32 %v358, %v378
      %v382 = vadd.f32 %v359, %v378
      %v383 = vadd.f32 %v360, %v378
      %v384 = vadd.f32 %v361, %v378
      %v385 = vadd.f32 %v362, %v378
      %v386 = vadd.f32 %v363, %v378
      %v387 = vadd.f32 %v364, %v378
      %v388 = vadd.f32 %v365, %v378
      %v389 = vadd.f32 %v366, %v378
      %v390 = vadd.f32 %v367, %v378
      %v391 = vadd.f32 %v368, %v378
      %v392 = vadd.f32 %v369, %v378
      %v393 = vadd.f32 %v370, %v378
      %v394 = vadd.f32 %v371, %v378
      %v395 = vadd.f32 %v372, %v378
      %v396 = vld [vmem:[%s304] sm:$0xf]
      %v397 = vld [vmem:[%s304 + $0x4] sm:$0xf]
      %v398 = vld [vmem:[%s304 + $0x8] sm:$0xf]
      %v399 = vld [vmem:[%s304 + $0xc] sm:$0xf]
      %v400 = vld [vmem:[%s304 + $0x10] sm:$0xf]
      %v401 = vld [vmem:[%s304 + $0x14] sm:$0xf]
      %v402 = vld [vmem:[%s304 + $0x18] sm:$0xf]
      %v403 = vld [vmem:[%s304 + $0x1c] sm:$0xf]
      %v404 = vld [vmem:[%s304 + $0x20] sm:$0xf]
      %v405 = vld [vmem:[%s304 + $0x24] sm:$0xf]
      %v406 = vld [vmem:[%s304 + $0x28] sm:$0xf]
      %v407 = vld [vmem:[%s304 + $0x2c] sm:$0xf]
      %v408 = vld [vmem:[%s304 + $0x30] sm:$0xf]
      %v409 = vld [vmem:[%s304 + $0x34] sm:$0xf]
      %v410 = vld [vmem:[%s304 + $0x38] sm:$0xf]
      %v411 = vld [vmem:[%s304 + $0x3c] sm:$0xf]
      %v412 = vunpack.c.l.bf16 %v396
      %v413 = vunpack.c.l.bf16 %v397
      %v414 = vunpack.c.l.bf16 %v398
      %v415 = vunpack.c.l.bf16 %v399
      %v416 = vunpack.c.l.bf16 %v400
      %v417 = vunpack.c.l.bf16 %v401
      %v418 = vunpack.c.l.bf16 %v402
      %v419 = vunpack.c.l.bf16 %v403
      %v420 = vunpack.c.l.bf16 %v404
      %v421 = vunpack.c.l.bf16 %v405
      %v422 = vunpack.c.l.bf16 %v406
      %v423 = vunpack.c.l.bf16 %v407
      %v424 = vunpack.c.l.bf16 %v408
      %v425 = vunpack.c.l.bf16 %v409
      %v426 = vunpack.c.l.bf16 %v410
      %v427 = vunpack.c.l.bf16 %v411
      %v428 = vld [vmem:[%s4] sm:$0x1]
      %v430 = vlaneseq
      %v431 = vshrl.u32 %v430, 7
      %v432 = vsub.s32 0, %v431
      %v433 = vrot.slane %v428, %v432
      %v435 = vmul.f32 %v412, %v433
      %v436 = vmul.f32 %v413, %v433
      %v437 = vmul.f32 %v414, %v433
      %v438 = vmul.f32 %v415, %v433
      %v439 = vmul.f32 %v416, %v433
      %v440 = vmul.f32 %v417, %v433
      %v441 = vmul.f32 %v418, %v433
      %v442 = vmul.f32 %v419, %v433
      %v443 = vmul.f32 %v420, %v433
      %v444 = vmul.f32 %v421, %v433
      %v445 = vmul.f32 %v422, %v433
      %v446 = vmul.f32 %v423, %v433
      %v447 = vmul.f32 %v424, %v433
      %v448 = vmul.f32 %v425, %v433
      %v449 = vmul.f32 %v426, %v433
      %v450 = vmul.f32 %v427, %v433
      %v451 = vadd.f32 %v380, %v435
      %v452 = vadd.f32 %v381, %v436
      %v453 = vadd.f32 %v382, %v437
      %v454 = vadd.f32 %v383, %v438
      %v455 = vadd.f32 %v384, %v439
      %v456 = vadd.f32 %v385, %v440
      %v457 = vadd.f32 %v386, %v441
      %v458 = vadd.f32 %v387, %v442
      %v459 = vadd.f32 %v388, %v443
      %v460 = vadd.f32 %v389, %v444
      %v461 = vadd.f32 %v390, %v445
      %v462 = vadd.f32 %v391, %v446
      %v463 = vadd.f32 %v392, %v447
      %v464 = vadd.f32 %v393, %v448
      %v465 = vadd.f32 %v394, %v449
      %v466 = vadd.f32 %v395, %v450
      %v467 = vld [vmem:[%s5] sm:$0x1]
      %v469 = vlaneseq
      %v470 = vshrl.u32 %v469, 7
      %v471 = vsub.s32 0, %v470
      %v472 = vrot.slane %v467, %v471
      %v474 = vadd.f32 %v451, %v472
      %v475 = vadd.f32 %v452, %v472
      %v476 = vadd.f32 %v453, %v472
      %v477 = vadd.f32 %v454, %v472
      %v478 = vadd.f32 %v455, %v472
      %v479 = vadd.f32 %v456, %v472
      %v480 = vadd.f32 %v457, %v472
      %v481 = vadd.f32 %v458, %v472
      %v482 = vadd.f32 %v459, %v472
      %v483 = vadd.f32 %v460, %v472
      %v484 = vadd.f32 %v461, %v472
      %v485 = vadd.f32 %v462, %v472
      %v486 = vadd.f32 %v463, %v472
      %v487 = vadd.f32 %v464, %v472
      %v488 = vadd.f32 %v465, %v472
      %v489 = vadd.f32 %v466, %v472
      %490 = vst [vmem:[%s316] sm:$0xff] %v474
      %491 = vst [vmem:[%s316 + $0x8] sm:$0xff] %v475
      %492 = vst [vmem:[%s316 + $0x10] sm:$0xff] %v476
      %493 = vst [vmem:[%s316 + $0x18] sm:$0xff] %v477
      %494 = vst [vmem:[%s316 + $0x20] sm:$0xff] %v478
      %495 = vst [vmem:[%s316 + $0x28] sm:$0xff] %v479
      %496 = vst [vmem:[%s316 + $0x30] sm:$0xff] %v480
      %497 = vst [vmem:[%s316 + $0x38] sm:$0xff] %v481
      %498 = vst [vmem:[%s316 + $0x40] sm:$0xff] %v482
      %499 = vst [vmem:[%s316 + $0x48] sm:$0xff] %v483
      %500 = vst [vmem:[%s316 + $0x50] sm:$0xff] %v484
      %501 = vst [vmem:[%s316 + $0x58] sm:$0xff] %v485
      %502 = vst [vmem:[%s316 + $0x60] sm:$0xff] %v486
      %503 = vst [vmem:[%s316 + $0x68] sm:$0xff] %v487
      %504 = vst [vmem:[%s316 + $0x70] sm:$0xff] %v488
      %505 = vst [vmem:[%s316 + $0x78] sm:$0xff] %v489
      %v506 = vmax.f32 %v474, 0.0
      %v507 = vmax.f32 %v475, 0.0
      %v508 = vmax.f32 %v476, 0.0
      %v509 = vmax.f32 %v477, 0.0
      %v510 = vmax.f32 %v478, 0.0
      %v511 = vmax.f32 %v479, 0.0
      %v512 = vmax.f32 %v480, 0.0
      %v513 = vmax.f32 %v481, 0.0
      %v514 = vmax.f32 %v482, 0.0
      %v515 = vmax.f32 %v483, 0.0
      %v516 = vmax.f32 %v484, 0.0
      %v517 = vmax.f32 %v485, 0.0
      %v518 = vmax.f32 %v486, 0.0
      %v519 = vmax.f32 %v487, 0.0
      %v520 = vmax.f32 %v488, 0.0
      %v521 = vmax.f32 %v489, 0.0
      %v522 = vpack.c.bf16 %v507, %v506
      %v523 = vpack.c.bf16 %v509, %v508
      %v524 = vpack.c.bf16 %v511, %v510
      %v525 = vpack.c.bf16 %v513, %v512
      %v526 = vpack.c.bf16 %v515, %v514
      %v527 = vpack.c.bf16 %v517, %v516
      %v528 = vpack.c.bf16 %v519, %v518
      %v529 = vpack.c.bf16 %v521, %v520
      %v538 = vunpack.c.l.b16 %v522
      %v539 = vunpack.c.h.b16 %v522
      %v540 = vunpack.c.l.b16 %v523
      %v541 = vunpack.c.h.b16 %v523
      %v542 = vunpack.c.l.b16 %v524
      %v543 = vunpack.c.h.b16 %v524
      %v544 = vunpack.c.l.b16 %v525
      %v545 = vunpack.c.h.b16 %v525
      %v546 = vunpack.c.l.b16 %v526
      %v547 = vunpack.c.h.b16 %v526
      %v548 = vunpack.c.l.b16 %v527
      %v549 = vunpack.c.h.b16 %v527
      %v550 = vunpack.c.l.b16 %v528
      %v551 = vunpack.c.h.b16 %v528
      %v552 = vunpack.c.l.b16 %v529
      %v553 = vunpack.c.h.b16 %v529
      %v554 = vpack.c.b16 %v538, %v538
      %v555 = vpack.c.b16 %v539, %v539
      %v556 = vpack.c.b16 %v540, %v540
      %v557 = vpack.c.b16 %v541, %v541
      %v558 = vpack.c.b16 %v542, %v542
      %v559 = vpack.c.b16 %v543, %v543
      %v560 = vpack.c.b16 %v544, %v544
      %v561 = vpack.c.b16 %v545, %v545
      %v562 = vpack.c.b16 %v546, %v546
      %v563 = vpack.c.b16 %v547, %v547
      %v564 = vpack.c.b16 %v548, %v548
      %v565 = vpack.c.b16 %v549, %v549
      %v566 = vpack.c.b16 %v550, %v550
      %v567 = vpack.c.b16 %v551, %v551
      %v568 = vpack.c.b16 %v552, %v552
      %v569 = vpack.c.b16 %v553, %v553
      %586 = vst [vmem:[%s310] sm:$0xf] %v554
      %587 = vst [vmem:[%s310 + $0x4] sm:$0xf] %v555
      %588 = vst [vmem:[%s310 + $0x8] sm:$0xf] %v556
      %589 = vst [vmem:[%s310 + $0xc] sm:$0xf] %v557
      %590 = vst [vmem:[%s310 + $0x10] sm:$0xf] %v558
      %591 = vst [vmem:[%s310 + $0x14] sm:$0xf] %v559
      %592 = vst [vmem:[%s310 + $0x18] sm:$0xf] %v560
      %593 = vst [vmem:[%s310 + $0x1c] sm:$0xf] %v561
      %594 = vst [vmem:[%s310 + $0x20] sm:$0xf] %v562
      %595 = vst [vmem:[%s310 + $0x24] sm:$0xf] %v563
      %596 = vst [vmem:[%s310 + $0x28] sm:$0xf] %v564
      %597 = vst [vmem:[%s310 + $0x2c] sm:$0xf] %v565
      %598 = vst [vmem:[%s310 + $0x30] sm:$0xf] %v566
      %599 = vst [vmem:[%s310 + $0x34] sm:$0xf] %v567
      %600 = vst [vmem:[%s310 + $0x38] sm:$0xf] %v568
      %601 = vst [vmem:[%s310 + $0x3c] sm:$0xf] %v569
      %s602 = smul.u32 16, %s19
      %p603 = scmp.lt.s32.totalorder %s602, 63
      %s604 = scalar_select %p603, %s602, 63
      %s605 = smul.addr %s604, 4
      %s606 = scalar_lea.vmem %s6, %s605
      %s607 = smul.u32 16, %s19
      %p608 = scmp.lt.s32.totalorder %s607, 63
      %s609 = scalar_select %p608, %s607, 63
      %s610 = smul.addr %s609, 8
      %s611 = scalar_lea.vmem %s7, %s610
      // Predicated region
      $region45: #{bottleneck_forward.9} parent=43 // pred_check
        %p612 = pneg %p173
      $region46: #{bottleneck_forward.9} parent=43 // pred_check_branch
        %614 = sbr.rel (%p612) target = $region48
      $region47: #{bottleneck_forward.9} parent=43 // pred_region
        %s615 = smul.u32 16, %s19
      $region48: #{bottleneck_forward.9} parent=43 // pred_fallthru
        _
      // Predicated region
      $region49: #{bottleneck_forward.9} parent=43 // pred_check
        %p616 = pneg %p199
      $region50: #{bottleneck_forward.9} parent=43 // pred_check_branch
        %618 = sbr.rel (%p616) target = $region52
      $region51: #{bottleneck_forward.9} parent=43 // pred_region
        %s619 = smul.u32 16, %s19
      $region52: #{bottleneck_forward.9} parent=43 // pred_fallthru
        _
    $region44: #{bottleneck_forward.9} parent=5 // pred_fallthru
      _
    %p620 = scmp.le.s32.totalorder 2, %s14
    // Predicated region
    $region53: #{bottleneck_forward.9} parent=5 // pred_check
      %p621 = pneg %p620
    $region54: #{bottleneck_forward.9} parent=5 // pred_check_branch
      %623 = sbr.rel (%p621) target = $region56
    $region55: #{bottleneck_forward.9} parent=5 // pred_region
      %s624 = ssub.s32 %s14, 2
      // Predicated region
      $region57: #{bottleneck_forward.9} parent=55 // pred_check
        %p625 = pneg %p179
      $region58: #{bottleneck_forward.9} parent=55 // pred_check_branch
        %627 = sbr.rel (%p625) target = $region60
      $region59: #{bottleneck_forward.9} parent=55 // pred_region
        %s628 = smul.u32 16, %s20
        %p629 = scmp.lt.s32.totalorder %s628, 63
        %s630 = scalar_select %p629, %s628, 63
        %s631 = smul.addr %s630, 4
        %s632 = scalar_lea.vmem %s6, %s631
      $region60: #{bottleneck_forward.9} parent=55 // pred_fallthru
        _
      // Predicated region
      $region61: #{bottleneck_forward.9} parent=55 // pred_check
        %p633 = pneg %p205
      $region62: #{bottleneck_forward.9} parent=55 // pred_check_branch
        %635 = sbr.rel (%p633) target = $region64
      $region63: #{bottleneck_forward.9} parent=55 // pred_region
        %s636 = smul.u32 16, %s20
        %p637 = scmp.lt.s32.totalorder %s636, 63
        %s638 = scalar_select %p637, %s636, 63
        %s639 = smul.addr %s638, 8
        %s640 = scalar_lea.vmem %s7, %s639
      $region64: #{bottleneck_forward.9} parent=55 // pred_fallthru
        _
    $region56: #{bottleneck_forward.9} parent=5 // pred_fallthru
      _
  $region6: #{bottleneck_forward.9} parent=0 // loop_footer
    %s18 = sadd.s32 1, %s14
  $region7: #{bottleneck_forward.9} parent=0 // loop_footer_branch
    %13 = sbr.rel target = $region3
  $region8: #{bottleneck_forward.9} parent=0 // loop_exit
    _

// kernel: bottleneck_forward.6
$region0: #{bottleneck_forward.6}
  #allocation0 [shape = 'u32[]', space=smem, size = 0x4, offset = 0x4, fixed_abs, tag = 'smem constant byte address 0x4 - core index']
  #allocation1 [shape = 'u32[144,128]{1,0:T(1,128)}', space=vmem, size = 0x12000, scoped, tag = 'internal scratch']
  #allocation2 [shape = 'bf16[18,18,128]{2,1,0:T(8,128)(2,1)}', space=vmem, size = 0x1b000, scoped, tag = 'scratch operand']
  %s0 = inlined_call_operand.vmem [shape: bf16[2,16,16,128], index: 0, kind: input, shape index: {}]
  %s1 = inlined_call_operand.vmem [shape: f32[1,128], index: 1, kind: input, shape index: {}]
  %s2 = inlined_call_operand.vmem [shape: f32[1,128], index: 2, kind: input, shape index: {}]
  %s3 = inlined_call_operand.vmem [shape: bf16[9,128,128], index: 3, kind: input, shape index: {}]
  %s4 = inlined_call_operand.vmem [shape: bf16[2,16,16,128], index: 4, kind: output, shape index: {0}]
  %s5 = inlined_call_operand.vmem [shape: f32[2,1,128], index: 5, kind: output, shape index: {1}]
  %s6 = inlined_call_operand.vmem [shape: f32[2,1,128], index: 6, kind: output, shape index: {2}]
  %7 = xla_tuple %s4, %s5, %s6
  %s8 = sld [smem:[#allocation0]]
  $region65: #{bottleneck_forward.6} parent=0
    _
  %s10 = ssub.s32 1, %s8
  %s11 = scalar_select 0, %s10, %s8
  loop: start=0, step=1, limit=4
  $region2: #{bottleneck_forward.6} parent=0 // loop_pre_header
    _
  $region3: #{bottleneck_forward.6} parent=0 // loop_header
    %s13 = sphi 0, %s17
    %p14 = scmp.ge.s32.totalorder %s13, 4
    %s23 = sphi 0, %s25
    %s26 = sphi 0, %s23
    %s27 = sphi 0, %s26
    %s43 = sphi 0, %s27
    %s47 = sphi 0, %s47
    %s49 = sphi 0, %s47
    %s50 = sphi 0, %s49
    %s64 = sphi 0, %s50
    %s68 = sphi 0, %s68
    %s70 = sphi 0, %s68
    %s71 = sphi 0, %s70
    %s85 = sphi 0, %s71
    %s89 = sphi 0, %s89
    %s91 = sphi 0, %s89
    %s92 = sphi 0, %s91
    %s106 = sphi 0, %s92
    %s112 = sphi 0, %s114
    %s115 = sphi 0, %s112
    %s116 = sphi 0, %s115
    %s132 = sphi 0, %s116
    %s138 = sphi 0, %s140
    %s141 = sphi 0, %s138
    %s142 = sphi 0, %s141
    %s158 = sphi 0, %s142
    %s164 = sphi 0, %s166
    %s167 = sphi 0, %s164
    %s168 = sphi 0, %s167
    %s184 = sphi 0, %s168
  $region4: #{bottleneck_forward.6} parent=0 // loop_header_branch
    %16 = sbr.rel (%p14) target = $region8
  $region5: #{bottleneck_forward.6} parent=0 // loop_body
    %s18 = ssub.s32 %s13, 1
    %s19 = ssub.s32 %s13, 2
    %s20 = sadd.s32 %s13, 1
    %s21 = ssub.s32 %s13, %s20
    %p22 = scmp.eq.s32.totalorder %s21, 0
    %s24 = sadd.s32 %s23, 1
    %s25 = scalar_select %p22, %s23, %s24
    %p28 = pneg %p22
    %p29 = scmp.eq.s32.totalorder %s13, 1
    %p30 = por %p28, %p29
    %p31 = scmp.ne.s32.totalorder %s23, %s26
    %p32 = scmp.eq.s32.totalorder %s13, 0
    %p33 = por %p31, %p32
    %p34 = scmp.ne.s32.totalorder %s23, %s26
    %p35 = scmp.eq.s32.totalorder %s18, 1
    %p36 = por %p34, %p35
    %p37 = scmp.ne.s32.totalorder %s26, %s27
    %p38 = scmp.eq.s32.totalorder %s18, 0
    %p39 = por %p37, %p38
    %p40 = scmp.ne.s32.totalorder %s26, %s27
    %p41 = scmp.eq.s32.totalorder %s19, 1
    %p42 = por %p40, %p41
    %p44 = scmp.ne.s32.totalorder %s27, %s43
    %p45 = scmp.eq.s32.totalorder %s19, 0
    %p46 = por %p44, %p45
    %s48 = sadd.s32 %s47, 1
    %p51 = scmp.eq.s32.totalorder %s13, 1
    %p52 = scmp.ne.s32.totalorder %s47, %s49
    %p53 = scmp.eq.s32.totalorder %s13, 0
    %p54 = por %p52, %p53
    %p55 = scmp.ne.s32.totalorder %s47, %s49
    %p56 = scmp.eq.s32.totalorder %s18, 1
    %p57 = por %p55, %p56
    %p58 = scmp.ne.s32.totalorder %s49, %s50
    %p59 = scmp.eq.s32.totalorder %s18, 0
    %p60 = por %p58, %p59
    %p61 = scmp.ne.s32.totalorder %s49, %s50
    %p62 = scmp.eq.s32.totalorder %s19, 1
    %p63 = por %p61, %p62
    %p65 = scmp.ne.s32.totalorder %s50, %s64
    %p66 = scmp.eq.s32.totalorder %s19, 0
    %p67 = por %p65, %p66
    %s69 = sadd.s32 %s68, 1
    %p72 = scmp.eq.s32.totalorder %s13, 1
    %p73 = scmp.ne.s32.totalorder %s68, %s70
    %p74 = scmp.eq.s32.totalorder %s13, 0
    %p75 = por %p73, %p74
    %p76 = scmp.ne.s32.totalorder %s68, %s70
    %p77 = scmp.eq.s32.totalorder %s18, 1
    %p78 = por %p76, %p77
    %p79 = scmp.ne.s32.totalorder %s70, %s71
    %p80 = scmp.eq.s32.totalorder %s18, 0
    %p81 = por %p79, %p80
    %p82 = scmp.ne.s32.totalorder %s70, %s71
    %p83 = scmp.eq.s32.totalorder %s19, 1
    %p84 = por %p82, %p83
    %p86 = scmp.ne.s32.totalorder %s71, %s85
    %p87 = scmp.eq.s32.totalorder %s19, 0
    %p88 = por %p86, %p87
    %s90 = sadd.s32 %s89, 1
    %p93 = scmp.eq.s32.totalorder %s13, 1
    %p94 = scmp.ne.s32.totalorder %s89, %s91
    %p95 = scmp.eq.s32.totalorder %s13, 0
    %p96 = por %p94, %p95
    %p97 = scmp.ne.s32.totalorder %s89, %s91
    %p98 = scmp.eq.s32.totalorder %s18, 1
    %p99 = por %p97, %p98
    %p100 = scmp.ne.s32.totalorder %s91, %s92
    %p101 = scmp.eq.s32.totalorder %s18, 0
    %p102 = por %p100, %p101
    %p103 = scmp.ne.s32.totalorder %s91, %s92
    %p104 = scmp.eq.s32.totalorder %s19, 1
    %p105 = por %p103, %p104
    %p107 = scmp.ne.s32.totalorder %s92, %s106
    %p108 = scmp.eq.s32.totalorder %s19, 0
    %p109 = por %p107, %p108
    %s110 = ssub.s32 %s13, %s20
    %p111 = scmp.eq.s32.totalorder %s110, 0
    %s113 = sadd.s32 %s112, 1
    %s114 = scalar_select %p111, %s112, %s113
    %p117 = pneg %p111
    %p118 = scmp.eq.s32.totalorder %s13, 1
    %p119 = por %p117, %p118
    %p120 = scmp.ne.s32.totalorder %s112, %s115
    %p121 = scmp.eq.s32.totalorder %s13, 0
    %p122 = por %p120, %p121
    %p123 = scmp.ne.s32.totalorder %s112, %s115
    %p124 = scmp.eq.s32.totalorder %s18, 1
    %p125 = por %p123, %p124
    %p126 = scmp.ne.s32.totalorder %s115, %s116
    %p127 = scmp.eq.s32.totalorder %s18, 0
    %p128 = por %p126, %p127
    %p129 = scmp.ne.s32.totalorder %s115, %s116
    %p130 = scmp.eq.s32.totalorder %s19, 1
    %p131 = por %p129, %p130
    %p133 = scmp.ne.s32.totalorder %s116, %s132
    %p134 = scmp.eq.s32.totalorder %s19, 0
    %p135 = por %p133, %p134
    %s136 = ssub.s32 %s13, %s20
    %p137 = scmp.eq.s32.totalorder %s136, 0
    %s139 = sadd.s32 %s138, 1
    %s140 = scalar_select %p137, %s138, %s139
    %p143 = pneg %p137
    %p144 = scmp.eq.s32.totalorder %s13, 1
    %p145 = por %p143, %p144
    %p146 = scmp.ne.s32.totalorder %s138, %s141
    %p147 = scmp.eq.s32.totalorder %s13, 0
    %p148 = por %p146, %p147
    %p149 = scmp.ne.s32.totalorder %s138, %s141
    %p150 = scmp.eq.s32.totalorder %s18, 1
    %p151 = por %p149, %p150
    %p152 = scmp.ne.s32.totalorder %s141, %s142
    %p153 = scmp.eq.s32.totalorder %s18, 0
    %p154 = por %p152, %p153
    %p155 = scmp.ne.s32.totalorder %s141, %s142
    %p156 = scmp.eq.s32.totalorder %s19, 1
    %p157 = por %p155, %p156
    %p159 = scmp.ne.s32.totalorder %s142, %s158
    %p160 = scmp.eq.s32.totalorder %s19, 0
    %p161 = por %p159, %p160
    %s162 = ssub.s32 %s13, %s20
    %p163 = scmp.eq.s32.totalorder %s162, 0
    %s165 = sadd.s32 %s164, 1
    %s166 = scalar_select %p163, %s164, %s165
    %p169 = pneg %p163
    %p170 = scmp.eq.s32.totalorder %s13, 1
    %p171 = por %p169, %p170
    %p172 = scmp.ne.s32.totalorder %s164, %s167
    %p173 = scmp.eq.s32.totalorder %s13, 0
    %p174 = por %p172, %p173
    %p175 = scmp.ne.s32.totalorder %s164, %s167
    %p176 = scmp.eq.s32.totalorder %s18, 1
    %p177 = por %p175, %p176
    %p178 = scmp.ne.s32.totalorder %s167, %s168
    %p179 = scmp.eq.s32.totalorder %s18, 0
    %p180 = por %p178, %p179
    %p181 = scmp.ne.s32.totalorder %s167, %s168
    %p182 = scmp.eq.s32.totalorder %s19, 1
    %p183 = por %p181, %p182
    %p185 = scmp.ne.s32.totalorder %s168, %s184
    %p186 = scmp.eq.s32.totalorder %s19, 0
    %p187 = por %p185, %p186
    %p188 = scmp.le.s32.totalorder 1, %s13
    %p189 = scmp.lt.s32.totalorder %s13, 3
    %p190 = pnand %p188, %p189
    %p191 = pneg %p190
    // Predicated region
    $region9: #{bottleneck_forward.6} parent=5 // pred_check
      _
    $region10: #{bottleneck_forward.6} parent=5 // pred_check_branch
      %193 = sbr.rel (%p190) target = $region12
    $region11: #{bottleneck_forward.6} parent=5 // pred_region
      %s194 = ssub.s32 %s13, 1
      // Predicated region
      $region13: #{bottleneck_forward.6} parent=11 // pred_check
        %p195 = pneg %p60
      $region14: #{bottleneck_forward.6} parent=11 // pred_check_branch
        %197 = sbr.rel (%p195) target = $region16
      $region15: #{bottleneck_forward.6} parent=11 // pred_region
        _
      $region16: #{bottleneck_forward.6} parent=11 // pred_fallthru
        _
      // Predicated region
      $region17: #{bottleneck_forward.6} parent=11 // pred_check
        %p198 = pneg %p81
      $region18: #{bottleneck_forward.6} parent=11 // pred_check_branch
        %200 = sbr.rel (%p198) target = $region20
      $region19: #{bottleneck_forward.6} parent=11 // pred_region
        _
      $region20: #{bottleneck_forward.6} parent=11 // pred_fallthru
        _
      // Predicated region
      $region21: #{bottleneck_forward.6} parent=11 // pred_check
        %p201 = pneg %p102
      $region22: #{bottleneck_forward.6} parent=11 // pred_check_branch
        %203 = sbr.rel (%p201) target = $region24
      $region23: #{bottleneck_forward.6} parent=11 // pred_region
        _
      $region24: #{bottleneck_forward.6} parent=11 // pred_fallthru
        _
    $region12: #{bottleneck_forward.6} parent=5 // pred_fallthru
      _
    %p204 = scmp.lt.s32.totalorder %s13, 2
    // Predicated region
    $region25: #{bottleneck_forward.6} parent=5 // pred_check
      %p205 = pneg %p204
    $region26: #{bottleneck_forward.6} parent=5 // pred_check_branch
      %207 = sbr.rel (%p205) target = $region28
    $region27: #{bottleneck_forward.6} parent=5 // pred_region
      // Predicated region
      $region29: #{bottleneck_forward.6} parent=27 // pred_check
        %p208 = pneg %p33
      $region30: #{bottleneck_forward.6} parent=27 // pred_check_branch
        %210 = sbr.rel (%p208) target = $region32
      $region31: #{bottleneck_forward.6} parent=27 // pred_region
        %p211 = scmp.lt.s32.totalorder %s13, 1
        %s212 = scalar_select %p211, %s13, 1
        %s213 = smul.addr %s212, 32
        %s214 = smul.addr %s213, 4
        %s215 = scalar_lea.vmem %s0, %s214
      $region32: #{bottleneck_forward.6} parent=27 // pred_fallthru
        _
    $region28: #{bottleneck_forward.6} parent=5 // pred_fallthru
      _
    %p216 = scmp.le.s32.totalorder 1, %s13
    %p217 = scmp.lt.s32.totalorder %s13, 3
    %p218 = pnand %p216, %p217
    %p219 = pneg %p218
    // Predicated region
    $region33: #{bottleneck_forward.6} parent=5 // pred_check
      _
    $region34: #{bottleneck_forward.6} parent=5 // pred_check_branch
      %221 = sbr.rel (%p218) target = $region36
    $region35: #{bottleneck_forward.6} parent=5 // pred_region
      %s222 = ssub.s32 %s13, 1
      %p223 = scmp.lt.s32.totalorder %s18, 1
      %s224 = scalar_select %p223, %s18, 1
      %s225 = smul.addr %s224, 32
      %s226 = smul.addr %s225, 4
      %s227 = scalar_lea.vmem %s0, %s226
      %p228 = pneg %p39
      %p229 = pneg %p36
      %p230 = pneg %p60
      %p231 = pneg %p57
      %p232 = pneg %p81
      %p233 = pneg %p78
      %p234 = pneg %p102
      %p235 = pneg %p99
      %p236 = pneg %p128
      %p237 = pneg %p125
      %p238 = scmp.lt.s32.totalorder %s18, 1
      %s239 = scalar_select %p238, %s18, 1
      %s240 = smul.addr %s239, 32
      %s241 = smul.addr %s240, 4
      %s242 = scalar_lea.vmem %s4, %s241
      %p243 = pneg %p154
      %p244 = pneg %p151
      %p245 = scmp.lt.s32.totalorder %s18, 1
      %s246 = scalar_select %p245, %s18, 1
      %s247 = scalar_lea.vmem %s5, %s246
      %p248 = pneg %p180
      %p249 = pneg %p177
      %p250 = scmp.lt.s32.totalorder %s18, 1
      %s251 = scalar_select %p250, %s18, 1
      %s252 = scalar_lea.vmem %s6, %s251
      %p253 = scmp.lt.s32.totalorder %s18, 1
      %s254 = scalar_select %p253, %s18, 1
      %s255 = smul.addr %s254, 32
      %s256 = smul.addr %s255, 4
      %s257 = scalar_lea.vmem %s0, %s256
      %p258 = scmp.lt.s32.totalorder %s18, 1
      %s259 = scalar_select %p258, %s18, 1
      %s260 = smul.addr %s259, 32
      %s261 = smul.addr %s260, 4
      %s262 = scalar_lea.vmem %s4, %s261
      %p263 = scmp.lt.s32.totalorder %s18, 1
      %s264 = scalar_select %p263, %s18, 1
      %s265 = scalar_lea.vmem %s5, %s264
      %p266 = scmp.lt.s32.totalorder %s18, 1
      %s267 = scalar_select %p266, %s18, 1
      %s268 = scalar_lea.vmem %s6, %s267
      %v270 = vld [vmem:[%s257] sm:$0xf]
      %v271 = vld [vmem:[%s257 + $0x4] sm:$0xf]
      %v272 = vld [vmem:[%s257 + $0x8] sm:$0xf]
      %v273 = vld [vmem:[%s257 + $0xc] sm:$0xf]
      %v274 = vld [vmem:[%s257 + $0x10] sm:$0xf]
      %v275 = vld [vmem:[%s257 + $0x14] sm:$0xf]
      %v276 = vld [vmem:[%s257 + $0x18] sm:$0xf]
      %v277 = vld [vmem:[%s257 + $0x1c] sm:$0xf]
      %v278 = vld [vmem:[%s257 + $0x20] sm:$0xf]
      %v279 = vld [vmem:[%s257 + $0x24] sm:$0xf]
      %v280 = vld [vmem:[%s257 + $0x28] sm:$0xf]
      %v281 = vld [vmem:[%s257 + $0x2c] sm:$0xf]
      %v282 = vld [vmem:[%s257 + $0x30] sm:$0xf]
      %v283 = vld [vmem:[%s257 + $0x34] sm:$0xf]
      %v284 = vld [vmem:[%s257 + $0x38] sm:$0xf]
      %v285 = vld [vmem:[%s257 + $0x3c] sm:$0xf]
      %v286 = vld [vmem:[%s257 + $0x40] sm:$0xf]
      %v287 = vld [vmem:[%s257 + $0x44] sm:$0xf]
      %v288 = vld [vmem:[%s257 + $0x48] sm:$0xf]
      %v289 = vld [vmem:[%s257 + $0x4c] sm:$0xf]
      %v290 = vld [vmem:[%s257 + $0x50] sm:$0xf]
      %v291 = vld [vmem:[%s257 + $0x54] sm:$0xf]
      %v292 = vld [vmem:[%s257 + $0x58] sm:$0xf]
      %v293 = vld [vmem:[%s257 + $0x5c] sm:$0xf]
      %v294 = vld [vmem:[%s257 + $0x60] sm:$0xf]
      %v295 = vld [vmem:[%s257 + $0x64] sm:$0xf]
      %v296 = vld [vmem:[%s257 + $0x68] sm:$0xf]
      %v297 = vld [vmem:[%s257 + $0x6c] sm:$0xf]
      %v298 = vld [vmem:[%s257 + $0x70] sm:$0xf]
      %v299 = vld [vmem:[%s257 + $0x74] sm:$0xf]
      %v300 = vld [vmem:[%s257 + $0x78] sm:$0xf]
      %v301 = vld [vmem:[%s257 + $0x7c] sm:$0xf]
      %v302 = vunpack.c.l.bf16 %v270
      %v303 = vunpack.c.l.bf16 %v271
      %v304 = vunpack.c.l.bf16 %v272
      %v305 = vunpack.c.l.bf16 %v273
      %v306 = vunpack.c.l.bf16 %v274
      %v307 = vunpack.c.l.bf16 %v275
      %v308 = vunpack.c.l.bf16 %v276
      %v309 = vunpack.c.l.bf16 %v277
      %v310 = vunpack.c.l.bf16 %v278
      %v311 = vunpack.c.l.bf16 %v279
      %v312 = vunpack.c.l.bf16 %v280
      %v313 = vunpack.c.l.bf16 %v281
      %v314 = vunpack.c.l.bf16 %v282
      %v315 = vunpack.c.l.bf16 %v283
      %v316 = vunpack.c.l.bf16 %v284
      %v317 = vunpack.c.l.bf16 %v285
      %v318 = vunpack.c.l.bf16 %v286
      %v319 = vunpack.c.l.bf16 %v287
      %v320 = vunpack.c.l.bf16 %v288
      %v321 = vunpack.c.l.bf16 %v289
      %v322 = vunpack.c.l.bf16 %v290
      %v323 = vunpack.c.l.bf16 %v291
      %v324 = vunpack.c.l.bf16 %v292
      %v325 = vunpack.c.l.bf16 %v293
      %v326 = vunpack.c.l.bf16 %v294
      %v327 = vunpack.c.l.bf16 %v295
      %v328 = vunpack.c.l.bf16 %v296
      %v329 = vunpack.c.l.bf16 %v297
      %v330 = vunpack.c.l.bf16 %v298
      %v331 = vunpack.c.l.bf16 %v299
      %v332 = vunpack.c.l.bf16 %v300
      %v333 = vunpack.c.l.bf16 %v301
      %v334 = vld [vmem:[%s1] sm:$0x1]
      %v336 = vlaneseq
      %v337 = vshrl.u32 %v336, 7
      %v338 = vsub.s32 0, %v337
      %v339 = vrot.slane %v334, %v338
      %v341 = vmul.f32 %v302, %v339
      %v342 = vmul.f32 %v303, %v339
      %v343 = vmul.f32 %v304, %v339
      %v344 = vmul.f32 %v305, %v339
      %v345 = vmul.f32 %v306, %v339
      %v346 = vmul.f32 %v307, %v339
      %v347 = vmul.f32 %v308, %v339
      %v348 = vmul.f32 %v309, %v339
      %v349 = vmul.f32 %v310, %v339
      %v350 = vmul.f32 %v311, %v339
      %v351 = vmul.f32 %v312, %v339
      %v352 = vmul.f32 %v313, %v339
      %v353 = vmul.f32 %v314, %v339
      %v354 = vmul.f32 %v315, %v339
      %v355 = vmul.f32 %v316, %v339
      %v356 = vmul.f32 %v317, %v339
      %v357 = vmul.f32 %v318, %v339
      %v358 = vmul.f32 %v319, %v339
      %v359 = vmul.f32 %v320, %v339
      %v360 = vmul.f32 %v321, %v339
      %v361 = vmul.f32 %v322, %v339
      %v362 = vmul.f32 %v323, %v339
      %v363 = vmul.f32 %v324, %v339
      %v364 = vmul.f32 %v325, %v339
      %v365 = vmul.f32 %v326, %v339
      %v366 = vmul.f32 %v327, %v339
      %v367 = vmul.f32 %v328, %v339
      %v368 = vmul.f32 %v329, %v339
      %v369 = vmul.f32 %v330, %v339
      %v370 = vmul.f32 %v331, %v339
      %v371 = vmul.f32 %v332, %v339
      %v372 = vmul.f32 %v333, %v339
      %v373 = vld [vmem:[%s2] sm:$0x1]
      %v375 = vlaneseq
      %v376 = vshrl.u32 %v375, 7
      %v377 = vsub.s32 0, %v376
      %v378 = vrot.slane %v373, %v377
      %v380 = vadd.f32 %v341, %v378
      %v381 = vadd.f32 %v342, %v378
      %v382 = vadd.f32 %v343, %v378
      %v383 = vadd.f32 %v344, %v378
      %v384 = vadd.f32 %v345, %v378
      %v385 = vadd.f32 %v346, %v378
      %v386 = vadd.f32 %v347, %v378
      %v387 = vadd.f32 %v348, %v378
      %v388 = vadd.f32 %v349, %v378
      %v389 = vadd.f32 %v350, %v378
      %v390 = vadd.f32 %v351, %v378
      %v391 = vadd.f32 %v352, %v378
      %v392 = vadd.f32 %v353, %v378
      %v393 = vadd.f32 %v354, %v378
      %v394 = vadd.f32 %v355, %v378
      %v395 = vadd.f32 %v356, %v378
      %v396 = vadd.f32 %v357, %v378
      %v397 = vadd.f32 %v358, %v378
      %v398 = vadd.f32 %v359, %v378
      %v399 = vadd.f32 %v360, %v378
      %v400 = vadd.f32 %v361, %v378
      %v401 = vadd.f32 %v362, %v378
      %v402 = vadd.f32 %v363, %v378
      %v403 = vadd.f32 %v364, %v378
      %v404 = vadd.f32 %v365, %v378
      %v405 = vadd.f32 %v366, %v378
      %v406 = vadd.f32 %v367, %v378
      %v407 = vadd.f32 %v368, %v378
      %v408 = vadd.f32 %v369, %v378
      %v409 = vadd.f32 %v370, %v378
      %v410 = vadd.f32 %v371, %v378
      %v411 = vadd.f32 %v372, %v378
      %v412 = vmax.f32 %v380, 0.0
      %v413 = vmax.f32 %v381, 0.0
      %v414 = vmax.f32 %v382, 0.0
      %v415 = vmax.f32 %v383, 0.0
      %v416 = vmax.f32 %v384, 0.0
      %v417 = vmax.f32 %v385, 0.0
      %v418 = vmax.f32 %v386, 0.0
      %v419 = vmax.f32 %v387, 0.0
      %v420 = vmax.f32 %v388, 0.0
      %v421 = vmax.f32 %v389, 0.0
      %v422 = vmax.f32 %v390, 0.0
      %v423 = vmax.f32 %v391, 0.0
      %v424 = vmax.f32 %v392, 0.0
      %v425 = vmax.f32 %v393, 0.0
      %v426 = vmax.f32 %v394, 0.0
      %v427 = vmax.f32 %v395, 0.0
      %v428 = vmax.f32 %v396, 0.0
      %v429 = vmax.f32 %v397, 0.0
      %v430 = vmax.f32 %v398, 0.0
      %v431 = vmax.f32 %v399, 0.0
      %v432 = vmax.f32 %v400, 0.0
      %v433 = vmax.f32 %v401, 0.0
      %v434 = vmax.f32 %v402, 0.0
      %v435 = vmax.f32 %v403, 0.0
      %v436 = vmax.f32 %v404, 0.0
      %v437 = vmax.f32 %v405, 0.0
      %v438 = vmax.f32 %v406, 0.0
      %v439 = vmax.f32 %v407, 0.0
      %v440 = vmax.f32 %v408, 0.0
      %v441 = vmax.f32 %v409, 0.0
      %v442 = vmax.f32 %v410, 0.0
      %v443 = vmax.f32 %v411, 0.0
      %444 = vst [vmem:[#allocation2] sm:$0xf] 0
      %445 = vst [vmem:[#allocation2 + $0x4] sm:$0xf] 0
      %446 = vst [vmem:[#allocation2 + $0x8] sm:$0x1] 0
      %447 = vst [vmem:[#allocation2 + $0xc] sm:$0xf] 0
      %448 = vst [vmem:[#allocation2 + $0x10] sm:$0xf] 0
      %449 = vst [vmem:[#allocation2 + $0x14] sm:$0x1] 0
      %450 = vst [vmem:[#allocation2 + $0x18] sm:$0xf] 0
      %451 = vst [vmem:[#allocation2 + $0x1c] sm:$0xf] 0
      %452 = vst [vmem:[#allocation2 + $0x20] sm:$0x1] 0
      %453 = vst [vmem:[#allocation2 + $0x24] sm:$0xf] 0
      %454 = vst [vmem:[#allocation2 + $0x28] sm:$0xf] 0
      %455 = vst [vmem:[#allocation2 + $0x2c] sm:$0x1] 0
      %456 = vst [vmem:[#allocation2 + $0x30] sm:$0xf] 0
      %457 = vst [vmem:[#allocation2 + $0x34] sm:$0xf] 0
      %458 = vst [vmem:[#allocation2 + $0x38] sm:$0x1] 0
      %459 = vst [vmem:[#allocation2 + $0x3c] sm:$0xf] 0
      %460 = vst [vmem:[#allocation2 + $0x40] sm:$0xf] 0
      %461 = vst [vmem:[#allocation2 + $0x44] sm:$0x1] 0
      %462 = vst [vmem:[#allocation2 + $0x48] sm:$0xf] 0
      %463 = vst [vmem:[#allocation2 + $0x4c] sm:$0xf] 0
      %464 = vst [vmem:[#allocation2 + $0x50] sm:$0x1] 0
      %465 = vst [vmem:[#allocation2 + $0x54] sm:$0xf] 0
      %466 = vst [vmem:[#allocation2 + $0x58] sm:$0xf] 0
      %467 = vst [vmem:[#allocation2 + $0x5c] sm:$0x1] 0
      %468 = vst [vmem:[#allocation2 + $0x60] sm:$0xf] 0
      %469 = vst [vmem:[#allocation2 + $0x64] sm:$0xf] 0
      %470 = vst [vmem:[#allocation2 + $0x68] sm:$0x1] 0
      %471 = vst [vmem:[#allocation2 + $0x6c] sm:$0xf] 0
      %472 = vst [vmem:[#allocation2 + $0x70] sm:$0xf] 0
      %473 = vst [vmem:[#allocation2 + $0x74] sm:$0x1] 0
      %474 = vst [vmem:[#allocation2 + $0x78] sm:$0xf] 0
      %475 = vst [vmem:[#allocation2 + $0x7c] sm:$0xf] 0
      %476 = vst [vmem:[#allocation2 + $0x80] sm:$0x1] 0
      %477 = vst [vmem:[#allocation2 + $0x84] sm:$0xf] 0
      %478 = vst [vmem:[#allocation2 + $0x88] sm:$0xf] 0
      %479 = vst [vmem:[#allocation2 + $0x8c] sm:$0x1] 0
      %480 = vst [vmem:[#allocation2 + $0x90] sm:$0xf] 0
      %481 = vst [vmem:[#allocation2 + $0x94] sm:$0xf] 0
      %482 = vst [vmem:[#allocation2 + $0x98] sm:$0x1] 0
      %483 = vst [vmem:[#allocation2 + $0x9c] sm:$0xf] 0
      %484 = vst [vmem:[#allocation2 + $0xa0] sm:$0xf] 0
      %485 = vst [vmem:[#allocation2 + $0xa4] sm:$0x1] 0
      %486 = vst [vmem:[#allocation2 + $0xa8] sm:$0xf] 0
      %487 = vst [vmem:[#allocation2 + $0xac] sm:$0xf] 0
      %488 = vst [vmem:[#allocation2 + $0xb0] sm:$0x1] 0
      %489 = vst [vmem:[#allocation2 + $0xb4] sm:$0xf] 0
      %490 = vst [vmem:[#allocation2 + $0xb8] sm:$0xf] 0
      %491 = vst [vmem:[#allocation2 + $0xbc] sm:$0x1] 0
      %492 = vst [vmem:[#allocation2 + $0xc0] sm:$0xf] 0
      %493 = vst [vmem:[#allocation2 + $0xc4] sm:$0xf] 0
      %494 = vst [vmem:[#allocation2 + $0xc8] sm:$0x1] 0
      %495 = vst [vmem:[#allocation2 + $0xcc] sm:$0xf] 0
      %496 = vst [vmem:[#allocation2 + $0xd0] sm:$0xf] 0
      %497 = vst [vmem:[#allocation2 + $0xd4] sm:$0x1] 0
      %v498 = vpack.c.bf16 %v413, %v412
      %v499 = vpack.c.bf16 %v415, %v414
      %v500 = vpack.c.bf16 %v417, %v416
      %v501 = vpack.c.bf16 %v419, %v418
      %v502 = vpack.c.bf16 %v421, %v420
      %v503 = vpack.c.bf16 %v423, %v422
      %v504 = vpack.c.bf16 %v425, %v424
      %v505 = vpack.c.bf16 %v427, %v426
      %v506 = vpack.c.bf16 %v429, %v428
      %v507 = vpack.c.bf16 %v431, %v430
      %v508 = vpack.c.bf16 %v433, %v432
      %v509 = vpack.c.bf16 %v435, %v434
      %v510 = vpack.c.bf16 %v437, %v436
      %v511 = vpack.c.bf16 %v439, %v438
      %v512 = vpack.c.bf16 %v441, %v440
      %v513 = vpack.c.bf16 %v443, %v442
      %v530 = vunpack.c.l.b16 %v498
      %v531 = vunpack.c.h.b16 %v498
      %v532 = vunpack.c.l.b16 %v499
      %v533 = vunpack.c.h.b16 %v499
      %v534 = vunpack.c.l.b16 %v500
      %v535 = vunpack.c.h.b16 %v500
      %v536 = vunpack.c.l.b16 %v501
      %v537 = vunpack.c.h.b16 %v501
      %v538 = vunpack.c.l.b16 %v502
      %v539 = vunpack.c.h.b16 %v502
      %v540 = vunpack.c.l.b16 %v503
      %v541 = vunpack.c.h.b16 %v503
      %v542 = vunpack.c.l.b16 %v504
      %v543 = vunpack.c.h.b16 %v504
      %v544 = vunpack.c.l.b16 %v505
      %v545 = vunpack.c.h.b16 %v505
      %v546 = vunpack.c.l.b16 %v506
      %v547 = vunpack.c.h.b16 %v506
      %v548 = vunpack.c.l.b16 %v507
      %v549 = vunpack.c.h.b16 %v507
      %v550 = vunpack.c.l.b16 %v508
      %v551 = vunpack.c.h.b16 %v508
      %v552 = vunpack.c.l.b16 %v509
      %v553 = vunpack.c.h.b16 %v509
      %v554 = vunpack.c.l.b16 %v510
      %v555 = vunpack.c.h.b16 %v510
      %v556 = vunpack.c.l.b16 %v511
      %v557 = vunpack.c.h.b16 %v511
      %v558 = vunpack.c.l.b16 %v512
      %v559 = vunpack.c.h.b16 %v512
      %v560 = vunpack.c.l.b16 %v513
      %v561 = vunpack.c.h.b16 %v513
      %v562 = vpack.c.b16 %v530, %v530
      %v563 = vpack.c.b16 %v531, %v531
      %v564 = vpack.c.b16 %v532, %v532
      %v565 = vpack.c.b16 %v533, %v533
      %v566 = vpack.c.b16 %v534, %v534
      %v567 = vpack.c.b16 %v535, %v535
      %v568 = vpack.c.b16 %v536, %v536
      %v569 = vpack.c.b16 %v537, %v537
      %v570 = vpack.c.b16 %v538, %v538
      %v571 = vpack.c.b16 %v539, %v539
      %v572 = vpack.c.b16 %v540, %v540
      %v573 = vpack.c.b16 %v541, %v541
      %v574 = vpack.c.b16 %v542, %v542
      %v575 = vpack.c.b16 %v543, %v543
      %v576 = vpack.c.b16 %v544, %v544
      %v577 = vpack.c.b16 %v545, %v545
      %v578 = vpack.c.b16 %v546, %v546
      %v579 = vpack.c.b16 %v547, %v547
      %v580 = vpack.c.b16 %v548, %v548
      %v581 = vpack.c.b16 %v549, %v549
      %v582 = vpack.c.b16 %v550, %v550
      %v583 = vpack.c.b16 %v551, %v551
      %v584 = vpack.c.b16 %v552, %v552
      %v585 = vpack.c.b16 %v553, %v553
      %v586 = vpack.c.b16 %v554, %v554
      %v587 = vpack.c.b16 %v555, %v555
      %v588 = vpack.c.b16 %v556, %v556
      %v589 = vpack.c.b16 %v557, %v557
      %v590 = vpack.c.b16 %v558, %v558
      %v591 = vpack.c.b16 %v559, %v559
      %v592 = vpack.c.b16 %v560, %v560
      %v593 = vpack.c.b16 %v561, %v561
      %vm594 = vsmask.f32 256
      %vm595 = vsmask.f32 4368
      %vm596 = vmor %vm594, %vm595
      %v598 = vshrl.u32 %v562, 16
      %v600 = vrot.slane %v598, 7
      %v601 = vshll.u32 %v562, 16
      %v603 = vor.u32 %v600, %v601
      %v604 = vrot.slane %v600, 4
      %v606 = vshrl.u32 %v563, 16
      %v608 = vrot.slane %v606, 7
      %v609 = vshll.u32 %v563, 16
      %v611 = vor.u32 %v608, %v609
      %v612 = vsel %vm596, %v604, %v611
      %v613 = vrot.slane %v608, 4
      %v615 = vshrl.u32 %v564, 16
      %v617 = vrot.slane %v615, 7
      %v618 = vshll.u32 %v564, 16
      %v620 = vor.u32 %v617, %v618
      %v621 = vrot.slane %v617, 4
      %v623 = vshrl.u32 %v565, 16
      %v625 = vrot.slane %v623, 7
      %v626 = vshll.u32 %v565, 16
      %v628 = vor.u32 %v625, %v626
      %v629 = vsel %vm596, %v621, %v628
      %v630 = vrot.slane %v625, 4
      %v632 = vshrl.u32 %v566, 16
      %v634 = vrot.slane %v632, 7
      %v635 = vshll.u32 %v566, 16
      %v637 = vor.u32 %v634, %v635
      %v638 = vrot.slane %v634, 4
      %v640 = vshrl.u32 %v567, 16
      %v642 = vrot.slane %v640, 7
      %v643 = vshll.u32 %v567, 16
      %v645 = vor.u32 %v642, %v643
      %v646 = vsel %vm596, %v638, %v645
      %v647 = vrot.slane %v642, 4
      %v649 = vshrl.u32 %v568, 16
      %v651 = vrot.slane %v649, 7
      %v652 = vshll.u32 %v568, 16
      %v654 = vor.u32 %v651, %v652
      %v655 = vrot.slane %v651, 4
      %v657 = vshrl.u32 %v569, 16
      %v659 = vrot.slane %v657, 7
      %v660 = vshll.u32 %v569, 16
      %v662 = vor.u32 %v659, %v660
      %v663 = vsel %vm596, %v655, %v662
      %v664 = vrot.slane %v659, 4
      %v666 = vshrl.u32 %v570, 16
      %v668 = vrot.slane %v666, 7
      %v669 = vshll.u32 %v570, 16
      %v671 = vor.u32 %v668, %v669
      %v672 = vrot.slane %v668, 4
      %v674 = vshrl.u32 %v571, 16
      %v676 = vrot.slane %v674, 7
      %v677 = vshll.u32 %v571, 16
      %v679 = vor.u32 %v676, %v677
      %v680 = vsel %vm596, %v672, %v679
      %v681 = vrot.slane %v676, 4
      %v683 = vshrl.u32 %v572, 16
      %v685 = vrot.slane %v683, 7
      %v686 = vshll.u32 %v572, 16
      %v688 = vor.u32 %v685, %v686
      %v689 = vrot.slane %v685, 4
      %v691 = vshrl.u32 %v573, 16
      %v693 = vrot.slane %v691, 7
      %v694 = vshll.u32 %v573, 16
      %v696 = vor.u32 %v693, %v694
      %v697 = vsel %vm596, %v689, %v696
      %v698 = vrot.slane %v693, 4
      %v700 = vshrl.u32 %v574, 16
      %v702 = vrot.slane %v700, 7
      %v703 = vshll.u32 %v574, 16
      %v705 = vor.u32 %v702, %v703
      %v706 = vrot.slane %v702, 4
      %v708 = vshrl.u32 %v575, 16
      %v710 = vrot.slane %v708, 7
      %v711 = vshll.u32 %v575, 16
      %v713 = vor.u32 %v710, %v711
      %v714 = vsel %vm596, %v706, %v713
      %v715 = vrot.slane %v710, 4
      %v717 = vshrl.u32 %v576, 16
      %v719 = vrot.slane %v717, 7
      %v720 = vshll.u32 %v576, 16
      %v722 = vor.u32 %v719, %v720
      %v723 = vrot.slane %v719, 4
      %v725 = vshrl.u32 %v577, 16
      %v727 = vrot.slane %v725, 7
      %v728 = vshll.u32 %v577, 16
      %v730 = vor.u32 %v727, %v728
      %v731 = vsel %vm596, %v723, %v730
      %v732 = vrot.slane %v727, 4
      %v734 = vshrl.u32 %v578, 16
      %v736 = vrot.slane %v734, 7
      %v737 = vshll.u32 %v578, 16
      %v739 = vor.u32 %v736, %v737
      %v740 = vrot.slane %v736, 4
      %v742 = vshrl.u32 %v579, 16
      %v744 = vrot.slane %v742, 7
      %v745 = vshll.u32 %v579, 16
      %v747 = vor.u32 %v744, %v745
      %v748 = vsel %vm596, %v740, %v747
      %v749 = vrot.slane %v744, 4
      %v751 = vshrl.u32 %v580, 16
      %v753 = vrot.slane %v751, 7
      %v754 = vshll.u32 %v580, 16
      %v756 = vor.u32 %v753, %v754
      %v757 = vrot.slane %v753, 4
      %v759 = vshrl.u32 %v581, 16
      %v761 = vrot.slane %v759, 7
      %v762 = vshll.u32 %v581, 16
      %v764 = vor.u32 %v761, %v762
      %v765 = vsel %vm596, %v757, %v764
      %v766 = vrot.slane %v761, 4
      %v768 = vshrl.u32 %v582, 16
      %v770 = vrot.slane %v768, 7
      %v771 = vshll.u32 %v582, 16
      %v773 = vor.u32 %v770, %v771
      %v774 = vrot.slane %v770, 4
      %v776 = vshrl.u32 %v583, 16
      %v778 = vrot.slane %v776, 7
      %v779 = vshll.u32 %v583, 16
      %v781 = vor.u32 %v778, %v779
      %v782 = vsel %vm596, %v774, %v781
      %v783 = vrot.slane %v778, 4
      %v785 = vshrl.u32 %v584, 16
      %v787 = vrot.slane %v785, 7
      %v788 = vshll.u32 %v584, 16
      %v790 = vor.u32 %v787, %v788
      %v791 = vrot.slane %v787, 4
      %v793 = vshrl.u32 %v585, 16
      %v795 = vrot.slane %v793, 7
      %v796 = vshll.u32 %v585, 16
      %v798 = vor.u32 %v795, %v796
      %v799 = vsel %vm596, %v791, %v798
      %v800 = vrot.slane %v795, 4
      %v802 = vshrl.u32 %v586, 16
      %v804 = vrot.slane %v802, 7
      %v805 = vshll.u32 %v586, 16
      %v807 = vor.u32 %v804, %v805
      %v808 = vrot.slane %v804, 4
      %v810 = vshrl.u32 %v587, 16
      %v812 = vrot.slane %v810, 7
      %v813 = vshll.u32 %v587, 16
      %v815 = vor.u32 %v812, %v813
      %v816 = vsel %vm596, %v808, %v815
      %v817 = vrot.slane %v812, 4
      %v819 = vshrl.u32 %v588, 16
      %v821 = vrot.slane %v819, 7
      %v822 = vshll.u32 %v588, 16
      %v824 = vor.u32 %v821, %v822
      %v825 = vrot.slane %v821, 4
      %v827 = vshrl.u32 %v589, 16
      %v829 = vrot.slane %v827, 7
      %v830 = vshll.u32 %v589, 16
      %v832 = vor.u32 %v829, %v830
      %v833 = vsel %vm596, %v825, %v832
      %v834 = vrot.slane %v829, 4
      %v836 = vshrl.u32 %v590, 16
      %v838 = vrot.slane %v836, 7
      %v839 = vshll.u32 %v590, 16
      %v841 = vor.u32 %v838, %v839
      %v842 = vrot.slane %v838, 4
      %v844 = vshrl.u32 %v591, 16
      %v846 = vrot.slane %v844, 7
      %v847 = vshll.u32 %v591, 16
      %v849 = vor.u32 %v846, %v847
      %v850 = vsel %vm596, %v842, %v849
      %v851 = vrot.slane %v846, 4
      %v853 = vshrl.u32 %v592, 16
      %v855 = vrot.slane %v853, 7
      %v856 = vshll.u32 %v592, 16
      %v858 = vor.u32 %v855, %v856
      %v859 = vrot.slane %v855, 4
      %v861 = vshrl.u32 %v593, 16
      %v863 = vrot.slane %v861, 7
      %v864 = vshll.u32 %v593, 16
      %v866 = vor.u32 %v863, %v864
      %v867 = vsel %vm596, %v859, %v866
      %v868 = vrot.slane %v863, 4
      %s917 = scalar_lea.vmem [#allocation2], 12
      %vm918 = vcmask 1043456
      %vm919 = vsmask.f32 7938
      %vm920 = vmand %vm918, %vm919
      %v921 = vld [vmem:[%s917] sm:$0xf]
      %v922 = vsel %vm920, %v603, %v921
      %923 = vst [vmem:[%s917] sm:$0xf] %v922
      %924 = vst [vmem:[%s917 + $0x4] sm:$0xf] %v612
      %vm925 = vcmask 1040384
      %vm926 = vmand %vm925, %vm594
      %v927 = vld [vmem:[%s917 + $0x8] sm:$0x1]
      %v928 = vsel %vm926, %v613, %v927
      %929 = vst [vmem:[%s917 + $0x8] sm:$0x1] %v928
      %v930 = vld [vmem:[%s917 + $0xc] sm:$0xf]
      %v931 = vsel %vm920, %v620, %v930
      %932 = vst [vmem:[%s917 + $0xc] sm:$0xf] %v931
      %933 = vst [vmem:[%s917 + $0x10] sm:$0xf] %v629
      %v934 = vld [vmem:[%s917 + $0x14] sm:$0x1]
      %v935 = vsel %vm926, %v630, %v934
      %936 = vst [vmem:[%s917 + $0x14] sm:$0x1] %v935
      %v937 = vld [vmem:[%s917 + $0x18] sm:$0xf]
      %v938 = vsel %vm920, %v637, %v937
      %939 = vst [vmem:[%s917 + $0x18] sm:$0xf] %v938
      %940 = vst [vmem:[%s917 + $0x1c] sm:$0xf] %v646
      %v941 = vld [vmem:[%s917 + $0x20] sm:$0x1]
      %v942 = vsel %vm926, %v647, %v941
      %943 = vst [vmem:[%s917 + $0x20] sm:$0x1] %v942
      %v944 = vld [vmem:[%s917 + $0x24] sm:$0xf]
      %v945 = vsel %vm920, %v654, %v944
      %946 = vst [vmem:[%s917 + $0x24] sm:$0xf] %v945
      %947 = vst [vmem:[%s917 + $0x28] sm:$0xf] %v663
      %v948 = vld [vmem:[%s917 + $0x2c] sm:$0x1]
      %v949 = vsel %vm926, %v664, %v948
      %950 = vst [vmem:[%s917 + $0x2c] sm:$0x1] %v949
      %v951 = vld [vmem:[%s917 + $0x30] sm:$0xf]
      %v952 = vsel %vm920, %v671, %v951
      %953 = vst [vmem:[%s917 + $0x30] sm:$0xf] %v952
      %954 = vst [vmem:[%s917 + $0x34] sm:$0xf] %v680
      %v955 = vld [vmem:[%s917 + $0x38] sm:$0x1]
      %v956 = vsel %vm926, %v681, %v955
      %957 = vst [vmem:[%s917 + $0x38] sm:$0x1] %v956
      %v958 = vld [vmem:[%s917 + $0x3c] sm:$0xf]
      %v959 = vsel %vm920, %v688, %v958
      %960 = vst [vmem:[%s917 + $0x3c] sm:$0xf] %v959
      %961 = vst [vmem:[%s917 + $0x40] sm:$0xf] %v697
      %v962 = vld [vmem:[%s917 + $0x44] sm:$0x1]
      %v963 = vsel %vm926, %v698, %v962
      %964 = vst [vmem:[%s917 + $0x44] sm:$0x1] %v963
      %v965 = vld [vmem:[%s917 + $0x48] sm:$0xf]
      %v966 = vsel %vm920, %v705, %v965
      %967 = vst [vmem:[%s917 + $0x48] sm:$0xf] %v966
      %968 = vst [vmem:[%s917 + $0x4c] sm:$0xf] %v714
      %v969 = vld [vmem:[%s917 + $0x50] sm:$0x1]
      %v970 = vsel %vm926, %v715, %v969
      %971 = vst [vmem:[%s917 + $0x50] sm:$0x1] %v970
      %v972 = vld [vmem:[%s917 + $0x54] sm:$0xf]
      %v973 = vsel %vm920, %v722, %v972
      %974 = vst [vmem:[%s917 + $0x54] sm:$0xf] %v973
      %975 = vst [vmem:[%s917 + $0x58] sm:$0xf] %v731
      %v976 = vld [vmem:[%s917 + $0x5c] sm:$0x1]
      %v977 = vsel %vm926, %v732, %v976
      %978 = vst [vmem:[%s917 + $0x5c] sm:$0x1] %v977
      %v979 = vld [vmem:[%s917 + $0x60] sm:$0xf]
      %v980 = vsel %vm920, %v739, %v979
      %981 = vst [vmem:[%s917 + $0x60] sm:$0xf] %v980
      %982 = vst [vmem:[%s917 + $0x64] sm:$0xf] %v748
      %v983 = vld [vmem:[%s917 + $0x68] sm:$0x1]
      %v984 = vsel %vm926, %v749, %v983
      %985 = vst [vmem:[%s917 + $0x68] sm:$0x1] %v984
      %v986 = vld [vmem:[%s917 + $0x6c] sm:$0xf]
      %v987 = vsel %vm920, %v756, %v986
      %988 = vst [vmem:[%s917 + $0x6c] sm:$0xf] %v987
      %989 = vst [vmem:[%s917 + $0x70] sm:$0xf] %v765
      %v990 = vld [vmem:[%s917 + $0x74] sm:$0x1]
      %v991 = vsel %vm926, %v766, %v990
      %992 = vst [vmem:[%s917 + $0x74] sm:$0x1] %v991
      %v993 = vld [vmem:[%s917 + $0x78] sm:$0xf]
      %v994 = vsel %vm920, %v773, %v993
      %995 = vst [vmem:[%s917 + $0x78] sm:$0xf] %v994
      %996 = vst [vmem:[%s917 + $0x7c] sm:$0xf] %v782
      %v997 = vld [vmem:[%s917 + $0x80] sm:$0x1]
      %v998 = vsel %vm926, %v783, %v997
      %999 = vst [vmem:[%s917 + $0x80] sm:$0x1] %v998
      %v1000 = vld [vmem:[%s917 + $0x84] sm:$0xf]
      %v1001 = vsel %vm920, %v790, %v1000
      %1002 = vst [vmem:[%s917 + $0x84] sm:$0xf] %v1001
      %1003 = vst [vmem:[%s917 + $0x88] sm:$0xf] %v799
      %v1004 = vld [vmem:[%s917 + $0x8c] sm:$0x1]
      %v1005 = vsel %vm926, %v800, %v1004
      %1006 = vst [vmem:[%s917 + $0x8c] sm:$0x1] %v1005
      %v1007 = vld [vmem:[%s917 + $0x90] sm:$0xf]
      %v1008 = vsel %vm920, %v807, %v1007
      %1009 = vst [vmem:[%s917 + $0x90] sm:$0xf] %v1008
      %1010 = vst [vmem:[%s917 + $0x94] sm:$0xf] %v816
      %v1011 = vld [vmem:[%s917 + $0x98] sm:$0x1]
      %v1012 = vsel %vm926, %v817, %v1011
      %1013 = vst [vmem:[%s917 + $0x98] sm:$0x1] %v1012
      %v1014 = vld [vmem:[%s917 + $0x9c] sm:$0xf]
      %v1015 = vsel %vm920, %v824, %v1014
      %1016 = vst [vmem:[%s917 + $0x9c] sm:$0xf] %v1015
      %1017 = vst [vmem:[%s917 + $0xa0] sm:$0xf] %v833
      %v1018 = vld [vmem:[%s917 + $0xa4] sm:$0x1]
      %v1019 = vsel %vm926, %v834, %v1018
      %1020 = vst [vmem:[%s917 + $0xa4] sm:$0x1] %v1019
      %v1021 = vld [vmem:[%s917 + $0xa8] sm:$0xf]
      %v1022 = vsel %vm920, %v841, %v1021
      %1023 = vst [vmem:[%s917 + $0xa8] sm:$0xf] %v1022
      %1024 = vst [vmem:[%s917 + $0xac] sm:$0xf] %v850
      %v1025 = vld [vmem:[%s917 + $0xb0] sm:$0x1]
      %v1026 = vsel %vm926, %v851, %v1025
      %1027 = vst [vmem:[%s917 + $0xb0] sm:$0x1] %v1026
      %v1028 = vld [vmem:[%s917 + $0xb4] sm:$0xf]
      %v1029 = vsel %vm920, %v858, %v1028
      %1030 = vst [vmem:[%s917 + $0xb4] sm:$0xf] %v1029
      %1031 = vst [vmem:[%s917 + $0xb8] sm:$0xf] %v867
      %v1032 = vld [vmem:[%s917 + $0xbc] sm:$0x1]
      %v1033 = vsel %vm926, %v868, %v1032
      %1034 = vst [vmem:[%s917 + $0xbc] sm:$0x1] %v1033
      %v1035 = vld [vmem:[#allocation2] sm:$0xf]
      %v1036 = vld [vmem:[#allocation2 + $0x4] sm:$0xf]
      %v1037 = vld [vmem:[#allocation2 + $0xc] sm:$0xf]
      %v1038 = vld [vmem:[#allocation2 + $0x10] sm:$0xf]
      %v1039 = vld [vmem:[#allocation2 + $0x18] sm:$0xf]
      %v1040 = vld [vmem:[#allocation2 + $0x1c] sm:$0xf]
      %v1041 = vld [vmem:[#allocation2 + $0x24] sm:$0xf]
      %v1042 = vld [vmem:[#allocation2 + $0x28] sm:$0xf]
      %v1043 = vld [vmem:[#allocation2 + $0x30] sm:$0xf]
      %v1044 = vld [vmem:[#allocation2 + $0x34] sm:$0xf]
      %v1045 = vld [vmem:[#allocation2 + $0x3c] sm:$0xf]
      %v1046 = vld [vmem:[#allocation2 + $0x40] sm:$0xf]
      %v1047 = vld [vmem:[#allocation2 + $0x48] sm:$0xf]
      %v1048 = vld [vmem:[#allocation2 + $0x4c] sm:$0xf]
      %v1049 = vld [vmem:[#allocation2 + $0x54] sm:$0xf]
      %v1050 = vld [vmem:[#allocation2 + $0x58] sm:$0xf]
      %v1051 = vld [vmem:[#allocation2 + $0x60] sm:$0xf]
      %v1052 = vld [vmem:[#allocation2 + $0x64] sm:$0xf]
      %v1053 = vld [vmem:[#allocation2 + $0x6c] sm:$0xf]
      %v1054 = vld [vmem:[#allocation2 + $0x70] sm:$0xf]
      %v1055 = vld [vmem:[#allocation2 + $0x78] sm:$0xf]
      %v1056 = vld [vmem:[#allocation2 + $0x7c] sm:$0xf]
      %v1057 = vld [vmem:[#allocation2 + $0x84] sm:$0xf]
      %v1058 = vld [vmem:[#allocation2 + $0x88] sm:$0xf]
      %v1059 = vld [vmem:[#allocation2 + $0x90] sm:$0xf]
      %v1060 = vld [vmem:[#allocation2 + $0x94] sm:$0xf]
      %v1061 = vld [vmem:[#allocation2 + $0x9c] sm:$0xf]
      %v1062 = vld [vmem:[#allocation2 + $0xa0] sm:$0xf]
      %v1063 = vld [vmem:[#allocation2 + $0xa8] sm:$0xf]
      %v1064 = vld [vmem:[#allocation2 + $0xac] sm:$0xf]
      %v1065 = vld [vmem:[#allocation2 + $0xb4] sm:$0xf]
      %v1066 = vld [vmem:[#allocation2 + $0xb8] sm:$0xf]
      %v1067 = vld [vmem:[%s3] sm:$0xf]
      %v1068 = vld [vmem:[%s3 + $0x4] sm:$0xf]
      %v1069 = vld [vmem:[%s3 + $0x8] sm:$0xf]
      %v1070 = vld [vmem:[%s3 + $0xc] sm:$0xf]
      %v1071 = vld [vmem:[%s3 + $0x10] sm:$0xf]
      %v1072 = vld [vmem:[%s3 + $0x14] sm:$0xf]
      %v1073 = vld [vmem:[%s3 + $0x18] sm:$0xf]
      %v1074 = vld [vmem:[%s3 + $0x1c] sm:$0xf]
      %v1075 = vld [vmem:[%s3 + $0x20] sm:$0xf]
      %v1076 = vld [vmem:[%s3 + $0x24] sm:$0xf]
      %v1077 = vld [vmem:[%s3 + $0x28] sm:$0xf]
      %v1078 = vld [vmem:[%s3 + $0x2c] sm:$0xf]
      %v1079 = vld [vmem:[%s3 + $0x30] sm:$0xf]
      %v1080 = vld [vmem:[%s3 + $0x34] sm:$0xf]
      %v1081 = vld [vmem:[%s3 + $0x38] sm:$0xf]
      %v1082 = vld [vmem:[%s3 + $0x3c] sm:$0xf]
      %v1083 = vld [vmem:[#allocation2 + $0x8] sm:$0x1]
      %v1084 = vld [vmem:[#allocation2 + $0x14] sm:$0x1]
      %v1085 = vld [vmem:[#allocation2 + $0x20] sm:$0x1]
      %v1086 = vld [vmem:[#allocation2 + $0x2c] sm:$0x1]
      %v1087 = vld [vmem:[#allocation2 + $0x38] sm:$0x1]
      %v1088 = vld [vmem:[#allocation2 + $0x44] sm:$0x1]
      %v1089 = vld [vmem:[#allocation2 + $0x50] sm:$0x1]
      %v1090 = vld [vmem:[#allocation2 + $0x5c] sm:$0x1]
      %v1091 = vld [vmem:[#allocation2 + $0x68] sm:$0x1]
      %v1092 = vld [vmem:[#allocation2 + $0x74] sm:$0x1]
      %v1093 = vld [vmem:[#allocation2 + $0x80] sm:$0x1]
      %v1094 = vld [vmem:[#allocation2 + $0x8c] sm:$0x1]
      %v1095 = vld [vmem:[#allocation2 + $0x98] sm:$0x1]
      %v1096 = vld [vmem:[#allocation2 + $0xa4] sm:$0x1]
      %v1097 = vld [vmem:[#allocation2 + $0xb0] sm:$0x1]
      %v1098 = vld [vmem:[#allocation2 + $0xbc] sm:$0x1]
      %vm1099 = vsmask.f32 3328
      %vm1100 = vsmask.f32 7440
      %vm1101 = vmor %vm1099, %vm1100
      %v1103 = vshrl.u32 %v1035, 16
      %v1105 = vrot.slane %v1103, 4
      %v1106 = vshll.u32 %v1035, 16
      %v1108 = vrot.slane %v1106, 5
      %v1109 = vor.u32 %v1105, %v1108
      %v1110 = vrot.slane %v1109, 4
      %v1112 = vshll.u32 %v1036, 16
      %v1114 = vrot.slane %v1112, 5
      %v1115 = vsel %vm1101, %v1110, %v1114
      %v1116 = vshrl.u32 %v1036, 16
      %v1118 = vrot.slane %v1116, 4
      %v1119 = vor.u32 %v1118, %v1114
      %v1120 = vrot.slane %v1119, 4
      %v1122 = vshll.u32 %v1083, 16
      %v1124 = vrot.slane %v1122, 5
      %v1125 = vsel %vm1101, %v1120, %v1124
      %v1127 = vshrl.u32 %v1037, 16
      %v1129 = vrot.slane %v1127, 4
      %v1130 = vshll.u32 %v1037, 16
      %v1132 = vrot.slane %v1130, 5
      %v1133 = vor.u32 %v1129, %v1132
      %v1134 = vrot.slane %v1133, 4
      %v1136 = vshll.u32 %v1038, 16
      %v1138 = vrot.slane %v1136, 5
      %v1139 = vsel %vm1101, %v1134, %v1138
      %v1140 = vshrl.u32 %v1038, 16
      %v1142 = vrot.slane %v1140, 4
      %v1143 = vor.u32 %v1142, %v1138
      %v1144 = vrot.slane %v1143, 4
      %v1146 = vshll.u32 %v1084, 16
      %v1148 = vrot.slane %v1146, 5
      %v1149 = vsel %vm1101, %v1144, %v1148
      %v1151 = vshrl.u32 %v1039, 16
      %v1153 = vrot.slane %v1151, 4
      %v1154 = vshll.u32 %v1039, 16
      %v1156 = vrot.slane %v1154, 5
      %v1157 = vor.u32 %v1153, %v1156
      %v1158 = vrot.slane %v1157, 4
      %v1160 = vshll.u32 %v1040, 16
      %v1162 = vrot.slane %v1160, 5
      %v1163 = vsel %vm1101, %v1158, %v1162
      %v1164 = vshrl.u32 %v1040, 16
      %v1166 = vrot.slane %v1164, 4
      %v1167 = vor.u32 %v1166, %v1162
      %v1168 = vrot.slane %v1167, 4
      %v1170 = vshll.u32 %v1085, 16
      %v1172 = vrot.slane %v1170, 5
      %v1173 = vsel %vm1101, %v1168, %v1172
      %v1175 = vshrl.u32 %v1041, 16
      %v1177 = vrot.slane %v1175, 4
      %v1178 = vshll.u32 %v1041, 16
      %v1180 = vrot.slane %v1178, 5
      %v1181 = vor.u32 %v1177, %v1180
      %v1182 = vrot.slane %v1181, 4
      %v1184 = vshll.u32 %v1042, 16
      %v1186 = vrot.slane %v1184, 5
      %v1187 = vsel %vm1101, %v1182, %v1186
      %v1188 = vshrl.u32 %v1042, 16
      %v1190 = vrot.slane %v1188, 4
      %v1191 = vor.u32 %v1190, %v1186
      %v1192 = vrot.slane %v1191, 4
      %v1194 = vshll.u32 %v1086, 16
      %v1196 = vrot.slane %v1194, 5
      %v1197 = vsel %vm1101, %v1192, %v1196
      %v1199 = vshrl.u32 %v1043, 16
      %v1201 = vrot.slane %v1199, 4
      %v1202 = vshll.u32 %v1043, 16
      %v1204 = vrot.slane %v1202, 5
      %v1205 = vor.u32 %v1201, %v1204
      %v1206 = vrot.slane %v1205, 4
      %v1208 = vshll.u32 %v1044, 16
      %v1210 = vrot.slane %v1208, 5
      %v1211 = vsel %vm1101, %v1206, %v1210
      %v1212 = vshrl.u32 %v1044, 16
      %v1214 = vrot.slane %v1212, 4
      %v1215 = vor.u32 %v1214, %v1210
      %v1216 = vrot.slane %v1215, 4
      %v1218 = vshll.u32 %v1087, 16
      %v1220 = vrot.slane %v1218, 5
      %v1221 = vsel %vm1101, %v1216, %v1220
      %v1223 = vshrl.u32 %v1045, 16
      %v1225 = vrot.slane %v1223, 4
      %v1226 = vshll.u32 %v1045, 16
      %v1228 = vrot.slane %v1226, 5
      %v1229 = vor.u32 %v1225, %v1228
      %v1230 = vrot.slane %v1229, 4
      %v1232 = vshll.u32 %v1046, 16
      %v1234 = vrot.slane %v1232, 5
      %v1235 = vsel %vm1101, %v1230, %v1234
      %v1236 = vshrl.u32 %v1046, 16
      %v1238 = vrot.slane %v1236, 4
      %v1239 = vor.u32 %v1238, %v1234
      %v1240 = vrot.slane %v1239, 4
      %v1242 = vshll.u32 %v1088, 16
      %v1244 = vrot.slane %v1242, 5
      %v1245 = vsel %vm1101, %v1240, %v1244
      %v1247 = vshrl.u32 %v1047, 16
      %v1249 = vrot.slane %v1247, 4
      %v1250 = vshll.u32 %v1047, 16
      %v1252 = vrot.slane %v1250, 5
      %v1253 = vor.u32 %v1249, %v1252
      %v1254 = vrot.slane %v1253, 4
      %v1256 = vshll.u32 %v1048, 16
      %v1258 = vrot.slane %v1256, 5
      %v1259 = vsel %vm1101, %v1254, %v1258
      %v1260 = vshrl.u32 %v1048, 16
      %v1262 = vrot.slane %v1260, 4
      %v1263 = vor.u32 %v1262, %v1258
      %v1264 = vrot.slane %v1263, 4
      %v1266 = vshll.u32 %v1089, 16
      %v1268 = vrot.slane %v1266, 5
      %v1269 = vsel %vm1101, %v1264, %v1268
      %v1271 = vshrl.u32 %v1049, 16
      %v1273 = vrot.slane %v1271, 4
      %v1274 = vshll.u32 %v1049, 16
      %v1276 = vrot.slane %v1274, 5
      %v1277 = vor.u32 %v1273, %v1276
      %v1278 = vrot.slane %v1277, 4
      %v1280 = vshll.u32 %v1050, 16
      %v1282 = vrot.slane %v1280, 5
      %v1283 = vsel %vm1101, %v1278, %v1282
      %v1284 = vshrl.u32 %v1050, 16
      %v1286 = vrot.slane %v1284, 4
      %v1287 = vor.u32 %v1286, %v1282
      %v1288 = vrot.slane %v1287, 4
      %v1290 = vshll.u32 %v1090, 16
      %v1292 = vrot.slane %v1290, 5
      %v1293 = vsel %vm1101, %v1288, %v1292
      %v1295 = vshrl.u32 %v1051, 16
      %v1297 = vrot.slane %v1295, 4
      %v1298 = vshll.u32 %v1051, 16
      %v1300 = vrot.slane %v1298, 5
      %v1301 = vor.u32 %v1297, %v1300
      %v1302 = vrot.slane %v1301, 4
      %v1304 = vshll.u32 %v1052, 16
      %v1306 = vrot.slane %v1304, 5
      %v1307 = vsel %vm1101, %v1302, %v1306
      %v1308 = vshrl.u32 %v1052, 16
      %v1310 = vrot.slane %v1308, 4
      %v1311 = vor.u32 %v1310, %v1306
      %v1312 = vrot.slane %v1311, 4
      %v1314 = vshll.u32 %v1091, 16
      %v1316 = vrot.slane %v1314, 5
      %v1317 = vsel %vm1101, %v1312, %v1316
      %v1319 = vshrl.u32 %v1053, 16
      %v1321 = vrot.slane %v1319, 4
      %v1322 = vshll.u32 %v1053, 16
      %v1324 = vrot.slane %v1322, 5
      %v1325 = vor.u32 %v1321, %v1324
      %v1326 = vrot.slane %v1325, 4
      %v1328 = vshll.u32 %v1054, 16
      %v1330 = vrot.slane %v1328, 5
      %v1331 = vsel %vm1101, %v1326, %v1330
      %v1332 = vshrl.u32 %v1054, 16
      %v1334 = vrot.slane %v1332, 4
      %v1335 = vor.u32 %v1334, %v1330
      %v1336 = vrot.slane %v1335, 4
      %v1338 = vshll.u32 %v1092, 16
      %v1340 = vrot.slane %v1338, 5
      %v1341 = vsel %vm1101, %v1336, %v1340
      %v1343 = vshrl.u32 %v1055, 16
      %v1345 = vrot.slane %v1343, 4
      %v1346 = vshll.u32 %v1055, 16
      %v1348 = vrot.slane %v1346, 5
      %v1349 = vor.u32 %v1345, %v1348
      %v1350 = vrot.slane %v1349, 4
      %v1352 = vshll.u32 %v1056, 16
      %v1354 = vrot.slane %v1352, 5
      %v1355 = vsel %vm1101, %v1350, %v1354
      %v1356 = vshrl.u32 %v1056, 16
      %v1358 = vrot.slane %v1356, 4
      %v1359 = vor.u32 %v1358, %v1354
      %v1360 = vrot.slane %v1359, 4
      %v1362 = vshll.u32 %v1093, 16
      %v1364 = vrot.slane %v1362, 5
      %v1365 = vsel %vm1101, %v1360, %v1364
      %v1367 = vshrl.u32 %v1057, 16
      %v1369 = vrot.slane %v1367, 4
      %v1370 = vshll.u32 %v1057, 16
      %v1372 = vrot.slane %v1370, 5
      %v1373 = vor.u32 %v1369, %v1372
      %v1374 = vrot.slane %v1373, 4
      %v1376 = vshll.u32 %v1058, 16
      %v1378 = vrot.slane %v1376, 5
      %v1379 = vsel %vm1101, %v1374, %v1378
      %v1380 = vshrl.u32 %v1058, 16
      %v1382 = vrot.slane %v1380, 4
      %v1383 = vor.u32 %v1382, %v1378
      %v1384 = vrot.slane %v1383, 4
      %v1386 = vshll.u32 %v1094, 16
      %v1388 = vrot.slane %v1386, 5
      %v1389 = vsel %vm1101, %v1384, %v1388
      %v1391 = vshrl.u32 %v1059, 16
      %v1393 = vrot.slane %v1391, 4
      %v1394 = vshll.u32 %v1059, 16
      %v1396 = vrot.slane %v1394, 5
      %v1397 = vor.u32 %v1393, %v1396
      %v1398 = vrot.slane %v1397, 4
      %v1400 = vshll.u32 %v1060, 16
      %v1402 = vrot.slane %v1400, 5
      %v1403 = vsel %vm1101, %v1398, %v1402
      %v1404 = vshrl.u32 %v1060, 16
      %v1406 = vrot.slane %v1404, 4
      %v1407 = vor.u32 %v1406, %v1402
      %v1408 = vrot.slane %v1407, 4
      %v1410 = vshll.u32 %v1095, 16
      %v1412 = vrot.slane %v1410, 5
      %v1413 = vsel %vm1101, %v1408, %v1412
      %v1415 = vshrl.u32 %v1061, 16
      %v1417 = vrot.slane %v1415, 4
      %v1418 = vshll.u32 %v1061, 16
      %v1420 = vrot.slane %v1418, 5
      %v1421 = vor.u32 %v1417, %v1420
      %v1422 = vrot.slane %v1421, 4
      %v1424 = vshll.u32 %v1062, 16
      %v1426 = vrot.slane %v1424, 5
      %v1427 = vsel %vm1101, %v1422, %v1426
      %v1428 = vshrl.u32 %v1062, 16
      %v1430 = vrot.slane %v1428, 4
      %v1431 = vor.u32 %v1430, %v1426
      %v1432 = vrot.slane %v1431, 4
      %v1434 = vshll.u32 %v1096, 16
      %v1436 = vrot.slane %v1434, 5
      %v1437 = vsel %vm1101, %v1432, %v1436
      %v1439 = vshrl.u32 %v1063, 16
      %v1441 = vrot.slane %v1439, 4
      %v1442 = vshll.u32 %v1063, 16
      %v1444 = vrot.slane %v1442, 5
      %v1445 = vor.u32 %v1441, %v1444
      %v1446 = vrot.slane %v1445, 4
      %v1448 = vshll.u32 %v1064, 16
      %v1450 = vrot.slane %v1448, 5
      %v1451 = vsel %vm1101, %v1446, %v1450
      %v1452 = vshrl.u32 %v1064, 16
      %v1454 = vrot.slane %v1452, 4
      %v1455 = vor.u32 %v1454, %v1450
      %v1456 = vrot.slane %v1455, 4
      %v1458 = vshll.u32 %v1097, 16
      %v1460 = vrot.slane %v1458, 5
      %v1461 = vsel %vm1101, %v1456, %v1460
      %v1463 = vshrl.u32 %v1065, 16
      %v1465 = vrot.slane %v1463, 4
      %v1466 = vshll.u32 %v1065, 16
      %v1468 = vrot.slane %v1466, 5
      %v1469 = vor.u32 %v1465, %v1468
      %v1470 = vrot.slane %v1469, 4
      %v1472 = vshll.u32 %v1066, 16
      %v1474 = vrot.slane %v1472, 5
      %v1475 = vsel %vm1101, %v1470, %v1474
      %v1476 = vshrl.u32 %v1066, 16
      %v1478 = vrot.slane %v1476, 4
      %v1479 = vor.u32 %v1478, %v1474
      %v1480 = vrot.slane %v1479, 4
      %v1482 = vshll.u32 %v1098, 16
      %v1484 = vrot.slane %v1482, 5
      %v1485 = vsel %vm1101, %v1480, %v1484
      %s1486 = scalar_lea.vmem %s3, 64
      %v1487 = vld [vmem:[%s1486] sm:$0xf]
      %v1488 = vld [vmem:[%s1486 + $0x4] sm:$0xf]
      %v1489 = vld [vmem:[%s1486 + $0x8] sm:$0xf]
      %v1490 = vld [vmem:[%s1486 + $0xc] sm:$0xf]
      %v1491 = vld [vmem:[%s1486 + $0x10] sm:$0xf]
      %v1492 = vld [vmem:[%s1486 + $0x14] sm:$0xf]
      %v1493 = vld [vmem:[%s1486 + $0x18] sm:$0xf]
      %v1494 = vld [vmem:[%s1486 + $0x1c] sm:$0xf]
      %v1495 = vld [vmem:[%s1486 + $0x20] sm:$0xf]
      %v1496 = vld [vmem:[%s1486 + $0x24] sm:$0xf]
      %v1497 = vld [vmem:[%s1486 + $0x28] sm:$0xf]
      %v1498 = vld [vmem:[%s1486 + $0x2c] sm:$0xf]
      %v1499 = vld [vmem:[%s1486 + $0x30] sm:$0xf]
      %v1500 = vld [vmem:[%s1486 + $0x34] sm:$0xf]
      %v1501 = vld [vmem:[%s1486 + $0x38] sm:$0xf]
      %v1502 = vld [vmem:[%s1486 + $0x3c] sm:$0xf]
      %v1503 = vunpack.c.l.b16 %v1115
      %v1504 = vunpack.c.l.b16 %v1125
      %v1505 = vunpack.c.l.b16 %v1139
      %v1506 = vunpack.c.l.b16 %v1149
      %v1507 = vunpack.c.l.b16 %v1163
      %v1508 = vunpack.c.l.b16 %v1173
      %v1509 = vunpack.c.l.b16 %v1187
      %v1510 = vunpack.c.l.b16 %v1197
      %v1511 = vunpack.c.l.b16 %v1211
      %v1512 = vunpack.c.l.b16 %v1221
      %v1513 = vunpack.c.l.b16 %v1235
      %v1514 = vunpack.c.l.b16 %v1245
      %v1515 = vunpack.c.l.b16 %v1259
      %v1516 = vunpack.c.l.b16 %v1269
      %v1517 = vunpack.c.l.b16 %v1283
      %v1518 = vunpack.c.l.b16 %v1293
      %v1519 = vunpack.c.l.b16 %v1307
      %v1520 = vunpack.c.l.b16 %v1317
      %v1521 = vunpack.c.l.b16 %v1331
      %v1522 = vunpack.c.l.b16 %v1341
      %v1523 = vunpack.c.l.b16 %v1355
      %v1524 = vunpack.c.l.b16 %v1365
      %v1525 = vunpack.c.l.b16 %v1379
      %v1526 = vunpack.c.l.b16 %v1389
      %v1527 = vunpack.c.l.b16 %v1403
      %v1528 = vunpack.c.l.b16 %v1413
      %v1529 = vunpack.c.l.b16 %v1427
      %v1530 = vunpack.c.l.b16 %v1437
      %v1531 = vunpack.c.l.b16 %v1451
      %v1532 = vunpack.c.l.b16 %v1461
      %v1533 = vunpack.c.l.b16 %v1475
      %v1534 = vunpack.c.l.b16 %v1485
      %v1535 = vpack.c.b16 %v1504, %v1503
      %v1536 = vpack.c.b16 %v1506, %v1505
      %v1537 = vpack.c.b16 %v1508, %v1507
      %v1538 = vpack.c.b16 %v1510, %v1509
      %v1539 = vpack.c.b16 %v1512, %v1511
      %v1540 = vpack.c.b16 %v1514, %v1513
      %v1541 = vpack.c.b16 %v1516, %v1515
      %v1542 = vpack.c.b16 %v1518, %v1517
      %v1543 = vpack.c.b16 %v1520, %v1519
      %v1544 = vpack.c.b16 %v1522, %v1521
      %v1545 = vpack.c.b16 %v1524, %v1523
      %v1546 = vpack.c.b16 %v1526, %v1525
      %v1547 = vpack.c.b16 %v1528, %v1527
      %v1548 = vpack.c.b16 %v1530, %v1529
      %v1549 = vpack.c.b16 %v1532, %v1531
      %v1550 = vpack.c.b16 %v1534, %v1533
      %v1583 = vunpack.c.l.b16 %v1487
      %v1584 = vunpack.c.l.b16 %v1488
      %v1585 = vunpack.c.l.b16 %v1489
      %v1586 = vunpack.c.l.b16 %v1490
      %v1587 = vunpack.c.l.b16 %v1491
      %v1588 = vunpack.c.l.b16 %v1492
      %v1589 = vunpack.c.l.b16 %v1493
      %v1590 = vunpack.c.l.b16 %v1494
      %v1591 = vunpack.c.l.b16 %v1495
      %v1592 = vunpack.c.l.b16 %v1496
      %v1593 = vunpack.c.l.b16 %v1497
      %v1594 = vunpack.c.l.b16 %v1498
      %v1595 = vunpack.c.l.b16 %v1499
      %v1596 = vunpack.c.l.b16 %v1500
      %v1597 = vunpack.c.l.b16 %v1501
      %v1598 = vunpack.c.l.b16 %v1502
      %v1599 = vpack.c.b16 %v1584, %v1583
      %v1600 = vpack.c.b16 %v1586, %v1585
      %v1601 = vpack.c.b16 %v1588, %v1587
      %v1602 = vpack.c.b16 %v1590, %v1589
      %v1603 = vpack.c.b16 %v1592, %v1591
      %v1604 = vpack.c.b16 %v1594, %v1593
      %v1605 = vpack.c.b16 %v1596, %v1595
      %v1606 = vpack.c.b16 %v1598, %v1597
      %1615 = vmatprep.subr.bf16.mxu0 0
      %1616 = vmatpush1.bf16.msra.mxu0 %v1606
      %1617 = vmatprep.subr.bf16.mxu0 0
      %1618 = vmatpush1.bf16.msra.mxu0 %v1605
      %1619 = vmatprep.subr.bf16.mxu0 0
      %1620 = vmatpush1.bf16.msra.mxu0 %v1604
      %1621 = vmatprep.subr.bf16.mxu0 0
      %1622 = vmatpush1.bf16.msra.mxu0 %v1603
      %1623 = vmatprep.subr.bf16.mxu0 0
      %1624 = vmatpush1.bf16.msra.mxu0 %v1602
      %1625 = vmatprep.subr.bf16.mxu0 0
      %1626 = vmatpush1.bf16.msra.mxu0 %v1601
      %1627 = vmatprep.subr.bf16.mxu0 0
      %1628 = vmatpush1.bf16.msra.mxu0 %v1600
      %1629 = vmatprep.subr.bf16.mxu0 0
      %1630 = vmatpush1.bf16.msra.mxu0 %v1599
      %1631 = vmatprep.subr.bf16.mxu0 0
      %1632 = vmatpush2.bf16.msra.mxu0 0
      %1633 = vmatprep.subr.bf16.mxu0 0
      %1634 = vmatpush2.bf16.msra.mxu0 0
      %1635 = vmatprep.subr.bf16.mxu0 0
      %1636 = vmatpush2.bf16.msra.mxu0 0
      %1637 = vmatprep.subr.bf16.mxu0 0
      %1638 = vmatpush2.bf16.msra.mxu0 0
      %1639 = vmatprep.subr.bf16.mxu0 0
      %1640 = vmatpush2.bf16.msra.mxu0 0
      %1641 = vmatprep.subr.bf16.mxu0 0
      %1642 = vmatpush2.bf16.msra.mxu0 0
      %1643 = vmatprep.subr.bf16.mxu0 0
      %1644 = vmatpush2.bf16.msra.mxu0 0
      %1645 = vmatprep.subr.bf16.mxu0 0
      %1646 = vmatpush2.bf16.msra.mxu0 0
      %1647 = vmatprep.mubr.bf16.mxu0 0
      %1648 = vmatmul.mubr.bf16.gmra.mxu0 %v1535
      %v1649 = vpop.f32.mrf.mxu0
      %v1650 = vadd.f32 0.0, %v1649
      %v1651 = vpop.f32.mrf.mxu0
      %v1652 = vpop.f32.mrf.mxu0
      %v1653 = vadd.f32 0.0, %v1652
      %v1654 = vpop.f32.mrf.mxu0
      %1655 = vmatprep.mubr.bf16.mxu0 0
      %1656 = vmatmul.mubr.bf16.gmra.mxu0 %v1536
      %v1657 = vpop.f32.mrf.mxu0
      %v1658 = vadd.f32 0.0, %v1657
      %v1659 = vpop.f32.mrf.mxu0
      %v1660 = vpop.f32.mrf.mxu0
      %v1661 = vadd.f32 0.0, %v1660
      %v1662 = vpop.f32.mrf.mxu0
      %1663 = vmatprep.mubr.bf16.mxu0 0
      %1664 = vmatmul.mubr.bf16.gmra.mxu0 %v1537
      %v1665 = vpop.f32.mrf.mxu0
      %v1666 = vadd.f32 0.0, %v1665
      %v1667 = vpop.f32.mrf.mxu0
      %v1668 = vpop.f32.mrf.mxu0
      %v1669 = vadd.f32 0.0, %v1668
      %v1670 = vpop.f32.mrf.mxu0
      %1671 = vmatprep.mubr.bf16.mxu0 0
      %1672 = vmatmul.mubr.bf16.gmra.mxu0 %v1538
      %v1673 = vpop.f32.mrf.mxu0
      %v1674 = vadd.f32 0.0, %v1673
      %v1675 = vpop.f32.mrf.mxu0
      %v1676 = vpop.f32.mrf.mxu0
      %v1677 = vadd.f32 0.0, %v1676
      %v1678 = vpop.f32.mrf.mxu0
      %1679 = vmatprep.mubr.bf16.mxu0 0
      %1680 = vmatmul.mubr.bf16.gmra.mxu0 %v1539
      %v1681 = vpop.f32.mrf.mxu0
      %v1682 = vadd.f32 0.0, %v1681
      %v1683 = vpop.f32.mrf.mxu0
      %v1684 = vpop.f32.mrf.mxu0
      %v1685 = vadd.f32 0.0, %v1684
      %v1686 = vpop.f32.mrf.mxu0
      %1687 = vmatprep.mubr.bf16.mxu0 0
      %1688 = vmatmul.mubr.bf16.gmra.mxu0 %v1540
      %v1689 = vpop.f32.mrf.mxu0
      %v1690 = vadd.f32 0.0, %v1689
      %v1691 = vpop.f32.mrf.mxu0
      %v1692 = vpop.f32.mrf.mxu0
      %v1693 = vadd.f32 0.0, %v1692
      %v1694 = vpop.f32.mrf.mxu0
      %1695 = vmatprep.mubr.bf16.mxu0 0
      %1696 = vmatmul.mubr.bf16.gmra.mxu0 %v1541
      %v1697 = vpop.f32.mrf.mxu0
      %v1698 = vadd.f32 0.0, %v1697
      %v1699 = vpop.f32.mrf.mxu0
      %v1700 = vpop.f32.mrf.mxu0
      %v1701 = vadd.f32 0.0, %v1700
      %v1702 = vpop.f32.mrf.mxu0
      %1703 = vmatprep.mubr.bf16.mxu0 0
      %1704 = vmatmul.mubr.bf16.gmra.mxu0 %v1542
      %v1705 = vpop.f32.mrf.mxu0
      %v1706 = vadd.f32 0.0, %v1705
      %v1707 = vpop.f32.mrf.mxu0
      %v1708 = vpop.f32.mrf.mxu0
      %v1709 = vadd.f32 0.0, %v1708
      %v1710 = vpop.f32.mrf.mxu0
      %1711 = vmatprep.mubr.bf16.mxu0 0
      %1712 = vmatmul.mubr.bf16.gmra.mxu0 %v1543
      %v1713 = vpop.f32.mrf.mxu0
      %v1714 = vadd.f32 0.0, %v1713
      %v1715 = vpop.f32.mrf.mxu0
      %v1716 = vpop.f32.mrf.mxu0
      %v1717 = vadd.f32 0.0, %v1716
      %v1718 = vpop.f32.mrf.mxu0
      %1719 = vmatprep.mubr.bf16.mxu0 0
      %1720 = vmatmul.mubr.bf16.gmra.mxu0 %v1544
      %v1721 = vpop.f32.mrf.mxu0
      %v1722 = vadd.f32 0.0, %v1721
      %v1723 = vpop.f32.mrf.mxu0
      %v1724 = vpop.f32.mrf.mxu0
      %v1725 = vadd.f32 0.0, %v1724
      %v1726 = vpop.f32.mrf.mxu0
      %1727 = vmatprep.mubr.bf16.mxu0 0
      %1728 = vmatmul.mubr.bf16.gmra.mxu0 %v1545
      %v1729 = vpop.f32.mrf.mxu0
      %v1730 = vadd.f32 0.0, %v1729
      %v1731 = vpop.f32.mrf.mxu0
      %v1732 = vpop.f32.mrf.mxu0
      %v1733 = vadd.f32 0.0, %v1732
      %v1734 = vpop.f32.mrf.mxu0
      %1735 = vmatprep.mubr.bf16.mxu0 0
      %1736 = vmatmul.mubr.bf16.gmra.mxu0 %v1546
      %v1737 = vpop.f32.mrf.mxu0
      %v1738 = vadd.f32 0.0, %v1737
      %v1739 = vpop.f32.mrf.mxu0
      %v1740 = vpop.f32.mrf.mxu0
      %v1741 = vadd.f32 0.0, %v1740
      %v1742 = vpop.f32.mrf.mxu0
      %1743 = vmatprep.mubr.bf16.mxu0 0
      %1744 = vmatmul.mubr.bf16.gmra.mxu0 %v1547
      %v1745 = vpop.f32.mrf.mxu0
      %v1746 = vadd.f32 0.0, %v1745
      %v1747 = vpop.f32.mrf.mxu0
      %v1748 = vpop.f32.mrf.mxu0
      %v1749 = vadd.f32 0.0, %v1748
      %v1750 = vpop.f32.mrf.mxu0
      %1751 = vmatprep.mubr.bf16.mxu0 0
      %1752 = vmatmul.mubr.bf16.gmra.mxu0 %v1548
      %v1753 = vpop.f32.mrf.mxu0
      %v1754 = vadd.f32 0.0, %v1753
      %v1755 = vpop.f32.mrf.mxu0
      %v1756 = vpop.f32.mrf.mxu0
      %v1757 = vadd.f32 0.0, %v1756
      %v1758 = vpop.f32.mrf.mxu0
      %1759 = vmatprep.mubr.bf16.mxu0 0
      %1760 = vmatmul.mubr.bf16.gmra.mxu0 %v1549
      %v1761 = vpop.f32.mrf.mxu0
      %v1762 = vadd.f32 0.0, %v1761
      %v1763 = vpop.f32.mrf.mxu0
      %v1764 = vpop.f32.mrf.mxu0
      %v1765 = vadd.f32 0.0, %v1764
      %v1766 = vpop.f32.mrf.mxu0
      %1767 = vmatprep.mubr.bf16.mxu0 0
      %1768 = vmatmul.mubr.bf16.gmra.mxu0 %v1550
      %v1769 = vpop.f32.mrf.mxu0
      %v1770 = vadd.f32 0.0, %v1769
      %v1771 = vpop.f32.mrf.mxu0
      %v1772 = vpop.f32.mrf.mxu0
      %v1773 = vadd.f32 0.0, %v1772
      %v1774 = vpop.f32.mrf.mxu0
      %1775 = vdwg.mxu0
      %v1808 = vunpack.c.l.b16 %v1035
      %v1809 = vunpack.c.l.b16 %v1036
      %v1810 = vunpack.c.l.b16 %v1037
      %v1811 = vunpack.c.l.b16 %v1038
      %v1812 = vunpack.c.l.b16 %v1039
      %v1813 = vunpack.c.l.b16 %v1040
      %v1814 = vunpack.c.l.b16 %v1041
      %v1815 = vunpack.c.l.b16 %v1042
      %v1816 = vunpack.c.l.b16 %v1043
      %v1817 = vunpack.c.l.b16 %v1044
      %v1818 = vunpack.c.l.b16 %v1045
      %v1819 = vunpack.c.l.b16 %v1046
      %v1820 = vunpack.c.l.b16 %v1047
      %v1821 = vunpack.c.l.b16 %v1048
      %v1822 = vunpack.c.l.b16 %v1049
      %v1823 = vunpack.c.l.b16 %v1050
      %v1824 = vunpack.c.l.b16 %v1051
      %v1825 = vunpack.c.l.b16 %v1052
      %v1826 = vunpack.c.l.b16 %v1053
      %v1827 = vunpack.c.l.b16 %v1054
      %v1828 = vunpack.c.l.b16 %v1055
      %v1829 = vunpack.c.l.b16 %v1056
      %v1830 = vunpack.c.l.b16 %v1057
      %v1831 = vunpack.c.l.b16 %v1058
      %v1832 = vunpack.c.l.b16 %v1059
      %v1833 = vunpack.c.l.b16 %v1060
      %v1834 = vunpack.c.l.b16 %v1061
      %v1835 = vunpack.c.l.b16 %v1062
      %v1836 = vunpack.c.l.b16 %v1063
      %v1837 = vunpack.c.l.b16 %v1064
      %v1838 = vunpack.c.l.b16 %v1065
      %v1839 = vunpack.c.l.b16 %v1066
      %v1840 = vpack.c.b16 %v1809, %v1808
      %v1841 = vpack.c.b16 %v1811, %v1810
      %v1842 = vpack.c.b16 %v1813, %v1812
      %v1843 = vpack.c.b16 %v1815, %v1814
      %v1844 = vpack.c.b16 %v1817, %v1816
      %v1845 = vpack.c.b16 %v1819, %v1818
      %v1846 = vpack.c.b16 %v1821, %v1820
      %v1847 = vpack.c.b16 %v1823, %v1822
      %v1848 = vpack.c.b16 %v1825, %v1824
      %v1849 = vpack.c.b16 %v1827, %v1826
      %v1850 = vpack.c.b16 %v1829, %v1828
      %v1851 = vpack.c.b16 %v1831, %v1830
      %v1852 = vpack.c.b16 %v1833, %v1832
      %v1853 = vpack.c.b16 %v1835, %v1834
      %v1854 = vpack.c.b16 %v1837, %v1836
      %v1855 = vpack.c.b16 %v1839, %v1838
      %v1888 = vunpack.c.l.b16 %v1067
      %v1889 = vunpack.c.l.b16 %v1068
      %v1890 = vunpack.c.l.b16 %v1069
      %v1891 = vunpack.c.l.b16 %v1070
      %v1892 = vunpack.c.l.b16 %v1071
      %v1893 = vunpack.c.l.b16 %v1072
      %v1894 = vunpack.c.l.b16 %v1073
      %v1895 = vunpack.c.l.b16 %v1074
      %v1896 = vunpack.c.l.b16 %v1075
      %v1897 = vunpack.c.l.b16 %v1076
      %v1898 = vunpack.c.l.b16 %v1077
      %v1899 = vunpack.c.l.b16 %v1078
      %v1900 = vunpack.c.l.b16 %v1079
      %v1901 = vunpack.c.l.b16 %v1080
      %v1902 = vunpack.c.l.b16 %v1081
      %v1903 = vunpack.c.l.b16 %v1082
      %v1904 = vpack.c.b16 %v1889, %v1888
      %v1905 = vpack.c.b16 %v1891, %v1890
      %v1906 = vpack.c.b16 %v1893, %v1892
      %v1907 = vpack.c.b16 %v1895, %v1894
      %v1908 = vpack.c.b16 %v1897, %v1896
      %v1909 = vpack.c.b16 %v1899, %v1898
      %v1910 = vpack.c.b16 %v1901, %v1900
      %v1911 = vpack.c.b16 %v1903, %v1902
      %1920 = vmatprep.subr.bf16.mxu0 0
      %1921 = vmatpush1.bf16.msra.mxu0 %v1911
      %1922 = vmatprep.subr.bf16.mxu0 0
      %1923 = vmatpush1.bf16.msra.mxu0 %v1910
      %1924 = vmatprep.subr.bf16.mxu0 0
      %1925 = vmatpush1.bf16.msra.mxu0 %v1909
      %1926 = vmatprep.subr.bf16.mxu0 0
      %1927 = vmatpush1.bf16.msra.mxu0 %v1908
      %1928 = vmatprep.subr.bf16.mxu0 0
      %1929 = vmatpush1.bf16.msra.mxu0 %v1907
      %1930 = vmatprep.subr.bf16.mxu0 0
      %1931 = vmatpush1.bf16.msra.mxu0 %v1906
      %1932 = vmatprep.subr.bf16.mxu0 0
      %1933 = vmatpush1.bf16.msra.mxu0 %v1905
      %1934 = vmatprep.subr.bf16.mxu0 0
      %1935 = vmatpush1.bf16.msra.mxu0 %v1904
      %1936 = vmatprep.subr.bf16.mxu0 0
      %1937 = vmatpush2.bf16.msra.mxu0 0
      %1938 = vmatprep.subr.bf16.mxu0 0
      %1939 = vmatpush2.bf16.msra.mxu0 0
      %1940 = vmatprep.subr.bf16.mxu0 0
      %1941 = vmatpush2.bf16.msra.mxu0 0
      %1942 = vmatprep.subr.bf16.mxu0 0
      %1943 = vmatpush2.bf16.msra.mxu0 0
      %1944 = vmatprep.subr.bf16.mxu0 0
      %1945 = vmatpush2.bf16.msra.mxu0 0
      %1946 = vmatprep.subr.bf16.mxu0 0
      %1947 = vmatpush2.bf16.msra.mxu0 0
      %1948 = vmatprep.subr.bf16.mxu0 0
      %1949 = vmatpush2.bf16.msra.mxu0 0
      %1950 = vmatprep.subr.bf16.mxu0 0
      %1951 = vmatpush2.bf16.msra.mxu0 0
      %1952 = vmatprep.mubr.bf16.mxu0 0
      %1953 = vmatmul.mubr.bf16.gmra.mxu0 %v1840
      %v1954 = vpop.f32.mrf.mxu0
      %v1955 = vadd.f32 %v1650, %v1954
      %v1956 = vpop.f32.mrf.mxu0
      %v1957 = vpop.f32.mrf.mxu0
      %v1958 = vadd.f32 %v1653, %v1957
      %v1959 = vpop.f32.mrf.mxu0
      %1960 = vmatprep.mubr.bf16.mxu0 0
      %1961 = vmatmul.mubr.bf16.gmra.mxu0 %v1841
      %v1962 = vpop.f32.mrf.mxu0
      %v1963 = vadd.f32 %v1658, %v1962
      %v1964 = vpop.f32.mrf.mxu0
      %v1965 = vpop.f32.mrf.mxu0
      %v1966 = vadd.f32 %v1661, %v1965
      %v1967 = vpop.f32.mrf.mxu0
      %1968 = vmatprep.mubr.bf16.mxu0 0
      %1969 = vmatmul.mubr.bf16.gmra.mxu0 %v1842
      %v1970 = vpop.f32.mrf.mxu0
      %v1971 = vadd.f32 %v1666, %v1970
      %v1972 = vpop.f32.mrf.mxu0
      %v1973 = vpop.f32.mrf.mxu0
      %v1974 = vadd.f32 %v1669, %v1973
      %v1975 = vpop.f32.mrf.mxu0
      %1976 = vmatprep.mubr.bf16.mxu0 0
      %1977 = vmatmul.mubr.bf16.gmra.mxu0 %v1843
      %v1978 = vpop.f32.mrf.mxu0
      %v1979 = vadd.f32 %v1674, %v1978
      %v1980 = vpop.f32.mrf.mxu0
      %v1981 = vpop.f32.mrf.mxu0
      %v1982 = vadd.f32 %v1677, %v1981
      %v1983 = vpop.f32.mrf.mxu0
      %1984 = vmatprep.mubr.bf16.mxu0 0
      %1985 = vmatmul.mubr.bf16.gmra.mxu0 %v1844
      %v1986 = vpop.f32.mrf.mxu0
      %v1987 = vadd.f32 %v1682, %v1986
      %v1988 = vpop.f32.mrf.mxu0
      %v1989 = vpop.f32.mrf.mxu0
      %v1990 = vadd.f32 %v1685, %v1989
      %v1991 = vpop.f32.mrf.mxu0
      %1992 = vmatprep.mubr.bf16.mxu0 0
      %1993 = vmatmul.mubr.bf16.gmra.mxu0 %v1845
      %v1994 = vpop.f32.mrf.mxu0
      %v1995 = vadd.f32 %v1690, %v1994
      %v1996 = vpop.f32.mrf.mxu0
      %v1997 = vpop.f32.mrf.mxu0
      %v1998 = vadd.f32 %v1693, %v1997
      %v1999 = vpop.f32.mrf.mxu0
      %2000 = vmatprep.mubr.bf16.mxu0 0
      %2001 = vmatmul.mubr.bf16.gmra.mxu0 %v1846
      %v2002 = vpop.f32.mrf.mxu0
      %v2003 = vadd.f32 %v1698, %v2002
      %v2004 = vpop.f32.mrf.mxu0
      %v2005 = vpop.f32.mrf.mxu0
      %v2006 = vadd.f32 %v1701, %v2005
      %v2007 = vpop.f32.mrf.mxu0
      %2008 = vmatprep.mubr.bf16.mxu0 0
      %2009 = vmatmul.mubr.bf16.gmra.mxu0 %v1847
      %v2010 = vpop.f32.mrf.mxu0
      %v2011 = vadd.f32 %v1706, %v2010
      %v2012 = vpop.f32.mrf.mxu0
      %v2013 = vpop.f32.mrf.mxu0
      %v2014 = vadd.f32 %v1709, %v2013
      %v2015 = vpop.f32.mrf.mxu0
      %2016 = vmatprep.mubr.bf16.mxu0 0
      %2017 = vmatmul.mubr.bf16.gmra.mxu0 %v1848
      %v2018 = vpop.f32.mrf.mxu0
      %v2019 = vadd.f32 %v1714, %v2018
      %v2020 = vpop.f32.mrf.mxu0
      %v2021 = vpop.f32.mrf.mxu0
      %v2022 = vadd.f32 %v1717, %v2021
      %v2023 = vpop.f32.mrf.mxu0
      %2024 = vmatprep.mubr.bf16.mxu0 0
      %2025 = vmatmul.mubr.bf16.gmra.mxu0 %v1849
      %v2026 = vpop.f32.mrf.mxu0
      %v2027 = vadd.f32 %v1722, %v2026
      %v2028 = vpop.f32.mrf.mxu0
      %v2029 = vpop.f32.mrf.mxu0
      %v2030 = vadd.f32 %v1725, %v2029
      %v2031 = vpop.f32.mrf.mxu0
      %2032 = vmatprep.mubr.bf16.mxu0 0
      %2033 = vmatmul.mubr.bf16.gmra.mxu0 %v1850
      %v2034 = vpop.f32.mrf.mxu0
      %v2035 = vadd.f32 %v1730, %v2034
      %v2036 = vpop.f32.mrf.mxu0
      %v2037 = vpop.f32.mrf.mxu0
      %v2038 = vadd.f32 %v1733, %v2037
      %v2039 = vpop.f32.mrf.mxu0
      %2040 = vmatprep.mubr.bf16.mxu0 0
      %2041 = vmatmul.mubr.bf16.gmra.mxu0 %v1851
      %v2042 = vpop.f32.mrf.mxu0
      %v2043 = vadd.f32 %v1738, %v2042
      %v2044 = vpop.f32.mrf.mxu0
      %v2045 = vpop.f32.mrf.mxu0
      %v2046 = vadd.f32 %v1741, %v2045
      %v2047 = vpop.f32.mrf.mxu0
      %2048 = vmatprep.mubr.bf16.mxu0 0
      %2049 = vmatmul.mubr.bf16.gmra.mxu0 %v1852
      %v2050 = vpop.f32.mrf.mxu0
      %v2051 = vadd.f32 %v1746, %v2050
      %v2052 = vpop.f32.mrf.mxu0
      %v2053 = vpop.f32.mrf.mxu0
      %v2054 = vadd.f32 %v1749, %v2053
      %v2055 = vpop.f32.mrf.mxu0
      %2056 = vmatprep.mubr.bf16.mxu0 0
      %2057 = vmatmul.mubr.bf16.gmra.mxu0 %v1853
      %v2058 = vpop.f32.mrf.mxu0
      %v2059 = vadd.f32 %v1754, %v2058
      %v2060 = vpop.f32.mrf.mxu0
      %v2061 = vpop.f32.mrf.mxu0
      %v2062 = vadd.f32 %v1757, %v2061
      %v2063 = vpop.f32.mrf.mxu0
      %2064 = vmatprep.mubr.bf16.mxu0 0
      %2065 = vmatmul.mubr.bf16.gmra.mxu0 %v1854
      %v2066 = vpop.f32.mrf.mxu0
      %v2067 = vadd.f32 %v1762, %v2066
      %v2068 = vpop.f32.mrf.mxu0
      %v2069 = vpop.f32.mrf.mxu0
      %v2070 = vadd.f32 %v1765, %v2069
      %v2071 = vpop.f32.mrf.mxu0
      %2072 = vmatprep.mubr.bf16.mxu0 0
      %2073 = vmatmul.mubr.bf16.gmra.mxu0 %v1855
      %v2074 = vpop.f32.mrf.mxu0
      %v2075 = vadd.f32 %v1770, %v2074
      %v2076 = vpop.f32.mrf.mxu0
      %v2077 = vpop.f32.mrf.mxu0
      %v2078 = vadd.f32 %v1773, %v2077
      %v2079 = vpop.f32.mrf.mxu0
      %2080 = vdwg.mxu0
      %v2081 = vld [vmem:[#allocation2] sm:$0xe]
      %v2082 = vld [vmem:[#allocation2 + $0xc] sm:$0xe]
      %v2083 = vld [vmem:[#allocation2 + $0x18] sm:$0xe]
      %v2084 = vld [vmem:[#allocation2 + $0x24] sm:$0xe]
      %v2085 = vld [vmem:[#allocation2 + $0x30] sm:$0xe]
      %v2086 = vld [vmem:[#allocation2 + $0x3c] sm:$0xe]
      %v2087 = vld [vmem:[#allocation2 + $0x48] sm:$0xe]
      %v2088 = vld [vmem:[#allocation2 + $0x54] sm:$0xe]
      %v2089 = vld [vmem:[#allocation2 + $0x60] sm:$0xe]
      %v2090 = vld [vmem:[#allocation2 + $0x6c] sm:$0xe]
      %v2091 = vld [vmem:[#allocation2 + $0x78] sm:$0xe]
      %v2092 = vld [vmem:[#allocation2 + $0x84] sm:$0xe]
      %v2093 = vld [vmem:[#allocation2 + $0x90] sm:$0xe]
      %v2094 = vld [vmem:[#allocation2 + $0x9c] sm:$0xe]
      %v2095 = vld [vmem:[#allocation2 + $0xa8] sm:$0xe]
      %v2096 = vld [vmem:[#allocation2 + $0xb4] sm:$0xe]
      %vm2129 = vcmask 1042432
      %vm2130 = vcmask 1046532
      %vm2131 = vmor %vm2129, %vm2130
      %v2132 = vrot.slane %v2081, 5
      %v2133 = vrot.slane %v2132, 4
      %v2134 = vrot.slane %v1036, 5
      %v2135 = vsel %vm2131, %v2133, %v2134
      %v2136 = vrot.slane %v2134, 4
      %v2137 = vrot.slane %v1083, 5
      %v2138 = vsel %vm2131, %v2136, %v2137
      %v2139 = vrot.slane %v2082, 5
      %v2140 = vrot.slane %v2139, 4
      %v2141 = vrot.slane %v1038, 5
      %v2142 = vsel %vm2131, %v2140, %v2141
      %v2143 = vrot.slane %v2141, 4
      %v2144 = vrot.slane %v1084, 5
      %v2145 = vsel %vm2131, %v2143, %v2144
      %v2146 = vrot.slane %v2083, 5
      %v2147 = vrot.slane %v2146, 4
      %v2148 = vrot.slane %v1040, 5
      %v2149 = vsel %vm2131, %v2147, %v2148
      %v2150 = vrot.slane %v2148, 4
      %v2151 = vrot.slane %v1085, 5
      %v2152 = vsel %vm2131, %v2150, %v2151
      %v2153 = vrot.slane %v2084, 5
      %v2154 = vrot.slane %v2153, 4
      %v2155 = vrot.slane %v1042, 5
      %v2156 = vsel %vm2131, %v2154, %v2155
      %v2157 = vrot.slane %v2155, 4
      %v2158 = vrot.slane %v1086, 5
      %v2159 = vsel %vm2131, %v2157, %v2158
      %v2160 = vrot.slane %v2085, 5
      %v2161 = vrot.slane %v2160, 4
      %v2162 = vrot.slane %v1044, 5
      %v2163 = vsel %vm2131, %v2161, %v2162
      %v2164 = vrot.slane %v2162, 4
      %v2165 = vrot.slane %v1087, 5
      %v2166 = vsel %vm2131, %v2164, %v2165
      %v2167 = vrot.slane %v2086, 5
      %v2168 = vrot.slane %v2167, 4
      %v2169 = vrot.slane %v1046, 5
      %v2170 = vsel %vm2131, %v2168, %v2169
      %v2171 = vrot.slane %v2169, 4
      %v2172 = vrot.slane %v1088, 5
      %v2173 = vsel %vm2131, %v2171, %v2172
      %v2174 = vrot.slane %v2087, 5
      %v2175 = vrot.slane %v2174, 4
      %v2176 = vrot.slane %v1048, 5
      %v2177 = vsel %vm2131, %v2175, %v2176
      %v2178 = vrot.slane %v2176, 4
      %v2179 = vrot.slane %v1089, 5
      %v2180 = vsel %vm2131, %v2178, %v2179
      %v2181 = vrot.slane %v2088, 5
      %v2182 = vrot.slane %v2181, 4
      %v2183 = vrot.slane %v1050, 5
      %v2184 = vsel %vm2131, %v2182, %v2183
      %v2185 = vrot.slane %v2183, 4
      %v2186 = vrot.slane %v1090, 5
      %v2187 = vsel %vm2131, %v2185, %v2186
      %v2188 = vrot.slane %v2089, 5
      %v2189 = vrot.slane %v2188, 4
      %v2190 = vrot.slane %v1052, 5
      %v2191 = vsel %vm2131, %v2189, %v2190
      %v2192 = vrot.slane %v2190, 4
      %v2193 = vrot.slane %v1091, 5
      %v2194 = vsel %vm2131, %v2192, %v2193
      %v2195 = vrot.slane %v2090, 5
      %v2196 = vrot.slane %v2195, 4
      %v2197 = vrot.slane %v1054, 5
      %v2198 = vsel %vm2131, %v2196, %v2197
      %v2199 = vrot.slane %v2197, 4
      %v2200 = vrot.slane %v1092, 5
      %v2201 = vsel %vm2131, %v2199, %v2200
      %v2202 = vrot.slane %v2091, 5
      %v2203 = vrot.slane %v2202, 4
      %v2204 = vrot.slane %v1056, 5
      %v2205 = vsel %vm2131, %v2203, %v2204
      %v2206 = vrot.slane %v2204, 4
      %v2207 = vrot.slane %v1093, 5
      %v2208 = vsel %vm2131, %v2206, %v2207
      %v2209 = vrot.slane %v2092, 5
      %v2210 = vrot.slane %v2209, 4
      %v2211 = vrot.slane %v1058, 5
      %v2212 = vsel %vm2131, %v2210, %v2211
      %v2213 = vrot.slane %v2211, 4
      %v2214 = vrot.slane %v1094, 5
      %v2215 = vsel %vm2131, %v2213, %v2214
      %v2216 = vrot.slane %v2093, 5
      %v2217 = vrot.slane %v2216, 4
      %v2218 = vrot.slane %v1060, 5
      %v2219 = vsel %vm2131, %v2217, %v2218
      %v2220 = vrot.slane %v2218, 4
      %v2221 = vrot.slane %v1095, 5
      %v2222 = vsel %vm2131, %v2220, %v2221
      %v2223 = vrot.slane %v2094, 5
      %v2224 = vrot.slane %v2223, 4
      %v2225 = vrot.slane %v1062, 5
      %v2226 = vsel %vm2131, %v2224, %v2225
      %v2227 = vrot.slane %v2225, 4
      %v2228 = vrot.slane %v1096, 5
      %v2229 = vsel %vm2131, %v2227, %v2228
      %v2230 = vrot.slane %v2095, 5
      %v2231 = vrot.slane %v2230, 4
      %v2232 = vrot.slane %v1064, 5
      %v2233 = vsel %vm2131, %v2231, %v2232
      %v2234 = vrot.slane %v2232, 4
      %v2235 = vrot.slane %v1097, 5
      %v2236 = vsel %vm2131, %v2234, %v2235
      %v2237 = vrot.slane %v2096, 5
      %v2238 = vrot.slane %v2237, 4
      %v2239 = vrot.slane %v1066, 5
      %v2240 = vsel %vm2131, %v2238, %v2239
      %v2241 = vrot.slane %v2239, 4
      %v2242 = vrot.slane %v1098, 5
      %v2243 = vsel %vm2131, %v2241, %v2242
      %s2244 = scalar_lea.vmem %s3, 128
      %v2245 = vld [vmem:[%s2244] sm:$0xf]
      %v2246 = vld [vmem:[%s2244 + $0x4] sm:$0xf]
      %v2247 = vld [vmem:[%s2244 + $0x8] sm:$0xf]
      %v2248 = vld [vmem:[%s2244 + $0xc] sm:$0xf]
      %v2249 = vld [vmem:[%s2244 + $0x10] sm:$0xf]
      %v2250 = vld [vmem:[%s2244 + $0x14] sm:$0xf]
      %v2251 = vld [vmem:[%s2244 + $0x18] sm:$0xf]
      %v2252 = vld [vmem:[%s2244 + $0x1c] sm:$0xf]
      %v2253 = vld [vmem:[%s2244 + $0x20] sm:$0xf]
      %v2254 = vld [vmem:[%s2244 + $0x24] sm:$0xf]
      %v2255 = vld [vmem:[%s2244 + $0x28] sm:$0xf]
      %v2256 = vld [vmem:[%s2244 + $0x2c] sm:$0xf]
      %v2257 = vld [vmem:[%s2244 + $0x30] sm:$0xf]
      %v2258 = vld [vmem:[%s2244 + $0x34] sm:$0xf]
      %v2259 = vld [vmem:[%s2244 + $0x38] sm:$0xf]
      %v2260 = vld [vmem:[%s2244 + $0x3c] sm:$0xf]
      %v2261 = vunpack.c.l.b16 %v2135
      %v2262 = vunpack.c.l.b16 %v2138
      %v2263 = vunpack.c.l.b16 %v2142
      %v2264 = vunpack.c.l.b16 %v2145
      %v2265 = vunpack.c.l.b16 %v2149
      %v2266 = vunpack.c.l.b16 %v2152
      %v2267 = vunpack.c.l.b16 %v2156
      %v2268 = vunpack.c.l.b16 %v2159
      %v2269 = vunpack.c.l.b16 %v2163
      %v2270 = vunpack.c.l.b16 %v2166
      %v2271 = vunpack.c.l.b16 %v2170
      %v2272 = vunpack.c.l.b16 %v2173
      %v2273 = vunpack.c.l.b16 %v2177
      %v2274 = vunpack.c.l.b16 %v2180
      %v2275 = vunpack.c.l.b16 %v2184
      %v2276 = vunpack.c.l.b16 %v2187
      %v2277 = vunpack.c.l.b16 %v2191
      %v2278 = vunpack.c.l.b16 %v2194
      %v2279 = vunpack.c.l.b16 %v2198
      %v2280 = vunpack.c.l.b16 %v2201
      %v2281 = vunpack.c.l.b16 %v2205
      %v2282 = vunpack.c.l.b16 %v2208
      %v2283 = vunpack.c.l.b16 %v2212
      %v2284 = vunpack.c.l.b16 %v2215
      %v2285 = vunpack.c.l.b16 %v2219
      %v2286 = vunpack.c.l.b16 %v2222
      %v2287 = vunpack.c.l.b16 %v2226
      %v2288 = vunpack.c.l.b16 %v2229
      %v2289 = vunpack.c.l.b16 %v2233
      %v2290 = vunpack.c.l.b16 %v2236
      %v2291 = vunpack.c.l.b16 %v2240
      %v2292 = vunpack.c.l.b16 %v2243
      %v2293 = vpack.c.b16 %v2262, %v2261
      %v2294 = vpack.c.b16 %v2264, %v2263
      %v2295 = vpack.c.b16 %v2266, %v2265
      %v2296 = vpack.c.b16 %v2268, %v2267
      %v2297 = vpack.c.b16 %v2270, %v2269
      %v2298 = vpack.c.b16 %v2272, %v2271
      %v2299 = vpack.c.b16 %v2274, %v2273
      %v2300 = vpack.c.b16 %v2276, %v2275
      %v2301 = vpack.c.b16 %v2278, %v2277
      %v2302 = vpack.c.b16 %v2280, %v2279
      %v2303 = vpack.c.b16 %v2282, %v2281
      %v2304 = vpack.c.b16 %v2284, %v2283
      %v2305 = vpack.c.b16 %v2286, %v2285
      %v2306 = vpack.c.b16 %v2288, %v2287
      %v2307 = vpack.c.b16 %v2290, %v2289
      %v2308 = vpack.c.b16 %v2292, %v2291
      %v2341 = vunpack.c.l.b16 %v2245
      %v2342 = vunpack.c.l.b16 %v2246
      %v2343 = vunpack.c.l.b16 %v2247
      %v2344 = vunpack.c.l.b16 %v2248
      %v2345 = vunpack.c.l.b16 %v2249
      %v2346 = vunpack.c.l.b16 %v2250
      %v2347 = vunpack.c.l.b16 %v2251
      %v2348 = vunpack.c.l.b16 %v2252
      %v2349 = vunpack.c.l.b16 %v2253
      %v2350 = vunpack.c.l.b16 %v2254
      %v2351 = vunpack.c.l.b16 %v2255
      %v2352 = vunpack.c.l.b16 %v2256
      %v2353 = vunpack.c.l.b16 %v2257
      %v2354 = vunpack.c.l.b16 %v2258
      %v2355 = vunpack.c.l.b16 %v2259
      %v2356 = vunpack.c.l.b16 %v2260
      %v2357 = vpack.c.b16 %v2342, %v2341
      %v2358 = vpack.c.b16 %v2344, %v2343
      %v2359 = vpack.c.b16 %v2346, %v2345
      %v2360 = vpack.c.b16 %v2348, %v2347
      %v2361 = vpack.c.b16 %v2350, %v2349
      %v2362 = vpack.c.b16 %v2352, %v2351
      %v2363 = vpack.c.b16 %v2354, %v2353
      %v2364 = vpack.c.b16 %v2356, %v2355
      %2373 = vmatprep.subr.bf16.mxu0 0
      %2374 = vmatpush1.bf16.msra.mxu0 %v2364
      %2375 = vmatprep.subr.bf16.mxu0 0
      %2376 = vmatpush1.bf16.msra.mxu0 %v2363
      %2377 = vmatprep.subr.bf16.mxu0 0
      %2378 = vmatpush1.bf16.msra.mxu0 %v2362
      %2379 = vmatprep.subr.bf16.mxu0 0
      %2380 = vmatpush1.bf16.msra.mxu0 %v2361
      %2381 = vmatprep.subr.bf16.mxu0 0
      %2382 = vmatpush1.bf16.msra.mxu0 %v2360
      %2383 = vmatprep.subr.bf16.mxu0 0
      %2384 = vmatpush1.bf16.msra.mxu0 %v2359
      %2385 = vmatprep.subr.bf16.mxu0 0
      %2386 = vmatpush1.bf16.msra.mxu0 %v2358
      %2387 = vmatprep.subr.bf16.mxu0 0
      %2388 = vmatpush1.bf16.msra.mxu0 %v2357
      %2389 = vmatprep.subr.bf16.mxu0 0
      %2390 = vmatpush2.bf16.msra.mxu0 0
      %2391 = vmatprep.subr.bf16.mxu0 0
      %2392 = vmatpush2.bf16.msra.mxu0 0
      %2393 = vmatprep.subr.bf16.mxu0 0
      %2394 = vmatpush2.bf16.msra.mxu0 0
      %2395 = vmatprep.subr.bf16.mxu0 0
      %2396 = vmatpush2.bf16.msra.mxu0 0
      %2397 = vmatprep.subr.bf16.mxu0 0
      %2398 = vmatpush2.bf16.msra.mxu0 0
      %2399 = vmatprep.subr.bf16.mxu0 0
      %2400 = vmatpush2.bf16.msra.mxu0 0
      %2401 = vmatprep.subr.bf16.mxu0 0
      %2402 = vmatpush2.bf16.msra.mxu0 0
      %2403 = vmatprep.subr.bf16.mxu0 0
      %2404 = vmatpush2.bf16.msra.mxu0 0
      %2405 = vmatprep.mubr.bf16.mxu0 0
      %2406 = vmatmul.mubr.bf16.gmra.mxu0 %v2293
      %v2407 = vpop.f32.mrf.mxu0
      %v2408 = vadd.f32 0.0, %v2407
      %v2409 = vpop.f32.mrf.mxu0
      %v2410 = vpop.f32.mrf.mxu0
      %v2411 = vadd.f32 0.0, %v2410
      %v2412 = vpop.f32.mrf.mxu0
      %2413 = vmatprep.mubr.bf16.mxu0 0
      %2414 = vmatmul.mubr.bf16.gmra.mxu0 %v2294
      %v2415 = vpop.f32.mrf.mxu0
      %v2416 = vadd.f32 0.0, %v2415
      %v2417 = vpop.f32.mrf.mxu0
      %v2418 = vpop.f32.mrf.mxu0
      %v2419 = vadd.f32 0.0, %v2418
      %v2420 = vpop.f32.mrf.mxu0
      %2421 = vmatprep.mubr.bf16.mxu0 0
      %2422 = vmatmul.mubr.bf16.gmra.mxu0 %v2295
      %v2423 = vpop.f32.mrf.mxu0
      %v2424 = vadd.f32 0.0, %v2423
      %v2425 = vpop.f32.mrf.mxu0
      %v2426 = vpop.f32.mrf.mxu0
      %v2427 = vadd.f32 0.0, %v2426
      %v2428 = vpop.f32.mrf.mxu0
      %2429 = vmatprep.mubr.bf16.mxu0 0
      %2430 = vmatmul.mubr.bf16.gmra.mxu0 %v2296
      %v2431 = vpop.f32.mrf.mxu0
      %v2432 = vadd.f32 0.0, %v2431
      %v2433 = vpop.f32.mrf.mxu0
      %v2434 = vpop.f32.mrf.mxu0
      %v2435 = vadd.f32 0.0, %v2434
      %v2436 = vpop.f32.mrf.mxu0
      %2437 = vmatprep.mubr.bf16.mxu0 0
      %2438 = vmatmul.mubr.bf16.gmra.mxu0 %v2297
      %v2439 = vpop.f32.mrf.mxu0
      %v2440 = vadd.f32 0.0, %v2439
      %v2441 = vpop.f32.mrf.mxu0
      %v2442 = vpop.f32.mrf.mxu0
      %v2443 = vadd.f32 0.0, %v2442
      %v2444 = vpop.f32.mrf.mxu0
      %2445 = vmatprep.mubr.bf16.mxu0 0
      %2446 = vmatmul.mubr.bf16.gmra.mxu0 %v2298
      %v2447 = vpop.f32.mrf.mxu0
      %v2448 = vadd.f32 0.0, %v2447
      %v2449 = vpop.f32.mrf.mxu0
      %v2450 = vpop.f32.mrf.mxu0
      %v2451 = vadd.f32 0.0, %v2450
      %v2452 = vpop.f32.mrf.mxu0
      %2453 = vmatprep.mubr.bf16.mxu0 0
      %2454 = vmatmul.mubr.bf16.gmra.mxu0 %v2299
      %v2455 = vpop.f32.mrf.mxu0
      %v2456 = vadd.f32 0.0, %v2455
      %v2457 = vpop.f32.mrf.mxu0
      %v2458 = vpop.f32.mrf.mxu0
      %v2459 = vadd.f32 0.0, %v2458
      %v2460 = vpop.f32.mrf.mxu0
      %2461 = vmatprep.mubr.bf16.mxu0 0
      %2462 = vmatmul.mubr.bf16.gmra.mxu0 %v2300
      %v2463 = vpop.f32.mrf.mxu0
      %v2464 = vadd.f32 0.0, %v2463
      %v2465 = vpop.f32.mrf.mxu0
      %v2466 = vpop.f32.mrf.mxu0
      %v2467 = vadd.f32 0.0, %v2466
      %v2468 = vpop.f32.mrf.mxu0
      %2469 = vmatprep.mubr.bf16.mxu0 0
      %2470 = vmatmul.mubr.bf16.gmra.mxu0 %v2301
      %v2471 = vpop.f32.mrf.mxu0
      %v2472 = vadd.f32 0.0, %v2471
      %v2473 = vpop.f32.mrf.mxu0
      %v2474 = vpop.f32.mrf.mxu0
      %v2475 = vadd.f32 0.0, %v2474
      %v2476 = vpop.f32.mrf.mxu0
      %2477 = vmatprep.mubr.bf16.mxu0 0
      %2478 = vmatmul.mubr.bf16.gmra.mxu0 %v2302
      %v2479 = vpop.f32.mrf.mxu0
      %v2480 = vadd.f32 0.0, %v2479
      %v2481 = vpop.f32.mrf.mxu0
      %v2482 = vpop.f32.mrf.mxu0
      %v2483 = vadd.f32 0.0, %v2482
      %v2484 = vpop.f32.mrf.mxu0
      %2485 = vmatprep.mubr.bf16.mxu0 0
      %2486 = vmatmul.mubr.bf16.gmra.mxu0 %v2303
      %v2487 = vpop.f32.mrf.mxu0
      %v2488 = vadd.f32 0.0, %v2487
      %v2489 = vpop.f32.mrf.mxu0
      %v2490 = vpop.f32.mrf.mxu0
      %v2491 = vadd.f32 0.0, %v2490
      %v2492 = vpop.f32.mrf.mxu0
      %2493 = vmatprep.mubr.bf16.mxu0 0
      %2494 = vmatmul.mubr.bf16.gmra.mxu0 %v2304
      %v2495 = vpop.f32.mrf.mxu0
      %v2496 = vadd.f32 0.0, %v2495
      %v2497 = vpop.f32.mrf.mxu0
      %v2498 = vpop.f32.mrf.mxu0
      %v2499 = vadd.f32 0.0, %v2498
      %v2500 = vpop.f32.mrf.mxu0
      %2501 = vmatprep.mubr.bf16.mxu0 0
      %2502 = vmatmul.mubr.bf16.gmra.mxu0 %v2305
      %v2503 = vpop.f32.mrf.mxu0
      %v2504 = vadd.f32 0.0, %v2503
      %v2505 = vpop.f32.mrf.mxu0
      %v2506 = vpop.f32.mrf.mxu0
      %v2507 = vadd.f32 0.0, %v2506
      %v2508 = vpop.f32.mrf.mxu0
      %2509 = vmatprep.mubr.bf16.mxu0 0
      %2510 = vmatmul.mubr.bf16.gmra.mxu0 %v2306
      %v2511 = vpop.f32.mrf.mxu0
      %v2512 = vadd.f32 0.0, %v2511
      %v2513 = vpop.f32.mrf.mxu0
      %v2514 = vpop.f32.mrf.mxu0
      %v2515 = vadd.f32 0.0, %v2514
      %v2516 = vpop.f32.mrf.mxu0
      %2517 = vmatprep.mubr.bf16.mxu0 0
      %2518 = vmatmul.mubr.bf16.gmra.mxu0 %v2307
      %v2519 = vpop.f32.mrf.mxu0
      %v2520 = vadd.f32 0.0, %v2519
      %v2521 = vpop.f32.mrf.mxu0
      %v2522 = vpop.f32.mrf.mxu0
      %v2523 = vadd.f32 0.0, %v2522
      %v2524 = vpop.f32.mrf.mxu0
      %2525 = vmatprep.mubr.bf16.mxu0 0
      %2526 = vmatmul.mubr.bf16.gmra.mxu0 %v2308
      %v2527 = vpop.f32.mrf.mxu0
      %v2528 = vadd.f32 0.0, %v2527
      %v2529 = vpop.f32.mrf.mxu0
      %v2530 = vpop.f32.mrf.mxu0
      %v2531 = vadd.f32 0.0, %v2530
      %v2532 = vpop.f32.mrf.mxu0
      %2533 = vdwg.mxu0
      %v2534 = vadd.f32 %v1955, %v2408
      %v2535 = vadd.f32 %v1958, %v2411
      %v2536 = vadd.f32 %v1963, %v2416
      %v2537 = vadd.f32 %v1966, %v2419
      %v2538 = vadd.f32 %v1971, %v2424
      %v2539 = vadd.f32 %v1974, %v2427
      %v2540 = vadd.f32 %v1979, %v2432
      %v2541 = vadd.f32 %v1982, %v2435
      %v2542 = vadd.f32 %v1987, %v2440
      %v2543 = vadd.f32 %v1990, %v2443
      %v2544 = vadd.f32 %v1995, %v2448
      %v2545 = vadd.f32 %v1998, %v2451
      %v2546 = vadd.f32 %v2003, %v2456
      %v2547 = vadd.f32 %v2006, %v2459
      %v2548 = vadd.f32 %v2011, %v2464
      %v2549 = vadd.f32 %v2014, %v2467
      %v2550 = vadd.f32 %v2019, %v2472
      %v2551 = vadd.f32 %v2022, %v2475
      %v2552 = vadd.f32 %v2027, %v2480
      %v2553 = vadd.f32 %v2030, %v2483
      %v2554 = vadd.f32 %v2035, %v2488
      %v2555 = vadd.f32 %v2038, %v2491
      %v2556 = vadd.f32 %v2043, %v2496
      %v2557 = vadd.f32 %v2046, %v2499
      %v2558 = vadd.f32 %v2051, %v2504
      %v2559 = vadd.f32 %v2054, %v2507
      %v2560 = vadd.f32 %v2059, %v2512
      %v2561 = vadd.f32 %v2062, %v2515
      %v2562 = vadd.f32 %v2067, %v2520
      %v2563 = vadd.f32 %v2070, %v2523
      %v2564 = vadd.f32 %v2075, %v2528
      %v2565 = vadd.f32 %v2078, %v2531
      %v2566 = vld [vmem:[%s917] sm:$0xf]
      %v2567 = vld [vmem:[%s917 + $0x4] sm:$0xf]
      %v2568 = vld [vmem:[%s917 + $0xc] sm:$0xf]
      %v2569 = vld [vmem:[%s917 + $0x10] sm:$0xf]
      %v2570 = vld [vmem:[%s917 + $0x18] sm:$0xf]
      %v2571 = vld [vmem:[%s917 + $0x1c] sm:$0xf]
      %v2572 = vld [vmem:[%s917 + $0x24] sm:$0xf]
      %v2573 = vld [vmem:[%s917 + $0x28] sm:$0xf]
      %v2574 = vld [vmem:[%s917 + $0x30] sm:$0xf]
      %v2575 = vld [vmem:[%s917 + $0x34] sm:$0xf]
      %v2576 = vld [vmem:[%s917 + $0x3c] sm:$0xf]
      %v2577 = vld [vmem:[%s917 + $0x40] sm:$0xf]
      %v2578 = vld [vmem:[%s917 + $0x48] sm:$0xf]
      %v2579 = vld [vmem:[%s917 + $0x4c] sm:$0xf]
      %v2580 = vld [vmem:[%s917 + $0x54] sm:$0xf]
      %v2581 = vld [vmem:[%s917 + $0x58] sm:$0xf]
      %v2582 = vld [vmem:[%s917 + $0x60] sm:$0xf]
      %v2583 = vld [vmem:[%s917 + $0x64] sm:$0xf]
      %v2584 = vld [vmem:[%s917 + $0x6c] sm:$0xf]
      %v2585 = vld [vmem:[%s917 + $0x70] sm:$0xf]
      %v2586 = vld [vmem:[%s917 + $0x78] sm:$0xf]
      %v2587 = vld [vmem:[%s917 + $0x7c] sm:$0xf]
      %v2588 = vld [vmem:[%s917 + $0x84] sm:$0xf]
      %v2589 = vld [vmem:[%s917 + $0x88] sm:$0xf]
      %v2590 = vld [vmem:[%s917 + $0x90] sm:$0xf]
      %v2591 = vld [vmem:[%s917 + $0x94] sm:$0xf]
      %v2592 = vld [vmem:[%s917 + $0x9c] sm:$0xf]
      %v2593 = vld [vmem:[%s917 + $0xa0] sm:$0xf]
      %v2594 = vld [vmem:[%s917 + $0xa8] sm:$0xf]
      %v2595 = vld [vmem:[%s917 + $0xac] sm:$0xf]
      %v2596 = vld [vmem:[%s917 + $0xb4] sm:$0xf]
      %v2597 = vld [vmem:[%s917 + $0xb8] sm:$0xf]
      %s2598 = scalar_lea.vmem %s3, 192
      %v2599 = vld [vmem:[%s2598] sm:$0xf]
      %v2600 = vld [vmem:[%s2598 + $0x4] sm:$0xf]
      %v2601 = vld [vmem:[%s2598 + $0x8] sm:$0xf]
      %v2602 = vld [vmem:[%s2598 + $0xc] sm:$0xf]
      %v2603 = vld [vmem:[%s2598 + $0x10] sm:$0xf]
      %v2604 = vld [vmem:[%s2598 + $0x14] sm:$0xf]
      %v2605 = vld [vmem:[%s2598 + $0x18] sm:$0xf]
      %v2606 = vld [vmem:[%s2598 + $0x1c] sm:$0xf]
      %v2607 = vld [vmem:[%s2598 + $0x20] sm:$0xf]
      %v2608 = vld [vmem:[%s2598 + $0x24] sm:$0xf]
      %v2609 = vld [vmem:[%s2598 + $0x28] sm:$0xf]
      %v2610 = vld [vmem:[%s2598 + $0x2c] sm:$0xf]
      %v2611 = vld [vmem:[%s2598 + $0x30] sm:$0xf]
      %v2612 = vld [vmem:[%s2598 + $0x34] sm:$0xf]
      %v2613 = vld [vmem:[%s2598 + $0x38] sm:$0xf]
      %v2614 = vld [vmem:[%s2598 + $0x3c] sm:$0xf]
      %v2647 = vunpack.c.l.b16 %v2566
      %v2648 = vunpack.c.l.b16 %v2567
      %v2649 = vunpack.c.l.b16 %v2568
      %v2650 = vunpack.c.l.b16 %v2569
      %v2651 = vunpack.c.l.b16 %v2570
      %v2652 = vunpack.c.l.b16 %v2571
      %v2653 = vunpack.c.l.b16 %v2572
      %v2654 = vunpack.c.l.b16 %v2573
      %v2655 = vunpack.c.l.b16 %v2574
      %v2656 = vunpack.c.l.b16 %v2575
      %v2657 = vunpack.c.l.b16 %v2576
      %v2658 = vunpack.c.l.b16 %v2577
      %v2659 = vunpack.c.l.b16 %v2578
      %v2660 = vunpack.c.l.b16 %v2579
      %v2661 = vunpack.c.l.b16 %v2580
      %v2662 = vunpack.c.l.b16 %v2581
      %v2663 = vunpack.c.l.b16 %v2582
      %v2664 = vunpack.c.l.b16 %v2583
      %v2665 = vunpack.c.l.b16 %v2584
      %v2666 = vunpack.c.l.b16 %v2585
      %v2667 = vunpack.c.l.b16 %v2586
      %v2668 = vunpack.c.l.b16 %v2587
      %v2669 = vunpack.c.l.b16 %v2588
      %v2670 = vunpack.c.l.b16 %v2589
      %v2671 = vunpack.c.l.b16 %v2590
      %v2672 = vunpack.c.l.b16 %v2591
      %v2673 = vunpack.c.l.b16 %v2592
      %v2674 = vunpack.c.l.b16 %v2593
      %v2675 = vunpack.c.l.b16 %v2594
      %v2676 = vunpack.c.l.b16 %v2595
      %v2677 = vunpack.c.l.b16 %v2596
      %v2678 = vunpack.c.l.b16 %v2597
      %v2679 = vpack.c.b16 %v2648, %v2647
      %v2680 = vpack.c.b16 %v2650, %v2649
      %v2681 = vpack.c.b16 %v2652, %v2651
      %v2682 = vpack.c.b16 %v2654, %v2653
      %v2683 = vpack.c.b16 %v2656, %v2655
      %v2684 = vpack.c.b16 %v2658, %v2657
      %v2685 = vpack.c.b16 %v2660, %v2659
      %v2686 = vpack.c.b16 %v2662, %v2661
      %v2687 = vpack.c.b16 %v2664, %v2663
      %v2688 = vpack.c.b16 %v2666, %v2665
      %v2689 = vpack.c.b16 %v2668, %v2667
      %v2690 = vpack.c.b16 %v2670, %v2669
      %v2691 = vpack.c.b16 %v2672, %v2671
      %v2692 = vpack.c.b16 %v2674, %v2673
      %v2693 = vpack.c.b16 %v2676, %v2675
      %v2694 = vpack.c.b16 %v2678, %v2677
      %v2727 = vunpack.c.l.b16 %v2599
      %v2728 = vunpack.c.l.b16 %v2600
      %v2729 = vunpack.c.l.b16 %v2601
      %v2730 = vunpack.c.l.b16 %v2602
      %v2731 = vunpack.c.l.b16 %v2603
      %v2732 = vunpack.c.l.b16 %v2604
      %v2733 = vunpack.c.l.b16 %v2605
      %v2734 = vunpack.c.l.b16 %v2606
      %v2735 = vunpack.c.l.b16 %v2607
      %v2736 = vunpack.c.l.b16 %v2608
      %v2737 = vunpack.c.l.b16 %v2609
      %v2738 = vunpack.c.l.b16 %v2610
      %v2739 = vunpack.c.l.b16 %v2611
      %v2740 = vunpack.c.l.b16 %v2612
      %v2741 = vunpack.c.l.b16 %v2613
      %v2742 = vunpack.c.l.b16 %v2614
      %v2743 = vpack.c.b16 %v2728, %v2727
      %v2744 = vpack.c.b16 %v2730, %v2729
      %v2745 = vpack.c.b16 %v2732, %v2731
      %v2746 = vpack.c.b16 %v2734, %v2733
      %v2747 = vpack.c.b16 %v2736, %v2735
      %v2748 = vpack.c.b16 %v2738, %v2737
      %v2749 = vpack.c.b16 %v2740, %v2739
      %v2750 = vpack.c.b16 %v2742, %v2741
      %2759 = vmatprep.subr.bf16.mxu0 0
      %2760 = vmatpush1.bf16.msra.mxu0 %v2750
      %2761 = vmatprep.subr.bf16.mxu0 0
      %2762 = vmatpush1.bf16.msra.mxu0 %v2749
      %2763 = vmatprep.subr.bf16.mxu0 0
      %2764 = vmatpush1.bf16.msra.mxu0 %v2748
      %2765 = vmatprep.subr.bf16.mxu0 0
      %2766 = vmatpush1.bf16.msra.mxu0 %v2747
      %2767 = vmatprep.subr.bf16.mxu0 0
      %2768 = vmatpush1.bf16.msra.mxu0 %v2746
      %2769 = vmatprep.subr.bf16.mxu0 0
      %2770 = vmatpush1.bf16.msra.mxu0 %v2745
      %2771 = vmatprep.subr.bf16.mxu0 0
      %2772 = vmatpush1.bf16.msra.mxu0 %v2744
      %2773 = vmatprep.subr.bf16.mxu0 0
      %2774 = vmatpush1.bf16.msra.mxu0 %v2743
      %2775 = vmatprep.subr.bf16.mxu0 0
      %2776 = vmatpush2.bf16.msra.mxu0 0
      %2777 = vmatprep.subr.bf16.mxu0 0
      %2778 = vmatpush2.bf16.msra.mxu0 0
      %2779 = vmatprep.subr.bf16.mxu0 0
      %2780 = vmatpush2.bf16.msra.mxu0 0
      %2781 = vmatprep.subr.bf16.mxu0 0
      %2782 = vmatpush2.bf16.msra.mxu0 0
      %2783 = vmatprep.subr.bf16.mxu0 0
      %2784 = vmatpush2.bf16.msra.mxu0 0
      %2785 = vmatprep.subr.bf16.mxu0 0
      %2786 = vmatpush2.bf16.msra.mxu0 0
      %2787 = vmatprep.subr.bf16.mxu0 0
      %2788 = vmatpush2.bf16.msra.mxu0 0
      %2789 = vmatprep.subr.bf16.mxu0 0
      %2790 = vmatpush2.bf16.msra.mxu0 0
      %2791 = vmatprep.mubr.bf16.mxu0 0
      %2792 = vmatmul.mubr.bf16.gmra.mxu0 %v2679
      %v2793 = vpop.f32.mrf.mxu0
      %v2794 = vadd.f32 0.0, %v2793
      %v2795 = vpop.f32.mrf.mxu0
      %v2796 = vpop.f32.mrf.mxu0
      %v2797 = vadd.f32 0.0, %v2796
      %v2798 = vpop.f32.mrf.mxu0
      %2799 = vmatprep.mubr.bf16.mxu0 0
      %2800 = vmatmul.mubr.bf16.gmra.mxu0 %v2680
      %v2801 = vpop.f32.mrf.mxu0
      %v2802 = vadd.f32 0.0, %v2801
      %v2803 = vpop.f32.mrf.mxu0
      %v2804 = vpop.f32.mrf.mxu0
      %v2805 = vadd.f32 0.0, %v2804
      %v2806 = vpop.f32.mrf.mxu0
      %2807 = vmatprep.mubr.bf16.mxu0 0
      %2808 = vmatmul.mubr.bf16.gmra.mxu0 %v2681
      %v2809 = vpop.f32.mrf.mxu0
      %v2810 = vadd.f32 0.0, %v2809
      %v2811 = vpop.f32.mrf.mxu0
      %v2812 = vpop.f32.mrf.mxu0
      %v2813 = vadd.f32 0.0, %v2812
      %v2814 = vpop.f32.mrf.mxu0
      %2815 = vmatprep.mubr.bf16.mxu0 0
      %2816 = vmatmul.mubr.bf16.gmra.mxu0 %v2682
      %v2817 = vpop.f32.mrf.mxu0
      %v2818 = vadd.f32 0.0, %v2817
      %v2819 = vpop.f32.mrf.mxu0
      %v2820 = vpop.f32.mrf.mxu0
      %v2821 = vadd.f32 0.0, %v2820
      %v2822 = vpop.f32.mrf.mxu0
      %2823 = vmatprep.mubr.bf16.mxu0 0
      %2824 = vmatmul.mubr.bf16.gmra.mxu0 %v2683
      %v2825 = vpop.f32.mrf.mxu0
      %v2826 = vadd.f32 0.0, %v2825
      %v2827 = vpop.f32.mrf.mxu0
      %v2828 = vpop.f32.mrf.mxu0
      %v2829 = vadd.f32 0.0, %v2828
      %v2830 = vpop.f32.mrf.mxu0
      %2831 = vmatprep.mubr.bf16.mxu0 0
      %2832 = vmatmul.mubr.bf16.gmra.mxu0 %v2684
      %v2833 = vpop.f32.mrf.mxu0
      %v2834 = vadd.f32 0.0, %v2833
      %v2835 = vpop.f32.mrf.mxu0
      %v2836 = vpop.f32.mrf.mxu0
      %v2837 = vadd.f32 0.0, %v2836
      %v2838 = vpop.f32.mrf.mxu0
      %2839 = vmatprep.mubr.bf16.mxu0 0
      %2840 = vmatmul.mubr.bf16.gmra.mxu0 %v2685
      %v2841 = vpop.f32.mrf.mxu0
      %v2842 = vadd.f32 0.0, %v2841
      %v2843 = vpop.f32.mrf.mxu0
      %v2844 = vpop.f32.mrf.mxu0
      %v2845 = vadd.f32 0.0, %v2844
      %v2846 = vpop.f32.mrf.mxu0
      %2847 = vmatprep.mubr.bf16.mxu0 0
      %2848 = vmatmul.mubr.bf16.gmra.mxu0 %v2686
      %v2849 = vpop.f32.mrf.mxu0
      %v2850 = vadd.f32 0.0, %v2849
      %v2851 = vpop.f32.mrf.mxu0
      %v2852 = vpop.f32.mrf.mxu0
      %v2853 = vadd.f32 0.0, %v2852
      %v2854 = vpop.f32.mrf.mxu0
      %2855 = vmatprep.mubr.bf16.mxu0 0
      %2856 = vmatmul.mubr.bf16.gmra.mxu0 %v2687
      %v2857 = vpop.f32.mrf.mxu0
      %v2858 = vadd.f32 0.0, %v2857
      %v2859 = vpop.f32.mrf.mxu0
      %v2860 = vpop.f32.mrf.mxu0
      %v2861 = vadd.f32 0.0, %v2860
      %v2862 = vpop.f32.mrf.mxu0
      %2863 = vmatprep.mubr.bf16.mxu0 0
      %2864 = vmatmul.mubr.bf16.gmra.mxu0 %v2688
      %v2865 = vpop.f32.mrf.mxu0
      %v2866 = vadd.f32 0.0, %v2865
      %v2867 = vpop.f32.mrf.mxu0
      %v2868 = vpop.f32.mrf.mxu0
      %v2869 = vadd.f32 0.0, %v2868
      %v2870 = vpop.f32.mrf.mxu0
      %2871 = vmatprep.mubr.bf16.mxu0 0
      %2872 = vmatmul.mubr.bf16.gmra.mxu0 %v2689
      %v2873 = vpop.f32.mrf.mxu0
      %v2874 = vadd.f32 0.0, %v2873
      %v2875 = vpop.f32.mrf.mxu0
      %v2876 = vpop.f32.mrf.mxu0
      %v2877 = vadd.f32 0.0, %v2876
      %v2878 = vpop.f32.mrf.mxu0
      %2879 = vmatprep.mubr.bf16.mxu0 0
      %2880 = vmatmul.mubr.bf16.gmra.mxu0 %v2690
      %v2881 = vpop.f32.mrf.mxu0
      %v2882 = vadd.f32 0.0, %v2881
      %v2883 = vpop.f32.mrf.mxu0
      %v2884 = vpop.f32.mrf.mxu0
      %v2885 = vadd.f32 0.0, %v2884
      %v2886 = vpop.f32.mrf.mxu0
      %2887 = vmatprep.mubr.bf16.mxu0 0
      %2888 = vmatmul.mubr.bf16.gmra.mxu0 %v2691
      %v2889 = vpop.f32.mrf.mxu0
      %v2890 = vadd.f32 0.0, %v2889
      %v2891 = vpop.f32.mrf.mxu0
      %v2892 = vpop.f32.mrf.mxu0
      %v2893 = vadd.f32 0.0, %v2892
      %v2894 = vpop.f32.mrf.mxu0
      %2895 = vmatprep.mubr.bf16.mxu0 0
      %2896 = vmatmul.mubr.bf16.gmra.mxu0 %v2692
      %v2897 = vpop.f32.mrf.mxu0
      %v2898 = vadd.f32 0.0, %v2897
      %v2899 = vpop.f32.mrf.mxu0
      %v2900 = vpop.f32.mrf.mxu0
      %v2901 = vadd.f32 0.0, %v2900
      %v2902 = vpop.f32.mrf.mxu0
      %2903 = vmatprep.mubr.bf16.mxu0 0
      %2904 = vmatmul.mubr.bf16.gmra.mxu0 %v2693
      %v2905 = vpop.f32.mrf.mxu0
      %v2906 = vadd.f32 0.0, %v2905
      %v2907 = vpop.f32.mrf.mxu0
      %v2908 = vpop.f32.mrf.mxu0
      %v2909 = vadd.f32 0.0, %v2908
      %v2910 = vpop.f32.mrf.mxu0
      %2911 = vmatprep.mubr.bf16.mxu0 0
      %2912 = vmatmul.mubr.bf16.gmra.mxu0 %v2694
      %v2913 = vpop.f32.mrf.mxu0
      %v2914 = vadd.f32 0.0, %v2913
      %v2915 = vpop.f32.mrf.mxu0
      %v2916 = vpop.f32.mrf.mxu0
      %v2917 = vadd.f32 0.0, %v2916
      %v2918 = vpop.f32.mrf.mxu0
      %2919 = vdwg.mxu0
      %v2920 = vadd.f32 %v2534, %v2794
      %v2921 = vadd.f32 %v2535, %v2797
      %v2922 = vadd.f32 %v2536, %v2802
      %v2923 = vadd.f32 %v2537, %v2805
      %v2924 = vadd.f32 %v2538, %v2810
      %v2925 = vadd.f32 %v2539, %v2813
      %v2926 = vadd.f32 %v2540, %v2818
      %v2927 = vadd.f32 %v2541, %v2821
      %v2928 = vadd.f32 %v2542, %v2826
      %v2929 = vadd.f32 %v2543, %v2829
      %v2930 = vadd.f32 %v2544, %v2834
      %v2931 = vadd.f32 %v2545, %v2837
      %v2932 = vadd.f32 %v2546, %v2842
      %v2933 = vadd.f32 %v2547, %v2845
      %v2934 = vadd.f32 %v2548, %v2850
      %v2935 = vadd.f32 %v2549, %v2853
      %v2936 = vadd.f32 %v2550, %v2858
      %v2937 = vadd.f32 %v2551, %v2861
      %v2938 = vadd.f32 %v2552, %v2866
      %v2939 = vadd.f32 %v2553, %v2869
      %v2940 = vadd.f32 %v2554, %v2874
      %v2941 = vadd.f32 %v2555, %v2877
      %v2942 = vadd.f32 %v2556, %v2882
      %v2943 = vadd.f32 %v2557, %v2885
      %v2944 = vadd.f32 %v2558, %v2890
      %v2945 = vadd.f32 %v2559, %v2893
      %v2946 = vadd.f32 %v2560, %v2898
      %v2947 = vadd.f32 %v2561, %v2901
      %v2948 = vadd.f32 %v2562, %v2906
      %v2949 = vadd.f32 %v2563, %v2909
      %v2950 = vadd.f32 %v2564, %v2914
      %v2951 = vadd.f32 %v2565, %v2917
      %v2952 = vld [vmem:[%s917] sm:$0xf]
      %v2953 = vld [vmem:[%s917 + $0x4] sm:$0xf]
      %v2954 = vld [vmem:[%s917 + $0x8] sm:$0x1]
      %v2955 = vld [vmem:[%s917 + $0xc] sm:$0xf]
      %v2956 = vld [vmem:[%s917 + $0x10] sm:$0xf]
      %v2957 = vld [vmem:[%s917 + $0x14] sm:$0x1]
      %v2958 = vld [vmem:[%s917 + $0x18] sm:$0xf]
      %v2959 = vld [vmem:[%s917 + $0x1c] sm:$0xf]
      %v2960 = vld [vmem:[%s917 + $0x20] sm:$0x1]
      %v2961 = vld [vmem:[%s917 + $0x24] sm:$0xf]
      %v2962 = vld [vmem:[%s917 + $0x28] sm:$0xf]
      %v2963 = vld [vmem:[%s917 + $0x2c] sm:$0x1]
      %v2964 = vld [vmem:[%s917 + $0x30] sm:$0xf]
      %v2965 = vld [vmem:[%s917 + $0x34] sm:$0xf]
      %v2966 = vld [vmem:[%s917 + $0x38] sm:$0x1]
      %v2967 = vld [vmem:[%s917 + $0x3c] sm:$0xf]
      %v2968 = vld [vmem:[%s917 + $0x40] sm:$0xf]
      %v2969 = vld [vmem:[%s917 + $0x44] sm:$0x1]
      %v2970 = vld [vmem:[%s917 + $0x48] sm:$0xf]
      %v2971 = vld [vmem:[%s917 + $0x4c] sm:$0xf]
      %v2972 = vld [vmem:[%s917 + $0x50] sm:$0x1]
      %v2973 = vld [vmem:[%s917 + $0x54] sm:$0xf]
      %v2974 = vld [vmem:[%s917 + $0x58] sm:$0xf]
      %v2975 = vld [vmem:[%s917 + $0x5c] sm:$0x1]
      %v2976 = vld [vmem:[%s917 + $0x60] sm:$0xf]
      %v2977 = vld [vmem:[%s917 + $0x64] sm:$0xf]
      %v2978 = vld [vmem:[%s917 + $0x68] sm:$0x1]
      %v2979 = vld [vmem:[%s917 + $0x6c] sm:$0xf]
      %v2980 = vld [vmem:[%s917 + $0x70] sm:$0xf]
      %v2981 = vld [vmem:[%s917 + $0x74] sm:$0x1]
      %v2982 = vld [vmem:[%s917 + $0x78] sm:$0xf]
      %v2983 = vld [vmem:[%s917 + $0x7c] sm:$0xf]
      %v2984 = vld [vmem:[%s917 + $0x80] sm:$0x1]
      %v2985 = vld [vmem:[%s917 + $0x84] sm:$0xf]
      %v2986 = vld [vmem:[%s917 + $0x88] sm:$0xf]
      %v2987 = vld [vmem:[%s917 + $0x8c] sm:$0x1]
      %v2988 = vld [vmem:[%s917 + $0x90] sm:$0xf]
      %v2989 = vld [vmem:[%s917 + $0x94] sm:$0xf]
      %v2990 = vld [vmem:[%s917 + $0x98] sm:$0x1]
      %v2991 = vld [vmem:[%s917 + $0x9c] sm:$0xf]
      %v2992 = vld [vmem:[%s917 + $0xa0] sm:$0xf]
      %v2993 = vld [vmem:[%s917 + $0xa4] sm:$0x1]
      %v2994 = vld [vmem:[%s917 + $0xa8] sm:$0xf]
      %v2995 = vld [vmem:[%s917 + $0xac] sm:$0xf]
      %v2996 = vld [vmem:[%s917 + $0xb0] sm:$0x1]
      %v2997 = vld [vmem:[%s917 + $0xb4] sm:$0xf]
      %v2998 = vld [vmem:[%s917 + $0xb8] sm:$0xf]
      %v2999 = vld [vmem:[%s917 + $0xbc] sm:$0x1]
      %v3001 = vshrl.u32 %v2952, 16
      %v3003 = vrot.slane %v3001, 4
      %v3004 = vshll.u32 %v2952, 16
      %v3006 = vrot.slane %v3004, 5
      %v3007 = vor.u32 %v3003, %v3006
      %v3008 = vrot.slane %v3007, 4
      %v3010 = vshll.u32 %v2953, 16
      %v3012 = vrot.slane %v3010, 5
      %v3013 = vsel %vm1101, %v3008, %v3012
      %v3014 = vshrl.u32 %v2953, 16
      %v3016 = vrot.slane %v3014, 4
      %v3017 = vor.u32 %v3016, %v3012
      %v3018 = vrot.slane %v3017, 4
      %v3020 = vshll.u32 %v2954, 16
      %v3022 = vrot.slane %v3020, 5
      %v3023 = vsel %vm1101, %v3018, %v3022
      %v3025 = vshrl.u32 %v2955, 16
      %v3027 = vrot.slane %v3025, 4
      %v3028 = vshll.u32 %v2955, 16
      %v3030 = vrot.slane %v3028, 5
      %v3031 = vor.u32 %v3027, %v3030
      %v3032 = vrot.slane %v3031, 4
      %v3034 = vshll.u32 %v2956, 16
      %v3036 = vrot.slane %v3034, 5
      %v3037 = vsel %vm1101, %v3032, %v3036
      %v3038 = vshrl.u32 %v2956, 16
      %v3040 = vrot.slane %v3038, 4
      %v3041 = vor.u32 %v3040, %v3036
      %v3042 = vrot.slane %v3041, 4
      %v3044 = vshll.u32 %v2957, 16
      %v3046 = vrot.slane %v3044, 5
      %v3047 = vsel %vm1101, %v3042, %v3046
      %v3049 = vshrl.u32 %v2958, 16
      %v3051 = vrot.slane %v3049, 4
      %v3052 = vshll.u32 %v2958, 16
      %v3054 = vrot.slane %v3052, 5
      %v3055 = vor.u32 %v3051, %v3054
      %v3056 = vrot.slane %v3055, 4
      %v3058 = vshll.u32 %v2959, 16
      %v3060 = vrot.slane %v3058, 5
      %v3061 = vsel %vm1101, %v3056, %v3060
      %v3062 = vshrl.u32 %v2959, 16
      %v3064 = vrot.slane %v3062, 4
      %v3065 = vor.u32 %v3064, %v3060
      %v3066 = vrot.slane %v3065, 4
      %v3068 = vshll.u32 %v2960, 16
      %v3070 = vrot.slane %v3068, 5
      %v3071 = vsel %vm1101, %v3066, %v3070
      %v3073 = vshrl.u32 %v2961, 16
      %v3075 = vrot.slane %v3073, 4
      %v3076 = vshll.u32 %v2961, 16
      %v3078 = vrot.slane %v3076, 5
      %v3079 = vor.u32 %v3075, %v3078
      %v3080 = vrot.slane %v3079, 4
      %v3082 = vshll.u32 %v2962, 16
      %v3084 = vrot.slane %v3082, 5
      %v3085 = vsel %vm1101, %v3080, %v3084
      %v3086 = vshrl.u32 %v2962, 16
      %v3088 = vrot.slane %v3086, 4
      %v3089 = vor.u32 %v3088, %v3084
      %v3090 = vrot.slane %v3089, 4
      %v3092 = vshll.u32 %v2963, 16
      %v3094 = vrot.slane %v3092, 5
      %v3095 = vsel %vm1101, %v3090, %v3094
      %v3097 = vshrl.u32 %v2964, 16
      %v3099 = vrot.slane %v3097, 4
      %v3100 = vshll.u32 %v2964, 16
      %v3102 = vrot.slane %v3100, 5
      %v3103 = vor.u32 %v3099, %v3102
      %v3104 = vrot.slane %v3103, 4
      %v3106 = vshll.u32 %v2965, 16
      %v3108 = vrot.slane %v3106, 5
      %v3109 = vsel %vm1101, %v3104, %v3108
      %v3110 = vshrl.u32 %v2965, 16
      %v3112 = vrot.slane %v3110, 4
      %v3113 = vor.u32 %v3112, %v3108
      %v3114 = vrot.slane %v3113, 4
      %v3116 = vshll.u32 %v2966, 16
      %v3118 = vrot.slane %v3116, 5
      %v3119 = vsel %vm1101, %v3114, %v3118
      %v3121 = vshrl.u32 %v2967, 16
      %v3123 = vrot.slane %v3121, 4
      %v3124 = vshll.u32 %v2967, 16
      %v3126 = vrot.slane %v3124, 5
      %v3127 = vor.u32 %v3123, %v3126
      %v3128 = vrot.slane %v3127, 4
      %v3130 = vshll.u32 %v2968, 16
      %v3132 = vrot.slane %v3130, 5
      %v3133 = vsel %vm1101, %v3128, %v3132
      %v3134 = vshrl.u32 %v2968, 16
      %v3136 = vrot.slane %v3134, 4
      %v3137 = vor.u32 %v3136, %v3132
      %v3138 = vrot.slane %v3137, 4
      %v3140 = vshll.u32 %v2969, 16
      %v3142 = vrot.slane %v3140, 5
      %v3143 = vsel %vm1101, %v3138, %v3142
      %v3145 = vshrl.u32 %v2970, 16
      %v3147 = vrot.slane %v3145, 4
      %v3148 = vshll.u32 %v2970, 16
      %v3150 = vrot.slane %v3148, 5
      %v3151 = vor.u32 %v3147, %v3150
      %v3152 = vrot.slane %v3151, 4
      %v3154 = vshll.u32 %v2971, 16
      %v3156 = vrot.slane %v3154, 5
      %v3157 = vsel %vm1101, %v3152, %v3156
      %v3158 = vshrl.u32 %v2971, 16
      %v3160 = vrot.slane %v3158, 4
      %v3161 = vor.u32 %v3160, %v3156
      %v3162 = vrot.slane %v3161, 4
      %v3164 = vshll.u32 %v2972, 16
      %v3166 = vrot.slane %v3164, 5
      %v3167 = vsel %vm1101, %v3162, %v3166
      %v3169 = vshrl.u32 %v2973, 16
      %v3171 = vrot.slane %v3169, 4
      %v3172 = vshll.u32 %v2973, 16
      %v3174 = vrot.slane %v3172, 5
      %v3175 = vor.u32 %v3171, %v3174
      %v3176 = vrot.slane %v3175, 4
      %v3178 = vshll.u32 %v2974, 16
      %v3180 = vrot.slane %v3178, 5
      %v3181 = vsel %vm1101, %v3176, %v3180
      %v3182 = vshrl.u32 %v2974, 16
      %v3184 = vrot.slane %v3182, 4
      %v3185 = vor.u32 %v3184, %v3180
      %v3186 = vrot.slane %v3185, 4
      %v3188 = vshll.u32 %v2975, 16
      %v3190 = vrot.slane %v3188, 5
      %v3191 = vsel %vm1101, %v3186, %v3190
      %v3193 = vshrl.u32 %v2976, 16
      %v3195 = vrot.slane %v3193, 4
      %v3196 = vshll.u32 %v2976, 16
      %v3198 = vrot.slane %v3196, 5
      %v3199 = vor.u32 %v3195, %v3198
      %v3200 = vrot.slane %v3199, 4
      %v3202 = vshll.u32 %v2977, 16
      %v3204 = vrot.slane %v3202, 5
      %v3205 = vsel %vm1101, %v3200, %v3204
      %v3206 = vshrl.u32 %v2977, 16
      %v3208 = vrot.slane %v3206, 4
      %v3209 = vor.u32 %v3208, %v3204
      %v3210 = vrot.slane %v3209, 4
      %v3212 = vshll.u32 %v2978, 16
      %v3214 = vrot.slane %v3212, 5
      %v3215 = vsel %vm1101, %v3210, %v3214
      %v3217 = vshrl.u32 %v2979, 16
      %v3219 = vrot.slane %v3217, 4
      %v3220 = vshll.u32 %v2979, 16
      %v3222 = vrot.slane %v3220, 5
      %v3223 = vor.u32 %v3219, %v3222
      %v3224 = vrot.slane %v3223, 4
      %v3226 = vshll.u32 %v2980, 16
      %v3228 = vrot.slane %v3226, 5
      %v3229 = vsel %vm1101, %v3224, %v3228
      %v3230 = vshrl.u32 %v2980, 16
      %v3232 = vrot.slane %v3230, 4
      %v3233 = vor.u32 %v3232, %v3228
      %v3234 = vrot.slane %v3233, 4
      %v3236 = vshll.u32 %v2981, 16
      %v3238 = vrot.slane %v3236, 5
      %v3239 = vsel %vm1101, %v3234, %v3238
      %v3241 = vshrl.u32 %v2982, 16
      %v3243 = vrot.slane %v3241, 4
      %v3244 = vshll.u32 %v2982, 16
      %v3246 = vrot.slane %v3244, 5
      %v3247 = vor.u32 %v3243, %v3246
      %v3248 = vrot.slane %v3247, 4
      %v3250 = vshll.u32 %v2983, 16
      %v3252 = vrot.slane %v3250, 5
      %v3253 = vsel %vm1101, %v3248, %v3252
      %v3254 = vshrl.u32 %v2983, 16
      %v3256 = vrot.slane %v3254, 4
      %v3257 = vor.u32 %v3256, %v3252
      %v3258 = vrot.slane %v3257, 4
      %v3260 = vshll.u32 %v2984, 16
      %v3262 = vrot.slane %v3260, 5
      %v3263 = vsel %vm1101, %v3258, %v3262
      %v3265 = vshrl.u32 %v2985, 16
      %v3267 = vrot.slane %v3265, 4
      %v3268 = vshll.u32 %v2985, 16
      %v3270 = vrot.slane %v3268, 5
      %v3271 = vor.u32 %v3267, %v3270
      %v3272 = vrot.slane %v3271, 4
      %v3274 = vshll.u32 %v2986, 16
      %v3276 = vrot.slane %v3274, 5
      %v3277 = vsel %vm1101, %v3272, %v3276
      %v3278 = vshrl.u32 %v2986, 16
      %v3280 = vrot.slane %v3278, 4
      %v3281 = vor.u32 %v3280, %v3276
      %v3282 = vrot.slane %v3281, 4
      %v3284 = vshll.u32 %v2987, 16
      %v3286 = vrot.slane %v3284, 5
      %v3287 = vsel %vm1101, %v3282, %v3286
      %v3289 = vshrl.u32 %v2988, 16
      %v3291 = vrot.slane %v3289, 4
      %v3292 = vshll.u32 %v2988, 16
      %v3294 = vrot.slane %v3292, 5
      %v3295 = vor.u32 %v3291, %v3294
      %v3296 = vrot.slane %v3295, 4
      %v3298 = vshll.u32 %v2989, 16
      %v3300 = vrot.slane %v3298, 5
      %v3301 = vsel %vm1101, %v3296, %v3300
      %v3302 = vshrl.u32 %v2989, 16
      %v3304 = vrot.slane %v3302, 4
      %v3305 = vor.u32 %v3304, %v3300
      %v3306 = vrot.slane %v3305, 4
      %v3308 = vshll.u32 %v2990, 16
      %v3310 = vrot.slane %v3308, 5
      %v3311 = vsel %vm1101, %v3306, %v3310
      %v3313 = vshrl.u32 %v2991, 16
      %v3315 = vrot.slane %v3313, 4
      %v3316 = vshll.u32 %v2991, 16
      %v3318 = vrot.slane %v3316, 5
      %v3319 = vor.u32 %v3315, %v3318
      %v3320 = vrot.slane %v3319, 4
      %v3322 = vshll.u32 %v2992, 16
      %v3324 = vrot.slane %v3322, 5
      %v3325 = vsel %vm1101, %v3320, %v3324
      %v3326 = vshrl.u32 %v2992, 16
      %v3328 = vrot.slane %v3326, 4
      %v3329 = vor.u32 %v3328, %v3324
      %v3330 = vrot.slane %v3329, 4
      %v3332 = vshll.u32 %v2993, 16
      %v3334 = vrot.slane %v3332, 5
      %v3335 = vsel %vm1101, %v3330, %v3334
      %v3337 = vshrl.u32 %v2994, 16
      %v3339 = vrot.slane %v3337, 4
      %v3340 = vshll.u32 %v2994, 16
      %v3342 = vrot.slane %v3340, 5
      %v3343 = vor.u32 %v3339, %v3342
      %v3344 = vrot.slane %v3343, 4
      %v3346 = vshll.u32 %v2995, 16
      %v3348 = vrot.slane %v3346, 5
      %v3349 = vsel %vm1101, %v3344, %v3348
      %v3350 = vshrl.u32 %v2995, 16
      %v3352 = vrot.slane %v3350, 4
      %v3353 = vor.u32 %v3352, %v3348
      %v3354 = vrot.slane %v3353, 4
      %v3356 = vshll.u32 %v2996, 16
      %v3358 = vrot.slane %v3356, 5
      %v3359 = vsel %vm1101, %v3354, %v3358
      %v3361 = vshrl.u32 %v2997, 16
      %v3363 = vrot.slane %v3361, 4
      %v3364 = vshll.u32 %v2997, 16
      %v3366 = vrot.slane %v3364, 5
      %v3367 = vor.u32 %v3363, %v3366
      %v3368 = vrot.slane %v3367, 4
      %v3370 = vshll.u32 %v2998, 16
      %v3372 = vrot.slane %v3370, 5
      %v3373 = vsel %vm1101, %v3368, %v3372
      %v3374 = vshrl.u32 %v2998, 16
      %v3376 = vrot.slane %v3374, 4
      %v3377 = vor.u32 %v3376, %v3372
      %v3378 = vrot.slane %v3377, 4
      %v3380 = vshll.u32 %v2999, 16
      %v3382 = vrot.slane %v3380, 5
      %v3383 = vsel %vm1101, %v3378, %v3382
      %s3384 = scalar_lea.vmem %s3, 256
      %v3385 = vld [vmem:[%s3384] sm:$0xf]
      %v3386 = vld [vmem:[%s3384 + $0x4] sm:$0xf]
      %v3387 = vld [vmem:[%s3384 + $0x8] sm:$0xf]
      %v3388 = vld [vmem:[%s3384 + $0xc] sm:$0xf]
      %v3389 = vld [vmem:[%s3384 + $0x10] sm:$0xf]
      %v3390 = vld [vmem:[%s3384 + $0x14] sm:$0xf]
      %v3391 = vld [vmem:[%s3384 + $0x18] sm:$0xf]
      %v3392 = vld [vmem:[%s3384 + $0x1c] sm:$0xf]
      %v3393 = vld [vmem:[%s3384 + $0x20] sm:$0xf]
      %v3394 = vld [vmem:[%s3384 + $0x24] sm:$0xf]
      %v3395 = vld [vmem:[%s3384 + $0x28] sm:$0xf]
      %v3396 = vld [vmem:[%s3384 + $0x2c] sm:$0xf]
      %v3397 = vld [vmem:[%s3384 + $0x30] sm:$0xf]
      %v3398 = vld [vmem:[%s3384 + $0x34] sm:$0xf]
      %v3399 = vld [vmem:[%s3384 + $0x38] sm:$0xf]
      %v3400 = vld [vmem:[%s3384 + $0x3c] sm:$0xf]
      %v3401 = vunpack.c.l.b16 %v3013
      %v3402 = vunpack.c.l.b16 %v3023
      %v3403 = vunpack.c.l.b16 %v3037
      %v3404 = vunpack.c.l.b16 %v3047
      %v3405 = vunpack.c.l.b16 %v3061
      %v3406 = vunpack.c.l.b16 %v3071
      %v3407 = vunpack.c.l.b16 %v3085
      %v3408 = vunpack.c.l.b16 %v3095
      %v3409 = vunpack.c.l.b16 %v3109
      %v3410 = vunpack.c.l.b16 %v3119
      %v3411 = vunpack.c.l.b16 %v3133
      %v3412 = vunpack.c.l.b16 %v3143
      %v3413 = vunpack.c.l.b16 %v3157
      %v3414 = vunpack.c.l.b16 %v3167
      %v3415 = vunpack.c.l.b16 %v3181
      %v3416 = vunpack.c.l.b16 %v3191
      %v3417 = vunpack.c.l.b16 %v3205
      %v3418 = vunpack.c.l.b16 %v3215
      %v3419 = vunpack.c.l.b16 %v3229
      %v3420 = vunpack.c.l.b16 %v3239
      %v3421 = vunpack.c.l.b16 %v3253
      %v3422 = vunpack.c.l.b16 %v3263
      %v3423 = vunpack.c.l.b16 %v3277
      %v3424 = vunpack.c.l.b16 %v3287
      %v3425 = vunpack.c.l.b16 %v3301
      %v3426 = vunpack.c.l.b16 %v3311
      %v3427 = vunpack.c.l.b16 %v3325
      %v3428 = vunpack.c.l.b16 %v3335
      %v3429 = vunpack.c.l.b16 %v3349
      %v3430 = vunpack.c.l.b16 %v3359
      %v3431 = vunpack.c.l.b16 %v3373
      %v3432 = vunpack.c.l.b16 %v3383
      %v3433 = vpack.c.b16 %v3402, %v3401
      %v3434 = vpack.c.b16 %v3404, %v3403
      %v3435 = vpack.c.b16 %v3406, %v3405
      %v3436 = vpack.c.b16 %v3408, %v3407
      %v3437 = vpack.c.b16 %v3410, %v3409
      %v3438 = vpack.c.b16 %v3412, %v3411
      %v3439 = vpack.c.b16 %v3414, %v3413
      %v3440 = vpack.c.b16 %v3416, %v3415
      %v3441 = vpack.c.b16 %v3418, %v3417
      %v3442 = vpack.c.b16 %v3420, %v3419
      %v3443 = vpack.c.b16 %v3422, %v3421
      %v3444 = vpack.c.b16 %v3424, %v3423
      %v3445 = vpack.c.b16 %v3426, %v3425
      %v3446 = vpack.c.b16 %v3428, %v3427
      %v3447 = vpack.c.b16 %v3430, %v3429
      %v3448 = vpack.c.b16 %v3432, %v3431
      %v3481 = vunpack.c.l.b16 %v3385
      %v3482 = vunpack.c.l.b16 %v3386
      %v3483 = vunpack.c.l.b16 %v3387
      %v3484 = vunpack.c.l.b16 %v3388
      %v3485 = vunpack.c.l.b16 %v3389
      %v3486 = vunpack.c.l.b16 %v3390
      %v3487 = vunpack.c.l.b16 %v3391
      %v3488 = vunpack.c.l.b16 %v3392
      %v3489 = vunpack.c.l.b16 %v3393
      %v3490 = vunpack.c.l.b16 %v3394
      %v3491 = vunpack.c.l.b16 %v3395
      %v3492 = vunpack.c.l.b16 %v3396
      %v3493 = vunpack.c.l.b16 %v3397
      %v3494 = vunpack.c.l.b16 %v3398
      %v3495 = vunpack.c.l.b16 %v3399
      %v3496 = vunpack.c.l.b16 %v3400
      %v3497 = vpack.c.b16 %v3482, %v3481
      %v3498 = vpack.c.b16 %v3484, %v3483
      %v3499 = vpack.c.b16 %v3486, %v3485
      %v3500 = vpack.c.b16 %v3488, %v3487
      %v3501 = vpack.c.b16 %v3490, %v3489
      %v3502 = vpack.c.b16 %v3492, %v3491
      %v3503 = vpack.c.b16 %v3494, %v3493
      %v3504 = vpack.c.b16 %v3496, %v3495
      %3513 = vmatprep.subr.bf16.mxu0 0
      %3514 = vmatpush1.bf16.msra.mxu0 %v3504
      %3515 = vmatprep.subr.bf16.mxu0 0
      %3516 = vmatpush1.bf16.msra.mxu0 %v3503
      %3517 = vmatprep.subr.bf16.mxu0 0
      %3518 = vmatpush1.bf16.msra.mxu0 %v3502
      %3519 = vmatprep.subr.bf16.mxu0 0
      %3520 = vmatpush1.bf16.msra.mxu0 %v3501
      %3521 = vmatprep.subr.bf16.mxu0 0
      %3522 = vmatpush1.bf16.msra.mxu0 %v3500
      %3523 = vmatprep.subr.bf16.mxu0 0
      %3524 = vmatpush1.bf16.msra.mxu0 %v3499
      %3525 = vmatprep.subr.bf16.mxu0 0
      %3526 = vmatpush1.bf16.msra.mxu0 %v3498
      %3527 = vmatprep.subr.bf16.mxu0 0
      %3528 = vmatpush1.bf16.msra.mxu0 %v3497
      %3529 = vmatprep.subr.bf16.mxu0 0
      %3530 = vmatpush2.bf16.msra.mxu0 0
      %3531 = vmatprep.subr.bf16.mxu0 0
      %3532 = vmatpush2.bf16.msra.mxu0 0
      %3533 = vmatprep.subr.bf16.mxu0 0
      %3534 = vmatpush2.bf16.msra.mxu0 0
      %3535 = vmatprep.subr.bf16.mxu0 0
      %3536 = vmatpush2.bf16.msra.mxu0 0
      %3537 = vmatprep.subr.bf16.mxu0 0
      %3538 = vmatpush2.bf16.msra.mxu0 0
      %3539 = vmatprep.subr.bf16.mxu0 0
      %3540 = vmatpush2.bf16.msra.mxu0 0
      %3541 = vmatprep.subr.bf16.mxu0 0
      %3542 = vmatpush2.bf16.msra.mxu0 0
      %3543 = vmatprep.subr.bf16.mxu0 0
      %3544 = vmatpush2.bf16.msra.mxu0 0
      %3545 = vmatprep.mubr.bf16.mxu0 0
      %3546 = vmatmul.mubr.bf16.gmra.mxu0 %v3433
      %v3547 = vpop.f32.mrf.mxu0
      %v3548 = vadd.f32 0.0, %v3547
      %v3549 = vpop.f32.mrf.mxu0
      %v3550 = vpop.f32.mrf.mxu0
      %v3551 = vadd.f32 0.0, %v3550
      %v3552 = vpop.f32.mrf.mxu0
      %3553 = vmatprep.mubr.bf16.mxu0 0
      %3554 = vmatmul.mubr.bf16.gmra.mxu0 %v3434
      %v3555 = vpop.f32.mrf.mxu0
      %v3556 = vadd.f32 0.0, %v3555
      %v3557 = vpop.f32.mrf.mxu0
      %v3558 = vpop.f32.mrf.mxu0
      %v3559 = vadd.f32 0.0, %v3558
      %v3560 = vpop.f32.mrf.mxu0
      %3561 = vmatprep.mubr.bf16.mxu0 0
      %3562 = vmatmul.mubr.bf16.gmra.mxu0 %v3435
      %v3563 = vpop.f32.mrf.mxu0
      %v3564 = vadd.f32 0.0, %v3563
      %v3565 = vpop.f32.mrf.mxu0
      %v3566 = vpop.f32.mrf.mxu0
      %v3567 = vadd.f32 0.0, %v3566
      %v3568 = vpop.f32.mrf.mxu0
      %3569 = vmatprep.mubr.bf16.mxu0 0
      %3570 = vmatmul.mubr.bf16.gmra.mxu0 %v3436
      %v3571 = vpop.f32.mrf.mxu0
      %v3572 = vadd.f32 0.0, %v3571
      %v3573 = vpop.f32.mrf.mxu0
      %v3574 = vpop.f32.mrf.mxu0
      %v3575 = vadd.f32 0.0, %v3574
      %v3576 = vpop.f32.mrf.mxu0
      %3577 = vmatprep.mubr.bf16.mxu0 0
      %3578 = vmatmul.mubr.bf16.gmra.mxu0 %v3437
      %v3579 = vpop.f32.mrf.mxu0
      %v3580 = vadd.f32 0.0, %v3579
      %v3581 = vpop.f32.mrf.mxu0
      %v3582 = vpop.f32.mrf.mxu0
      %v3583 = vadd.f32 0.0, %v3582
      %v3584 = vpop.f32.mrf.mxu0
      %3585 = vmatprep.mubr.bf16.mxu0 0
      %3586 = vmatmul.mubr.bf16.gmra.mxu0 %v3438
      %v3587 = vpop.f32.mrf.mxu0
      %v3588 = vadd.f32 0.0, %v3587
      %v3589 = vpop.f32.mrf.mxu0
      %v3590 = vpop.f32.mrf.mxu0
      %v3591 = vadd.f32 0.0, %v3590
      %v3592 = vpop.f32.mrf.mxu0
      %3593 = vmatprep.mubr.bf16.mxu0 0
      %3594 = vmatmul.mubr.bf16.gmra.mxu0 %v3439
      %v3595 = vpop.f32.mrf.mxu0
      %v3596 = vadd.f32 0.0, %v3595
      %v3597 = vpop.f32.mrf.mxu0
      %v3598 = vpop.f32.mrf.mxu0
      %v3599 = vadd.f32 0.0, %v3598
      %v3600 = vpop.f32.mrf.mxu0
      %3601 = vmatprep.mubr.bf16.mxu0 0
      %3602 = vmatmul.mubr.bf16.gmra.mxu0 %v3440
      %v3603 = vpop.f32.mrf.mxu0
      %v3604 = vadd.f32 0.0, %v3603
      %v3605 = vpop.f32.mrf.mxu0
      %v3606 = vpop.f32.mrf.mxu0
      %v3607 = vadd.f32 0.0, %v3606
      %v3608 = vpop.f32.mrf.mxu0
      %3609 = vmatprep.mubr.bf16.mxu0 0
      %3610 = vmatmul.mubr.bf16.gmra.mxu0 %v3441
      %v3611 = vpop.f32.mrf.mxu0
      %v3612 = vadd.f32 0.0, %v3611
      %v3613 = vpop.f32.mrf.mxu0
      %v3614 = vpop.f32.mrf.mxu0
      %v3615 = vadd.f32 0.0, %v3614
      %v3616 = vpop.f32.mrf.mxu0
      %3617 = vmatprep.mubr.bf16.mxu0 0
      %3618 = vmatmul.mubr.bf16.gmra.mxu0 %v3442
      %v3619 = vpop.f32.mrf.mxu0
      %v3620 = vadd.f32 0.0, %v3619
      %v3621 = vpop.f32.mrf.mxu0
      %v3622 = vpop.f32.mrf.mxu0
      %v3623 = vadd.f32 0.0, %v3622
      %v3624 = vpop.f32.mrf.mxu0
      %3625 = vmatprep.mubr.bf16.mxu0 0
      %3626 = vmatmul.mubr.bf16.gmra.mxu0 %v3443
      %v3627 = vpop.f32.mrf.mxu0
      %v3628 = vadd.f32 0.0, %v3627
      %v3629 = vpop.f32.mrf.mxu0
      %v3630 = vpop.f32.mrf.mxu0
      %v3631 = vadd.f32 0.0, %v3630
      %v3632 = vpop.f32.mrf.mxu0
      %3633 = vmatprep.mubr.bf16.mxu0 0
      %3634 = vmatmul.mubr.bf16.gmra.mxu0 %v3444
      %v3635 = vpop.f32.mrf.mxu0
      %v3636 = vadd.f32 0.0, %v3635
      %v3637 = vpop.f32.mrf.mxu0
      %v3638 = vpop.f32.mrf.mxu0
      %v3639 = vadd.f32 0.0, %v3638
      %v3640 = vpop.f32.mrf.mxu0
      %3641 = vmatprep.mubr.bf16.mxu0 0
      %3642 = vmatmul.mubr.bf16.gmra.mxu0 %v3445
      %v3643 = vpop.f32.mrf.mxu0
      %v3644 = vadd.f32 0.0, %v3643
      %v3645 = vpop.f32.mrf.mxu0
      %v3646 = vpop.f32.mrf.mxu0
      %v3647 = vadd.f32 0.0, %v3646
      %v3648 = vpop.f32.mrf.mxu0
      %3649 = vmatprep.mubr.bf16.mxu0 0
      %3650 = vmatmul.mubr.bf16.gmra.mxu0 %v3446
      %v3651 = vpop.f32.mrf.mxu0
      %v3652 = vadd.f32 0.0, %v3651
      %v3653 = vpop.f32.mrf.mxu0
      %v3654 = vpop.f32.mrf.mxu0
      %v3655 = vadd.f32 0.0, %v3654
      %v3656 = vpop.f32.mrf.mxu0
      %3657 = vmatprep.mubr.bf16.mxu0 0
      %3658 = vmatmul.mubr.bf16.gmra.mxu0 %v3447
      %v3659 = vpop.f32.mrf.mxu0
      %v3660 = vadd.f32 0.0, %v3659
      %v3661 = vpop.f32.mrf.mxu0
      %v3662 = vpop.f32.mrf.mxu0
      %v3663 = vadd.f32 0.0, %v3662
      %v3664 = vpop.f32.mrf.mxu0
      %3665 = vmatprep.mubr.bf16.mxu0 0
      %3666 = vmatmul.mubr.bf16.gmra.mxu0 %v3448
      %v3667 = vpop.f32.mrf.mxu0
      %v3668 = vadd.f32 0.0, %v3667
      %v3669 = vpop.f32.mrf.mxu0
      %v3670 = vpop.f32.mrf.mxu0
      %v3671 = vadd.f32 0.0, %v3670
      %v3672 = vpop.f32.mrf.mxu0
      %3673 = vdwg.mxu0
      %v3674 = vadd.f32 %v2920, %v3548
      %v3675 = vadd.f32 %v2921, %v3551
      %v3676 = vadd.f32 %v2922, %v3556
      %v3677 = vadd.f32 %v2923, %v3559
      %v3678 = vadd.f32 %v2924, %v3564
      %v3679 = vadd.f32 %v2925, %v3567
      %v3680 = vadd.f32 %v2926, %v3572
      %v3681 = vadd.f32 %v2927, %v3575
      %v3682 = vadd.f32 %v2928, %v3580
      %v3683 = vadd.f32 %v2929, %v3583
      %v3684 = vadd.f32 %v2930, %v3588
      %v3685 = vadd.f32 %v2931, %v3591
      %v3686 = vadd.f32 %v2932, %v3596
      %v3687 = vadd.f32 %v2933, %v3599
      %v3688 = vadd.f32 %v2934, %v3604
      %v3689 = vadd.f32 %v2935, %v3607
      %v3690 = vadd.f32 %v2936, %v3612
      %v3691 = vadd.f32 %v2937, %v3615
      %v3692 = vadd.f32 %v2938, %v3620
      %v3693 = vadd.f32 %v2939, %v3623
      %v3694 = vadd.f32 %v2940, %v3628
      %v3695 = vadd.f32 %v2941, %v3631
      %v3696 = vadd.f32 %v2942, %v3636
      %v3697 = vadd.f32 %v2943, %v3639
      %v3698 = vadd.f32 %v2944, %v3644
      %v3699 = vadd.f32 %v2945, %v3647
      %v3700 = vadd.f32 %v2946, %v3652
      %v3701 = vadd.f32 %v2947, %v3655
      %v3702 = vadd.f32 %v2948, %v3660
      %v3703 = vadd.f32 %v2949, %v3663
      %v3704 = vadd.f32 %v2950, %v3668
      %v3705 = vadd.f32 %v2951, %v3671
      %v3706 = vld [vmem:[%s917] sm:$0xe]
      %v3707 = vld [vmem:[%s917 + $0xc] sm:$0xe]
      %v3708 = vld [vmem:[%s917 + $0x18] sm:$0xe]
      %v3709 = vld [vmem:[%s917 + $0x24] sm:$0xe]
      %v3710 = vld [vmem:[%s917 + $0x30] sm:$0xe]
      %v3711 = vld [vmem:[%s917 + $0x3c] sm:$0xe]
      %v3712 = vld [vmem:[%s917 + $0x48] sm:$0xe]
      %v3713 = vld [vmem:[%s917 + $0x54] sm:$0xe]
      %v3714 = vld [vmem:[%s917 + $0x60] sm:$0xe]
      %v3715 = vld [vmem:[%s917 + $0x6c] sm:$0xe]
      %v3716 = vld [vmem:[%s917 + $0x78] sm:$0xe]
      %v3717 = vld [vmem:[%s917 + $0x84] sm:$0xe]
      %v3718 = vld [vmem:[%s917 + $0x90] sm:$0xe]
      %v3719 = vld [vmem:[%s917 + $0x9c] sm:$0xe]
      %v3720 = vld [vmem:[%s917 + $0xa8] sm:$0xe]
      %v3721 = vld [vmem:[%s917 + $0xb4] sm:$0xe]
      %v3770 = vrot.slane %v3706, 5
      %v3771 = vrot.slane %v3770, 4
      %v3772 = vrot.slane %v2953, 5
      %v3773 = vsel %vm2131, %v3771, %v3772
      %v3774 = vrot.slane %v3772, 4
      %v3775 = vrot.slane %v2954, 5
      %v3776 = vsel %vm2131, %v3774, %v3775
      %v3777 = vrot.slane %v3707, 5
      %v3778 = vrot.slane %v3777, 4
      %v3779 = vrot.slane %v2956, 5
      %v3780 = vsel %vm2131, %v3778, %v3779
      %v3781 = vrot.slane %v3779, 4
      %v3782 = vrot.slane %v2957, 5
      %v3783 = vsel %vm2131, %v3781, %v3782
      %v3784 = vrot.slane %v3708, 5
      %v3785 = vrot.slane %v3784, 4
      %v3786 = vrot.slane %v2959, 5
      %v3787 = vsel %vm2131, %v3785, %v3786
      %v3788 = vrot.slane %v3786, 4
      %v3789 = vrot.slane %v2960, 5
      %v3790 = vsel %vm2131, %v3788, %v3789
      %v3791 = vrot.slane %v3709, 5
      %v3792 = vrot.slane %v3791, 4
      %v3793 = vrot.slane %v2962, 5
      %v3794 = vsel %vm2131, %v3792, %v3793
      %v3795 = vrot.slane %v3793, 4
      %v3796 = vrot.slane %v2963, 5
      %v3797 = vsel %vm2131, %v3795, %v3796
      %v3798 = vrot.slane %v3710, 5
      %v3799 = vrot.slane %v3798, 4
      %v3800 = vrot.slane %v2965, 5
      %v3801 = vsel %vm2131, %v3799, %v3800
      %v3802 = vrot.slane %v3800, 4
      %v3803 = vrot.slane %v2966, 5
      %v3804 = vsel %vm2131, %v3802, %v3803
      %v3805 = vrot.slane %v3711, 5
      %v3806 = vrot.slane %v3805, 4
      %v3807 = vrot.slane %v2968, 5
      %v3808 = vsel %vm2131, %v3806, %v3807
      %v3809 = vrot.slane %v3807, 4
      %v3810 = vrot.slane %v2969, 5
      %v3811 = vsel %vm2131, %v3809, %v3810
      %v3812 = vrot.slane %v3712, 5
      %v3813 = vrot.slane %v3812, 4
      %v3814 = vrot.slane %v2971, 5
      %v3815 = vsel %vm2131, %v3813, %v3814
      %v3816 = vrot.slane %v3814, 4
      %v3817 = vrot.slane %v2972, 5
      %v3818 = vsel %vm2131, %v3816, %v3817
      %v3819 = vrot.slane %v3713, 5
      %v3820 = vrot.slane %v3819, 4
      %v3821 = vrot.slane %v2974, 5
      %v3822 = vsel %vm2131, %v3820, %v3821
      %v3823 = vrot.slane %v3821, 4
      %v3824 = vrot.slane %v2975, 5
      %v3825 = vsel %vm2131, %v3823, %v3824
      %v3826 = vrot.slane %v3714, 5
      %v3827 = vrot.slane %v3826, 4
      %v3828 = vrot.slane %v2977, 5
      %v3829 = vsel %vm2131, %v3827, %v3828
      %v3830 = vrot.slane %v3828, 4
      %v3831 = vrot.slane %v2978, 5
      %v3832 = vsel %vm2131, %v3830, %v3831
      %v3833 = vrot.slane %v3715, 5
      %v3834 = vrot.slane %v3833, 4
      %v3835 = vrot.slane %v2980, 5
      %v3836 = vsel %vm2131, %v3834, %v3835
      %v3837 = vrot.slane %v3835, 4
      %v3838 = vrot.slane %v2981, 5
      %v3839 = vsel %vm2131, %v3837, %v3838
      %v3840 = vrot.slane %v3716, 5
      %v3841 = vrot.slane %v3840, 4
      %v3842 = vrot.slane %v2983, 5
      %v3843 = vsel %vm2131, %v3841, %v3842
      %v3844 = vrot.slane %v3842, 4
      %v3845 = vrot.slane %v2984, 5
      %v3846 = vsel %vm2131, %v3844, %v3845
      %v3847 = vrot.slane %v3717, 5
      %v3848 = vrot.slane %v3847, 4
      %v3849 = vrot.slane %v2986, 5
      %v3850 = vsel %vm2131, %v3848, %v3849
      %v3851 = vrot.slane %v3849, 4
      %v3852 = vrot.slane %v2987, 5
      %v3853 = vsel %vm2131, %v3851, %v3852
      %v3854 = vrot.slane %v3718, 5
      %v3855 = vrot.slane %v3854, 4
      %v3856 = vrot.slane %v2989, 5
      %v3857 = vsel %vm2131, %v3855, %v3856
      %v3858 = vrot.slane %v3856, 4
      %v3859 = vrot.slane %v2990, 5
      %v3860 = vsel %vm2131, %v3858, %v3859
      %v3861 = vrot.slane %v3719, 5
      %v3862 = vrot.slane %v3861, 4
      %v3863 = vrot.slane %v2992, 5
      %v3864 = vsel %vm2131, %v3862, %v3863
      %v3865 = vrot.slane %v3863, 4
      %v3866 = vrot.slane %v2993, 5
      %v3867 = vsel %vm2131, %v3865, %v3866
      %v3868 = vrot.slane %v3720, 5
      %v3869 = vrot.slane %v3868, 4
      %v3870 = vrot.slane %v2995, 5
      %v3871 = vsel %vm2131, %v3869, %v3870
      %v3872 = vrot.slane %v3870, 4
      %v3873 = vrot.slane %v2996, 5
      %v3874 = vsel %vm2131, %v3872, %v3873
      %v3875 = vrot.slane %v3721, 5
      %v3876 = vrot.slane %v3875, 4
      %v3877 = vrot.slane %v2998, 5
      %v3878 = vsel %vm2131, %v3876, %v3877
      %v3879 = vrot.slane %v3877, 4
      %v3880 = vrot.slane %v2999, 5
      %v3881 = vsel %vm2131, %v3879, %v3880
      %s3882 = scalar_lea.vmem %s3, 320
      %v3883 = vld [vmem:[%s3882] sm:$0xf]
      %v3884 = vld [vmem:[%s3882 + $0x4] sm:$0xf]
      %v3885 = vld [vmem:[%s3882 + $0x8] sm:$0xf]
      %v3886 = vld [vmem:[%s3882 + $0xc] sm:$0xf]
      %v3887 = vld [vmem:[%s3882 + $0x10] sm:$0xf]
      %v3888 = vld [vmem:[%s3882 + $0x14] sm:$0xf]
      %v3889 = vld [vmem:[%s3882 + $0x18] sm:$0xf]
      %v3890 = vld [vmem:[%s3882 + $0x1c] sm:$0xf]
      %v3891 = vld [vmem:[%s3882 + $0x20] sm:$0xf]
      %v3892 = vld [vmem:[%s3882 + $0x24] sm:$0xf]
      %v3893 = vld [vmem:[%s3882 + $0x28] sm:$0xf]
      %v3894 = vld [vmem:[%s3882 + $0x2c] sm:$0xf]
      %v3895 = vld [vmem:[%s3882 + $0x30] sm:$0xf]
      %v3896 = vld [vmem:[%s3882 + $0x34] sm:$0xf]
      %v3897 = vld [vmem:[%s3882 + $0x38] sm:$0xf]
      %v3898 = vld [vmem:[%s3882 + $0x3c] sm:$0xf]
      %v3899 = vunpack.c.l.b16 %v3773
      %v3900 = vunpack.c.l.b16 %v3776
      %v3901 = vunpack.c.l.b16 %v3780
      %v3902 = vunpack.c.l.b16 %v3783
      %v3903 = vunpack.c.l.b16 %v3787
      %v3904 = vunpack.c.l.b16 %v3790
      %v3905 = vunpack.c.l.b16 %v3794
      %v3906 = vunpack.c.l.b16 %v3797
      %v3907 = vunpack.c.l.b16 %v3801
      %v3908 = vunpack.c.l.b16 %v3804
      %v3909 = vunpack.c.l.b16 %v3808
      %v3910 = vunpack.c.l.b16 %v3811
      %v3911 = vunpack.c.l.b16 %v3815
      %v3912 = vunpack.c.l.b16 %v3818
      %v3913 = vunpack.c.l.b16 %v3822
      %v3914 = vunpack.c.l.b16 %v3825
      %v3915 = vunpack.c.l.b16 %v3829
      %v3916 = vunpack.c.l.b16 %v3832
      %v3917 = vunpack.c.l.b16 %v3836
      %v3918 = vunpack.c.l.b16 %v3839
      %v3919 = vunpack.c.l.b16 %v3843
      %v3920 = vunpack.c.l.b16 %v3846
      %v3921 = vunpack.c.l.b16 %v3850
      %v3922 = vunpack.c.l.b16 %v3853
      %v3923 = vunpack.c.l.b16 %v3857
      %v3924 = vunpack.c.l.b16 %v3860
      %v3925 = vunpack.c.l.b16 %v3864
      %v3926 = vunpack.c.l.b16 %v3867
      %v3927 = vunpack.c.l.b16 %v3871
      %v3928 = vunpack.c.l.b16 %v3874
      %v3929 = vunpack.c.l.b16 %v3878
      %v3930 = vunpack.c.l.b16 %v3881
      %v3931 = vpack.c.b16 %v3900, %v3899
      %v3932 = vpack.c.b16 %v3902, %v3901
      %v3933 = vpack.c.b16 %v3904, %v3903
      %v3934 = vpack.c.b16 %v3906, %v3905
      %v3935 = vpack.c.b16 %v3908, %v3907
      %v3936 = vpack.c.b16 %v3910, %v3909
      %v3937 = vpack.c.b16 %v3912, %v3911
      %v3938 = vpack.c.b16 %v3914, %v3913
      %v3939 = vpack.c.b16 %v3916, %v3915
      %v3940 = vpack.c.b16 %v3918, %v3917
      %v3941 = vpack.c.b16 %v3920, %v3919
      %v3942 = vpack.c.b16 %v3922, %v3921
      %v3943 = vpack.c.b16 %v3924, %v3923
      %v3944 = vpack.c.b16 %v3926, %v3925
      %v3945 = vpack.c.b16 %v3928, %v3927
      %v3946 = vpack.c.b16 %v3930, %v3929
      %v3979 = vunpack.c.l.b16 %v3883
      %v3980 = vunpack.c.l.b16 %v3884
      %v3981 = vunpack.c.l.b16 %v3885
      %v3982 = vunpack.c.l.b16 %v3886
      %v3983 = vunpack.c.l.b16 %v3887
      %v3984 = vunpack.c.l.b16 %v3888
      %v3985 = vunpack.c.l.b16 %v3889
      %v3986 = vunpack.c.l.b16 %v3890
      %v3987 = vunpack.c.l.b16 %v3891
      %v3988 = vunpack.c.l.b16 %v3892
      %v3989 = vunpack.c.l.b16 %v3893
      %v3990 = vunpack.c.l.b16 %v3894
      %v3991 = vunpack.c.l.b16 %v3895
      %v3992 = vunpack.c.l.b16 %v3896
      %v3993 = vunpack.c.l.b16 %v3897
      %v3994 = vunpack.c.l.b16 %v3898
      %v3995 = vpack.c.b16 %v3980, %v3979
      %v3996 = vpack.c.b16 %v3982, %v3981
      %v3997 = vpack.c.b16 %v3984, %v3983
      %v3998 = vpack.c.b16 %v3986, %v3985
      %v3999 = vpack.c.b16 %v3988, %v3987
      %v4000 = vpack.c.b16 %v3990, %v3989
      %v4001 = vpack.c.b16 %v3992, %v3991
      %v4002 = vpack.c.b16 %v3994, %v3993
      %4011 = vmatprep.subr.bf16.mxu0 0
      %4012 = vmatpush1.bf16.msra.mxu0 %v4002
      %4013 = vmatprep.subr.bf16.mxu0 0
      %4014 = vmatpush1.bf16.msra.mxu0 %v4001
      %4015 = vmatprep.subr.bf16.mxu0 0
      %4016 = vmatpush1.bf16.msra.mxu0 %v4000
      %4017 = vmatprep.subr.bf16.mxu0 0
      %4018 = vmatpush1.bf16.msra.mxu0 %v3999
      %4019 = vmatprep.subr.bf16.mxu0 0
      %4020 = vmatpush1.bf16.msra.mxu0 %v3998
      %4021 = vmatprep.subr.bf16.mxu0 0
      %4022 = vmatpush1.bf16.msra.mxu0 %v3997
      %4023 = vmatprep.subr.bf16.mxu0 0
      %4024 = vmatpush1.bf16.msra.mxu0 %v3996
      %4025 = vmatprep.subr.bf16.mxu0 0
      %4026 = vmatpush1.bf16.msra.mxu0 %v3995
      %4027 = vmatprep.subr.bf16.mxu0 0
      %4028 = vmatpush2.bf16.msra.mxu0 0
      %4029 = vmatprep.subr.bf16.mxu0 0
      %4030 = vmatpush2.bf16.msra.mxu0 0
      %4031 = vmatprep.subr.bf16.mxu0 0
      %4032 = vmatpush2.bf16.msra.mxu0 0
      %4033 = vmatprep.subr.bf16.mxu0 0
      %4034 = vmatpush2.bf16.msra.mxu0 0
      %4035 = vmatprep.subr.bf16.mxu0 0
      %4036 = vmatpush2.bf16.msra.mxu0 0
      %4037 = vmatprep.subr.bf16.mxu0 0
      %4038 = vmatpush2.bf16.msra.mxu0 0
      %4039 = vmatprep.subr.bf16.mxu0 0
      %4040 = vmatpush2.bf16.msra.mxu0 0
      %4041 = vmatprep.subr.bf16.mxu0 0
      %4042 = vmatpush2.bf16.msra.mxu0 0
      %4043 = vmatprep.mubr.bf16.mxu0 0
      %4044 = vmatmul.mubr.bf16.gmra.mxu0 %v3931
      %v4045 = vpop.f32.mrf.mxu0
      %v4046 = vadd.f32 0.0, %v4045
      %v4047 = vpop.f32.mrf.mxu0
      %v4048 = vpop.f32.mrf.mxu0
      %v4049 = vadd.f32 0.0, %v4048
      %v4050 = vpop.f32.mrf.mxu0
      %4051 = vmatprep.mubr.bf16.mxu0 0
      %4052 = vmatmul.mubr.bf16.gmra.mxu0 %v3932
      %v4053 = vpop.f32.mrf.mxu0
      %v4054 = vadd.f32 0.0, %v4053
      %v4055 = vpop.f32.mrf.mxu0
      %v4056 = vpop.f32.mrf.mxu0
      %v4057 = vadd.f32 0.0, %v4056
      %v4058 = vpop.f32.mrf.mxu0
      %4059 = vmatprep.mubr.bf16.mxu0 0
      %4060 = vmatmul.mubr.bf16.gmra.mxu0 %v3933
      %v4061 = vpop.f32.mrf.mxu0
      %v4062 = vadd.f32 0.0, %v4061
      %v4063 = vpop.f32.mrf.mxu0
      %v4064 = vpop.f32.mrf.mxu0
      %v4065 = vadd.f32 0.0, %v4064
      %v4066 = vpop.f32.mrf.mxu0
      %4067 = vmatprep.mubr.bf16.mxu0 0
      %4068 = vmatmul.mubr.bf16.gmra.mxu0 %v3934
      %v4069 = vpop.f32.mrf.mxu0
      %v4070 = vadd.f32 0.0, %v4069
      %v4071 = vpop.f32.mrf.mxu0
      %v4072 = vpop.f32.mrf.mxu0
      %v4073 = vadd.f32 0.0, %v4072
      %v4074 = vpop.f32.mrf.mxu0
      %4075 = vmatprep.mubr.bf16.mxu0 0
      %4076 = vmatmul.mubr.bf16.gmra.mxu0 %v3935
      %v4077 = vpop.f32.mrf.mxu0
      %v4078 = vadd.f32 0.0, %v4077
      %v4079 = vpop.f32.mrf.mxu0
      %v4080 = vpop.f32.mrf.mxu0
      %v4081 = vadd.f32 0.0, %v4080
      %v4082 = vpop.f32.mrf.mxu0
      %4083 = vmatprep.mubr.bf16.mxu0 0
      %4084 = vmatmul.mubr.bf16.gmra.mxu0 %v3936
      %v4085 = vpop.f32.mrf.mxu0
      %v4086 = vadd.f32 0.0, %v4085
      %v4087 = vpop.f32.mrf.mxu0
      %v4088 = vpop.f32.mrf.mxu0
      %v4089 = vadd.f32 0.0, %v4088
      %v4090 = vpop.f32.mrf.mxu0
      %4091 = vmatprep.mubr.bf16.mxu0 0
      %4092 = vmatmul.mubr.bf16.gmra.mxu0 %v3937
      %v4093 = vpop.f32.mrf.mxu0
      %v4094 = vadd.f32 0.0, %v4093
      %v4095 = vpop.f32.mrf.mxu0
      %v4096 = vpop.f32.mrf.mxu0
      %v4097 = vadd.f32 0.0, %v4096
      %v4098 = vpop.f32.mrf.mxu0
      %4099 = vmatprep.mubr.bf16.mxu0 0
      %4100 = vmatmul.mubr.bf16.gmra.mxu0 %v3938
      %v4101 = vpop.f32.mrf.mxu0
      %v4102 = vadd.f32 0.0, %v4101
      %v4103 = vpop.f32.mrf.mxu0
      %v4104 = vpop.f32.mrf.mxu0
      %v4105 = vadd.f32 0.0, %v4104
      %v4106 = vpop.f32.mrf.mxu0
      %4107 = vmatprep.mubr.bf16.mxu0 0
      %4108 = vmatmul.mubr.bf16.gmra.mxu0 %v3939
      %v4109 = vpop.f32.mrf.mxu0
      %v4110 = vadd.f32 0.0, %v4109
      %v4111 = vpop.f32.mrf.mxu0
      %v4112 = vpop.f32.mrf.mxu0
      %v4113 = vadd.f32 0.0, %v4112
      %v4114 = vpop.f32.mrf.mxu0
      %4115 = vmatprep.mubr.bf16.mxu0 0
      %4116 = vmatmul.mubr.bf16.gmra.mxu0 %v3940
      %v4117 = vpop.f32.mrf.mxu0
      %v4118 = vadd.f32 0.0, %v4117
      %v4119 = vpop.f32.mrf.mxu0
      %v4120 = vpop.f32.mrf.mxu0
      %v4121 = vadd.f32 0.0, %v4120
      %v4122 = vpop.f32.mrf.mxu0
      %4123 = vmatprep.mubr.bf16.mxu0 0
      %4124 = vmatmul.mubr.bf16.gmra.mxu0 %v3941
      %v4125 = vpop.f32.mrf.mxu0
      %v4126 = vadd.f32 0.0, %v4125
      %v4127 = vpop.f32.mrf.mxu0
      %v4128 = vpop.f32.mrf.mxu0
      %v4129 = vadd.f32 0.0, %v4128
      %v4130 = vpop.f32.mrf.mxu0
      %4131 = vmatprep.mubr.bf16.mxu0 0
      %4132 = vmatmul.mubr.bf16.gmra.mxu0 %v3942
      %v4133 = vpop.f32.mrf.mxu0
      %v4134 = vadd.f32 0.0, %v4133
      %v4135 = vpop.f32.mrf.mxu0
      %v4136 = vpop.f32.mrf.mxu0
      %v4137 = vadd.f32 0.0, %v4136
      %v4138 = vpop.f32.mrf.mxu0
      %4139 = vmatprep.mubr.bf16.mxu0 0
      %4140 = vmatmul.mubr.bf16.gmra.mxu0 %v3943
      %v4141 = vpop.f32.mrf.mxu0
      %v4142 = vadd.f32 0.0, %v4141
      %v4143 = vpop.f32.mrf.mxu0
      %v4144 = vpop.f32.mrf.mxu0
      %v4145 = vadd.f32 0.0, %v4144
      %v4146 = vpop.f32.mrf.mxu0
      %4147 = vmatprep.mubr.bf16.mxu0 0
      %4148 = vmatmul.mubr.bf16.gmra.mxu0 %v3944
      %v4149 = vpop.f32.mrf.mxu0
      %v4150 = vadd.f32 0.0, %v4149
      %v4151 = vpop.f32.mrf.mxu0
      %v4152 = vpop.f32.mrf.mxu0
      %v4153 = vadd.f32 0.0, %v4152
      %v4154 = vpop.f32.mrf.mxu0
      %4155 = vmatprep.mubr.bf16.mxu0 0
      %4156 = vmatmul.mubr.bf16.gmra.mxu0 %v3945
      %v4157 = vpop.f32.mrf.mxu0
      %v4158 = vadd.f32 0.0, %v4157
      %v4159 = vpop.f32.mrf.mxu0
      %v4160 = vpop.f32.mrf.mxu0
      %v4161 = vadd.f32 0.0, %v4160
      %v4162 = vpop.f32.mrf.mxu0
      %4163 = vmatprep.mubr.bf16.mxu0 0
      %4164 = vmatmul.mubr.bf16.gmra.mxu0 %v3946
      %v4165 = vpop.f32.mrf.mxu0
      %v4166 = vadd.f32 0.0, %v4165
      %v4167 = vpop.f32.mrf.mxu0
      %v4168 = vpop.f32.mrf.mxu0
      %v4169 = vadd.f32 0.0, %v4168
      %v4170 = vpop.f32.mrf.mxu0
      %4171 = vdwg.mxu0
      %v4172 = vadd.f32 %v3674, %v4046
      %v4173 = vadd.f32 %v3675, %v4049
      %v4174 = vadd.f32 %v3676, %v4054
      %v4175 = vadd.f32 %v3677, %v4057
      %v4176 = vadd.f32 %v3678, %v4062
      %v4177 = vadd.f32 %v3679, %v4065
      %v4178 = vadd.f32 %v3680, %v4070
      %v4179 = vadd.f32 %v3681, %v4073
      %v4180 = vadd.f32 %v3682, %v4078
      %v4181 = vadd.f32 %v3683, %v4081
      %v4182 = vadd.f32 %v3684, %v4086
      %v4183 = vadd.f32 %v3685, %v4089
      %v4184 = vadd.f32 %v3686, %v4094
      %v4185 = vadd.f32 %v3687, %v4097
      %v4186 = vadd.f32 %v3688, %v4102
      %v4187 = vadd.f32 %v3689, %v4105
      %v4188 = vadd.f32 %v3690, %v4110
      %v4189 = vadd.f32 %v3691, %v4113
      %v4190 = vadd.f32 %v3692, %v4118
      %v4191 = vadd.f32 %v3693, %v4121
      %v4192 = vadd.f32 %v3694, %v4126
      %v4193 = vadd.f32 %v3695, %v4129
      %v4194 = vadd.f32 %v3696, %v4134
      %v4195 = vadd.f32 %v3697, %v4137
      %v4196 = vadd.f32 %v3698, %v4142
      %v4197 = vadd.f32 %v3699, %v4145
      %v4198 = vadd.f32 %v3700, %v4150
      %v4199 = vadd.f32 %v3701, %v4153
      %v4200 = vadd.f32 %v3702, %v4158
      %v4201 = vadd.f32 %v3703, %v4161
      %v4202 = vadd.f32 %v3704, %v4166
      %v4203 = vadd.f32 %v3705, %v4169
      %s4204 = scalar_lea.vmem [#allocation2], 24
      %v4205 = vld [vmem:[%s4204] sm:$0xf]
      %v4206 = vld [vmem:[%s4204 + $0x4] sm:$0xf]
      %v4207 = vld [vmem:[%s4204 + $0xc] sm:$0xf]
      %v4208 = vld [vmem:[%s4204 + $0x10] sm:$0xf]
      %v4209 = vld [vmem:[%s4204 + $0x18] sm:$0xf]
      %v4210 = vld [vmem:[%s4204 + $0x1c] sm:$0xf]
      %v4211 = vld [vmem:[%s4204 + $0x24] sm:$0xf]
      %v4212 = vld [vmem:[%s4204 + $0x28] sm:$0xf]
      %v4213 = vld [vmem:[%s4204 + $0x30] sm:$0xf]
      %v4214 = vld [vmem:[%s4204 + $0x34] sm:$0xf]
      %v4215 = vld [vmem:[%s4204 + $0x3c] sm:$0xf]
      %v4216 = vld [vmem:[%s4204 + $0x40] sm:$0xf]
      %v4217 = vld [vmem:[%s4204 + $0x48] sm:$0xf]
      %v4218 = vld [vmem:[%s4204 + $0x4c] sm:$0xf]
      %v4219 = vld [vmem:[%s4204 + $0x54] sm:$0xf]
      %v4220 = vld [vmem:[%s4204 + $0x58] sm:$0xf]
      %v4221 = vld [vmem:[%s4204 + $0x60] sm:$0xf]
      %v4222 = vld [vmem:[%s4204 + $0x64] sm:$0xf]
      %v4223 = vld [vmem:[%s4204 + $0x6c] sm:$0xf]
      %v4224 = vld [vmem:[%s4204 + $0x70] sm:$0xf]
      %v4225 = vld [vmem:[%s4204 + $0x78] sm:$0xf]
      %v4226 = vld [vmem:[%s4204 + $0x7c] sm:$0xf]
      %v4227 = vld [vmem:[%s4204 + $0x84] sm:$0xf]
      %v4228 = vld [vmem:[%s4204 + $0x88] sm:$0xf]
      %v4229 = vld [vmem:[%s4204 + $0x90] sm:$0xf]
      %v4230 = vld [vmem:[%s4204 + $0x94] sm:$0xf]
      %v4231 = vld [vmem:[%s4204 + $0x9c] sm:$0xf]
      %v4232 = vld [vmem:[%s4204 + $0xa0] sm:$0xf]
      %v4233 = vld [vmem:[%s4204 + $0xa8] sm:$0xf]
      %v4234 = vld [vmem:[%s4204 + $0xac] sm:$0xf]
      %v4235 = vld [vmem:[%s4204 + $0xb4] sm:$0xf]
      %v4236 = vld [vmem:[%s4204 + $0xb8] sm:$0xf]
      %s4237 = scalar_lea.vmem %s3, 384
      %v4238 = vld [vmem:[%s4237] sm:$0xf]
      %v4239 = vld [vmem:[%s4237 + $0x4] sm:$0xf]
      %v4240 = vld [vmem:[%s4237 + $0x8] sm:$0xf]
      %v4241 = vld [vmem:[%s4237 + $0xc] sm:$0xf]
      %v4242 = vld [vmem:[%s4237 + $0x10] sm:$0xf]
      %v4243 = vld [vmem:[%s4237 + $0x14] sm:$0xf]
      %v4244 = vld [vmem:[%s4237 + $0x18] sm:$0xf]
      %v4245 = vld [vmem:[%s4237 + $0x1c] sm:$0xf]
      %v4246 = vld [vmem:[%s4237 + $0x20] sm:$0xf]
      %v4247 = vld [vmem:[%s4237 + $0x24] sm:$0xf]
      %v4248 = vld [vmem:[%s4237 + $0x28] sm:$0xf]
      %v4249 = vld [vmem:[%s4237 + $0x2c] sm:$0xf]
      %v4250 = vld [vmem:[%s4237 + $0x30] sm:$0xf]
      %v4251 = vld [vmem:[%s4237 + $0x34] sm:$0xf]
      %v4252 = vld [vmem:[%s4237 + $0x38] sm:$0xf]
      %v4253 = vld [vmem:[%s4237 + $0x3c] sm:$0xf]
      %v4286 = vunpack.c.l.b16 %v4205
      %v4287 = vunpack.c.l.b16 %v4206
      %v4288 = vunpack.c.l.b16 %v4207
      %v4289 = vunpack.c.l.b16 %v4208
      %v4290 = vunpack.c.l.b16 %v4209
      %v4291 = vunpack.c.l.b16 %v4210
      %v4292 = vunpack.c.l.b16 %v4211
      %v4293 = vunpack.c.l.b16 %v4212
      %v4294 = vunpack.c.l.b16 %v4213
      %v4295 = vunpack.c.l.b16 %v4214
      %v4296 = vunpack.c.l.b16 %v4215
      %v4297 = vunpack.c.l.b16 %v4216
      %v4298 = vunpack.c.l.b16 %v4217
      %v4299 = vunpack.c.l.b16 %v4218
      %v4300 = vunpack.c.l.b16 %v4219
      %v4301 = vunpack.c.l.b16 %v4220
      %v4302 = vunpack.c.l.b16 %v4221
      %v4303 = vunpack.c.l.b16 %v4222
      %v4304 = vunpack.c.l.b16 %v4223
      %v4305 = vunpack.c.l.b16 %v4224
      %v4306 = vunpack.c.l.b16 %v4225
      %v4307 = vunpack.c.l.b16 %v4226
      %v4308 = vunpack.c.l.b16 %v4227
      %v4309 = vunpack.c.l.b16 %v4228
      %v4310 = vunpack.c.l.b16 %v4229
      %v4311 = vunpack.c.l.b16 %v4230
      %v4312 = vunpack.c.l.b16 %v4231
      %v4313 = vunpack.c.l.b16 %v4232
      %v4314 = vunpack.c.l.b16 %v4233
      %v4315 = vunpack.c.l.b16 %v4234
      %v4316 = vunpack.c.l.b16 %v4235
      %v4317 = vunpack.c.l.b16 %v4236
      %v4318 = vpack.c.b16 %v4287, %v4286
      %v4319 = vpack.c.b16 %v4289, %v4288
      %v4320 = vpack.c.b16 %v4291, %v4290
      %v4321 = vpack.c.b16 %v4293, %v4292
      %v4322 = vpack.c.b16 %v4295, %v4294
      %v4323 = vpack.c.b16 %v4297, %v4296
      %v4324 = vpack.c.b16 %v4299, %v4298
      %v4325 = vpack.c.b16 %v4301, %v4300
      %v4326 = vpack.c.b16 %v4303, %v4302
      %v4327 = vpack.c.b16 %v4305, %v4304
      %v4328 = vpack.c.b16 %v4307, %v4306
      %v4329 = vpack.c.b16 %v4309, %v4308
      %v4330 = vpack.c.b16 %v4311, %v4310
      %v4331 = vpack.c.b16 %v4313, %v4312
      %v4332 = vpack.c.b16 %v4315, %v4314
      %v4333 = vpack.c.b16 %v4317, %v4316
      %v4366 = vunpack.c.l.b16 %v4238
      %v4367 = vunpack.c.l.b16 %v4239
      %v4368 = vunpack.c.l.b16 %v4240
      %v4369 = vunpack.c.l.b16 %v4241
      %v4370 = vunpack.c.l.b16 %v4242
      %v4371 = vunpack.c.l.b16 %v4243
      %v4372 = vunpack.c.l.b16 %v4244
      %v4373 = vunpack.c.l.b16 %v4245
      %v4374 = vunpack.c.l.b16 %v4246
      %v4375 = vunpack.c.l.b16 %v4247
      %v4376 = vunpack.c.l.b16 %v4248
      %v4377 = vunpack.c.l.b16 %v4249
      %v4378 = vunpack.c.l.b16 %v4250
      %v4379 = vunpack.c.l.b16 %v4251
      %v4380 = vunpack.c.l.b16 %v4252
      %v4381 = vunpack.c.l.b16 %v4253
      %v4382 = vpack.c.b16 %v4367, %v4366
      %v4383 = vpack.c.b16 %v4369, %v4368
      %v4384 = vpack.c.b16 %v4371, %v4370
      %v4385 = vpack.c.b16 %v4373, %v4372
      %v4386 = vpack.c.b16 %v4375, %v4374
      %v4387 = vpack.c.b16 %v4377, %v4376
      %v4388 = vpack.c.b16 %v4379, %v4378
      %v4389 = vpack.c.b16 %v4381, %v4380
      %4398 = vmatprep.subr.bf16.mxu0 0
      %4399 = vmatpush1.bf16.msra.mxu0 %v4389
      %4400 = vmatprep.subr.bf16.mxu0 0
      %4401 = vmatpush1.bf16.msra.mxu0 %v4388
      %4402 = vmatprep.subr.bf16.mxu0 0
      %4403 = vmatpush1.bf16.msra.mxu0 %v4387
      %4404 = vmatprep.subr.bf16.mxu0 0
      %4405 = vmatpush1.bf16.msra.mxu0 %v4386
      %4406 = vmatprep.subr.bf16.mxu0 0
      %4407 = vmatpush1.bf16.msra.mxu0 %v4385
      %4408 = vmatprep.subr.bf16.mxu0 0
      %4409 = vmatpush1.bf16.msra.mxu0 %v4384
      %4410 = vmatprep.subr.bf16.mxu0 0
      %4411 = vmatpush1.bf16.msra.mxu0 %v4383
      %4412 = vmatprep.subr.bf16.mxu0 0
      %4413 = vmatpush1.bf16.msra.mxu0 %v4382
      %4414 = vmatprep.subr.bf16.mxu0 0
      %4415 = vmatpush2.bf16.msra.mxu0 0
      %4416 = vmatprep.subr.bf16.mxu0 0
      %4417 = vmatpush2.bf16.msra.mxu0 0
      %4418 = vmatprep.subr.bf16.mxu0 0
      %4419 = vmatpush2.bf16.msra.mxu0 0
      %4420 = vmatprep.subr.bf16.mxu0 0
      %4421 = vmatpush2.bf16.msra.mxu0 0
      %4422 = vmatprep.subr.bf16.mxu0 0
      %4423 = vmatpush2.bf16.msra.mxu0 0
      %4424 = vmatprep.subr.bf16.mxu0 0
      %4425 = vmatpush2.bf16.msra.mxu0 0
      %4426 = vmatprep.subr.bf16.mxu0 0
      %4427 = vmatpush2.bf16.msra.mxu0 0
      %4428 = vmatprep.subr.bf16.mxu0 0
      %4429 = vmatpush2.bf16.msra.mxu0 0
      %4430 = vmatprep.mubr.bf16.mxu0 0
      %4431 = vmatmul.mubr.bf16.gmra.mxu0 %v4318
      %v4432 = vpop.f32.mrf.mxu0
      %v4433 = vadd.f32 0.0, %v4432
      %v4434 = vpop.f32.mrf.mxu0
      %v4435 = vpop.f32.mrf.mxu0
      %v4436 = vadd.f32 0.0, %v4435
      %v4437 = vpop.f32.mrf.mxu0
      %4438 = vmatprep.mubr.bf16.mxu0 0
      %4439 = vmatmul.mubr.bf16.gmra.mxu0 %v4319
      %v4440 = vpop.f32.mrf.mxu0
      %v4441 = vadd.f32 0.0, %v4440
      %v4442 = vpop.f32.mrf.mxu0
      %v4443 = vpop.f32.mrf.mxu0
      %v4444 = vadd.f32 0.0, %v4443
      %v4445 = vpop.f32.mrf.mxu0
      %4446 = vmatprep.mubr.bf16.mxu0 0
      %4447 = vmatmul.mubr.bf16.gmra.mxu0 %v4320
      %v4448 = vpop.f32.mrf.mxu0
      %v4449 = vadd.f32 0.0, %v4448
      %v4450 = vpop.f32.mrf.mxu0
      %v4451 = vpop.f32.mrf.mxu0
      %v4452 = vadd.f32 0.0, %v4451
      %v4453 = vpop.f32.mrf.mxu0
      %4454 = vmatprep.mubr.bf16.mxu0 0
      %4455 = vmatmul.mubr.bf16.gmra.mxu0 %v4321
      %v4456 = vpop.f32.mrf.mxu0
      %v4457 = vadd.f32 0.0, %v4456
      %v4458 = vpop.f32.mrf.mxu0
      %v4459 = vpop.f32.mrf.mxu0
      %v4460 = vadd.f32 0.0, %v4459
      %v4461 = vpop.f32.mrf.mxu0
      %4462 = vmatprep.mubr.bf16.mxu0 0
      %4463 = vmatmul.mubr.bf16.gmra.mxu0 %v4322
      %v4464 = vpop.f32.mrf.mxu0
      %v4465 = vadd.f32 0.0, %v4464
      %v4466 = vpop.f32.mrf.mxu0
      %v4467 = vpop.f32.mrf.mxu0
      %v4468 = vadd.f32 0.0, %v4467
      %v4469 = vpop.f32.mrf.mxu0
      %4470 = vmatprep.mubr.bf16.mxu0 0
      %4471 = vmatmul.mubr.bf16.gmra.mxu0 %v4323
      %v4472 = vpop.f32.mrf.mxu0
      %v4473 = vadd.f32 0.0, %v4472
      %v4474 = vpop.f32.mrf.mxu0
      %v4475 = vpop.f32.mrf.mxu0
      %v4476 = vadd.f32 0.0, %v4475
      %v4477 = vpop.f32.mrf.mxu0
      %4478 = vmatprep.mubr.bf16.mxu0 0
      %4479 = vmatmul.mubr.bf16.gmra.mxu0 %v4324
      %v4480 = vpop.f32.mrf.mxu0
      %v4481 = vadd.f32 0.0, %v4480
      %v4482 = vpop.f32.mrf.mxu0
      %v4483 = vpop.f32.mrf.mxu0
      %v4484 = vadd.f32 0.0, %v4483
      %v4485 = vpop.f32.mrf.mxu0
      %4486 = vmatprep.mubr.bf16.mxu0 0
      %4487 = vmatmul.mubr.bf16.gmra.mxu0 %v4325
      %v4488 = vpop.f32.mrf.mxu0
      %v4489 = vadd.f32 0.0, %v4488
      %v4490 = vpop.f32.mrf.mxu0
      %v4491 = vpop.f32.mrf.mxu0
      %v4492 = vadd.f32 0.0, %v4491
      %v4493 = vpop.f32.mrf.mxu0
      %4494 = vmatprep.mubr.bf16.mxu0 0
      %4495 = vmatmul.mubr.bf16.gmra.mxu0 %v4326
      %v4496 = vpop.f32.mrf.mxu0
      %v4497 = vadd.f32 0.0, %v4496
      %v4498 = vpop.f32.mrf.mxu0
      %v4499 = vpop.f32.mrf.mxu0
      %v4500 = vadd.f32 0.0, %v4499
      %v4501 = vpop.f32.mrf.mxu0
      %4502 = vmatprep.mubr.bf16.mxu0 0
      %4503 = vmatmul.mubr.bf16.gmra.mxu0 %v4327
      %v4504 = vpop.f32.mrf.mxu0
      %v4505 = vadd.f32 0.0, %v4504
      %v4506 = vpop.f32.mrf.mxu0
      %v4507 = vpop.f32.mrf.mxu0
      %v4508 = vadd.f32 0.0, %v4507
      %v4509 = vpop.f32.mrf.mxu0
      %4510 = vmatprep.mubr.bf16.mxu0 0
      %4511 = vmatmul.mubr.bf16.gmra.mxu0 %v4328
      %v4512 = vpop.f32.mrf.mxu0
      %v4513 = vadd.f32 0.0, %v4512
      %v4514 = vpop.f32.mrf.mxu0
      %v4515 = vpop.f32.mrf.mxu0
      %v4516 = vadd.f32 0.0, %v4515
      %v4517 = vpop.f32.mrf.mxu0
      %4518 = vmatprep.mubr.bf16.mxu0 0
      %4519 = vmatmul.mubr.bf16.gmra.mxu0 %v4329
      %v4520 = vpop.f32.mrf.mxu0
      %v4521 = vadd.f32 0.0, %v4520
      %v4522 = vpop.f32.mrf.mxu0
      %v4523 = vpop.f32.mrf.mxu0
      %v4524 = vadd.f32 0.0, %v4523
      %v4525 = vpop.f32.mrf.mxu0
      %4526 = vmatprep.mubr.bf16.mxu0 0
      %4527 = vmatmul.mubr.bf16.gmra.mxu0 %v4330
      %v4528 = vpop.f32.mrf.mxu0
      %v4529 = vadd.f32 0.0, %v4528
      %v4530 = vpop.f32.mrf.mxu0
      %v4531 = vpop.f32.mrf.mxu0
      %v4532 = vadd.f32 0.0, %v4531
      %v4533 = vpop.f32.mrf.mxu0
      %4534 = vmatprep.mubr.bf16.mxu0 0
      %4535 = vmatmul.mubr.bf16.gmra.mxu0 %v4331
      %v4536 = vpop.f32.mrf.mxu0
      %v4537 = vadd.f32 0.0, %v4536
      %v4538 = vpop.f32.mrf.mxu0
      %v4539 = vpop.f32.mrf.mxu0
      %v4540 = vadd.f32 0.0, %v4539
      %v4541 = vpop.f32.mrf.mxu0
      %4542 = vmatprep.mubr.bf16.mxu0 0
      %4543 = vmatmul.mubr.bf16.gmra.mxu0 %v4332
      %v4544 = vpop.f32.mrf.mxu0
      %v4545 = vadd.f32 0.0, %v4544
      %v4546 = vpop.f32.mrf.mxu0
      %v4547 = vpop.f32.mrf.mxu0
      %v4548 = vadd.f32 0.0, %v4547
      %v4549 = vpop.f32.mrf.mxu0
      %4550 = vmatprep.mubr.bf16.mxu0 0
      %4551 = vmatmul.mubr.bf16.gmra.mxu0 %v4333
      %v4552 = vpop.f32.mrf.mxu0
      %v4553 = vadd.f32 0.0, %v4552
      %v4554 = vpop.f32.mrf.mxu0
      %v4555 = vpop.f32.mrf.mxu0
      %v4556 = vadd.f32 0.0, %v4555
      %v4557 = vpop.f32.mrf.mxu0
      %4558 = vdwg.mxu0
      %v4559 = vadd.f32 %v4172, %v4433
      %v4560 = vadd.f32 %v4173, %v4436
      %v4561 = vadd.f32 %v4174, %v4441
      %v4562 = vadd.f32 %v4175, %v4444
      %v4563 = vadd.f32 %v4176, %v4449
      %v4564 = vadd.f32 %v4177, %v4452
      %v4565 = vadd.f32 %v4178, %v4457
      %v4566 = vadd.f32 %v4179, %v4460
      %v4567 = vadd.f32 %v4180, %v4465
      %v4568 = vadd.f32 %v4181, %v4468
      %v4569 = vadd.f32 %v4182, %v4473
      %v4570 = vadd.f32 %v4183, %v4476
      %v4571 = vadd.f32 %v4184, %v4481
      %v4572 = vadd.f32 %v4185, %v4484
      %v4573 = vadd.f32 %v4186, %v4489
      %v4574 = vadd.f32 %v4187, %v4492
      %v4575 = vadd.f32 %v4188, %v4497
      %v4576 = vadd.f32 %v4189, %v4500
      %v4577 = vadd.f32 %v4190, %v4505
      %v4578 = vadd.f32 %v4191, %v4508
      %v4579 = vadd.f32 %v4192, %v4513
      %v4580 = vadd.f32 %v4193, %v4516
      %v4581 = vadd.f32 %v4194, %v4521
      %v4582 = vadd.f32 %v4195, %v4524
      %v4583 = vadd.f32 %v4196, %v4529
      %v4584 = vadd.f32 %v4197, %v4532
      %v4585 = vadd.f32 %v4198, %v4537
      %v4586 = vadd.f32 %v4199, %v4540
      %v4587 = vadd.f32 %v4200, %v4545
      %v4588 = vadd.f32 %v4201, %v4548
      %v4589 = vadd.f32 %v4202, %v4553
      %v4590 = vadd.f32 %v4203, %v4556
      %v4591 = vld [vmem:[%s4204] sm:$0xf]
      %v4592 = vld [vmem:[%s4204 + $0x4] sm:$0xf]
      %v4593 = vld [vmem:[%s4204 + $0x8] sm:$0x1]
      %v4594 = vld [vmem:[%s4204 + $0xc] sm:$0xf]
      %v4595 = vld [vmem:[%s4204 + $0x10] sm:$0xf]
      %v4596 = vld [vmem:[%s4204 + $0x14] sm:$0x1]
      %v4597 = vld [vmem:[%s4204 + $0x18] sm:$0xf]
      %v4598 = vld [vmem:[%s4204 + $0x1c] sm:$0xf]
      %v4599 = vld [vmem:[%s4204 + $0x20] sm:$0x1]
      %v4600 = vld [vmem:[%s4204 + $0x24] sm:$0xf]
      %v4601 = vld [vmem:[%s4204 + $0x28] sm:$0xf]
      %v4602 = vld [vmem:[%s4204 + $0x2c] sm:$0x1]
      %v4603 = vld [vmem:[%s4204 + $0x30] sm:$0xf]
      %v4604 = vld [vmem:[%s4204 + $0x34] sm:$0xf]
      %v4605 = vld [vmem:[%s4204 + $0x38] sm:$0x1]
      %v4606 = vld [vmem:[%s4204 + $0x3c] sm:$0xf]
      %v4607 = vld [vmem:[%s4204 + $0x40] sm:$0xf]
      %v4608 = vld [vmem:[%s4204 + $0x44] sm:$0x1]
      %v4609 = vld [vmem:[%s4204 + $0x48] sm:$0xf]
      %v4610 = vld [vmem:[%s4204 + $0x4c] sm:$0xf]
      %v4611 = vld [vmem:[%s4204 + $0x50] sm:$0x1]
      %v4612 = vld [vmem:[%s4204 + $0x54] sm:$0xf]
      %v4613 = vld [vmem:[%s4204 + $0x58] sm:$0xf]
      %v4614 = vld [vmem:[%s4204 + $0x5c] sm:$0x1]
      %v4615 = vld [vmem:[%s4204 + $0x60] sm:$0xf]
      %v4616 = vld [vmem:[%s4204 + $0x64] sm:$0xf]
      %v4617 = vld [vmem:[%s4204 + $0x68] sm:$0x1]
      %v4618 = vld [vmem:[%s4204 + $0x6c] sm:$0xf]
      %v4619 = vld [vmem:[%s4204 + $0x70] sm:$0xf]
      %v4620 = vld [vmem:[%s4204 + $0x74] sm:$0x1]
      %v4621 = vld [vmem:[%s4204 + $0x78] sm:$0xf]
      %v4622 = vld [vmem:[%s4204 + $0x7c] sm:$0xf]
      %v4623 = vld [vmem:[%s4204 + $0x80] sm:$0x1]
      %v4624 = vld [vmem:[%s4204 + $0x84] sm:$0xf]
      %v4625 = vld [vmem:[%s4204 + $0x88] sm:$0xf]
      %v4626 = vld [vmem:[%s4204 + $0x8c] sm:$0x1]
      %v4627 = vld [vmem:[%s4204 + $0x90] sm:$0xf]
      %v4628 = vld [vmem:[%s4204 + $0x94] sm:$0xf]
      %v4629 = vld [vmem:[%s4204 + $0x98] sm:$0x1]
      %v4630 = vld [vmem:[%s4204 + $0x9c] sm:$0xf]
      %v4631 = vld [vmem:[%s4204 + $0xa0] sm:$0xf]
      %v4632 = vld [vmem:[%s4204 + $0xa4] sm:$0x1]
      %v4633 = vld [vmem:[%s4204 + $0xa8] sm:$0xf]
      %v4634 = vld [vmem:[%s4204 + $0xac] sm:$0xf]
      %v4635 = vld [vmem:[%s4204 + $0xb0] sm:$0x1]
      %v4636 = vld [vmem:[%s4204 + $0xb4] sm:$0xf]
      %v4637 = vld [vmem:[%s4204 + $0xb8] sm:$0xf]
      %v4638 = vld [vmem:[%s4204 + $0xbc] sm:$0x1]
      %v4640 = vshrl.u32 %v4591, 16
      %v4642 = vrot.slane %v4640, 4
      %v4643 = vshll.u32 %v4591, 16
      %v4645 = vrot.slane %v4643, 5
      %v4646 = vor.u32 %v4642, %v4645
      %v4647 = vrot.slane %v4646, 4
      %v4649 = vshll.u32 %v4592, 16
      %v4651 = vrot.slane %v4649, 5
      %v4652 = vsel %vm1101, %v4647, %v4651
      %v4653 = vshrl.u32 %v4592, 16
      %v4655 = vrot.slane %v4653, 4
      %v4656 = vor.u32 %v4655, %v4651
      %v4657 = vrot.slane %v4656, 4
      %v4659 = vshll.u32 %v4593, 16
      %v4661 = vrot.slane %v4659, 5
      %v4662 = vsel %vm1101, %v4657, %v4661
      %v4664 = vshrl.u32 %v4594, 16
      %v4666 = vrot.slane %v4664, 4
      %v4667 = vshll.u32 %v4594, 16
      %v4669 = vrot.slane %v4667, 5
      %v4670 = vor.u32 %v4666, %v4669
      %v4671 = vrot.slane %v4670, 4
      %v4673 = vshll.u32 %v4595, 16
      %v4675 = vrot.slane %v4673, 5
      %v4676 = vsel %vm1101, %v4671, %v4675
      %v4677 = vshrl.u32 %v4595, 16
      %v4679 = vrot.slane %v4677, 4
      %v4680 = vor.u32 %v4679, %v4675
      %v4681 = vrot.slane %v4680, 4
      %v4683 = vshll.u32 %v4596, 16
      %v4685 = vrot.slane %v4683, 5
      %v4686 = vsel %vm1101, %v4681, %v4685
      %v4688 = vshrl.u32 %v4597, 16
      %v4690 = vrot.slane %v4688, 4
      %v4691 = vshll.u32 %v4597, 16
      %v4693 = vrot.slane %v4691, 5
      %v4694 = vor.u32 %v4690, %v4693
      %v4695 = vrot.slane %v4694, 4
      %v4697 = vshll.u32 %v4598, 16
      %v4699 = vrot.slane %v4697, 5
      %v4700 = vsel %vm1101, %v4695, %v4699
      %v4701 = vshrl.u32 %v4598, 16
      %v4703 = vrot.slane %v4701, 4
      %v4704 = vor.u32 %v4703, %v4699
      %v4705 = vrot.slane %v4704, 4
      %v4707 = vshll.u32 %v4599, 16
      %v4709 = vrot.slane %v4707, 5
      %v4710 = vsel %vm1101, %v4705, %v4709
      %v4712 = vshrl.u32 %v4600, 16
      %v4714 = vrot.slane %v4712, 4
      %v4715 = vshll.u32 %v4600, 16
      %v4717 = vrot.slane %v4715, 5
      %v4718 = vor.u32 %v4714, %v4717
      %v4719 = vrot.slane %v4718, 4
      %v4721 = vshll.u32 %v4601, 16
      %v4723 = vrot.slane %v4721, 5
      %v4724 = vsel %vm1101, %v4719, %v4723
      %v4725 = vshrl.u32 %v4601, 16
      %v4727 = vrot.slane %v4725, 4
      %v4728 = vor.u32 %v4727, %v4723
      %v4729 = vrot.slane %v4728, 4
      %v4731 = vshll.u32 %v4602, 16
      %v4733 = vrot.slane %v4731, 5
      %v4734 = vsel %vm1101, %v4729, %v4733
      %v4736 = vshrl.u32 %v4603, 16
      %v4738 = vrot.slane %v4736, 4
      %v4739 = vshll.u32 %v4603, 16
      %v4741 = vrot.slane %v4739, 5
      %v4742 = vor.u32 %v4738, %v4741
      %v4743 = vrot.slane %v4742, 4
      %v4745 = vshll.u32 %v4604, 16
      %v4747 = vrot.slane %v4745, 5
      %v4748 = vsel %vm1101, %v4743, %v4747
      %v4749 = vshrl.u32 %v4604, 16
      %v4751 = vrot.slane %v4749, 4
      %v4752 = vor.u32 %v4751, %v4747
      %v4753 = vrot.slane %v4752, 4
      %v4755 = vshll.u32 %v4605, 16
      %v4757 = vrot.slane %v4755, 5
      %v4758 = vsel %vm1101, %v4753, %v4757
      %v4760 = vshrl.u32 %v4606, 16
      %v4762 = vrot.slane %v4760, 4
      %v4763 = vshll.u32 %v4606, 16
      %v4765 = vrot.slane %v4763, 5
      %v4766 = vor.u32 %v4762, %v4765
      %v4767 = vrot.slane %v4766, 4
      %v4769 = vshll.u32 %v4607, 16
      %v4771 = vrot.slane %v4769, 5
      %v4772 = vsel %vm1101, %v4767, %v4771
      %v4773 = vshrl.u32 %v4607, 16
      %v4775 = vrot.slane %v4773, 4
      %v4776 = vor.u32 %v4775, %v4771
      %v4777 = vrot.slane %v4776, 4
      %v4779 = vshll.u32 %v4608, 16
      %v4781 = vrot.slane %v4779, 5
      %v4782 = vsel %vm1101, %v4777, %v4781
      %v4784 = vshrl.u32 %v4609, 16
      %v4786 = vrot.slane %v4784, 4
      %v4787 = vshll.u32 %v4609, 16
      %v4789 = vrot.slane %v4787, 5
      %v4790 = vor.u32 %v4786, %v4789
      %v4791 = vrot.slane %v4790, 4
      %v4793 = vshll.u32 %v4610, 16
      %v4795 = vrot.slane %v4793, 5
      %v4796 = vsel %vm1101, %v4791, %v4795
      %v4797 = vshrl.u32 %v4610, 16
      %v4799 = vrot.slane %v4797, 4
      %v4800 = vor.u32 %v4799, %v4795
      %v4801 = vrot.slane %v4800, 4
      %v4803 = vshll.u32 %v4611, 16
      %v4805 = vrot.slane %v4803, 5
      %v4806 = vsel %vm1101, %v4801, %v4805
      %v4808 = vshrl.u32 %v4612, 16
      %v4810 = vrot.slane %v4808, 4
      %v4811 = vshll.u32 %v4612, 16
      %v4813 = vrot.slane %v4811, 5
      %v4814 = vor.u32 %v4810, %v4813
      %v4815 = vrot.slane %v4814, 4
      %v4817 = vshll.u32 %v4613, 16
      %v4819 = vrot.slane %v4817, 5
      %v4820 = vsel %vm1101, %v4815, %v4819
      %v4821 = vshrl.u32 %v4613, 16
      %v4823 = vrot.slane %v4821, 4
      %v4824 = vor.u32 %v4823, %v4819
      %v4825 = vrot.slane %v4824, 4
      %v4827 = vshll.u32 %v4614, 16
      %v4829 = vrot.slane %v4827, 5
      %v4830 = vsel %vm1101, %v4825, %v4829
      %v4832 = vshrl.u32 %v4615, 16
      %v4834 = vrot.slane %v4832, 4
      %v4835 = vshll.u32 %v4615, 16
      %v4837 = vrot.slane %v4835, 5
      %v4838 = vor.u32 %v4834, %v4837
      %v4839 = vrot.slane %v4838, 4
      %v4841 = vshll.u32 %v4616, 16
      %v4843 = vrot.slane %v4841, 5
      %v4844 = vsel %vm1101, %v4839, %v4843
      %v4845 = vshrl.u32 %v4616, 16
      %v4847 = vrot.slane %v4845, 4
      %v4848 = vor.u32 %v4847, %v4843
      %v4849 = vrot.slane %v4848, 4
      %v4851 = vshll.u32 %v4617, 16
      %v4853 = vrot.slane %v4851, 5
      %v4854 = vsel %vm1101, %v4849, %v4853
      %v4856 = vshrl.u32 %v4618, 16
      %v4858 = vrot.slane %v4856, 4
      %v4859 = vshll.u32 %v4618, 16
      %v4861 = vrot.slane %v4859, 5
      %v4862 = vor.u32 %v4858, %v4861
      %v4863 = vrot.slane %v4862, 4
      %v4865 = vshll.u32 %v4619, 16
      %v4867 = vrot.slane %v4865, 5
      %v4868 = vsel %vm1101, %v4863, %v4867
      %v4869 = vshrl.u32 %v4619, 16
      %v4871 = vrot.slane %v4869, 4
      %v4872 = vor.u32 %v4871, %v4867
      %v4873 = vrot.slane %v4872, 4
      %v4875 = vshll.u32 %v4620, 16
      %v4877 = vrot.slane %v4875, 5
      %v4878 = vsel %vm1101, %v4873, %v4877
      %v4880 = vshrl.u32 %v4621, 16
      %v4882 = vrot.slane %v4880, 4
      %v4883 = vshll.u32 %v4621, 16
      %v4885 = vrot.slane %v4883, 5
      %v4886 = vor.u32 %v4882, %v4885
      %v4887 = vrot.slane %v4886, 4
      %v4889 = vshll.u32 %v4622, 16
      %v4891 = vrot.slane %v4889, 5
      %v4892 = vsel %vm1101, %v4887, %v4891
      %v4893 = vshrl.u32 %v4622, 16
      %v4895 = vrot.slane %v4893, 4
      %v4896 = vor.u32 %v4895, %v4891
      %v4897 = vrot.slane %v4896, 4
      %v4899 = vshll.u32 %v4623, 16
      %v4901 = vrot.slane %v4899, 5
      %v4902 = vsel %vm1101, %v4897, %v4901
      %v4904 = vshrl.u32 %v4624, 16
      %v4906 = vrot.slane %v4904, 4
      %v4907 = vshll.u32 %v4624, 16
      %v4909 = vrot.slane %v4907, 5
      %v4910 = vor.u32 %v4906, %v4909
      %v4911 = vrot.slane %v4910, 4
      %v4913 = vshll.u32 %v4625, 16
      %v4915 = vrot.slane %v4913, 5
      %v4916 = vsel %vm1101, %v4911, %v4915
      %v4917 = vshrl.u32 %v4625, 16
      %v4919 = vrot.slane %v4917, 4
      %v4920 = vor.u32 %v4919, %v4915
      %v4921 = vrot.slane %v4920, 4
      %v4923 = vshll.u32 %v4626, 16
      %v4925 = vrot.slane %v4923, 5
      %v4926 = vsel %vm1101, %v4921, %v4925
      %v4928 = vshrl.u32 %v4627, 16
      %v4930 = vrot.slane %v4928, 4
      %v4931 = vshll.u32 %v4627, 16
      %v4933 = vrot.slane %v4931, 5
      %v4934 = vor.u32 %v4930, %v4933
      %v4935 = vrot.slane %v4934, 4
      %v4937 = vshll.u32 %v4628, 16
      %v4939 = vrot.slane %v4937, 5
      %v4940 = vsel %vm1101, %v4935, %v4939
      %v4941 = vshrl.u32 %v4628, 16
      %v4943 = vrot.slane %v4941, 4
      %v4944 = vor.u32 %v4943, %v4939
      %v4945 = vrot.slane %v4944, 4
      %v4947 = vshll.u32 %v4629, 16
      %v4949 = vrot.slane %v4947, 5
      %v4950 = vsel %vm1101, %v4945, %v4949
      %v4952 = vshrl.u32 %v4630, 16
      %v4954 = vrot.slane %v4952, 4
      %v4955 = vshll.u32 %v4630, 16
      %v4957 = vrot.slane %v4955, 5
      %v4958 = vor.u32 %v4954, %v4957
      %v4959 = vrot.slane %v4958, 4
      %v4961 = vshll.u32 %v4631, 16
      %v4963 = vrot.slane %v4961, 5
      %v4964 = vsel %vm1101, %v4959, %v4963
      %v4965 = vshrl.u32 %v4631, 16
      %v4967 = vrot.slane %v4965, 4
      %v4968 = vor.u32 %v4967, %v4963
      %v4969 = vrot.slane %v4968, 4
      %v4971 = vshll.u32 %v4632, 16
      %v4973 = vrot.slane %v4971, 5
      %v4974 = vsel %vm1101, %v4969, %v4973
      %v4976 = vshrl.u32 %v4633, 16
      %v4978 = vrot.slane %v4976, 4
      %v4979 = vshll.u32 %v4633, 16
      %v4981 = vrot.slane %v4979, 5
      %v4982 = vor.u32 %v4978, %v4981
      %v4983 = vrot.slane %v4982, 4
      %v4985 = vshll.u32 %v4634, 16
      %v4987 = vrot.slane %v4985, 5
      %v4988 = vsel %vm1101, %v4983, %v4987
      %v4989 = vshrl.u32 %v4634, 16
      %v4991 = vrot.slane %v4989, 4
      %v4992 = vor.u32 %v4991, %v4987
      %v4993 = vrot.slane %v4992, 4
      %v4995 = vshll.u32 %v4635, 16
      %v4997 = vrot.slane %v4995, 5
      %v4998 = vsel %vm1101, %v4993, %v4997
      %v5000 = vshrl.u32 %v4636, 16
      %v5002 = vrot.slane %v5000, 4
      %v5003 = vshll.u32 %v4636, 16
      %v5005 = vrot.slane %v5003, 5
      %v5006 = vor.u32 %v5002, %v5005
      %v5007 = vrot.slane %v5006, 4
      %v5009 = vshll.u32 %v4637, 16
      %v5011 = vrot.slane %v5009, 5
      %v5012 = vsel %vm1101, %v5007, %v5011
      %v5013 = vshrl.u32 %v4637, 16
      %v5015 = vrot.slane %v5013, 4
      %v5016 = vor.u32 %v5015, %v5011
      %v5017 = vrot.slane %v5016, 4
      %v5019 = vshll.u32 %v4638, 16
      %v5021 = vrot.slane %v5019, 5
      %v5022 = vsel %vm1101, %v5017, %v5021
      %s5023 = scalar_lea.vmem %s3, 448
      %v5024 = vld [vmem:[%s5023] sm:$0xf]
      %v5025 = vld [vmem:[%s5023 + $0x4] sm:$0xf]
      %v5026 = vld [vmem:[%s5023 + $0x8] sm:$0xf]
      %v5027 = vld [vmem:[%s5023 + $0xc] sm:$0xf]
      %v5028 = vld [vmem:[%s5023 + $0x10] sm:$0xf]
      %v5029 = vld [vmem:[%s5023 + $0x14] sm:$0xf]
      %v5030 = vld [vmem:[%s5023 + $0x18] sm:$0xf]
      %v5031 = vld [vmem:[%s5023 + $0x1c] sm:$0xf]
      %v5032 = vld [vmem:[%s5023 + $0x20] sm:$0xf]
      %v5033 = vld [vmem:[%s5023 + $0x24] sm:$0xf]
      %v5034 = vld [vmem:[%s5023 + $0x28] sm:$0xf]
      %v5035 = vld [vmem:[%s5023 + $0x2c] sm:$0xf]
      %v5036 = vld [vmem:[%s5023 + $0x30] sm:$0xf]
      %v5037 = vld [vmem:[%s5023 + $0x34] sm:$0xf]
      %v5038 = vld [vmem:[%s5023 + $0x38] sm:$0xf]
      %v5039 = vld [vmem:[%s5023 + $0x3c] sm:$0xf]
      %v5040 = vunpack.c.l.b16 %v4652
      %v5041 = vunpack.c.l.b16 %v4662
      %v5042 = vunpack.c.l.b16 %v4676
      %v5043 = vunpack.c.l.b16 %v4686
      %v5044 = vunpack.c.l.b16 %v4700
      %v5045 = vunpack.c.l.b16 %v4710
      %v5046 = vunpack.c.l.b16 %v4724
      %v5047 = vunpack.c.l.b16 %v4734
      %v5048 = vunpack.c.l.b16 %v4748
      %v5049 = vunpack.c.l.b16 %v4758
      %v5050 = vunpack.c.l.b16 %v4772
      %v5051 = vunpack.c.l.b16 %v4782
      %v5052 = vunpack.c.l.b16 %v4796
      %v5053 = vunpack.c.l.b16 %v4806
      %v5054 = vunpack.c.l.b16 %v4820
      %v5055 = vunpack.c.l.b16 %v4830
      %v5056 = vunpack.c.l.b16 %v4844
      %v5057 = vunpack.c.l.b16 %v4854
      %v5058 = vunpack.c.l.b16 %v4868
      %v5059 = vunpack.c.l.b16 %v4878
      %v5060 = vunpack.c.l.b16 %v4892
      %v5061 = vunpack.c.l.b16 %v4902
      %v5062 = vunpack.c.l.b16 %v4916
      %v5063 = vunpack.c.l.b16 %v4926
      %v5064 = vunpack.c.l.b16 %v4940
      %v5065 = vunpack.c.l.b16 %v4950
      %v5066 = vunpack.c.l.b16 %v4964
      %v5067 = vunpack.c.l.b16 %v4974
      %v5068 = vunpack.c.l.b16 %v4988
      %v5069 = vunpack.c.l.b16 %v4998
      %v5070 = vunpack.c.l.b16 %v5012
      %v5071 = vunpack.c.l.b16 %v5022
      %v5072 = vpack.c.b16 %v5041, %v5040
      %v5073 = vpack.c.b16 %v5043, %v5042
      %v5074 = vpack.c.b16 %v5045, %v5044
      %v5075 = vpack.c.b16 %v5047, %v5046
      %v5076 = vpack.c.b16 %v5049, %v5048
      %v5077 = vpack.c.b16 %v5051, %v5050
      %v5078 = vpack.c.b16 %v5053, %v5052
      %v5079 = vpack.c.b16 %v5055, %v5054
      %v5080 = vpack.c.b16 %v5057, %v5056
      %v5081 = vpack.c.b16 %v5059, %v5058
      %v5082 = vpack.c.b16 %v5061, %v5060
      %v5083 = vpack.c.b16 %v5063, %v5062
      %v5084 = vpack.c.b16 %v5065, %v5064
      %v5085 = vpack.c.b16 %v5067, %v5066
      %v5086 = vpack.c.b16 %v5069, %v5068
      %v5087 = vpack.c.b16 %v5071, %v5070
      %v5120 = vunpack.c.l.b16 %v5024
      %v5121 = vunpack.c.l.b16 %v5025
      %v5122 = vunpack.c.l.b16 %v5026
      %v5123 = vunpack.c.l.b16 %v5027
      %v5124 = vunpack.c.l.b16 %v5028
      %v5125 = vunpack.c.l.b16 %v5029
      %v5126 = vunpack.c.l.b16 %v5030
      %v5127 = vunpack.c.l.b16 %v5031
      %v5128 = vunpack.c.l.b16 %v5032
      %v5129 = vunpack.c.l.b16 %v5033
      %v5130 = vunpack.c.l.b16 %v5034
      %v5131 = vunpack.c.l.b16 %v5035
      %v5132 = vunpack.c.l.b16 %v5036
      %v5133 = vunpack.c.l.b16 %v5037
      %v5134 = vunpack.c.l.b16 %v5038
      %v5135 = vunpack.c.l.b16 %v5039
      %v5136 = vpack.c.b16 %v5121, %v5120
      %v5137 = vpack.c.b16 %v5123, %v5122
      %v5138 = vpack.c.b16 %v5125, %v5124
      %v5139 = vpack.c.b16 %v5127, %v5126
      %v5140 = vpack.c.b16 %v5129, %v5128
      %v5141 = vpack.c.b16 %v5131, %v5130
      %v5142 = vpack.c.b16 %v5133, %v5132
      %v5143 = vpack.c.b16 %v5135, %v5134
      %5152 = vmatprep.subr.bf16.mxu0 0
      %5153 = vmatpush1.bf16.msra.mxu0 %v5143
      %5154 = vmatprep.subr.bf16.mxu0 0
      %5155 = vmatpush1.bf16.msra.mxu0 %v5142
      %5156 = vmatprep.subr.bf16.mxu0 0
      %5157 = vmatpush1.bf16.msra.mxu0 %v5141
      %5158 = vmatprep.subr.bf16.mxu0 0
      %5159 = vmatpush1.bf16.msra.mxu0 %v5140
      %5160 = vmatprep.subr.bf16.mxu0 0
      %5161 = vmatpush1.bf16.msra.mxu0 %v5139
      %5162 = vmatprep.subr.bf16.mxu0 0
      %5163 = vmatpush1.bf16.msra.mxu0 %v5138
      %5164 = vmatprep.subr.bf16.mxu0 0
      %5165 = vmatpush1.bf16.msra.mxu0 %v5137
      %5166 = vmatprep.subr.bf16.mxu0 0
      %5167 = vmatpush1.bf16.msra.mxu0 %v5136
      %5168 = vmatprep.subr.bf16.mxu0 0
      %5169 = vmatpush2.bf16.msra.mxu0 0
      %5170 = vmatprep.subr.bf16.mxu0 0
      %5171 = vmatpush2.bf16.msra.mxu0 0
      %5172 = vmatprep.subr.bf16.mxu0 0
      %5173 = vmatpush2.bf16.msra.mxu0 0
      %5174 = vmatprep.subr.bf16.mxu0 0
      %5175 = vmatpush2.bf16.msra.mxu0 0
      %5176 = vmatprep.subr.bf16.mxu0 0
      %5177 = vmatpush2.bf16.msra.mxu0 0
      %5178 = vmatprep.subr.bf16.mxu0 0
      %5179 = vmatpush2.bf16.msra.mxu0 0
      %5180 = vmatprep.subr.bf16.mxu0 0
      %5181 = vmatpush2.bf16.msra.mxu0 0
      %5182 = vmatprep.subr.bf16.mxu0 0
      %5183 = vmatpush2.bf16.msra.mxu0 0
      %5184 = vmatprep.mubr.bf16.mxu0 0
      %5185 = vmatmul.mubr.bf16.gmra.mxu0 %v5072
      %v5186 = vpop.f32.mrf.mxu0
      %v5187 = vadd.f32 0.0, %v5186
      %v5188 = vpop.f32.mrf.mxu0
      %v5189 = vpop.f32.mrf.mxu0
      %v5190 = vadd.f32 0.0, %v5189
      %v5191 = vpop.f32.mrf.mxu0
      %5192 = vmatprep.mubr.bf16.mxu0 0
      %5193 = vmatmul.mubr.bf16.gmra.mxu0 %v5073
      %v5194 = vpop.f32.mrf.mxu0
      %v5195 = vadd.f32 0.0, %v5194
      %v5196 = vpop.f32.mrf.mxu0
      %v5197 = vpop.f32.mrf.mxu0
      %v5198 = vadd.f32 0.0, %v5197
      %v5199 = vpop.f32.mrf.mxu0
      %5200 = vmatprep.mubr.bf16.mxu0 0
      %5201 = vmatmul.mubr.bf16.gmra.mxu0 %v5074
      %v5202 = vpop.f32.mrf.mxu0
      %v5203 = vadd.f32 0.0, %v5202
      %v5204 = vpop.f32.mrf.mxu0
      %v5205 = vpop.f32.mrf.mxu0
      %v5206 = vadd.f32 0.0, %v5205
      %v5207 = vpop.f32.mrf.mxu0
      %5208 = vmatprep.mubr.bf16.mxu0 0
      %5209 = vmatmul.mubr.bf16.gmra.mxu0 %v5075
      %v5210 = vpop.f32.mrf.mxu0
      %v5211 = vadd.f32 0.0, %v5210
      %v5212 = vpop.f32.mrf.mxu0
      %v5213 = vpop.f32.mrf.mxu0
      %v5214 = vadd.f32 0.0, %v5213
      %v5215 = vpop.f32.mrf.mxu0
      %5216 = vmatprep.mubr.bf16.mxu0 0
      %5217 = vmatmul.mubr.bf16.gmra.mxu0 %v5076
      %v5218 = vpop.f32.mrf.mxu0
      %v5219 = vadd.f32 0.0, %v5218
      %v5220 = vpop.f32.mrf.mxu0
      %v5221 = vpop.f32.mrf.mxu0
      %v5222 = vadd.f32 0.0, %v5221
      %v5223 = vpop.f32.mrf.mxu0
      %5224 = vmatprep.mubr.bf16.mxu0 0
      %5225 = vmatmul.mubr.bf16.gmra.mxu0 %v5077
      %v5226 = vpop.f32.mrf.mxu0
      %v5227 = vadd.f32 0.0, %v5226
      %v5228 = vpop.f32.mrf.mxu0
      %v5229 = vpop.f32.mrf.mxu0
      %v5230 = vadd.f32 0.0, %v5229
      %v5231 = vpop.f32.mrf.mxu0
      %5232 = vmatprep.mubr.bf16.mxu0 0
      %5233 = vmatmul.mubr.bf16.gmra.mxu0 %v5078
      %v5234 = vpop.f32.mrf.mxu0
      %v5235 = vadd.f32 0.0, %v5234
      %v5236 = vpop.f32.mrf.mxu0
      %v5237 = vpop.f32.mrf.mxu0
      %v5238 = vadd.f32 0.0, %v5237
      %v5239 = vpop.f32.mrf.mxu0
      %5240 = vmatprep.mubr.bf16.mxu0 0
      %5241 = vmatmul.mubr.bf16.gmra.mxu0 %v5079
      %v5242 = vpop.f32.mrf.mxu0
      %v5243 = vadd.f32 0.0, %v5242
      %v5244 = vpop.f32.mrf.mxu0
      %v5245 = vpop.f32.mrf.mxu0
      %v5246 = vadd.f32 0.0, %v5245
      %v5247 = vpop.f32.mrf.mxu0
      %5248 = vmatprep.mubr.bf16.mxu0 0
      %5249 = vmatmul.mubr.bf16.gmra.mxu0 %v5080
      %v5250 = vpop.f32.mrf.mxu0
      %v5251 = vadd.f32 0.0, %v5250
      %v5252 = vpop.f32.mrf.mxu0
      %v5253 = vpop.f32.mrf.mxu0
      %v5254 = vadd.f32 0.0, %v5253
      %v5255 = vpop.f32.mrf.mxu0
      %5256 = vmatprep.mubr.bf16.mxu0 0
      %5257 = vmatmul.mubr.bf16.gmra.mxu0 %v5081
      %v5258 = vpop.f32.mrf.mxu0
      %v5259 = vadd.f32 0.0, %v5258
      %v5260 = vpop.f32.mrf.mxu0
      %v5261 = vpop.f32.mrf.mxu0
      %v5262 = vadd.f32 0.0, %v5261
      %v5263 = vpop.f32.mrf.mxu0
      %5264 = vmatprep.mubr.bf16.mxu0 0
      %5265 = vmatmul.mubr.bf16.gmra.mxu0 %v5082
      %v5266 = vpop.f32.mrf.mxu0
      %v5267 = vadd.f32 0.0, %v5266
      %v5268 = vpop.f32.mrf.mxu0
      %v5269 = vpop.f32.mrf.mxu0
      %v5270 = vadd.f32 0.0, %v5269
      %v5271 = vpop.f32.mrf.mxu0
      %5272 = vmatprep.mubr.bf16.mxu0 0
      %5273 = vmatmul.mubr.bf16.gmra.mxu0 %v5083
      %v5274 = vpop.f32.mrf.mxu0
      %v5275 = vadd.f32 0.0, %v5274
      %v5276 = vpop.f32.mrf.mxu0
      %v5277 = vpop.f32.mrf.mxu0
      %v5278 = vadd.f32 0.0, %v5277
      %v5279 = vpop.f32.mrf.mxu0
      %5280 = vmatprep.mubr.bf16.mxu0 0
      %5281 = vmatmul.mubr.bf16.gmra.mxu0 %v5084
      %v5282 = vpop.f32.mrf.mxu0
      %v5283 = vadd.f32 0.0, %v5282
      %v5284 = vpop.f32.mrf.mxu0
      %v5285 = vpop.f32.mrf.mxu0
      %v5286 = vadd.f32 0.0, %v5285
      %v5287 = vpop.f32.mrf.mxu0
      %5288 = vmatprep.mubr.bf16.mxu0 0
      %5289 = vmatmul.mubr.bf16.gmra.mxu0 %v5085
      %v5290 = vpop.f32.mrf.mxu0
      %v5291 = vadd.f32 0.0, %v5290
      %v5292 = vpop.f32.mrf.mxu0
      %v5293 = vpop.f32.mrf.mxu0
      %v5294 = vadd.f32 0.0, %v5293
      %v5295 = vpop.f32.mrf.mxu0
      %5296 = vmatprep.mubr.bf16.mxu0 0
      %5297 = vmatmul.mubr.bf16.gmra.mxu0 %v5086
      %v5298 = vpop.f32.mrf.mxu0
      %v5299 = vadd.f32 0.0, %v5298
      %v5300 = vpop.f32.mrf.mxu0
      %v5301 = vpop.f32.mrf.mxu0
      %v5302 = vadd.f32 0.0, %v5301
      %v5303 = vpop.f32.mrf.mxu0
      %5304 = vmatprep.mubr.bf16.mxu0 0
      %5305 = vmatmul.mubr.bf16.gmra.mxu0 %v5087
      %v5306 = vpop.f32.mrf.mxu0
      %v5307 = vadd.f32 0.0, %v5306
      %v5308 = vpop.f32.mrf.mxu0
      %v5309 = vpop.f32.mrf.mxu0
      %v5310 = vadd.f32 0.0, %v5309
      %v5311 = vpop.f32.mrf.mxu0
      %5312 = vdwg.mxu0
      %v5313 = vadd.f32 %v4559, %v5187
      %v5314 = vadd.f32 %v4560, %v5190
      %v5315 = vadd.f32 %v4561, %v5195
      %v5316 = vadd.f32 %v4562, %v5198
      %v5317 = vadd.f32 %v4563, %v5203
      %v5318 = vadd.f32 %v4564, %v5206
      %v5319 = vadd.f32 %v4565, %v5211
      %v5320 = vadd.f32 %v4566, %v5214
      %v5321 = vadd.f32 %v4567, %v5219
      %v5322 = vadd.f32 %v4568, %v5222
      %v5323 = vadd.f32 %v4569, %v5227
      %v5324 = vadd.f32 %v4570, %v5230
      %v5325 = vadd.f32 %v4571, %v5235
      %v5326 = vadd.f32 %v4572, %v5238
      %v5327 = vadd.f32 %v4573, %v5243
      %v5328 = vadd.f32 %v4574, %v5246
      %v5329 = vadd.f32 %v4575, %v5251
      %v5330 = vadd.f32 %v4576, %v5254
      %v5331 = vadd.f32 %v4577, %v5259
      %v5332 = vadd.f32 %v4578, %v5262
      %v5333 = vadd.f32 %v4579, %v5267
      %v5334 = vadd.f32 %v4580, %v5270
      %v5335 = vadd.f32 %v4581, %v5275
      %v5336 = vadd.f32 %v4582, %v5278
      %v5337 = vadd.f32 %v4583, %v5283
      %v5338 = vadd.f32 %v4584, %v5286
      %v5339 = vadd.f32 %v4585, %v5291
      %v5340 = vadd.f32 %v4586, %v5294
      %v5341 = vadd.f32 %v4587, %v5299
      %v5342 = vadd.f32 %v4588, %v5302
      %v5343 = vadd.f32 %v4589, %v5307
      %v5344 = vadd.f32 %v4590, %v5310
      %v5345 = vld [vmem:[%s4204] sm:$0xe]
      %v5346 = vld [vmem:[%s4204 + $0xc] sm:$0xe]
      %v5347 = vld [vmem:[%s4204 + $0x18] sm:$0xe]
      %v5348 = vld [vmem:[%s4204 + $0x24] sm:$0xe]
      %v5349 = vld [vmem:[%s4204 + $0x30] sm:$0xe]
      %v5350 = vld [vmem:[%s4204 + $0x3c] sm:$0xe]
      %v5351 = vld [vmem:[%s4204 + $0x48] sm:$0xe]
      %v5352 = vld [vmem:[%s4204 + $0x54] sm:$0xe]
      %v5353 = vld [vmem:[%s4204 + $0x60] sm:$0xe]
      %v5354 = vld [vmem:[%s4204 + $0x6c] sm:$0xe]
      %v5355 = vld [vmem:[%s4204 + $0x78] sm:$0xe]
      %v5356 = vld [vmem:[%s4204 + $0x84] sm:$0xe]
      %v5357 = vld [vmem:[%s4204 + $0x90] sm:$0xe]
      %v5358 = vld [vmem:[%s4204 + $0x9c] sm:$0xe]
      %v5359 = vld [vmem:[%s4204 + $0xa8] sm:$0xe]
      %v5360 = vld [vmem:[%s4204 + $0xb4] sm:$0xe]
      %v5409 = vrot.slane %v5345, 5
      %v5410 = vrot.slane %v5409, 4
      %v5411 = vrot.slane %v4592, 5
      %v5412 = vsel %vm2131, %v5410, %v5411
      %v5413 = vrot.slane %v5411, 4
      %v5414 = vrot.slane %v4593, 5
      %v5415 = vsel %vm2131, %v5413, %v5414
      %v5416 = vrot.slane %v5346, 5
      %v5417 = vrot.slane %v5416, 4
      %v5418 = vrot.slane %v4595, 5
      %v5419 = vsel %vm2131, %v5417, %v5418
      %v5420 = vrot.slane %v5418, 4
      %v5421 = vrot.slane %v4596, 5
      %v5422 = vsel %vm2131, %v5420, %v5421
      %v5423 = vrot.slane %v5347, 5
      %v5424 = vrot.slane %v5423, 4
      %v5425 = vrot.slane %v4598, 5
      %v5426 = vsel %vm2131, %v5424, %v5425
      %v5427 = vrot.slane %v5425, 4
      %v5428 = vrot.slane %v4599, 5
      %v5429 = vsel %vm2131, %v5427, %v5428
      %v5430 = vrot.slane %v5348, 5
      %v5431 = vrot.slane %v5430, 4
      %v5432 = vrot.slane %v4601, 5
      %v5433 = vsel %vm2131, %v5431, %v5432
      %v5434 = vrot.slane %v5432, 4
      %v5435 = vrot.slane %v4602, 5
      %v5436 = vsel %vm2131, %v5434, %v5435
      %v5437 = vrot.slane %v5349, 5
      %v5438 = vrot.slane %v5437, 4
      %v5439 = vrot.slane %v4604, 5
      %v5440 = vsel %vm2131, %v5438, %v5439
      %v5441 = vrot.slane %v5439, 4
      %v5442 = vrot.slane %v4605, 5
      %v5443 = vsel %vm2131, %v5441, %v5442
      %v5444 = vrot.slane %v5350, 5
      %v5445 = vrot.slane %v5444, 4
      %v5446 = vrot.slane %v4607, 5
      %v5447 = vsel %vm2131, %v5445, %v5446
      %v5448 = vrot.slane %v5446, 4
      %v5449 = vrot.slane %v4608, 5
      %v5450 = vsel %vm2131, %v5448, %v5449
      %v5451 = vrot.slane %v5351, 5
      %v5452 = vrot.slane %v5451, 4
      %v5453 = vrot.slane %v4610, 5
      %v5454 = vsel %vm2131, %v5452, %v5453
      %v5455 = vrot.slane %v5453, 4
      %v5456 = vrot.slane %v4611, 5
      %v5457 = vsel %vm2131, %v5455, %v5456
      %v5458 = vrot.slane %v5352, 5
      %v5459 = vrot.slane %v5458, 4
      %v5460 = vrot.slane %v4613, 5
      %v5461 = vsel %vm2131, %v5459, %v5460
      %v5462 = vrot.slane %v5460, 4
      %v5463 = vrot.slane %v4614, 5
      %v5464 = vsel %vm2131, %v5462, %v5463
      %v5465 = vrot.slane %v5353, 5
      %v5466 = vrot.slane %v5465, 4
      %v5467 = vrot.slane %v4616, 5
      %v5468 = vsel %vm2131, %v5466, %v5467
      %v5469 = vrot.slane %v5467, 4
      %v5470 = vrot.slane %v4617, 5
      %v5471 = vsel %vm2131, %v5469, %v5470
      %v5472 = vrot.slane %v5354, 5
      %v5473 = vrot.slane %v5472, 4
      %v5474 = vrot.slane %v4619, 5
      %v5475 = vsel %vm2131, %v5473, %v5474
      %v5476 = vrot.slane %v5474, 4
      %v5477 = vrot.slane %v4620, 5
      %v5478 = vsel %vm2131, %v5476, %v5477
      %v5479 = vrot.slane %v5355, 5
      %v5480 = vrot.slane %v5479, 4
      %v5481 = vrot.slane %v4622, 5
      %v5482 = vsel %vm2131, %v5480, %v5481
      %v5483 = vrot.slane %v5481, 4
      %v5484 = vrot.slane %v4623, 5
      %v5485 = vsel %vm2131, %v5483, %v5484
      %v5486 = vrot.slane %v5356, 5
      %v5487 = vrot.slane %v5486, 4
      %v5488 = vrot.slane %v4625, 5
      %v5489 = vsel %vm2131, %v5487, %v5488
      %v5490 = vrot.slane %v5488, 4
      %v5491 = vrot.slane %v4626, 5
      %v5492 = vsel %vm2131, %v5490, %v5491
      %v5493 = vrot.slane %v5357, 5
      %v5494 = vrot.slane %v5493, 4
      %v5495 = vrot.slane %v4628, 5
      %v5496 = vsel %vm2131, %v5494, %v5495
      %v5497 = vrot.slane %v5495, 4
      %v5498 = vrot.slane %v4629, 5
      %v5499 = vsel %vm2131, %v5497, %v5498
      %v5500 = vrot.slane %v5358, 5
      %v5501 = vrot.slane %v5500, 4
      %v5502 = vrot.slane %v4631, 5
      %v5503 = vsel %vm2131, %v5501, %v5502
      %v5504 = vrot.slane %v5502, 4
      %v5505 = vrot.slane %v4632, 5
      %v5506 = vsel %vm2131, %v5504, %v5505
      %v5507 = vrot.slane %v5359, 5
      %v5508 = vrot.slane %v5507, 4
      %v5509 = vrot.slane %v4634, 5
      %v5510 = vsel %vm2131, %v5508, %v5509
      %v5511 = vrot.slane %v5509, 4
      %v5512 = vrot.slane %v4635, 5
      %v5513 = vsel %vm2131, %v5511, %v5512
      %v5514 = vrot.slane %v5360, 5
      %v5515 = vrot.slane %v5514, 4
      %v5516 = vrot.slane %v4637, 5
      %v5517 = vsel %vm2131, %v5515, %v5516
      %v5518 = vrot.slane %v5516, 4
      %v5519 = vrot.slane %v4638, 5
      %v5520 = vsel %vm2131, %v5518, %v5519
      %s5521 = scalar_lea.vmem %s3, 512
      %v5522 = vld [vmem:[%s5521] sm:$0xf]
      %v5523 = vld [vmem:[%s5521 + $0x4] sm:$0xf]
      %v5524 = vld [vmem:[%s5521 + $0x8] sm:$0xf]
      %v5525 = vld [vmem:[%s5521 + $0xc] sm:$0xf]
      %v5526 = vld [vmem:[%s5521 + $0x10] sm:$0xf]
      %v5527 = vld [vmem:[%s5521 + $0x14] sm:$0xf]
      %v5528 = vld [vmem:[%s5521 + $0x18] sm:$0xf]
      %v5529 = vld [vmem:[%s5521 + $0x1c] sm:$0xf]
      %v5530 = vld [vmem:[%s5521 + $0x20] sm:$0xf]
      %v5531 = vld [vmem:[%s5521 + $0x24] sm:$0xf]
      %v5532 = vld [vmem:[%s5521 + $0x28] sm:$0xf]
      %v5533 = vld [vmem:[%s5521 + $0x2c] sm:$0xf]
      %v5534 = vld [vmem:[%s5521 + $0x30] sm:$0xf]
      %v5535 = vld [vmem:[%s5521 + $0x34] sm:$0xf]
      %v5536 = vld [vmem:[%s5521 + $0x38] sm:$0xf]
      %v5537 = vld [vmem:[%s5521 + $0x3c] sm:$0xf]
      %v5538 = vunpack.c.l.b16 %v5412
      %v5539 = vunpack.c.l.b16 %v5415
      %v5540 = vunpack.c.l.b16 %v5419
      %v5541 = vunpack.c.l.b16 %v5422
      %v5542 = vunpack.c.l.b16 %v5426
      %v5543 = vunpack.c.l.b16 %v5429
      %v5544 = vunpack.c.l.b16 %v5433
      %v5545 = vunpack.c.l.b16 %v5436
      %v5546 = vunpack.c.l.b16 %v5440
      %v5547 = vunpack.c.l.b16 %v5443
      %v5548 = vunpack.c.l.b16 %v5447
      %v5549 = vunpack.c.l.b16 %v5450
      %v5550 = vunpack.c.l.b16 %v5454
      %v5551 = vunpack.c.l.b16 %v5457
      %v5552 = vunpack.c.l.b16 %v5461
      %v5553 = vunpack.c.l.b16 %v5464
      %v5554 = vunpack.c.l.b16 %v5468
      %v5555 = vunpack.c.l.b16 %v5471
      %v5556 = vunpack.c.l.b16 %v5475
      %v5557 = vunpack.c.l.b16 %v5478
      %v5558 = vunpack.c.l.b16 %v5482
      %v5559 = vunpack.c.l.b16 %v5485
      %v5560 = vunpack.c.l.b16 %v5489
      %v5561 = vunpack.c.l.b16 %v5492
      %v5562 = vunpack.c.l.b16 %v5496
      %v5563 = vunpack.c.l.b16 %v5499
      %v5564 = vunpack.c.l.b16 %v5503
      %v5565 = vunpack.c.l.b16 %v5506
      %v5566 = vunpack.c.l.b16 %v5510
      %v5567 = vunpack.c.l.b16 %v5513
      %v5568 = vunpack.c.l.b16 %v5517
      %v5569 = vunpack.c.l.b16 %v5520
      %v5570 = vpack.c.b16 %v5539, %v5538
      %v5571 = vpack.c.b16 %v5541, %v5540
      %v5572 = vpack.c.b16 %v5543, %v5542
      %v5573 = vpack.c.b16 %v5545, %v5544
      %v5574 = vpack.c.b16 %v5547, %v5546
      %v5575 = vpack.c.b16 %v5549, %v5548
      %v5576 = vpack.c.b16 %v5551, %v5550
      %v5577 = vpack.c.b16 %v5553, %v5552
      %v5578 = vpack.c.b16 %v5555, %v5554
      %v5579 = vpack.c.b16 %v5557, %v5556
      %v5580 = vpack.c.b16 %v5559, %v5558
      %v5581 = vpack.c.b16 %v5561, %v5560
      %v5582 = vpack.c.b16 %v5563, %v5562
      %v5583 = vpack.c.b16 %v5565, %v5564
      %v5584 = vpack.c.b16 %v5567, %v5566
      %v5585 = vpack.c.b16 %v5569, %v5568
      %v5618 = vunpack.c.l.b16 %v5522
      %v5619 = vunpack.c.l.b16 %v5523
      %v5620 = vunpack.c.l.b16 %v5524
      %v5621 = vunpack.c.l.b16 %v5525
      %v5622 = vunpack.c.l.b16 %v5526
      %v5623 = vunpack.c.l.b16 %v5527
      %v5624 = vunpack.c.l.b16 %v5528
      %v5625 = vunpack.c.l.b16 %v5529
      %v5626 = vunpack.c.l.b16 %v5530
      %v5627 = vunpack.c.l.b16 %v5531
      %v5628 = vunpack.c.l.b16 %v5532
      %v5629 = vunpack.c.l.b16 %v5533
      %v5630 = vunpack.c.l.b16 %v5534
      %v5631 = vunpack.c.l.b16 %v5535
      %v5632 = vunpack.c.l.b16 %v5536
      %v5633 = vunpack.c.l.b16 %v5537
      %v5634 = vpack.c.b16 %v5619, %v5618
      %v5635 = vpack.c.b16 %v5621, %v5620
      %v5636 = vpack.c.b16 %v5623, %v5622
      %v5637 = vpack.c.b16 %v5625, %v5624
      %v5638 = vpack.c.b16 %v5627, %v5626
      %v5639 = vpack.c.b16 %v5629, %v5628
      %v5640 = vpack.c.b16 %v5631, %v5630
      %v5641 = vpack.c.b16 %v5633, %v5632
      %5650 = vmatprep.subr.bf16.mxu0 0
      %5651 = vmatpush1.bf16.msra.mxu0 %v5641
      %5652 = vmatprep.subr.bf16.mxu0 0
      %5653 = vmatpush1.bf16.msra.mxu0 %v5640
      %5654 = vmatprep.subr.bf16.mxu0 0
      %5655 = vmatpush1.bf16.msra.mxu0 %v5639
      %5656 = vmatprep.subr.bf16.mxu0 0
      %5657 = vmatpush1.bf16.msra.mxu0 %v5638
      %5658 = vmatprep.subr.bf16.mxu0 0
      %5659 = vmatpush1.bf16.msra.mxu0 %v5637
      %5660 = vmatprep.subr.bf16.mxu0 0
      %5661 = vmatpush1.bf16.msra.mxu0 %v5636
      %5662 = vmatprep.subr.bf16.mxu0 0
      %5663 = vmatpush1.bf16.msra.mxu0 %v5635
      %5664 = vmatprep.subr.bf16.mxu0 0
      %5665 = vmatpush1.bf16.msra.mxu0 %v5634
      %5666 = vmatprep.subr.bf16.mxu0 0
      %5667 = vmatpush2.bf16.msra.mxu0 0
      %5668 = vmatprep.subr.bf16.mxu0 0
      %5669 = vmatpush2.bf16.msra.mxu0 0
      %5670 = vmatprep.subr.bf16.mxu0 0
      %5671 = vmatpush2.bf16.msra.mxu0 0
      %5672 = vmatprep.subr.bf16.mxu0 0
      %5673 = vmatpush2.bf16.msra.mxu0 0
      %5674 = vmatprep.subr.bf16.mxu0 0
      %5675 = vmatpush2.bf16.msra.mxu0 0
      %5676 = vmatprep.subr.bf16.mxu0 0
      %5677 = vmatpush2.bf16.msra.mxu0 0
      %5678 = vmatprep.subr.bf16.mxu0 0
      %5679 = vmatpush2.bf16.msra.mxu0 0
      %5680 = vmatprep.subr.bf16.mxu0 0
      %5681 = vmatpush2.bf16.msra.mxu0 0
      %5682 = vmatprep.mubr.bf16.mxu0 0
      %5683 = vmatmul.mubr.bf16.gmra.mxu0 %v5570
      %v5684 = vpop.f32.mrf.mxu0
      %v5685 = vadd.f32 0.0, %v5684
      %v5686 = vpop.f32.mrf.mxu0
      %v5687 = vpop.f32.mrf.mxu0
      %v5688 = vadd.f32 0.0, %v5687
      %v5689 = vpop.f32.mrf.mxu0
      %5690 = vmatprep.mubr.bf16.mxu0 0
      %5691 = vmatmul.mubr.bf16.gmra.mxu0 %v5571
      %v5692 = vpop.f32.mrf.mxu0
      %v5693 = vadd.f32 0.0, %v5692
      %v5694 = vpop.f32.mrf.mxu0
      %v5695 = vpop.f32.mrf.mxu0
      %v5696 = vadd.f32 0.0, %v5695
      %v5697 = vpop.f32.mrf.mxu0
      %5698 = vmatprep.mubr.bf16.mxu0 0
      %5699 = vmatmul.mubr.bf16.gmra.mxu0 %v5572
      %v5700 = vpop.f32.mrf.mxu0
      %v5701 = vadd.f32 0.0, %v5700
      %v5702 = vpop.f32.mrf.mxu0
      %v5703 = vpop.f32.mrf.mxu0
      %v5704 = vadd.f32 0.0, %v5703
      %v5705 = vpop.f32.mrf.mxu0
      %5706 = vmatprep.mubr.bf16.mxu0 0
      %5707 = vmatmul.mubr.bf16.gmra.mxu0 %v5573
      %v5708 = vpop.f32.mrf.mxu0
      %v5709 = vadd.f32 0.0, %v5708
      %v5710 = vpop.f32.mrf.mxu0
      %v5711 = vpop.f32.mrf.mxu0
      %v5712 = vadd.f32 0.0, %v5711
      %v5713 = vpop.f32.mrf.mxu0
      %5714 = vmatprep.mubr.bf16.mxu0 0
      %5715 = vmatmul.mubr.bf16.gmra.mxu0 %v5574
      %v5716 = vpop.f32.mrf.mxu0
      %v5717 = vadd.f32 0.0, %v5716
      %v5718 = vpop.f32.mrf.mxu0
      %v5719 = vpop.f32.mrf.mxu0
      %v5720 = vadd.f32 0.0, %v5719
      %v5721 = vpop.f32.mrf.mxu0
      %5722 = vmatprep.mubr.bf16.mxu0 0
      %5723 = vmatmul.mubr.bf16.gmra.mxu0 %v5575
      %v5724 = vpop.f32.mrf.mxu0
      %v5725 = vadd.f32 0.0, %v5724
      %v5726 = vpop.f32.mrf.mxu0
      %v5727 = vpop.f32.mrf.mxu0
      %v5728 = vadd.f32 0.0, %v5727
      %v5729 = vpop.f32.mrf.mxu0
      %5730 = vmatprep.mubr.bf16.mxu0 0
      %5731 = vmatmul.mubr.bf16.gmra.mxu0 %v5576
      %v5732 = vpop.f32.mrf.mxu0
      %v5733 = vadd.f32 0.0, %v5732
      %v5734 = vpop.f32.mrf.mxu0
      %v5735 = vpop.f32.mrf.mxu0
      %v5736 = vadd.f32 0.0, %v5735
      %v5737 = vpop.f32.mrf.mxu0
      %5738 = vmatprep.mubr.bf16.mxu0 0
      %5739 = vmatmul.mubr.bf16.gmra.mxu0 %v5577
      %v5740 = vpop.f32.mrf.mxu0
      %v5741 = vadd.f32 0.0, %v5740
      %v5742 = vpop.f32.mrf.mxu0
      %v5743 = vpop.f32.mrf.mxu0
      %v5744 = vadd.f32 0.0, %v5743
      %v5745 = vpop.f32.mrf.mxu0
      %5746 = vmatprep.mubr.bf16.mxu0 0
      %5747 = vmatmul.mubr.bf16.gmra.mxu0 %v5578
      %v5748 = vpop.f32.mrf.mxu0
      %v5749 = vadd.f32 0.0, %v5748
      %v5750 = vpop.f32.mrf.mxu0
      %v5751 = vpop.f32.mrf.mxu0
      %v5752 = vadd.f32 0.0, %v5751
      %v5753 = vpop.f32.mrf.mxu0
      %5754 = vmatprep.mubr.bf16.mxu0 0
      %5755 = vmatmul.mubr.bf16.gmra.mxu0 %v5579
      %v5756 = vpop.f32.mrf.mxu0
      %v5757 = vadd.f32 0.0, %v5756
      %v5758 = vpop.f32.mrf.mxu0
      %v5759 = vpop.f32.mrf.mxu0
      %v5760 = vadd.f32 0.0, %v5759
      %v5761 = vpop.f32.mrf.mxu0
      %5762 = vmatprep.mubr.bf16.mxu0 0
      %5763 = vmatmul.mubr.bf16.gmra.mxu0 %v5580
      %v5764 = vpop.f32.mrf.mxu0
      %v5765 = vadd.f32 0.0, %v5764
      %v5766 = vpop.f32.mrf.mxu0
      %v5767 = vpop.f32.mrf.mxu0
      %v5768 = vadd.f32 0.0, %v5767
      %v5769 = vpop.f32.mrf.mxu0
      %5770 = vmatprep.mubr.bf16.mxu0 0
      %5771 = vmatmul.mubr.bf16.gmra.mxu0 %v5581
      %v5772 = vpop.f32.mrf.mxu0
      %v5773 = vadd.f32 0.0, %v5772
      %v5774 = vpop.f32.mrf.mxu0
      %v5775 = vpop.f32.mrf.mxu0
      %v5776 = vadd.f32 0.0, %v5775
      %v5777 = vpop.f32.mrf.mxu0
      %5778 = vmatprep.mubr.bf16.mxu0 0
      %5779 = vmatmul.mubr.bf16.gmra.mxu0 %v5582
      %v5780 = vpop.f32.mrf.mxu0
      %v5781 = vadd.f32 0.0, %v5780
      %v5782 = vpop.f32.mrf.mxu0
      %v5783 = vpop.f32.mrf.mxu0
      %v5784 = vadd.f32 0.0, %v5783
      %v5785 = vpop.f32.mrf.mxu0
      %5786 = vmatprep.mubr.bf16.mxu0 0
      %5787 = vmatmul.mubr.bf16.gmra.mxu0 %v5583
      %v5788 = vpop.f32.mrf.mxu0
      %v5789 = vadd.f32 0.0, %v5788
      %v5790 = vpop.f32.mrf.mxu0
      %v5791 = vpop.f32.mrf.mxu0
      %v5792 = vadd.f32 0.0, %v5791
      %v5793 = vpop.f32.mrf.mxu0
      %5794 = vmatprep.mubr.bf16.mxu0 0
      %5795 = vmatmul.mubr.bf16.gmra.mxu0 %v5584
      %v5796 = vpop.f32.mrf.mxu0
      %v5797 = vadd.f32 0.0, %v5796
      %v5798 = vpop.f32.mrf.mxu0
      %v5799 = vpop.f32.mrf.mxu0
      %v5800 = vadd.f32 0.0, %v5799
      %v5801 = vpop.f32.mrf.mxu0
      %5802 = vmatprep.mubr.bf16.mxu0 0
      %5803 = vmatmul.mubr.bf16.gmra.mxu0 %v5585
      %v5804 = vpop.f32.mrf.mxu0
      %v5805 = vadd.f32 0.0, %v5804
      %v5806 = vpop.f32.mrf.mxu0
      %v5807 = vpop.f32.mrf.mxu0
      %v5808 = vadd.f32 0.0, %v5807
      %v5809 = vpop.f32.mrf.mxu0
      %5810 = vdwg.mxu0
      %v5811 = vadd.f32 %v5313, %v5685
      %v5812 = vadd.f32 %v5314, %v5688
      %v5813 = vadd.f32 %v5315, %v5693
      %v5814 = vadd.f32 %v5316, %v5696
      %v5815 = vadd.f32 %v5317, %v5701
      %v5816 = vadd.f32 %v5318, %v5704
      %v5817 = vadd.f32 %v5319, %v5709
      %v5818 = vadd.f32 %v5320, %v5712
      %v5819 = vadd.f32 %v5321, %v5717
      %v5820 = vadd.f32 %v5322, %v5720
      %v5821 = vadd.f32 %v5323, %v5725
      %v5822 = vadd.f32 %v5324, %v5728
      %v5823 = vadd.f32 %v5325, %v5733
      %v5824 = vadd.f32 %v5326, %v5736
      %v5825 = vadd.f32 %v5327, %v5741
      %v5826 = vadd.f32 %v5328, %v5744
      %v5827 = vadd.f32 %v5329, %v5749
      %v5828 = vadd.f32 %v5330, %v5752
      %v5829 = vadd.f32 %v5331, %v5757
      %v5830 = vadd.f32 %v5332, %v5760
      %v5831 = vadd.f32 %v5333, %v5765
      %v5832 = vadd.f32 %v5334, %v5768
      %v5833 = vadd.f32 %v5335, %v5773
      %v5834 = vadd.f32 %v5336, %v5776
      %v5835 = vadd.f32 %v5337, %v5781
      %v5836 = vadd.f32 %v5338, %v5784
      %v5837 = vadd.f32 %v5339, %v5789
      %v5838 = vadd.f32 %v5340, %v5792
      %v5839 = vadd.f32 %v5341, %v5797
      %v5840 = vadd.f32 %v5342, %v5800
      %v5841 = vadd.f32 %v5343, %v5805
      %v5842 = vadd.f32 %v5344, %v5808
      %v5843 = vpack.c.bf16 %v5812, %v5811
      %v5844 = vpack.c.bf16 %v5814, %v5813
      %v5845 = vpack.c.bf16 %v5816, %v5815
      %v5846 = vpack.c.bf16 %v5818, %v5817
      %v5847 = vpack.c.bf16 %v5820, %v5819
      %v5848 = vpack.c.bf16 %v5822, %v5821
      %v5849 = vpack.c.bf16 %v5824, %v5823
      %v5850 = vpack.c.bf16 %v5826, %v5825
      %v5851 = vpack.c.bf16 %v5828, %v5827
      %v5852 = vpack.c.bf16 %v5830, %v5829
      %v5853 = vpack.c.bf16 %v5832, %v5831
      %v5854 = vpack.c.bf16 %v5834, %v5833
      %v5855 = vpack.c.bf16 %v5836, %v5835
      %v5856 = vpack.c.bf16 %v5838, %v5837
      %v5857 = vpack.c.bf16 %v5840, %v5839
      %v5858 = vpack.c.bf16 %v5842, %v5841
      %v5875 = vunpack.c.l.b16 %v5843
      %v5876 = vunpack.c.h.b16 %v5843
      %v5877 = vunpack.c.l.b16 %v5844
      %v5878 = vunpack.c.h.b16 %v5844
      %v5879 = vunpack.c.l.b16 %v5845
      %v5880 = vunpack.c.h.b16 %v5845
      %v5881 = vunpack.c.l.b16 %v5846
      %v5882 = vunpack.c.h.b16 %v5846
      %v5883 = vunpack.c.l.b16 %v5847
      %v5884 = vunpack.c.h.b16 %v5847
      %v5885 = vunpack.c.l.b16 %v5848
      %v5886 = vunpack.c.h.b16 %v5848
      %v5887 = vunpack.c.l.b16 %v5849
      %v5888 = vunpack.c.h.b16 %v5849
      %v5889 = vunpack.c.l.b16 %v5850
      %v5890 = vunpack.c.h.b16 %v5850
      %v5891 = vunpack.c.l.b16 %v5851
      %v5892 = vunpack.c.h.b16 %v5851
      %v5893 = vunpack.c.l.b16 %v5852
      %v5894 = vunpack.c.h.b16 %v5852
      %v5895 = vunpack.c.l.b16 %v5853
      %v5896 = vunpack.c.h.b16 %v5853
      %v5897 = vunpack.c.l.b16 %v5854
      %v5898 = vunpack.c.h.b16 %v5854
      %v5899 = vunpack.c.l.b16 %v5855
      %v5900 = vunpack.c.h.b16 %v5855
      %v5901 = vunpack.c.l.b16 %v5856
      %v5902 = vunpack.c.h.b16 %v5856
      %v5903 = vunpack.c.l.b16 %v5857
      %v5904 = vunpack.c.h.b16 %v5857
      %v5905 = vunpack.c.l.b16 %v5858
      %v5906 = vunpack.c.h.b16 %v5858
      %v5907 = vpack.c.b16 %v5875, %v5875
      %v5908 = vpack.c.b16 %v5876, %v5876
      %v5909 = vpack.c.b16 %v5877, %v5877
      %v5910 = vpack.c.b16 %v5878, %v5878
      %v5911 = vpack.c.b16 %v5879, %v5879
      %v5912 = vpack.c.b16 %v5880, %v5880
      %v5913 = vpack.c.b16 %v5881, %v5881
      %v5914 = vpack.c.b16 %v5882, %v5882
      %v5915 = vpack.c.b16 %v5883, %v5883
      %v5916 = vpack.c.b16 %v5884, %v5884
      %v5917 = vpack.c.b16 %v5885, %v5885
      %v5918 = vpack.c.b16 %v5886, %v5886
      %v5919 = vpack.c.b16 %v5887, %v5887
      %v5920 = vpack.c.b16 %v5888, %v5888
      %v5921 = vpack.c.b16 %v5889, %v5889
      %v5922 = vpack.c.b16 %v5890, %v5890
      %v5923 = vpack.c.b16 %v5891, %v5891
      %v5924 = vpack.c.b16 %v5892, %v5892
      %v5925 = vpack.c.b16 %v5893, %v5893
      %v5926 = vpack.c.b16 %v5894, %v5894
      %v5927 = vpack.c.b16 %v5895, %v5895
      %v5928 = vpack.c.b16 %v5896, %v5896
      %v5929 = vpack.c.b16 %v5897, %v5897
      %v5930 = vpack.c.b16 %v5898, %v5898
      %v5931 = vpack.c.b16 %v5899, %v5899
      %v5932 = vpack.c.b16 %v5900, %v5900
      %v5933 = vpack.c.b16 %v5901, %v5901
      %v5934 = vpack.c.b16 %v5902, %v5902
      %v5935 = vpack.c.b16 %v5903, %v5903
      %v5936 = vpack.c.b16 %v5904, %v5904
      %v5937 = vpack.c.b16 %v5905, %v5905
      %v5938 = vpack.c.b16 %v5906, %v5906
      %5971 = vst [vmem:[%s262] sm:$0xf] %v5907
      %5972 = vst [vmem:[%s262 + $0x4] sm:$0xf] %v5908
      %5973 = vst [vmem:[%s262 + $0x8] sm:$0xf] %v5909
      %5974 = vst [vmem:[%s262 + $0xc] sm:$0xf] %v5910
      %5975 = vst [vmem:[%s262 + $0x10] sm:$0xf] %v5911
      %5976 = vst [vmem:[%s262 + $0x14] sm:$0xf] %v5912
      %5977 = vst [vmem:[%s262 + $0x18] sm:$0xf] %v5913
      %5978 = vst [vmem:[%s262 + $0x1c] sm:$0xf] %v5914
      %5979 = vst [vmem:[%s262 + $0x20] sm:$0xf] %v5915
      %5980 = vst [vmem:[%s262 + $0x24] sm:$0xf] %v5916
      %5981 = vst [vmem:[%s262 + $0x28] sm:$0xf] %v5917
      %5982 = vst [vmem:[%s262 + $0x2c] sm:$0xf] %v5918
      %5983 = vst [vmem:[%s262 + $0x30] sm:$0xf] %v5919
      %5984 = vst [vmem:[%s262 + $0x34] sm:$0xf] %v5920
      %5985 = vst [vmem:[%s262 + $0x38] sm:$0xf] %v5921
      %5986 = vst [vmem:[%s262 + $0x3c] sm:$0xf] %v5922
      %5987 = vst [vmem:[%s262 + $0x40] sm:$0xf] %v5923
      %5988 = vst [vmem:[%s262 + $0x44] sm:$0xf] %v5924
      %5989 = vst [vmem:[%s262 + $0x48] sm:$0xf] %v5925
      %5990 = vst [vmem:[%s262 + $0x4c] sm:$0xf] %v5926
      %5991 = vst [vmem:[%s262 + $0x50] sm:$0xf] %v5927
      %5992 = vst [vmem:[%s262 + $0x54] sm:$0xf] %v5928
      %5993 = vst [vmem:[%s262 + $0x58] sm:$0xf] %v5929
      %5994 = vst [vmem:[%s262 + $0x5c] sm:$0xf] %v5930
      %5995 = vst [vmem:[%s262 + $0x60] sm:$0xf] %v5931
      %5996 = vst [vmem:[%s262 + $0x64] sm:$0xf] %v5932
      %5997 = vst [vmem:[%s262 + $0x68] sm:$0xf] %v5933
      %5998 = vst [vmem:[%s262 + $0x6c] sm:$0xf] %v5934
      %5999 = vst [vmem:[%s262 + $0x70] sm:$0xf] %v5935
      %6000 = vst [vmem:[%s262 + $0x74] sm:$0xf] %v5936
      %6001 = vst [vmem:[%s262 + $0x78] sm:$0xf] %v5937
      %6002 = vst [vmem:[%s262 + $0x7c] sm:$0xf] %v5938
      %v6003 = vadd.f32 %v5811, %v5812
      %v6004 = vadd.f32 %v6003, %v5813
      %v6005 = vadd.f32 %v6004, %v5814
      %v6006 = vadd.f32 %v6005, %v5815
      %v6007 = vadd.f32 %v6006, %v5816
      %v6008 = vadd.f32 %v6007, %v5817
      %v6009 = vadd.f32 %v6008, %v5818
      %v6010 = vadd.f32 %v6009, %v5819
      %v6011 = vadd.f32 %v6010, %v5820
      %v6012 = vadd.f32 %v6011, %v5821
      %v6013 = vadd.f32 %v6012, %v5822
      %v6014 = vadd.f32 %v6013, %v5823
      %v6015 = vadd.f32 %v6014, %v5824
      %v6016 = vadd.f32 %v6015, %v5825
      %v6017 = vadd.f32 %v6016, %v5826
      %v6018 = vadd.f32 %v6017, %v5827
      %v6019 = vadd.f32 %v6018, %v5828
      %v6020 = vadd.f32 %v6019, %v5829
      %v6021 = vadd.f32 %v6020, %v5830
      %v6022 = vadd.f32 %v6021, %v5831
      %v6023 = vadd.f32 %v6022, %v5832
      %v6024 = vadd.f32 %v6023, %v5833
      %v6025 = vadd.f32 %v6024, %v5834
      %v6026 = vadd.f32 %v6025, %v5835
      %v6027 = vadd.f32 %v6026, %v5836
      %v6028 = vadd.f32 %v6027, %v5837
      %v6029 = vadd.f32 %v6028, %v5838
      %v6030 = vadd.f32 %v6029, %v5839
      %v6031 = vadd.f32 %v6030, %v5840
      %v6032 = vadd.f32 %v6031, %v5841
      %v6033 = vadd.f32 %v6032, %v5842
      %v6034 = vrot.slane %v6033, 4
      %v6035 = vadd.f32 %v6033, %v6034
      %v6036 = vrot.slane %v6035, 2
      %v6037 = vadd.f32 %v6035, %v6036
      %v6038 = vrot.slane %v6037, 1
      %v6039 = vadd.f32 %v6037, %v6038
      %6040 = vst [vmem:[%s265] sm:$0x1] %v6039
      %v6041 = vmul.f32 %v5811, %v5811
      %v6042 = vmul.f32 %v5812, %v5812
      %v6043 = vmul.f32 %v5813, %v5813
      %v6044 = vmul.f32 %v5814, %v5814
      %v6045 = vmul.f32 %v5815, %v5815
      %v6046 = vmul.f32 %v5816, %v5816
      %v6047 = vmul.f32 %v5817, %v5817
      %v6048 = vmul.f32 %v5818, %v5818
      %v6049 = vmul.f32 %v5819, %v5819
      %v6050 = vmul.f32 %v5820, %v5820
      %v6051 = vmul.f32 %v5821, %v5821
      %v6052 = vmul.f32 %v5822, %v5822
      %v6053 = vmul.f32 %v5823, %v5823
      %v6054 = vmul.f32 %v5824, %v5824
      %v6055 = vmul.f32 %v5825, %v5825
      %v6056 = vmul.f32 %v5826, %v5826
      %v6057 = vmul.f32 %v5827, %v5827
      %v6058 = vmul.f32 %v5828, %v5828
      %v6059 = vmul.f32 %v5829, %v5829
      %v6060 = vmul.f32 %v5830, %v5830
      %v6061 = vmul.f32 %v5831, %v5831
      %v6062 = vmul.f32 %v5832, %v5832
      %v6063 = vmul.f32 %v5833, %v5833
      %v6064 = vmul.f32 %v5834, %v5834
      %v6065 = vmul.f32 %v5835, %v5835
      %v6066 = vmul.f32 %v5836, %v5836
      %v6067 = vmul.f32 %v5837, %v5837
      %v6068 = vmul.f32 %v5838, %v5838
      %v6069 = vmul.f32 %v5839, %v5839
      %v6070 = vmul.f32 %v5840, %v5840
      %v6071 = vmul.f32 %v5841, %v5841
      %v6072 = vmul.f32 %v5842, %v5842
      %v6073 = vadd.f32 %v6041, %v6042
      %v6074 = vadd.f32 %v6073, %v6043
      %v6075 = vadd.f32 %v6074, %v6044
      %v6076 = vadd.f32 %v6075, %v6045
      %v6077 = vadd.f32 %v6076, %v6046
      %v6078 = vadd.f32 %v6077, %v6047
      %v6079 = vadd.f32 %v6078, %v6048
      %v6080 = vadd.f32 %v6079, %v6049
      %v6081 = vadd.f32 %v6080, %v6050
      %v6082 = vadd.f32 %v6081, %v6051
      %v6083 = vadd.f32 %v6082, %v6052
      %v6084 = vadd.f32 %v6083, %v6053
      %v6085 = vadd.f32 %v6084, %v6054
      %v6086 = vadd.f32 %v6085, %v6055
      %v6087 = vadd.f32 %v6086, %v6056
      %v6088 = vadd.f32 %v6087, %v6057
      %v6089 = vadd.f32 %v6088, %v6058
      %v6090 = vadd.f32 %v6089, %v6059
      %v6091 = vadd.f32 %v6090, %v6060
      %v6092 = vadd.f32 %v6091, %v6061
      %v6093 = vadd.f32 %v6092, %v6062
      %v6094 = vadd.f32 %v6093, %v6063
      %v6095 = vadd.f32 %v6094, %v6064
      %v6096 = vadd.f32 %v6095, %v6065
      %v6097 = vadd.f32 %v6096, %v6066
      %v6098 = vadd.f32 %v6097, %v6067
      %v6099 = vadd.f32 %v6098, %v6068
      %v6100 = vadd.f32 %v6099, %v6069
      %v6101 = vadd.f32 %v6100, %v6070
      %v6102 = vadd.f32 %v6101, %v6071
      %v6103 = vadd.f32 %v6102, %v6072
      %v6104 = vrot.slane %v6103, 4
      %v6105 = vadd.f32 %v6103, %v6104
      %v6106 = vrot.slane %v6105, 2
      %v6107 = vadd.f32 %v6105, %v6106
      %v6108 = vrot.slane %v6107, 1
      %v6109 = vadd.f32 %v6107, %v6108
      %6110 = vst [vmem:[%s268] sm:$0x1] %v6109
      %p6111 = scmp.lt.s32.totalorder %s18, 1
      %s6112 = scalar_select %p6111, %s18, 1
      %s6113 = smul.addr %s6112, 32
      %s6114 = smul.addr %s6113, 4
      %s6115 = scalar_lea.vmem %s4, %s6114
      %p6116 = scmp.lt.s32.totalorder %s18, 1
      %s6117 = scalar_select %p6116, %s18, 1
      %s6118 = scalar_lea.vmem %s5, %s6117
      %p6119 = scmp.lt.s32.totalorder %s18, 1
      %s6120 = scalar_select %p6119, %s18, 1
      %s6121 = scalar_lea.vmem %s6, %s6120
      // Predicated region
      $region37: #{bottleneck_forward.6} parent=35 // pred_check
        %p6122 = pneg %p125
      $region38: #{bottleneck_forward.6} parent=35 // pred_check_branch
        %6124 = sbr.rel (%p6122) target = $region40
      $region39: #{bottleneck_forward.6} parent=35 // pred_region
        _
      $region40: #{bottleneck_forward.6} parent=35 // pred_fallthru
        _
      // Predicated region
      $region41: #{bottleneck_forward.6} parent=35 // pred_check
        %p6125 = pneg %p151
      $region42: #{bottleneck_forward.6} parent=35 // pred_check_branch
        %6127 = sbr.rel (%p6125) target = $region44
      $region43: #{bottleneck_forward.6} parent=35 // pred_region
        _
      $region44: #{bottleneck_forward.6} parent=35 // pred_fallthru
        _
      // Predicated region
      $region45: #{bottleneck_forward.6} parent=35 // pred_check
        %p6128 = pneg %p177
      $region46: #{bottleneck_forward.6} parent=35 // pred_check_branch
        %6130 = sbr.rel (%p6128) target = $region48
      $region47: #{bottleneck_forward.6} parent=35 // pred_region
        _
      $region48: #{bottleneck_forward.6} parent=35 // pred_fallthru
        _
    $region36: #{bottleneck_forward.6} parent=5 // pred_fallthru
      _
    %p6131 = scmp.le.s32.totalorder 2, %s13
    // Predicated region
    $region49: #{bottleneck_forward.6} parent=5 // pred_check
      %p6132 = pneg %p6131
    $region50: #{bottleneck_forward.6} parent=5 // pred_check_branch
      %6134 = sbr.rel (%p6132) target = $region52
    $region51: #{bottleneck_forward.6} parent=5 // pred_region
      %s6135 = ssub.s32 %s13, 2
      // Predicated region
      $region53: #{bottleneck_forward.6} parent=51 // pred_check
        %p6136 = pneg %p131
      $region54: #{bottleneck_forward.6} parent=51 // pred_check_branch
        %6138 = sbr.rel (%p6136) target = $region56
      $region55: #{bottleneck_forward.6} parent=51 // pred_region
        %p6139 = scmp.lt.s32.totalorder %s19, 1
        %s6140 = scalar_select %p6139, %s19, 1
        %s6141 = smul.addr %s6140, 32
        %s6142 = smul.addr %s6141, 4
        %s6143 = scalar_lea.vmem %s4, %s6142
      $region56: #{bottleneck_forward.6} parent=51 // pred_fallthru
        _
      // Predicated region
      $region57: #{bottleneck_forward.6} parent=51 // pred_check
        %p6144 = pneg %p157
      $region58: #{bottleneck_forward.6} parent=51 // pred_check_branch
        %6146 = sbr.rel (%p6144) target = $region60
      $region59: #{bottleneck_forward.6} parent=51 // pred_region
        %p6147 = scmp.lt.s32.totalorder %s19, 1
        %s6148 = scalar_select %p6147, %s19, 1
        %s6149 = scalar_lea.vmem %s5, %s6148
      $region60: #{bottleneck_forward.6} parent=51 // pred_fallthru
        _
      // Predicated region
      $region61: #{bottleneck_forward.6} parent=51 // pred_check
        %p6150 = pneg %p183
      $region62: #{bottleneck_forward.6} parent=51 // pred_check_branch
        %6152 = sbr.rel (%p6150) target = $region64
      $region63: #{bottleneck_forward.6} parent=51 // pred_region
        %p6153 = scmp.lt.s32.totalorder %s19, 1
        %s6154 = scalar_select %p6153, %s19, 1
        %s6155 = scalar_lea.vmem %s6, %s6154
      $region64: #{bottleneck_forward.6} parent=51 // pred_fallthru
        _
    $region52: #{bottleneck_forward.6} parent=5 // pred_fallthru
      _
  $region6: #{bottleneck_forward.6} parent=0 // loop_footer
    %s17 = sadd.s32 1, %s13
  $region7: #{bottleneck_forward.6} parent=0 // loop_footer_branch
    %12 = sbr.rel target = $region3
  $region8: #{bottleneck_forward.6} parent=0 // loop_exit
    _

</llo_original>
